<compile_context>
chip_gen: v7x
topology: tpu7x:2x2x1
jax: 0.10.0
libtpu: 0.0.40
codegen_flags: <defaults>
</compile_context>

<pallas_src>
import math

import jax
import jax.numpy as jnp
from jax import lax
from jax.experimental import pallas as pl
from jax.experimental.pallas import tpu as pltpu


def _round_up(x, m):
    return ((x + m - 1) // m) * m


def feedback_head_forward(embeds, kp, *, hid_p, C_p, num_classes):
    """BiLSTM -> Linear -> softmax head (labels=None branch of FeedbackModel).

    embeds: (B, T, H) float32 backbone `last_hidden_state`.
    kp:     kernel-layout (padded / transposed / bf16) params from pack_params().
    Returns softmax probabilities (B, T, num_classes) in float32.
    """
    B, T, H = embeds.shape
    Gp = 4 * hid_p                       # per-direction gate width, mult. of 128

    # Batch chunking: 8 sublanes per chunk (the review's B_pad=8). If the batch
    # is ever split across multiple grid steps, use 16 so bf16 blocks stay
    # packed-tile aligned.
    b_chunk = 8 if B <= 8 else 16
    B_pad = _round_up(B, b_chunk)
    n_chunks = B_pad // b_chunk

    def kernel(x_ref, wih_ref, whh_ref, b_ref, wcf_ref, wcb_ref, bc_ref,
               out_ref, xpf, xpb, hbf, hbb):
        # ---- Input projection, BOTH directions: one lane-dense bf16 MXU matmul.
        x_flat = x_ref[...].reshape(T * b_chunk, H)
        xp = jnp.dot(x_flat, wih_ref[...],
                     preferred_element_type=jnp.float32) + b_ref[...]
        xpf[...] = xp[:, :Gp].reshape(T, b_chunk, Gp).astype(jnp.bfloat16)
        xpb[...] = xp[:, Gp:].reshape(T, b_chunk, Gp).astype(jnp.bfloat16)

        def lstm_gates(gates, c):
            # PyTorch nn.LSTM gate order i, f, g, o; 128-aligned lane slices.
            i = jax.nn.sigmoid(gates[:, 0 * hid_p:1 * hid_p])
            f = jax.nn.sigmoid(gates[:, 1 * hid_p:2 * hid_p])
            g = jnp.tanh(gates[:, 2 * hid_p:3 * hid_p])
            o = jax.nn.sigmoid(gates[:, 3 * hid_p:4 * hid_p])
            c_new = f * c + i * g
            return o * jnp.tanh(c_new), c_new

        # Fused fwd/bwd recurrence: ONE (B, 2*hid_p) x (2*hid_p, 8*hid_p) dot
        # per step (block-diagonal W_hh), gate math in f32.
        def step(s, carry):
            h_cat, c_f, c_b = carry
            g = jnp.dot(h_cat, whh_ref[...],     # ref read inside loop (no hoist)
                        preferred_element_type=jnp.float32)
            gf = g[:, :Gp] + xpf[s].astype(jnp.float32)           # fwd @ time s
            gb = g[:, Gp:] + xpb[T - 1 - s].astype(jnp.float32)   # bwd @ T-1-s
            h_f, c_f = lstm_gates(gf, c_f)
            h_b, c_b = lstm_gates(gb, c_b)
            hbf[s] = h_f.astype(jnp.bfloat16)
            hbb[T - 1 - s] = h_b.astype(jnp.bfloat16)
            h_cat = jnp.concatenate([h_f, h_b], axis=-1).astype(jnp.bfloat16)
            return h_cat, c_f, c_b

        carry0 = (jnp.zeros((b_chunk, 2 * hid_p), jnp.bfloat16),
                  jnp.zeros((b_chunk, hid_p), jnp.float32),
                  jnp.zeros((b_chunk, hid_p), jnp.float32))
        lax.fori_loop(0, T, step, carry0, unroll=min(T, 8))

        # ---- Classifier: two accumulating bf16 dots (no lane concat) + softmax.
        hf = hbf[...].reshape(T * b_chunk, hid_p)
        hb = hbb[...].reshape(T * b_chunk, hid_p)
        preds = (jnp.dot(hf, wcf_ref[...], preferred_element_type=jnp.float32)
                 + jnp.dot(hb, wcb_ref[...], preferred_element_type=jnp.float32)
                 + bc_ref[...])
        # Exact softmax (module output is probabilities); padded class lanes
        # carry a -1e30 bias -> exp == 0.
        m = jnp.max(preds, axis=-1, keepdims=True)
        e = jnp.exp(preds - m)
        probs = e / jnp.sum(e, axis=-1, keepdims=True)
        out_ref[...] = probs.reshape(T, b_chunk, C_p).astype(out_ref.dtype)

    # Time-major, batch-padded, bf16 input layout.
    # TODO(synk): ideally the backbone emits time-major embeddings so this
    #             wrapper-side transpose (extra XLA HBM pass) disappears.
    x_tm = jnp.pad(embeds, ((0, B_pad - B), (0, 0), (0, 0)))
    x_tm = jnp.transpose(x_tm, (1, 0, 2)).astype(jnp.bfloat16)   # (T, B_pad, H)

    # VMEM budget from actual shapes (inputs/outputs double-buffered + scratch).
    def nbytes(shape, dtype):
        return math.prod(shape) * jnp.dtype(dtype).itemsize

    weight_bytes = sum(nbytes(kp[k].shape, kp[k].dtype)
                       for k in ("wih", "whh", "b", "wc_f", "wc_b", "bc"))
    need = (2 * (nbytes((T, b_chunk, H), jnp.bfloat16) + weight_bytes
                 + nbytes((T, b_chunk, C_p), jnp.float32))
            + 2 * nbytes((T, b_chunk, Gp), jnp.bfloat16)
            + 2 * nbytes((T, b_chunk, hid_p), jnp.bfloat16))
    vmem_limit = int(min(max(2 * need, 32 * 1024 * 1024), 100 * 1024 * 1024))

    def full_spec(arr):
        nd = arr.ndim
        return pl.BlockSpec(arr.shape, lambda bi, _nd=nd: (0,) * _nd)

    out_tm = pl.pallas_call(
        kernel,
        out_shape=jax.ShapeDtypeStruct((T, B_pad, C_p), jnp.float32),
        grid_spec=pltpu.PrefetchScalarGridSpec(
            num_scalar_prefetch=0,
            grid=(n_chunks,),
            in_specs=[
                pl.BlockSpec((T, b_chunk, H), lambda bi: (0, bi, 0)),  # x
                full_spec(kp["wih"]), full_spec(kp["whh"]), full_spec(kp["b"]),
                full_spec(kp["wc_f"]), full_spec(kp["wc_b"]), full_spec(kp["bc"]),
            ],
            out_specs=pl.BlockSpec((T, b_chunk, C_p), lambda bi: (0, bi, 0)),
            scratch_shapes=[
                pltpu.VMEM((T, b_chunk, Gp), jnp.bfloat16),      # xproj fwd
                pltpu.VMEM((T, b_chunk, Gp), jnp.bfloat16),      # xproj bwd
                pltpu.VMEM((T, b_chunk, hid_p), jnp.bfloat16),   # fwd hidden hist
                pltpu.VMEM((T, b_chunk, hid_p), jnp.bfloat16),   # bwd hidden hist
            ]),
        compiler_params=pltpu.CompilerParams(
            dimension_semantics=("parallel",),
            vmem_limit_bytes=vmem_limit),
    )(x_tm, kp["wih"], kp["whh"], kp["b"], kp["wc_f"], kp["wc_b"], kp["bc"])

    # (T, B_pad, C_p) -> (B, T, num_classes)
    return out_tm.transpose(1, 0, 2)[:B, :, :num_classes]


def init_params(key, H, hid, C):
    """Deterministic init mirroring PyTorch nn.LSTM / nn.Linear defaults,
    stored in PyTorch layout."""
    ks = jax.random.split(key, 10)
    kb = 1.0 / math.sqrt(hid)
    cb = 1.0 / math.sqrt(2 * hid)

    def u(k, shape, bound):
        return jax.random.uniform(k, shape, jnp.float32, -bound, bound)

    return dict(
        w_ih_f=u(ks[0], (4 * hid, H), kb),
        w_hh_f=u(ks[1], (4 * hid, hid), kb),
        b_ih_f=u(ks[2], (4 * hid,), kb),
        b_hh_f=u(ks[3], (4 * hid,), kb),
        w_ih_b=u(ks[4], (4 * hid, H), kb),
        w_hh_b=u(ks[5], (4 * hid, hid), kb),
        b_ih_b=u(ks[6], (4 * hid,), kb),
        b_hh_b=u(ks[7], (4 * hid,), kb),
        w_cls=u(ks[8], (C, 2 * hid), cb),     # (num_classes, 2*hid)
        b_cls=u(ks[9], (C,), cb),
    )


def pack_params(p, *, H, hid, C, hid_p, C_p):
    """Transpose + zero-pad PyTorch-layout params into the fused kernel layout.

    Columns are direction-major: [fwd i f g o | bwd i f g o], each gate hid_p
    wide so every slice is 128-lane aligned. W_hh is block-diagonal over the
    lane-concatenated hidden state [h_f | h_b]. Zero weights/bias in padded
    hidden lanes keep them exactly 0 through the recurrence; padded classes get
    a -1e30 bias so softmax ignores them. MXU operands are returned in bf16;
    biases stay f32 (added after the f32-accumulated matmuls).
    """
    Gp = 4 * hid_p

    def one_dir(w_ih, w_hh, b_ih, b_hh):
        wih = jnp.zeros((H, Gp), jnp.float32)
        whh = jnp.zeros((hid_p, Gp), jnp.float32)
        b = jnp.zeros((Gp,), jnp.float32)
        bsum = b_ih + b_hh
        for k in range(4):
            wih = wih.at[:, k * hid_p:k * hid_p + hid].set(
                w_ih[k * hid:(k + 1) * hid, :].T)
            whh = whh.at[:hid, k * hid_p:k * hid_p + hid].set(
                w_hh[k * hid:(k + 1) * hid, :].T)
            b = b.at[k * hid_p:k * hid_p + hid].set(bsum[k * hid:(k + 1) * hid])
        return wih, whh, b

    wih_f, whh_f, b_f = one_dir(p["w_ih_f"], p["w_hh_f"], p["b_ih_f"], p["b_hh_f"])
    wih_b, whh_b, b_b = one_dir(p["w_ih_b"], p["w_hh_b"], p["b_ih_b"], p["b_hh_b"])

    wih = jnp.concatenate([wih_f, wih_b], axis=1)                    # (H, 2*Gp)
    whh = jnp.zeros((2 * hid_p, 2 * Gp), jnp.float32)                # block-diag
    whh = whh.at[:hid_p, :Gp].set(whh_f).at[hid_p:, Gp:].set(whh_b)
    b = jnp.concatenate([b_f, b_b])[None, :]                         # (1, 2*Gp)

    wc = p["w_cls"]          # (C, 2*hid): [:, :hid] -> fwd h, [:, hid:] -> bwd h
    wc_f = jnp.zeros((hid_p, C_p), jnp.float32).at[:hid, :C].set(wc[:, :hid].T)
    wc_b = jnp.zeros((hid_p, C_p), jnp.float32).at[:hid, :C].set(wc[:, hid:].T)
    bc = jnp.full((1, C_p), -1e30, jnp.float32).at[0, :C].set(p["b_cls"])

    return dict(
        wih=wih.astype(jnp.bfloat16),
        whh=whh.astype(jnp.bfloat16),
        b=b,                                 # f32
        wc_f=wc_f.astype(jnp.bfloat16),
        wc_b=wc_b.astype(jnp.bfloat16),
        bc=bc,                               # f32 (-1e30 on padded classes)
    )


def reference_forward(embeds, p):
    """Pure-JAX f32 reference for the labels=None branch of FeedbackModel.forward."""
    B, T, H = embeds.shape
    hid = p["w_hh_f"].shape[1]

    def run_dir(w_ih, w_hh, b_ih, b_hh, reverse):
        xs = jnp.swapaxes(embeds, 0, 1)        # (T, B, H)
        if reverse:
            xs = xs[::-1]

        def step(carry, xt):
            h, c = carry
            gates = xt @ w_ih.T + h @ w_hh.T + b_ih + b_hh
            i, f, g, o = jnp.split(gates, 4, axis=-1)
            c = jax.nn.sigmoid(f) * c + jax.nn.sigmoid(i) * jnp.tanh(g)
            h = jax.nn.sigmoid(o) * jnp.tanh(c)
            return (h, c), h

        init = (jnp.zeros((B, hid), jnp.float32),
                jnp.zeros((B, hid), jnp.float32))
        _, hs = lax.scan(step, init, xs)
        if reverse:
            hs = hs[::-1]
        return jnp.swapaxes(hs, 0, 1)          # (B, T, hid)

    h_f = run_dir(p["w_ih_f"], p["w_hh_f"], p["b_ih_f"], p["b_hh_f"], False)
    h_b = run_dir(p["w_ih_b"], p["w_hh_b"], p["b_ih_b"], p["b_hh_b"], True)
    h = jnp.concatenate([h_f, h_b], axis=-1)
    logits = h @ p["w_cls"].T + p["b_cls"]
    return jax.nn.softmax(logits, axis=-1)


if __name__ == "__main__":
    B, T, H = 2, 8, 32          # batch, sequence length, backbone hidden size
    hid = H // 2                # LSTM hidden size per direction
    C = 8                       # num_classes
    vocab = 64

    hid_p = _round_up(hid, 128)   # gate slices land on 128-lane boundaries
    C_p = _round_up(C, 128)       # lane-dense kernel output

    key = jax.random.PRNGKey(0)
    k_emb, k_ids, k_par = jax.random.split(key, 3)

    # Backbone stub: deterministic embedding table lookup (plain JAX glue).
    emb_table = jax.random.normal(k_emb, (vocab, H), jnp.float32) * 0.02
    input_ids = jax.random.randint(k_ids, (B, T), 0, vocab)
    attention_mask = jnp.ones((B, T), jnp.int32)   # all tokens valid (unused)
    embeds = emb_table[input_ids]                  # "last_hidden_state" (B,T,H)

    params = init_params(k_par, H, hid, C)
    kparams = pack_params(params, H=H, hid=hid, C=C, hid_p=hid_p, C_p=C_p)

    probs = feedback_head_forward(embeds, kparams, hid_p=hid_p, C_p=C_p,
                                  num_classes=C)
    probs = jax.block_until_ready(probs)

    assert probs.shape == (B, T, C)
    assert bool(jnp.all(jnp.isfinite(probs)))
    # Exact softmax normalization -> rows sum to 1 tightly.
    assert bool(jnp.allclose(jnp.sum(probs, axis=-1), 1.0, atol=1e-3))

    # Compare against a pure-JAX f32 reference of the same forward pass
    # (bf16 MXU operands -> bf16-class tolerance).
    ref = reference_forward(embeds, params)
    assert bool(jnp.allclose(probs, ref, atol=2e-2, rtol=2e-2))

    print("KERNEL_OK")
</pallas_src>

<mosaic_0001>
module attributes {stable_mosaic.version = 11 : i64} {
  func.func @kernel(%arg0: i32, %arg1: memref<8x8x32xbf16, #tpu.memory_space<vmem>>, %arg2: memref<32x1024xbf16, #tpu.memory_space<vmem>>, %arg3: memref<256x1024xbf16, #tpu.memory_space<vmem>>, %arg4: memref<1x1024xf32, #tpu.memory_space<vmem>>, %arg5: memref<128x128xbf16, #tpu.memory_space<vmem>>, %arg6: memref<128x128xbf16, #tpu.memory_space<vmem>>, %arg7: memref<1x128xf32, #tpu.memory_space<vmem>>, %arg8: memref<8x8x128xf32, #tpu.memory_space<vmem>>, %arg9: memref<8x8x512xbf16, #tpu.memory_space<vmem>>, %arg10: memref<8x8x512xbf16, #tpu.memory_space<vmem>>, %arg11: memref<8x8x128xbf16, #tpu.memory_space<vmem>>, %arg12: memref<8x8x128xbf16, #tpu.memory_space<vmem>>) attributes {dimension_semantics = [#tpu.dimension_semantics<parallel>], iteration_bounds = array<i64: 1>, scalar_prefetch = 0 : i64, scratch_operands = 4 : i64, tpu.core_type = #tpu.core_type<tc>, window_params = [{transform_indices = @transform_0, window_bounds = array<i64: 8, 8, 32>}, {pipeline_mode = #tpu.pipeline_mode<synchronous>, transform_indices = @transform_1, window_bounds = array<i64: 32, 1024>}, {pipeline_mode = #tpu.pipeline_mode<synchronous>, transform_indices = @transform_2, window_bounds = array<i64: 256, 1024>}, {pipeline_mode = #tpu.pipeline_mode<synchronous>, transform_indices = @transform_3, window_bounds = array<i64: 1, 1024>}, {pipeline_mode = #tpu.pipeline_mode<synchronous>, transform_indices = @transform_4, window_bounds = array<i64: 128, 128>}, {pipeline_mode = #tpu.pipeline_mode<synchronous>, transform_indices = @transform_5, window_bounds = array<i64: 128, 128>}, {pipeline_mode = #tpu.pipeline_mode<synchronous>, transform_indices = @transform_6, window_bounds = array<i64: 1, 128>}, {transform_indices = @transform_7, window_bounds = array<i64: 8, 8, 128>}]} {
    %c0 = arith.constant 0 : index
    %c0_0 = arith.constant 0 : index
    %c0_1 = arith.constant 0 : index
    %0 = vector.load %arg1[%c0, %c0_0, %c0_1] : memref<8x8x32xbf16, #tpu.memory_space<vmem>>, vector<8x8x32xbf16>
    %1 = vector.shape_cast %0 : vector<8x8x32xbf16> to vector<64x32xbf16>
    %c0_2 = arith.constant 0 : index
    %c0_3 = arith.constant 0 : index
    %2 = vector.load %arg2[%c0_2, %c0_3] : memref<32x1024xbf16, #tpu.memory_space<vmem>>, vector<32x1024xbf16>
    %cst = arith.constant dense<0.000000e+00> : vector<64x1024xf32>
    %3 = tpu.matmul %1, %2, %cst {dimension_numbers = #tpu.dot_dimension_numbers<[1], [0], [0], [1], [0, 0, 1, 1], [], []>} : vector<64x32xbf16>, vector<32x1024xbf16>, vector<64x1024xf32> -> vector<64x1024xf32>
    %c0_4 = arith.constant 0 : index
    %c0_5 = arith.constant 0 : index
    %4 = vector.load %arg4[%c0_4, %c0_5] : memref<1x1024xf32, #tpu.memory_space<vmem>>, vector<1x1024xf32>
    %5 = vector.broadcast %4 : vector<1x1024xf32> to vector<64x1024xf32>
    %6 = arith.addf %3, %5 : vector<64x1024xf32>
    %7 = vector.extract_strided_slice %6 {offsets = [0, 0], sizes = [64, 512], strides = [1, 1]} : vector<64x1024xf32> to vector<64x512xf32>
    %8 = vector.shape_cast %7 : vector<64x512xf32> to vector<8x8x512xf32>
    %9 = arith.truncf %8 : vector<8x8x512xf32> to vector<8x8x512xbf16>
    %c0_6 = arith.constant 0 : index
    %c0_7 = arith.constant 0 : index
    %c0_8 = arith.constant 0 : index
    %10 = vector.load %arg9[%c0_6, %c0_7, %c0_8] : memref<8x8x512xbf16, #tpu.memory_space<vmem>>, vector<8x8x512xbf16>
    tpu.vector_store %arg9[%c0_6, %c0_7, %c0_8], %9 {strides = array<i32>} : memref<8x8x512xbf16, #tpu.memory_space<vmem>>, vector<8x8x512xbf16>,
    %11 = vector.extract_strided_slice %6 {offsets = [0, 512], sizes = [64, 512], strides = [1, 1]} : vector<64x1024xf32> to vector<64x512xf32>
    %12 = vector.shape_cast %11 : vector<64x512xf32> to vector<8x8x512xf32>
    %13 = arith.truncf %12 : vector<8x8x512xf32> to vector<8x8x512xbf16>
    %c0_9 = arith.constant 0 : index
    %c0_10 = arith.constant 0 : index
    %c0_11 = arith.constant 0 : index
    %14 = vector.load %arg10[%c0_9, %c0_10, %c0_11] : memref<8x8x512xbf16, #tpu.memory_space<vmem>>, vector<8x8x512xbf16>
    tpu.vector_store %arg10[%c0_9, %c0_10, %c0_11], %13 {strides = array<i32>} : memref<8x8x512xbf16, #tpu.memory_space<vmem>>, vector<8x8x512xbf16>,
    %cst_12 = arith.constant 0.000000e+00 : bf16
    %15 = vector.broadcast %cst_12 : bf16 to vector<8x256xbf16>
    %cst_13 = arith.constant 0.000000e+00 : f32
    %16 = vector.broadcast %cst_13 : f32 to vector<8x128xf32>
    %cst_14 = arith.constant 0.000000e+00 : f32
    %17 = vector.broadcast %cst_14 : f32 to vector<8x128xf32>
    %c0_i32 = arith.constant 0 : i32
    %c0_15 = arith.constant 0 : index
    %c0_16 = arith.constant 0 : index
    %18 = vector.load %arg3[%c0_15, %c0_16] : memref<256x1024xbf16, #tpu.memory_space<vmem>>, vector<256x1024xbf16>
    %cst_17 = arith.constant dense<0.000000e+00> : vector<8x1024xf32>
    %19 = tpu.matmul %15, %18, %cst_17 {dimension_numbers = #tpu.dot_dimension_numbers<[1], [0], [0], [1], [0, 0, 1, 1], [], []>} : vector<8x256xbf16>, vector<256x1024xbf16>, vector<8x1024xf32> -> vector<8x1024xf32>
    %20 = vector.extract_strided_slice %19 {offsets = [0, 0], sizes = [8, 512], strides = [1, 1]} : vector<8x1024xf32> to vector<8x512xf32>
    %21 = arith.index_cast %c0_i32 : i32 to index
    %c0_18 = arith.constant 0 : index
    %c0_19 = arith.constant 0 : index
    %22 = vector.load %arg9[%21, %c0_18, %c0_19] : memref<8x8x512xbf16, #tpu.memory_space<vmem>>, vector<1x8x512xbf16>
    %23 = vector.shape_cast %22 : vector<1x8x512xbf16> to vector<8x512xbf16>
    %24 = arith.extf %23 : vector<8x512xbf16> to vector<8x512xf32>
    %25 = arith.addf %20, %24 : vector<8x512xf32>
    %26 = vector.extract_strided_slice %19 {offsets = [0, 512], sizes = [8, 512], strides = [1, 1]} : vector<8x1024xf32> to vector<8x512xf32>
    %c7_i32 = arith.constant 7 : i32
    %27 = arith.subi %c7_i32, %c0_i32 : i32
    %28 = arith.index_cast %27 : i32 to index
    %c0_20 = arith.constant 0 : index
    %c0_21 = arith.constant 0 : index
    %29 = vector.load %arg10[%28, %c0_20, %c0_21] : memref<8x8x512xbf16, #tpu.memory_space<vmem>>, vector<1x8x512xbf16>
    %30 = vector.shape_cast %29 : vector<1x8x512xbf16> to vector<8x512xbf16>
    %31 = arith.extf %30 : vector<8x512xbf16> to vector<8x512xf32>
    %32 = arith.addf %26, %31 : vector<8x512xf32>
    %33 = vector.extract_strided_slice %25 {offsets = [0, 0], sizes = [8, 128], strides = [1, 1]} : vector<8x512xf32> to vector<8x128xf32>
    %34 = arith.negf %33 : vector<8x128xf32>
    %35 = math.exp %34 : vector<8x128xf32>
    %cst_22 = arith.constant 1.000000e+00 : f32
    %36 = vector.broadcast %cst_22 : f32 to vector<8x128xf32>
    %37 = arith.addf %36, %35 : vector<8x128xf32>
    %38 = arith.divf %36, %37 : vector<8x128xf32>
    %39 = vector.extract_strided_slice %25 {offsets = [0, 128], sizes = [8, 128], strides = [1, 1]} : vector<8x512xf32> to vector<8x128xf32>
    %40 = arith.negf %39 : vector<8x128xf32>
    %41 = math.exp %40 : vector<8x128xf32>
    %cst_23 = arith.constant 1.000000e+00 : f32
    %42 = vector.broadcast %cst_23 : f32 to vector<8x128xf32>
    %43 = arith.addf %42, %41 : vector<8x128xf32>
    %44 = arith.divf %42, %43 : vector<8x128xf32>
    %45 = vector.extract_strided_slice %25 {offsets = [0, 256], sizes = [8, 128], strides = [1, 1]} : vector<8x512xf32> to vector<8x128xf32>
    %46 = math.tanh %45 : vector<8x128xf32>
    %47 = vector.extract_strided_slice %25 {offsets = [0, 384], sizes = [8, 128], strides = [1, 1]} : vector<8x512xf32> to vector<8x128xf32>
    %48 = arith.negf %47 : vector<8x128xf32>
    %49 = math.exp %48 : vector<8x128xf32>
    %cst_24 = arith.constant 1.000000e+00 : f32
    %50 = vector.broadcast %cst_24 : f32 to vector<8x128xf32>
    %51 = arith.addf %50, %49 : vector<8x128xf32>
    %52 = arith.divf %50, %51 : vector<8x128xf32>
    %53 = arith.mulf %44, %16 : vector<8x128xf32>
    %54 = arith.mulf %38, %46 : vector<8x128xf32>
    %55 = arith.addf %53, %54 : vector<8x128xf32>
    %56 = math.tanh %55 : vector<8x128xf32>
    %57 = arith.mulf %52, %56 : vector<8x128xf32>
    %58 = vector.extract_strided_slice %32 {offsets = [0, 0], sizes = [8, 128], strides = [1, 1]} : vector<8x512xf32> to vector<8x128xf32>
    %59 = arith.negf %58 : vector<8x128xf32>
    %60 = math.exp %59 : vector<8x128xf32>
    %cst_25 = arith.constant 1.000000e+00 : f32
    %61 = vector.broadcast %cst_25 : f32 to vector<8x128xf32>
    %62 = arith.addf %61, %60 : vector<8x128xf32>
    %63 = arith.divf %61, %62 : vector<8x128xf32>
    %64 = vector.extract_strided_slice %32 {offsets = [0, 128], sizes = [8, 128], strides = [1, 1]} : vector<8x512xf32> to vector<8x128xf32>
    %65 = arith.negf %64 : vector<8x128xf32>
    %66 = math.exp %65 : vector<8x128xf32>
    %cst_26 = arith.constant 1.000000e+00 : f32
    %67 = vector.broadcast %cst_26 : f32 to vector<8x128xf32>
    %68 = arith.addf %67, %66 : vector<8x128xf32>
    %69 = arith.divf %67, %68 : vector<8x128xf32>
    %70 = vector.extract_strided_slice %32 {offsets = [0, 256], sizes = [8, 128], strides = [1, 1]} : vector<8x512xf32> to vector<8x128xf32>
    %71 = math.tanh %70 : vector<8x128xf32>
    %72 = vector.extract_strided_slice %32 {offsets = [0, 384], sizes = [8, 128], strides = [1, 1]} : vector<8x512xf32> to vector<8x128xf32>
    %73 = arith.negf %72 : vector<8x128xf32>
    %74 = math.exp %73 : vector<8x128xf32>
    %cst_27 = arith.constant 1.000000e+00 : f32
    %75 = vector.broadcast %cst_27 : f32 to vector<8x128xf32>
    %76 = arith.addf %75, %74 : vector<8x128xf32>
    %77 = arith.divf %75, %76 : vector<8x128xf32>
    %78 = arith.mulf %69, %17 : vector<8x128xf32>
    %79 = arith.mulf %63, %71 : vector<8x128xf32>
    %80 = arith.addf %78, %79 : vector<8x128xf32>
    %81 = math.tanh %80 : vector<8x128xf32>
    %82 = arith.mulf %77, %81 : vector<8x128xf32>
    %83 = arith.truncf %57 : vector<8x128xf32> to vector<8x128xbf16>
    %84 = arith.index_cast %c0_i32 : i32 to index
    %c0_28 = arith.constant 0 : index
    %c0_29 = arith.constant 0 : index
    %85 = vector.load %arg11[%84, %c0_28, %c0_29] : memref<8x8x128xbf16, #tpu.memory_space<vmem>>, vector<1x8x128xbf16>
    %86 = vector.shape_cast %85 : vector<1x8x128xbf16> to vector<8x128xbf16>
    %87 = vector.shape_cast %83 : vector<8x128xbf16> to vector<1x8x128xbf16>
    tpu.vector_store %arg11[%84, %c0_28, %c0_29], %87 {strides = array<i32>} : memref<8x8x128xbf16, #tpu.memory_space<vmem>>, vector<1x8x128xbf16>,
    %88 = arith.truncf %82 : vector<8x128xf32> to vector<8x128xbf16>
    %c7_i32_30 = arith.constant 7 : i32
    %89 = arith.subi %c7_i32_30, %c0_i32 : i32
    %90 = arith.index_cast %89 : i32 to index
    %c0_31 = arith.constant 0 : index
    %c0_32 = arith.constant 0 : index
    %91 = vector.load %arg12[%90, %c0_31, %c0_32] : memref<8x8x128xbf16, #tpu.memory_space<vmem>>, vector<1x8x128xbf16>
    %92 = vector.shape_cast %91 : vector<1x8x128xbf16> to vector<8x128xbf16>
    %93 = vector.shape_cast %88 : vector<8x128xbf16> to vector<1x8x128xbf16>
    tpu.vector_store %arg12[%90, %c0_31, %c0_32], %93 {strides = array<i32>} : memref<8x8x128xbf16, #tpu.memory_space<vmem>>, vector<1x8x128xbf16>,
    %94 = tpu.concatenate %57, %82 in 1 : vector<8x128xf32>, vector<8x128xf32> -> vector<8x256xf32>
    %95 = arith.truncf %94 : vector<8x256xf32> to vector<8x256xbf16>
    %c1_i32 = arith.constant 1 : i32
    %c0_33 = arith.constant 0 : index
    %c0_34 = arith.constant 0 : index
    %96 = vector.load %arg3[%c0_33, %c0_34] : memref<256x1024xbf16, #tpu.memory_space<vmem>>, vector<256x1024xbf16>
    %cst_35 = arith.constant dense<0.000000e+00> : vector<8x1024xf32>
    %97 = tpu.matmul %95, %96, %cst_35 {dimension_numbers = #tpu.dot_dimension_numbers<[1], [0], [0], [1], [0, 0, 1, 1], [], []>} : vector<8x256xbf16>, vector<256x1024xbf16>, vector<8x1024xf32> -> vector<8x1024xf32>
    %98 = vector.extract_strided_slice %97 {offsets = [0, 0], sizes = [8, 512], strides = [1, 1]} : vector<8x1024xf32> to vector<8x512xf32>
    %99 = arith.index_cast %c1_i32 : i32 to index
    %c0_36 = arith.constant 0 : index
    %c0_37 = arith.constant 0 : index
    %100 = vector.load %arg9[%99, %c0_36, %c0_37] : memref<8x8x512xbf16, #tpu.memory_space<vmem>>, vector<1x8x512xbf16>
    %101 = vector.shape_cast %100 : vector<1x8x512xbf16> to vector<8x512xbf16>
    %102 = arith.extf %101 : vector<8x512xbf16> to vector<8x512xf32>
    %103 = arith.addf %98, %102 : vector<8x512xf32>
    %104 = vector.extract_strided_slice %97 {offsets = [0, 512], sizes = [8, 512], strides = [1, 1]} : vector<8x1024xf32> to vector<8x512xf32>
    %c7_i32_38 = arith.constant 7 : i32
    %105 = arith.subi %c7_i32_38, %c1_i32 : i32
    %106 = arith.index_cast %105 : i32 to index
    %c0_39 = arith.constant 0 : index
    %c0_40 = arith.constant 0 : index
    %107 = vector.load %arg10[%106, %c0_39, %c0_40] : memref<8x8x512xbf16, #tpu.memory_space<vmem>>, vector<1x8x512xbf16>
    %108 = vector.shape_cast %107 : vector<1x8x512xbf16> to vector<8x512xbf16>
    %109 = arith.extf %108 : vector<8x512xbf16> to vector<8x512xf32>
    %110 = arith.addf %104, %109 : vector<8x512xf32>
    %111 = vector.extract_strided_slice %103 {offsets = [0, 0], sizes = [8, 128], strides = [1, 1]} : vector<8x512xf32> to vector<8x128xf32>
    %112 = arith.negf %111 : vector<8x128xf32>
    %113 = math.exp %112 : vector<8x128xf32>
    %cst_41 = arith.constant 1.000000e+00 : f32
    %114 = vector.broadcast %cst_41 : f32 to vector<8x128xf32>
    %115 = arith.addf %114, %113 : vector<8x128xf32>
    %116 = arith.divf %114, %115 : vector<8x128xf32>
    %117 = vector.extract_strided_slice %103 {offsets = [0, 128], sizes = [8, 128], strides = [1, 1]} : vector<8x512xf32> to vector<8x128xf32>
    %118 = arith.negf %117 : vector<8x128xf32>
    %119 = math.exp %118 : vector<8x128xf32>
    %cst_42 = arith.constant 1.000000e+00 : f32
    %120 = vector.broadcast %cst_42 : f32 to vector<8x128xf32>
    %121 = arith.addf %120, %119 : vector<8x128xf32>
    %122 = arith.divf %120, %121 : vector<8x128xf32>
    %123 = vector.extract_strided_slice %103 {offsets = [0, 256], sizes = [8, 128], strides = [1, 1]} : vector<8x512xf32> to vector<8x128xf32>
    %124 = math.tanh %123 : vector<8x128xf32>
    %125 = vector.extract_strided_slice %103 {offsets = [0, 384], sizes = [8, 128], strides = [1, 1]} : vector<8x512xf32> to vector<8x128xf32>
    %126 = arith.negf %125 : vector<8x128xf32>
    %127 = math.exp %126 : vector<8x128xf32>
    %cst_43 = arith.constant 1.000000e+00 : f32
    %128 = vector.broadcast %cst_43 : f32 to vector<8x128xf32>
    %129 = arith.addf %128, %127 : vector<8x128xf32>
    %130 = arith.divf %128, %129 : vector<8x128xf32>
    %131 = arith.mulf %122, %55 : vector<8x128xf32>
    %132 = arith.mulf %116, %124 : vector<8x128xf32>
    %133 = arith.addf %131, %132 : vector<8x128xf32>
    %134 = math.tanh %133 : vector<8x128xf32>
    %135 = arith.mulf %130, %134 : vector<8x128xf32>
    %136 = vector.extract_strided_slice %110 {offsets = [0, 0], sizes = [8, 128], strides = [1, 1]} : vector<8x512xf32> to vector<8x128xf32>
    %137 = arith.negf %136 : vector<8x128xf32>
    %138 = math.exp %137 : vector<8x128xf32>
    %cst_44 = arith.constant 1.000000e+00 : f32
    %139 = vector.broadcast %cst_44 : f32 to vector<8x128xf32>
    %140 = arith.addf %139, %138 : vector<8x128xf32>
    %141 = arith.divf %139, %140 : vector<8x128xf32>
    %142 = vector.extract_strided_slice %110 {offsets = [0, 128], sizes = [8, 128], strides = [1, 1]} : vector<8x512xf32> to vector<8x128xf32>
    %143 = arith.negf %142 : vector<8x128xf32>
    %144 = math.exp %143 : vector<8x128xf32>
    %cst_45 = arith.constant 1.000000e+00 : f32
    %145 = vector.broadcast %cst_45 : f32 to vector<8x128xf32>
    %146 = arith.addf %145, %144 : vector<8x128xf32>
    %147 = arith.divf %145, %146 : vector<8x128xf32>
    %148 = vector.extract_strided_slice %110 {offsets = [0, 256], sizes = [8, 128], strides = [1, 1]} : vector<8x512xf32> to vector<8x128xf32>
    %149 = math.tanh %148 : vector<8x128xf32>
    %150 = vector.extract_strided_slice %110 {offsets = [0, 384], sizes = [8, 128], strides = [1, 1]} : vector<8x512xf32> to vector<8x128xf32>
    %151 = arith.negf %150 : vector<8x128xf32>
    %152 = math.exp %151 : vector<8x128xf32>
    %cst_46 = arith.constant 1.000000e+00 : f32
    %153 = vector.broadcast %cst_46 : f32 to vector<8x128xf32>
    %154 = arith.addf %153, %152 : vector<8x128xf32>
    %155 = arith.divf %153, %154 : vector<8x128xf32>
    %156 = arith.mulf %147, %80 : vector<8x128xf32>
    %157 = arith.mulf %141, %149 : vector<8x128xf32>
    %158 = arith.addf %156, %157 : vector<8x128xf32>
    %159 = math.tanh %158 : vector<8x128xf32>
    %160 = arith.mulf %155, %159 : vector<8x128xf32>
    %161 = arith.truncf %135 : vector<8x128xf32> to vector<8x128xbf16>
    %162 = arith.index_cast %c1_i32 : i32 to index
    %c0_47 = arith.constant 0 : index
    %c0_48 = arith.constant 0 : index
    %163 = vector.load %arg11[%162, %c0_47, %c0_48] : memref<8x8x128xbf16, #tpu.memory_space<vmem>>, vector<1x8x128xbf16>
    %164 = vector.shape_cast %163 : vector<1x8x128xbf16> to vector<8x128xbf16>
    %165 = vector.shape_cast %161 : vector<8x128xbf16> to vector<1x8x128xbf16>
    tpu.vector_store %arg11[%162, %c0_47, %c0_48], %165 {strides = array<i32>} : memref<8x8x128xbf16, #tpu.memory_space<vmem>>, vector<1x8x128xbf16>,
    %166 = arith.truncf %160 : vector<8x128xf32> to vector<8x128xbf16>
    %c7_i32_49 = arith.constant 7 : i32
    %167 = arith.subi %c7_i32_49, %c1_i32 : i32
    %168 = arith.index_cast %167 : i32 to index
    %c0_50 = arith.constant 0 : index
    %c0_51 = arith.constant 0 : index
    %169 = vector.load %arg12[%168, %c0_50, %c0_51] : memref<8x8x128xbf16, #tpu.memory_space<vmem>>, vector<1x8x128xbf16>
    %170 = vector.shape_cast %169 : vector<1x8x128xbf16> to vector<8x128xbf16>
    %171 = vector.shape_cast %166 : vector<8x128xbf16> to vector<1x8x128xbf16>
    tpu.vector_store %arg12[%168, %c0_50, %c0_51], %171 {strides = array<i32>} : memref<8x8x128xbf16, #tpu.memory_space<vmem>>, vector<1x8x128xbf16>,
    %172 = tpu.concatenate %135, %160 in 1 : vector<8x128xf32>, vector<8x128xf32> -> vector<8x256xf32>
    %173 = arith.truncf %172 : vector<8x256xf32> to vector<8x256xbf16>
    %c2_i32 = arith.constant 2 : i32
    %c0_52 = arith.constant 0 : index
    %c0_53 = arith.constant 0 : index
    %174 = vector.load %arg3[%c0_52, %c0_53] : memref<256x1024xbf16, #tpu.memory_space<vmem>>, vector<256x1024xbf16>
    %cst_54 = arith.constant dense<0.000000e+00> : vector<8x1024xf32>
    %175 = tpu.matmul %173, %174, %cst_54 {dimension_numbers = #tpu.dot_dimension_numbers<[1], [0], [0], [1], [0, 0, 1, 1], [], []>} : vector<8x256xbf16>, vector<256x1024xbf16>, vector<8x1024xf32> -> vector<8x1024xf32>
    %176 = vector.extract_strided_slice %175 {offsets = [0, 0], sizes = [8, 512], strides = [1, 1]} : vector<8x1024xf32> to vector<8x512xf32>
    %177 = arith.index_cast %c2_i32 : i32 to index
    %c0_55 = arith.constant 0 : index
    %c0_56 = arith.constant 0 : index
    %178 = vector.load %arg9[%177, %c0_55, %c0_56] : memref<8x8x512xbf16, #tpu.memory_space<vmem>>, vector<1x8x512xbf16>
    %179 = vector.shape_cast %178 : vector<1x8x512xbf16> to vector<8x512xbf16>
    %180 = arith.extf %179 : vector<8x512xbf16> to vector<8x512xf32>
    %181 = arith.addf %176, %180 : vector<8x512xf32>
    %182 = vector.extract_strided_slice %175 {offsets = [0, 512], sizes = [8, 512], strides = [1, 1]} : vector<8x1024xf32> to vector<8x512xf32>
    %c7_i32_57 = arith.constant 7 : i32
    %183 = arith.subi %c7_i32_57, %c2_i32 : i32
    %184 = arith.index_cast %183 : i32 to index
    %c0_58 = arith.constant 0 : index
    %c0_59 = arith.constant 0 : index
    %185 = vector.load %arg10[%184, %c0_58, %c0_59] : memref<8x8x512xbf16, #tpu.memory_space<vmem>>, vector<1x8x512xbf16>
    %186 = vector.shape_cast %185 : vector<1x8x512xbf16> to vector<8x512xbf16>
    %187 = arith.extf %186 : vector<8x512xbf16> to vector<8x512xf32>
    %188 = arith.addf %182, %187 : vector<8x512xf32>
    %189 = vector.extract_strided_slice %181 {offsets = [0, 0], sizes = [8, 128], strides = [1, 1]} : vector<8x512xf32> to vector<8x128xf32>
    %190 = arith.negf %189 : vector<8x128xf32>
    %191 = math.exp %190 : vector<8x128xf32>
    %cst_60 = arith.constant 1.000000e+00 : f32
    %192 = vector.broadcast %cst_60 : f32 to vector<8x128xf32>
    %193 = arith.addf %192, %191 : vector<8x128xf32>
    %194 = arith.divf %192, %193 : vector<8x128xf32>
    %195 = vector.extract_strided_slice %181 {offsets = [0, 128], sizes = [8, 128], strides = [1, 1]} : vector<8x512xf32> to vector<8x128xf32>
    %196 = arith.negf %195 : vector<8x128xf32>
    %197 = math.exp %196 : vector<8x128xf32>
    %cst_61 = arith.constant 1.000000e+00 : f32
    %198 = vector.broadcast %cst_61 : f32 to vector<8x128xf32>
    %199 = arith.addf %198, %197 : vector<8x128xf32>
    %200 = arith.divf %198, %199 : vector<8x128xf32>
    %201 = vector.extract_strided_slice %181 {offsets = [0, 256], sizes = [8, 128], strides = [1, 1]} : vector<8x512xf32> to vector<8x128xf32>
    %202 = math.tanh %201 : vector<8x128xf32>
    %203 = vector.extract_strided_slice %181 {offsets = [0, 384], sizes = [8, 128], strides = [1, 1]} : vector<8x512xf32> to vector<8x128xf32>
    %204 = arith.negf %203 : vector<8x128xf32>
    %205 = math.exp %204 : vector<8x128xf32>
    %cst_62 = arith.constant 1.000000e+00 : f32
    %206 = vector.broadcast %cst_62 : f32 to vector<8x128xf32>
    %207 = arith.addf %206, %205 : vector<8x128xf32>
    %208 = arith.divf %206, %207 : vector<8x128xf32>
    %209 = arith.mulf %200, %133 : vector<8x128xf32>
    %210 = arith.mulf %194, %202 : vector<8x128xf32>
    %211 = arith.addf %209, %210 : vector<8x128xf32>
    %212 = math.tanh %211 : vector<8x128xf32>
    %213 = arith.mulf %208, %212 : vector<8x128xf32>
    %214 = vector.extract_strided_slice %188 {offsets = [0, 0], sizes = [8, 128], strides = [1, 1]} : vector<8x512xf32> to vector<8x128xf32>
    %215 = arith.negf %214 : vector<8x128xf32>
    %216 = math.exp %215 : vector<8x128xf32>
    %cst_63 = arith.constant 1.000000e+00 : f32
    %217 = vector.broadcast %cst_63 : f32 to vector<8x128xf32>
    %218 = arith.addf %217, %216 : vector<8x128xf32>
    %219 = arith.divf %217, %218 : vector<8x128xf32>
    %220 = vector.extract_strided_slice %188 {offsets = [0, 128], sizes = [8, 128], strides = [1, 1]} : vector<8x512xf32> to vector<8x128xf32>
    %221 = arith.negf %220 : vector<8x128xf32>
    %222 = math.exp %221 : vector<8x128xf32>
    %cst_64 = arith.constant 1.000000e+00 : f32
    %223 = vector.broadcast %cst_64 : f32 to vector<8x128xf32>
    %224 = arith.addf %223, %222 : vector<8x128xf32>
    %225 = arith.divf %223, %224 : vector<8x128xf32>
    %226 = vector.extract_strided_slice %188 {offsets = [0, 256], sizes = [8, 128], strides = [1, 1]} : vector<8x512xf32> to vector<8x128xf32>
    %227 = math.tanh %226 : vector<8x128xf32>
    %228 = vector.extract_strided_slice %188 {offsets = [0, 384], sizes = [8, 128], strides = [1, 1]} : vector<8x512xf32> to vector<8x128xf32>
    %229 = arith.negf %228 : vector<8x128xf32>
    %230 = math.exp %229 : vector<8x128xf32>
    %cst_65 = arith.constant 1.000000e+00 : f32
    %231 = vector.broadcast %cst_65 : f32 to vector<8x128xf32>
    %232 = arith.addf %231, %230 : vector<8x128xf32>
    %233 = arith.divf %231, %232 : vector<8x128xf32>
    %234 = arith.mulf %225, %158 : vector<8x128xf32>
    %235 = arith.mulf %219, %227 : vector<8x128xf32>
    %236 = arith.addf %234, %235 : vector<8x128xf32>
    %237 = math.tanh %236 : vector<8x128xf32>
    %238 = arith.mulf %233, %237 : vector<8x128xf32>
    %239 = arith.truncf %213 : vector<8x128xf32> to vector<8x128xbf16>
    %240 = arith.index_cast %c2_i32 : i32 to index
    %c0_66 = arith.constant 0 : index
    %c0_67 = arith.constant 0 : index
    %241 = vector.load %arg11[%240, %c0_66, %c0_67] : memref<8x8x128xbf16, #tpu.memory_space<vmem>>, vector<1x8x128xbf16>
    %242 = vector.shape_cast %241 : vector<1x8x128xbf16> to vector<8x128xbf16>
    %243 = vector.shape_cast %239 : vector<8x128xbf16> to vector<1x8x128xbf16>
    tpu.vector_store %arg11[%240, %c0_66, %c0_67], %243 {strides = array<i32>} : memref<8x8x128xbf16, #tpu.memory_space<vmem>>, vector<1x8x128xbf16>,
    %244 = arith.truncf %238 : vector<8x128xf32> to vector<8x128xbf16>
    %c7_i32_68 = arith.constant 7 : i32
    %245 = arith.subi %c7_i32_68, %c2_i32 : i32
    %246 = arith.index_cast %245 : i32 to index
    %c0_69 = arith.constant 0 : index
    %c0_70 = arith.constant 0 : index
    %247 = vector.load %arg12[%246, %c0_69, %c0_70] : memref<8x8x128xbf16, #tpu.memory_space<vmem>>, vector<1x8x128xbf16>
    %248 = vector.shape_cast %247 : vector<1x8x128xbf16> to vector<8x128xbf16>
    %249 = vector.shape_cast %244 : vector<8x128xbf16> to vector<1x8x128xbf16>
    tpu.vector_store %arg12[%246, %c0_69, %c0_70], %249 {strides = array<i32>} : memref<8x8x128xbf16, #tpu.memory_space<vmem>>, vector<1x8x128xbf16>,
    %250 = tpu.concatenate %213, %238 in 1 : vector<8x128xf32>, vector<8x128xf32> -> vector<8x256xf32>
    %251 = arith.truncf %250 : vector<8x256xf32> to vector<8x256xbf16>
    %c3_i32 = arith.constant 3 : i32
    %c0_71 = arith.constant 0 : index
    %c0_72 = arith.constant 0 : index
    %252 = vector.load %arg3[%c0_71, %c0_72] : memref<256x1024xbf16, #tpu.memory_space<vmem>>, vector<256x1024xbf16>
    %cst_73 = arith.constant dense<0.000000e+00> : vector<8x1024xf32>
    %253 = tpu.matmul %251, %252, %cst_73 {dimension_numbers = #tpu.dot_dimension_numbers<[1], [0], [0], [1], [0, 0, 1, 1], [], []>} : vector<8x256xbf16>, vector<256x1024xbf16>, vector<8x1024xf32> -> vector<8x1024xf32>
    %254 = vector.extract_strided_slice %253 {offsets = [0, 0], sizes = [8, 512], strides = [1, 1]} : vector<8x1024xf32> to vector<8x512xf32>
    %255 = arith.index_cast %c3_i32 : i32 to index
    %c0_74 = arith.constant 0 : index
    %c0_75 = arith.constant 0 : index
    %256 = vector.load %arg9[%255, %c0_74, %c0_75] : memref<8x8x512xbf16, #tpu.memory_space<vmem>>, vector<1x8x512xbf16>
    %257 = vector.shape_cast %256 : vector<1x8x512xbf16> to vector<8x512xbf16>
    %258 = arith.extf %257 : vector<8x512xbf16> to vector<8x512xf32>
    %259 = arith.addf %254, %258 : vector<8x512xf32>
    %260 = vector.extract_strided_slice %253 {offsets = [0, 512], sizes = [8, 512], strides = [1, 1]} : vector<8x1024xf32> to vector<8x512xf32>
    %c7_i32_76 = arith.constant 7 : i32
    %261 = arith.subi %c7_i32_76, %c3_i32 : i32
    %262 = arith.index_cast %261 : i32 to index
    %c0_77 = arith.constant 0 : index
    %c0_78 = arith.constant 0 : index
    %263 = vector.load %arg10[%262, %c0_77, %c0_78] : memref<8x8x512xbf16, #tpu.memory_space<vmem>>, vector<1x8x512xbf16>
    %264 = vector.shape_cast %263 : vector<1x8x512xbf16> to vector<8x512xbf16>
    %265 = arith.extf %264 : vector<8x512xbf16> to vector<8x512xf32>
    %266 = arith.addf %260, %265 : vector<8x512xf32>
    %267 = vector.extract_strided_slice %259 {offsets = [0, 0], sizes = [8, 128], strides = [1, 1]} : vector<8x512xf32> to vector<8x128xf32>
    %268 = arith.negf %267 : vector<8x128xf32>
    %269 = math.exp %268 : vector<8x128xf32>
    %cst_79 = arith.constant 1.000000e+00 : f32
    %270 = vector.broadcast %cst_79 : f32 to vector<8x128xf32>
    %271 = arith.addf %270, %269 : vector<8x128xf32>
    %272 = arith.divf %270, %271 : vector<8x128xf32>
    %273 = vector.extract_strided_slice %259 {offsets = [0, 128], sizes = [8, 128], strides = [1, 1]} : vector<8x512xf32> to vector<8x128xf32>
    %274 = arith.negf %273 : vector<8x128xf32>
    %275 = math.exp %274 : vector<8x128xf32>
    %cst_80 = arith.constant 1.000000e+00 : f32
    %276 = vector.broadcast %cst_80 : f32 to vector<8x128xf32>
    %277 = arith.addf %276, %275 : vector<8x128xf32>
    %278 = arith.divf %276, %277 : vector<8x128xf32>
    %279 = vector.extract_strided_slice %259 {offsets = [0, 256], sizes = [8, 128], strides = [1, 1]} : vector<8x512xf32> to vector<8x128xf32>
    %280 = math.tanh %279 : vector<8x128xf32>
    %281 = vector.extract_strided_slice %259 {offsets = [0, 384], sizes = [8, 128], strides = [1, 1]} : vector<8x512xf32> to vector<8x128xf32>
    %282 = arith.negf %281 : vector<8x128xf32>
    %283 = math.exp %282 : vector<8x128xf32>
    %cst_81 = arith.constant 1.000000e+00 : f32
    %284 = vector.broadcast %cst_81 : f32 to vector<8x128xf32>
    %285 = arith.addf %284, %283 : vector<8x128xf32>
    %286 = arith.divf %284, %285 : vector<8x128xf32>
    %287 = arith.mulf %278, %211 : vector<8x128xf32>
    %288 = arith.mulf %272, %280 : vector<8x128xf32>
    %289 = arith.addf %287, %288 : vector<8x128xf32>
    %290 = math.tanh %289 : vector<8x128xf32>
    %291 = arith.mulf %286, %290 : vector<8x128xf32>
    %292 = vector.extract_strided_slice %266 {offsets = [0, 0], sizes = [8, 128], strides = [1, 1]} : vector<8x512xf32> to vector<8x128xf32>
    %293 = arith.negf %292 : vector<8x128xf32>
    %294 = math.exp %293 : vector<8x128xf32>
    %cst_82 = arith.constant 1.000000e+00 : f32
    %295 = vector.broadcast %cst_82 : f32 to vector<8x128xf32>
    %296 = arith.addf %295, %294 : vector<8x128xf32>
    %297 = arith.divf %295, %296 : vector<8x128xf32>
    %298 = vector.extract_strided_slice %266 {offsets = [0, 128], sizes = [8, 128], strides = [1, 1]} : vector<8x512xf32> to vector<8x128xf32>
    %299 = arith.negf %298 : vector<8x128xf32>
    %300 = math.exp %299 : vector<8x128xf32>
    %cst_83 = arith.constant 1.000000e+00 : f32
    %301 = vector.broadcast %cst_83 : f32 to vector<8x128xf32>
    %302 = arith.addf %301, %300 : vector<8x128xf32>
    %303 = arith.divf %301, %302 : vector<8x128xf32>
    %304 = vector.extract_strided_slice %266 {offsets = [0, 256], sizes = [8, 128], strides = [1, 1]} : vector<8x512xf32> to vector<8x128xf32>
    %305 = math.tanh %304 : vector<8x128xf32>
    %306 = vector.extract_strided_slice %266 {offsets = [0, 384], sizes = [8, 128], strides = [1, 1]} : vector<8x512xf32> to vector<8x128xf32>
    %307 = arith.negf %306 : vector<8x128xf32>
    %308 = math.exp %307 : vector<8x128xf32>
    %cst_84 = arith.constant 1.000000e+00 : f32
    %309 = vector.broadcast %cst_84 : f32 to vector<8x128xf32>
    %310 = arith.addf %309, %308 : vector<8x128xf32>
    %311 = arith.divf %309, %310 : vector<8x128xf32>
    %312 = arith.mulf %303, %236 : vector<8x128xf32>
    %313 = arith.mulf %297, %305 : vector<8x128xf32>
    %314 = arith.addf %312, %313 : vector<8x128xf32>
    %315 = math.tanh %314 : vector<8x128xf32>
    %316 = arith.mulf %311, %315 : vector<8x128xf32>
    %317 = arith.truncf %291 : vector<8x128xf32> to vector<8x128xbf16>
    %318 = arith.index_cast %c3_i32 : i32 to index
    %c0_85 = arith.constant 0 : index
    %c0_86 = arith.constant 0 : index
    %319 = vector.load %arg11[%318, %c0_85, %c0_86] : memref<8x8x128xbf16, #tpu.memory_space<vmem>>, vector<1x8x128xbf16>
    %320 = vector.shape_cast %319 : vector<1x8x128xbf16> to vector<8x128xbf16>
    %321 = vector.shape_cast %317 : vector<8x128xbf16> to vector<1x8x128xbf16>
    tpu.vector_store %arg11[%318, %c0_85, %c0_86], %321 {strides = array<i32>} : memref<8x8x128xbf16, #tpu.memory_space<vmem>>, vector<1x8x128xbf16>,
    %322 = arith.truncf %316 : vector<8x128xf32> to vector<8x128xbf16>
    %c7_i32_87 = arith.constant 7 : i32
    %323 = arith.subi %c7_i32_87, %c3_i32 : i32
    %324 = arith.index_cast %323 : i32 to index
    %c0_88 = arith.constant 0 : index
    %c0_89 = arith.constant 0 : index
    %325 = vector.load %arg12[%324, %c0_88, %c0_89] : memref<8x8x128xbf16, #tpu.memory_space<vmem>>, vector<1x8x128xbf16>
    %326 = vector.shape_cast %325 : vector<1x8x128xbf16> to vector<8x128xbf16>
    %327 = vector.shape_cast %322 : vector<8x128xbf16> to vector<1x8x128xbf16>
    tpu.vector_store %arg12[%324, %c0_88, %c0_89], %327 {strides = array<i32>} : memref<8x8x128xbf16, #tpu.memory_space<vmem>>, vector<1x8x128xbf16>,
    %328 = tpu.concatenate %291, %316 in 1 : vector<8x128xf32>, vector<8x128xf32> -> vector<8x256xf32>
    %329 = arith.truncf %328 : vector<8x256xf32> to vector<8x256xbf16>
    %c4_i32 = arith.constant 4 : i32
    %c0_90 = arith.constant 0 : index
    %c0_91 = arith.constant 0 : index
    %330 = vector.load %arg3[%c0_90, %c0_91] : memref<256x1024xbf16, #tpu.memory_space<vmem>>, vector<256x1024xbf16>
    %cst_92 = arith.constant dense<0.000000e+00> : vector<8x1024xf32>
    %331 = tpu.matmul %329, %330, %cst_92 {dimension_numbers = #tpu.dot_dimension_numbers<[1], [0], [0], [1], [0, 0, 1, 1], [], []>} : vector<8x256xbf16>, vector<256x1024xbf16>, vector<8x1024xf32> -> vector<8x1024xf32>
    %332 = vector.extract_strided_slice %331 {offsets = [0, 0], sizes = [8, 512], strides = [1, 1]} : vector<8x1024xf32> to vector<8x512xf32>
    %333 = arith.index_cast %c4_i32 : i32 to index
    %c0_93 = arith.constant 0 : index
    %c0_94 = arith.constant 0 : index
    %334 = vector.load %arg9[%333, %c0_93, %c0_94] : memref<8x8x512xbf16, #tpu.memory_space<vmem>>, vector<1x8x512xbf16>
    %335 = vector.shape_cast %334 : vector<1x8x512xbf16> to vector<8x512xbf16>
    %336 = arith.extf %335 : vector<8x512xbf16> to vector<8x512xf32>
    %337 = arith.addf %332, %336 : vector<8x512xf32>
    %338 = vector.extract_strided_slice %331 {offsets = [0, 512], sizes = [8, 512], strides = [1, 1]} : vector<8x1024xf32> to vector<8x512xf32>
    %c7_i32_95 = arith.constant 7 : i32
    %339 = arith.subi %c7_i32_95, %c4_i32 : i32
    %340 = arith.index_cast %339 : i32 to index
    %c0_96 = arith.constant 0 : index
    %c0_97 = arith.constant 0 : index
    %341 = vector.load %arg10[%340, %c0_96, %c0_97] : memref<8x8x512xbf16, #tpu.memory_space<vmem>>, vector<1x8x512xbf16>
    %342 = vector.shape_cast %341 : vector<1x8x512xbf16> to vector<8x512xbf16>
    %343 = arith.extf %342 : vector<8x512xbf16> to vector<8x512xf32>
    %344 = arith.addf %338, %343 : vector<8x512xf32>
    %345 = vector.extract_strided_slice %337 {offsets = [0, 0], sizes = [8, 128], strides = [1, 1]} : vector<8x512xf32> to vector<8x128xf32>
    %346 = arith.negf %345 : vector<8x128xf32>
    %347 = math.exp %346 : vector<8x128xf32>
    %cst_98 = arith.constant 1.000000e+00 : f32
    %348 = vector.broadcast %cst_98 : f32 to vector<8x128xf32>
    %349 = arith.addf %348, %347 : vector<8x128xf32>
    %350 = arith.divf %348, %349 : vector<8x128xf32>
    %351 = vector.extract_strided_slice %337 {offsets = [0, 128], sizes = [8, 128], strides = [1, 1]} : vector<8x512xf32> to vector<8x128xf32>
    %352 = arith.negf %351 : vector<8x128xf32>
    %353 = math.exp %352 : vector<8x128xf32>
    %cst_99 = arith.constant 1.000000e+00 : f32
    %354 = vector.broadcast %cst_99 : f32 to vector<8x128xf32>
    %355 = arith.addf %354, %353 : vector<8x128xf32>
    %356 = arith.divf %354, %355 : vector<8x128xf32>
    %357 = vector.extract_strided_slice %337 {offsets = [0, 256], sizes = [8, 128], strides = [1, 1]} : vector<8x512xf32> to vector<8x128xf32>
    %358 = math.tanh %357 : vector<8x128xf32>
    %359 = vector.extract_strided_slice %337 {offsets = [0, 384], sizes = [8, 128], strides = [1, 1]} : vector<8x512xf32> to vector<8x128xf32>
    %360 = arith.negf %359 : vector<8x128xf32>
    %361 = math.exp %360 : vector<8x128xf32>
    %cst_100 = arith.constant 1.000000e+00 : f32
    %362 = vector.broadcast %cst_100 : f32 to vector<8x128xf32>
    %363 = arith.addf %362, %361 : vector<8x128xf32>
    %364 = arith.divf %362, %363 : vector<8x128xf32>
    %365 = arith.mulf %356, %289 : vector<8x128xf32>
    %366 = arith.mulf %350, %358 : vector<8x128xf32>
    %367 = arith.addf %365, %366 : vector<8x128xf32>
    %368 = math.tanh %367 : vector<8x128xf32>
    %369 = arith.mulf %364, %368 : vector<8x128xf32>
    %370 = vector.extract_strided_slice %344 {offsets = [0, 0], sizes = [8, 128], strides = [1, 1]} : vector<8x512xf32> to vector<8x128xf32>
    %371 = arith.negf %370 : vector<8x128xf32>
    %372 = math.exp %371 : vector<8x128xf32>
    %cst_101 = arith.constant 1.000000e+00 : f32
    %373 = vector.broadcast %cst_101 : f32 to vector<8x128xf32>
    %374 = arith.addf %373, %372 : vector<8x128xf32>
    %375 = arith.divf %373, %374 : vector<8x128xf32>
    %376 = vector.extract_strided_slice %344 {offsets = [0, 128], sizes = [8, 128], strides = [1, 1]} : vector<8x512xf32> to vector<8x128xf32>
    %377 = arith.negf %376 : vector<8x128xf32>
    %378 = math.exp %377 : vector<8x128xf32>
    %cst_102 = arith.constant 1.000000e+00 : f32
    %379 = vector.broadcast %cst_102 : f32 to vector<8x128xf32>
    %380 = arith.addf %379, %378 : vector<8x128xf32>
    %381 = arith.divf %379, %380 : vector<8x128xf32>
    %382 = vector.extract_strided_slice %344 {offsets = [0, 256], sizes = [8, 128], strides = [1, 1]} : vector<8x512xf32> to vector<8x128xf32>
    %383 = math.tanh %382 : vector<8x128xf32>
    %384 = vector.extract_strided_slice %344 {offsets = [0, 384], sizes = [8, 128], strides = [1, 1]} : vector<8x512xf32> to vector<8x128xf32>
    %385 = arith.negf %384 : vector<8x128xf32>
    %386 = math.exp %385 : vector<8x128xf32>
    %cst_103 = arith.constant 1.000000e+00 : f32
    %387 = vector.broadcast %cst_103 : f32 to vector<8x128xf32>
    %388 = arith.addf %387, %386 : vector<8x128xf32>
    %389 = arith.divf %387, %388 : vector<8x128xf32>
    %390 = arith.mulf %381, %314 : vector<8x128xf32>
    %391 = arith.mulf %375, %383 : vector<8x128xf32>
    %392 = arith.addf %390, %391 : vector<8x128xf32>
    %393 = math.tanh %392 : vector<8x128xf32>
    %394 = arith.mulf %389, %393 : vector<8x128xf32>
    %395 = arith.truncf %369 : vector<8x128xf32> to vector<8x128xbf16>
    %396 = arith.index_cast %c4_i32 : i32 to index
    %c0_104 = arith.constant 0 : index
    %c0_105 = arith.constant 0 : index
    %397 = vector.load %arg11[%396, %c0_104, %c0_105] : memref<8x8x128xbf16, #tpu.memory_space<vmem>>, vector<1x8x128xbf16>
    %398 = vector.shape_cast %397 : vector<1x8x128xbf16> to vector<8x128xbf16>
    %399 = vector.shape_cast %395 : vector<8x128xbf16> to vector<1x8x128xbf16>
    tpu.vector_store %arg11[%396, %c0_104, %c0_105], %399 {strides = array<i32>} : memref<8x8x128xbf16, #tpu.memory_space<vmem>>, vector<1x8x128xbf16>,
    %400 = arith.truncf %394 : vector<8x128xf32> to vector<8x128xbf16>
    %c7_i32_106 = arith.constant 7 : i32
    %401 = arith.subi %c7_i32_106, %c4_i32 : i32
    %402 = arith.index_cast %401 : i32 to index
    %c0_107 = arith.constant 0 : index
    %c0_108 = arith.constant 0 : index
    %403 = vector.load %arg12[%402, %c0_107, %c0_108] : memref<8x8x128xbf16, #tpu.memory_space<vmem>>, vector<1x8x128xbf16>
    %404 = vector.shape_cast %403 : vector<1x8x128xbf16> to vector<8x128xbf16>
    %405 = vector.shape_cast %400 : vector<8x128xbf16> to vector<1x8x128xbf16>
    tpu.vector_store %arg12[%402, %c0_107, %c0_108], %405 {strides = array<i32>} : memref<8x8x128xbf16, #tpu.memory_space<vmem>>, vector<1x8x128xbf16>,
    %406 = tpu.concatenate %369, %394 in 1 : vector<8x128xf32>, vector<8x128xf32> -> vector<8x256xf32>
    %407 = arith.truncf %406 : vector<8x256xf32> to vector<8x256xbf16>
    %c5_i32 = arith.constant 5 : i32
    %c0_109 = arith.constant 0 : index
    %c0_110 = arith.constant 0 : index
    %408 = vector.load %arg3[%c0_109, %c0_110] : memref<256x1024xbf16, #tpu.memory_space<vmem>>, vector<256x1024xbf16>
    %cst_111 = arith.constant dense<0.000000e+00> : vector<8x1024xf32>
    %409 = tpu.matmul %407, %408, %cst_111 {dimension_numbers = #tpu.dot_dimension_numbers<[1], [0], [0], [1], [0, 0, 1, 1], [], []>} : vector<8x256xbf16>, vector<256x1024xbf16>, vector<8x1024xf32> -> vector<8x1024xf32>
    %410 = vector.extract_strided_slice %409 {offsets = [0, 0], sizes = [8, 512], strides = [1, 1]} : vector<8x1024xf32> to vector<8x512xf32>
    %411 = arith.index_cast %c5_i32 : i32 to index
    %c0_112 = arith.constant 0 : index
    %c0_113 = arith.constant 0 : index
    %412 = vector.load %arg9[%411, %c0_112, %c0_113] : memref<8x8x512xbf16, #tpu.memory_space<vmem>>, vector<1x8x512xbf16>
    %413 = vector.shape_cast %412 : vector<1x8x512xbf16> to vector<8x512xbf16>
    %414 = arith.extf %413 : vector<8x512xbf16> to vector<8x512xf32>
    %415 = arith.addf %410, %414 : vector<8x512xf32>
    %416 = vector.extract_strided_slice %409 {offsets = [0, 512], sizes = [8, 512], strides = [1, 1]} : vector<8x1024xf32> to vector<8x512xf32>
    %c7_i32_114 = arith.constant 7 : i32
    %417 = arith.subi %c7_i32_114, %c5_i32 : i32
    %418 = arith.index_cast %417 : i32 to index
    %c0_115 = arith.constant 0 : index
    %c0_116 = arith.constant 0 : index
    %419 = vector.load %arg10[%418, %c0_115, %c0_116] : memref<8x8x512xbf16, #tpu.memory_space<vmem>>, vector<1x8x512xbf16>
    %420 = vector.shape_cast %419 : vector<1x8x512xbf16> to vector<8x512xbf16>
    %421 = arith.extf %420 : vector<8x512xbf16> to vector<8x512xf32>
    %422 = arith.addf %416, %421 : vector<8x512xf32>
    %423 = vector.extract_strided_slice %415 {offsets = [0, 0], sizes = [8, 128], strides = [1, 1]} : vector<8x512xf32> to vector<8x128xf32>
    %424 = arith.negf %423 : vector<8x128xf32>
    %425 = math.exp %424 : vector<8x128xf32>
    %cst_117 = arith.constant 1.000000e+00 : f32
    %426 = vector.broadcast %cst_117 : f32 to vector<8x128xf32>
    %427 = arith.addf %426, %425 : vector<8x128xf32>
    %428 = arith.divf %426, %427 : vector<8x128xf32>
    %429 = vector.extract_strided_slice %415 {offsets = [0, 128], sizes = [8, 128], strides = [1, 1]} : vector<8x512xf32> to vector<8x128xf32>
    %430 = arith.negf %429 : vector<8x128xf32>
    %431 = math.exp %430 : vector<8x128xf32>
    %cst_118 = arith.constant 1.000000e+00 : f32
    %432 = vector.broadcast %cst_118 : f32 to vector<8x128xf32>
    %433 = arith.addf %432, %431 : vector<8x128xf32>
    %434 = arith.divf %432, %433 : vector<8x128xf32>
    %435 = vector.extract_strided_slice %415 {offsets = [0, 256], sizes = [8, 128], strides = [1, 1]} : vector<8x512xf32> to vector<8x128xf32>
    %436 = math.tanh %435 : vector<8x128xf32>
    %437 = vector.extract_strided_slice %415 {offsets = [0, 384], sizes = [8, 128], strides = [1, 1]} : vector<8x512xf32> to vector<8x128xf32>
    %438 = arith.negf %437 : vector<8x128xf32>
    %439 = math.exp %438 : vector<8x128xf32>
    %cst_119 = arith.constant 1.000000e+00 : f32
    %440 = vector.broadcast %cst_119 : f32 to vector<8x128xf32>
    %441 = arith.addf %440, %439 : vector<8x128xf32>
    %442 = arith.divf %440, %441 : vector<8x128xf32>
    %443 = arith.mulf %434, %367 : vector<8x128xf32>
    %444 = arith.mulf %428, %436 : vector<8x128xf32>
    %445 = arith.addf %443, %444 : vector<8x128xf32>
    %446 = math.tanh %445 : vector<8x128xf32>
    %447 = arith.mulf %442, %446 : vector<8x128xf32>
    %448 = vector.extract_strided_slice %422 {offsets = [0, 0], sizes = [8, 128], strides = [1, 1]} : vector<8x512xf32> to vector<8x128xf32>
    %449 = arith.negf %448 : vector<8x128xf32>
    %450 = math.exp %449 : vector<8x128xf32>
    %cst_120 = arith.constant 1.000000e+00 : f32
    %451 = vector.broadcast %cst_120 : f32 to vector<8x128xf32>
    %452 = arith.addf %451, %450 : vector<8x128xf32>
    %453 = arith.divf %451, %452 : vector<8x128xf32>
    %454 = vector.extract_strided_slice %422 {offsets = [0, 128], sizes = [8, 128], strides = [1, 1]} : vector<8x512xf32> to vector<8x128xf32>
    %455 = arith.negf %454 : vector<8x128xf32>
    %456 = math.exp %455 : vector<8x128xf32>
    %cst_121 = arith.constant 1.000000e+00 : f32
    %457 = vector.broadcast %cst_121 : f32 to vector<8x128xf32>
    %458 = arith.addf %457, %456 : vector<8x128xf32>
    %459 = arith.divf %457, %458 : vector<8x128xf32>
    %460 = vector.extract_strided_slice %422 {offsets = [0, 256], sizes = [8, 128], strides = [1, 1]} : vector<8x512xf32> to vector<8x128xf32>
    %461 = math.tanh %460 : vector<8x128xf32>
    %462 = vector.extract_strided_slice %422 {offsets = [0, 384], sizes = [8, 128], strides = [1, 1]} : vector<8x512xf32> to vector<8x128xf32>
    %463 = arith.negf %462 : vector<8x128xf32>
    %464 = math.exp %463 : vector<8x128xf32>
    %cst_122 = arith.constant 1.000000e+00 : f32
    %465 = vector.broadcast %cst_122 : f32 to vector<8x128xf32>
    %466 = arith.addf %465, %464 : vector<8x128xf32>
    %467 = arith.divf %465, %466 : vector<8x128xf32>
    %468 = arith.mulf %459, %392 : vector<8x128xf32>
    %469 = arith.mulf %453, %461 : vector<8x128xf32>
    %470 = arith.addf %468, %469 : vector<8x128xf32>
    %471 = math.tanh %470 : vector<8x128xf32>
    %472 = arith.mulf %467, %471 : vector<8x128xf32>
    %473 = arith.truncf %447 : vector<8x128xf32> to vector<8x128xbf16>
    %474 = arith.index_cast %c5_i32 : i32 to index
    %c0_123 = arith.constant 0 : index
    %c0_124 = arith.constant 0 : index
    %475 = vector.load %arg11[%474, %c0_123, %c0_124] : memref<8x8x128xbf16, #tpu.memory_space<vmem>>, vector<1x8x128xbf16>
    %476 = vector.shape_cast %475 : vector<1x8x128xbf16> to vector<8x128xbf16>
    %477 = vector.shape_cast %473 : vector<8x128xbf16> to vector<1x8x128xbf16>
    tpu.vector_store %arg11[%474, %c0_123, %c0_124], %477 {strides = array<i32>} : memref<8x8x128xbf16, #tpu.memory_space<vmem>>, vector<1x8x128xbf16>,
    %478 = arith.truncf %472 : vector<8x128xf32> to vector<8x128xbf16>
    %c7_i32_125 = arith.constant 7 : i32
    %479 = arith.subi %c7_i32_125, %c5_i32 : i32
    %480 = arith.index_cast %479 : i32 to index
    %c0_126 = arith.constant 0 : index
    %c0_127 = arith.constant 0 : index
    %481 = vector.load %arg12[%480, %c0_126, %c0_127] : memref<8x8x128xbf16, #tpu.memory_space<vmem>>, vector<1x8x128xbf16>
    %482 = vector.shape_cast %481 : vector<1x8x128xbf16> to vector<8x128xbf16>
    %483 = vector.shape_cast %478 : vector<8x128xbf16> to vector<1x8x128xbf16>
    tpu.vector_store %arg12[%480, %c0_126, %c0_127], %483 {strides = array<i32>} : memref<8x8x128xbf16, #tpu.memory_space<vmem>>, vector<1x8x128xbf16>,
    %484 = tpu.concatenate %447, %472 in 1 : vector<8x128xf32>, vector<8x128xf32> -> vector<8x256xf32>
    %485 = arith.truncf %484 : vector<8x256xf32> to vector<8x256xbf16>
    %c6_i32 = arith.constant 6 : i32
    %c0_128 = arith.constant 0 : index
    %c0_129 = arith.constant 0 : index
    %486 = vector.load %arg3[%c0_128, %c0_129] : memref<256x1024xbf16, #tpu.memory_space<vmem>>, vector<256x1024xbf16>
    %cst_130 = arith.constant dense<0.000000e+00> : vector<8x1024xf32>
    %487 = tpu.matmul %485, %486, %cst_130 {dimension_numbers = #tpu.dot_dimension_numbers<[1], [0], [0], [1], [0, 0, 1, 1], [], []>} : vector<8x256xbf16>, vector<256x1024xbf16>, vector<8x1024xf32> -> vector<8x1024xf32>
    %488 = vector.extract_strided_slice %487 {offsets = [0, 0], sizes = [8, 512], strides = [1, 1]} : vector<8x1024xf32> to vector<8x512xf32>
    %489 = arith.index_cast %c6_i32 : i32 to index
    %c0_131 = arith.constant 0 : index
    %c0_132 = arith.constant 0 : index
    %490 = vector.load %arg9[%489, %c0_131, %c0_132] : memref<8x8x512xbf16, #tpu.memory_space<vmem>>, vector<1x8x512xbf16>
    %491 = vector.shape_cast %490 : vector<1x8x512xbf16> to vector<8x512xbf16>
    %492 = arith.extf %491 : vector<8x512xbf16> to vector<8x512xf32>
    %493 = arith.addf %488, %492 : vector<8x512xf32>
    %494 = vector.extract_strided_slice %487 {offsets = [0, 512], sizes = [8, 512], strides = [1, 1]} : vector<8x1024xf32> to vector<8x512xf32>
    %c7_i32_133 = arith.constant 7 : i32
    %495 = arith.subi %c7_i32_133, %c6_i32 : i32
    %496 = arith.index_cast %495 : i32 to index
    %c0_134 = arith.constant 0 : index
    %c0_135 = arith.constant 0 : index
    %497 = vector.load %arg10[%496, %c0_134, %c0_135] : memref<8x8x512xbf16, #tpu.memory_space<vmem>>, vector<1x8x512xbf16>
    %498 = vector.shape_cast %497 : vector<1x8x512xbf16> to vector<8x512xbf16>
    %499 = arith.extf %498 : vector<8x512xbf16> to vector<8x512xf32>
    %500 = arith.addf %494, %499 : vector<8x512xf32>
    %501 = vector.extract_strided_slice %493 {offsets = [0, 0], sizes = [8, 128], strides = [1, 1]} : vector<8x512xf32> to vector<8x128xf32>
    %502 = arith.negf %501 : vector<8x128xf32>
    %503 = math.exp %502 : vector<8x128xf32>
    %cst_136 = arith.constant 1.000000e+00 : f32
    %504 = vector.broadcast %cst_136 : f32 to vector<8x128xf32>
    %505 = arith.addf %504, %503 : vector<8x128xf32>
    %506 = arith.divf %504, %505 : vector<8x128xf32>
    %507 = vector.extract_strided_slice %493 {offsets = [0, 128], sizes = [8, 128], strides = [1, 1]} : vector<8x512xf32> to vector<8x128xf32>
    %508 = arith.negf %507 : vector<8x128xf32>
    %509 = math.exp %508 : vector<8x128xf32>
    %cst_137 = arith.constant 1.000000e+00 : f32
    %510 = vector.broadcast %cst_137 : f32 to vector<8x128xf32>
    %511 = arith.addf %510, %509 : vector<8x128xf32>
    %512 = arith.divf %510, %511 : vector<8x128xf32>
    %513 = vector.extract_strided_slice %493 {offsets = [0, 256], sizes = [8, 128], strides = [1, 1]} : vector<8x512xf32> to vector<8x128xf32>
    %514 = math.tanh %513 : vector<8x128xf32>
    %515 = vector.extract_strided_slice %493 {offsets = [0, 384], sizes = [8, 128], strides = [1, 1]} : vector<8x512xf32> to vector<8x128xf32>
    %516 = arith.negf %515 : vector<8x128xf32>
    %517 = math.exp %516 : vector<8x128xf32>
    %cst_138 = arith.constant 1.000000e+00 : f32
    %518 = vector.broadcast %cst_138 : f32 to vector<8x128xf32>
    %519 = arith.addf %518, %517 : vector<8x128xf32>
    %520 = arith.divf %518, %519 : vector<8x128xf32>
    %521 = arith.mulf %512, %445 : vector<8x128xf32>
    %522 = arith.mulf %506, %514 : vector<8x128xf32>
    %523 = arith.addf %521, %522 : vector<8x128xf32>
    %524 = math.tanh %523 : vector<8x128xf32>
    %525 = arith.mulf %520, %524 : vector<8x128xf32>
    %526 = vector.extract_strided_slice %500 {offsets = [0, 0], sizes = [8, 128], strides = [1, 1]} : vector<8x512xf32> to vector<8x128xf32>
    %527 = arith.negf %526 : vector<8x128xf32>
    %528 = math.exp %527 : vector<8x128xf32>
    %cst_139 = arith.constant 1.000000e+00 : f32
    %529 = vector.broadcast %cst_139 : f32 to vector<8x128xf32>
    %530 = arith.addf %529, %528 : vector<8x128xf32>
    %531 = arith.divf %529, %530 : vector<8x128xf32>
    %532 = vector.extract_strided_slice %500 {offsets = [0, 128], sizes = [8, 128], strides = [1, 1]} : vector<8x512xf32> to vector<8x128xf32>
    %533 = arith.negf %532 : vector<8x128xf32>
    %534 = math.exp %533 : vector<8x128xf32>
    %cst_140 = arith.constant 1.000000e+00 : f32
    %535 = vector.broadcast %cst_140 : f32 to vector<8x128xf32>
    %536 = arith.addf %535, %534 : vector<8x128xf32>
    %537 = arith.divf %535, %536 : vector<8x128xf32>
    %538 = vector.extract_strided_slice %500 {offsets = [0, 256], sizes = [8, 128], strides = [1, 1]} : vector<8x512xf32> to vector<8x128xf32>
    %539 = math.tanh %538 : vector<8x128xf32>
    %540 = vector.extract_strided_slice %500 {offsets = [0, 384], sizes = [8, 128], strides = [1, 1]} : vector<8x512xf32> to vector<8x128xf32>
    %541 = arith.negf %540 : vector<8x128xf32>
    %542 = math.exp %541 : vector<8x128xf32>
    %cst_141 = arith.constant 1.000000e+00 : f32
    %543 = vector.broadcast %cst_141 : f32 to vector<8x128xf32>
    %544 = arith.addf %543, %542 : vector<8x128xf32>
    %545 = arith.divf %543, %544 : vector<8x128xf32>
    %546 = arith.mulf %537, %470 : vector<8x128xf32>
    %547 = arith.mulf %531, %539 : vector<8x128xf32>
    %548 = arith.addf %546, %547 : vector<8x128xf32>
    %549 = math.tanh %548 : vector<8x128xf32>
    %550 = arith.mulf %545, %549 : vector<8x128xf32>
    %551 = arith.truncf %525 : vector<8x128xf32> to vector<8x128xbf16>
    %552 = arith.index_cast %c6_i32 : i32 to index
    %c0_142 = arith.constant 0 : index
    %c0_143 = arith.constant 0 : index
    %553 = vector.load %arg11[%552, %c0_142, %c0_143] : memref<8x8x128xbf16, #tpu.memory_space<vmem>>, vector<1x8x128xbf16>
    %554 = vector.shape_cast %553 : vector<1x8x128xbf16> to vector<8x128xbf16>
    %555 = vector.shape_cast %551 : vector<8x128xbf16> to vector<1x8x128xbf16>
    tpu.vector_store %arg11[%552, %c0_142, %c0_143], %555 {strides = array<i32>} : memref<8x8x128xbf16, #tpu.memory_space<vmem>>, vector<1x8x128xbf16>,
    %556 = arith.truncf %550 : vector<8x128xf32> to vector<8x128xbf16>
    %c7_i32_144 = arith.constant 7 : i32
    %557 = arith.subi %c7_i32_144, %c6_i32 : i32
    %558 = arith.index_cast %557 : i32 to index
    %c0_145 = arith.constant 0 : index
    %c0_146 = arith.constant 0 : index
    %559 = vector.load %arg12[%558, %c0_145, %c0_146] : memref<8x8x128xbf16, #tpu.memory_space<vmem>>, vector<1x8x128xbf16>
    %560 = vector.shape_cast %559 : vector<1x8x128xbf16> to vector<8x128xbf16>
    %561 = vector.shape_cast %556 : vector<8x128xbf16> to vector<1x8x128xbf16>
    tpu.vector_store %arg12[%558, %c0_145, %c0_146], %561 {strides = array<i32>} : memref<8x8x128xbf16, #tpu.memory_space<vmem>>, vector<1x8x128xbf16>,
    %562 = tpu.concatenate %525, %550 in 1 : vector<8x128xf32>, vector<8x128xf32> -> vector<8x256xf32>
    %563 = arith.truncf %562 : vector<8x256xf32> to vector<8x256xbf16>
    %c7_i32_147 = arith.constant 7 : i32
    %c0_148 = arith.constant 0 : index
    %c0_149 = arith.constant 0 : index
    %564 = vector.load %arg3[%c0_148, %c0_149] : memref<256x1024xbf16, #tpu.memory_space<vmem>>, vector<256x1024xbf16>
    %cst_150 = arith.constant dense<0.000000e+00> : vector<8x1024xf32>
    %565 = tpu.matmul %563, %564, %cst_150 {dimension_numbers = #tpu.dot_dimension_numbers<[1], [0], [0], [1], [0, 0, 1, 1], [], []>} : vector<8x256xbf16>, vector<256x1024xbf16>, vector<8x1024xf32> -> vector<8x1024xf32>
    %566 = vector.extract_strided_slice %565 {offsets = [0, 0], sizes = [8, 512], strides = [1, 1]} : vector<8x1024xf32> to vector<8x512xf32>
    %567 = arith.index_cast %c7_i32_147 : i32 to index
    %c0_151 = arith.constant 0 : index
    %c0_152 = arith.constant 0 : index
    %568 = vector.load %arg9[%567, %c0_151, %c0_152] : memref<8x8x512xbf16, #tpu.memory_space<vmem>>, vector<1x8x512xbf16>
    %569 = vector.shape_cast %568 : vector<1x8x512xbf16> to vector<8x512xbf16>
    %570 = arith.extf %569 : vector<8x512xbf16> to vector<8x512xf32>
    %571 = arith.addf %566, %570 : vector<8x512xf32>
    %572 = vector.extract_strided_slice %565 {offsets = [0, 512], sizes = [8, 512], strides = [1, 1]} : vector<8x1024xf32> to vector<8x512xf32>
    %c7_i32_153 = arith.constant 7 : i32
    %573 = arith.subi %c7_i32_153, %c7_i32_147 : i32
    %574 = arith.index_cast %573 : i32 to index
    %c0_154 = arith.constant 0 : index
    %c0_155 = arith.constant 0 : index
    %575 = vector.load %arg10[%574, %c0_154, %c0_155] : memref<8x8x512xbf16, #tpu.memory_space<vmem>>, vector<1x8x512xbf16>
    %576 = vector.shape_cast %575 : vector<1x8x512xbf16> to vector<8x512xbf16>
    %577 = arith.extf %576 : vector<8x512xbf16> to vector<8x512xf32>
    %578 = arith.addf %572, %577 : vector<8x512xf32>
    %579 = vector.extract_strided_slice %571 {offsets = [0, 0], sizes = [8, 128], strides = [1, 1]} : vector<8x512xf32> to vector<8x128xf32>
    %580 = arith.negf %579 : vector<8x128xf32>
    %581 = math.exp %580 : vector<8x128xf32>
    %cst_156 = arith.constant 1.000000e+00 : f32
    %582 = vector.broadcast %cst_156 : f32 to vector<8x128xf32>
    %583 = arith.addf %582, %581 : vector<8x128xf32>
    %584 = arith.divf %582, %583 : vector<8x128xf32>
    %585 = vector.extract_strided_slice %571 {offsets = [0, 128], sizes = [8, 128], strides = [1, 1]} : vector<8x512xf32> to vector<8x128xf32>
    %586 = arith.negf %585 : vector<8x128xf32>
    %587 = math.exp %586 : vector<8x128xf32>
    %cst_157 = arith.constant 1.000000e+00 : f32
    %588 = vector.broadcast %cst_157 : f32 to vector<8x128xf32>
    %589 = arith.addf %588, %587 : vector<8x128xf32>
    %590 = arith.divf %588, %589 : vector<8x128xf32>
    %591 = vector.extract_strided_slice %571 {offsets = [0, 256], sizes = [8, 128], strides = [1, 1]} : vector<8x512xf32> to vector<8x128xf32>
    %592 = math.tanh %591 : vector<8x128xf32>
    %593 = vector.extract_strided_slice %571 {offsets = [0, 384], sizes = [8, 128], strides = [1, 1]} : vector<8x512xf32> to vector<8x128xf32>
    %594 = arith.negf %593 : vector<8x128xf32>
    %595 = math.exp %594 : vector<8x128xf32>
    %cst_158 = arith.constant 1.000000e+00 : f32
    %596 = vector.broadcast %cst_158 : f32 to vector<8x128xf32>
    %597 = arith.addf %596, %595 : vector<8x128xf32>
    %598 = arith.divf %596, %597 : vector<8x128xf32>
    %599 = arith.mulf %590, %523 : vector<8x128xf32>
    %600 = arith.mulf %584, %592 : vector<8x128xf32>
    %601 = arith.addf %599, %600 : vector<8x128xf32>
    %602 = math.tanh %601 : vector<8x128xf32>
    %603 = arith.mulf %598, %602 : vector<8x128xf32>
    %604 = vector.extract_strided_slice %578 {offsets = [0, 0], sizes = [8, 128], strides = [1, 1]} : vector<8x512xf32> to vector<8x128xf32>
    %605 = arith.negf %604 : vector<8x128xf32>
    %606 = math.exp %605 : vector<8x128xf32>
    %cst_159 = arith.constant 1.000000e+00 : f32
    %607 = vector.broadcast %cst_159 : f32 to vector<8x128xf32>
    %608 = arith.addf %607, %606 : vector<8x128xf32>
    %609 = arith.divf %607, %608 : vector<8x128xf32>
    %610 = vector.extract_strided_slice %578 {offsets = [0, 128], sizes = [8, 128], strides = [1, 1]} : vector<8x512xf32> to vector<8x128xf32>
    %611 = arith.negf %610 : vector<8x128xf32>
    %612 = math.exp %611 : vector<8x128xf32>
    %cst_160 = arith.constant 1.000000e+00 : f32
    %613 = vector.broadcast %cst_160 : f32 to vector<8x128xf32>
    %614 = arith.addf %613, %612 : vector<8x128xf32>
    %615 = arith.divf %613, %614 : vector<8x128xf32>
    %616 = vector.extract_strided_slice %578 {offsets = [0, 256], sizes = [8, 128], strides = [1, 1]} : vector<8x512xf32> to vector<8x128xf32>
    %617 = math.tanh %616 : vector<8x128xf32>
    %618 = vector.extract_strided_slice %578 {offsets = [0, 384], sizes = [8, 128], strides = [1, 1]} : vector<8x512xf32> to vector<8x128xf32>
    %619 = arith.negf %618 : vector<8x128xf32>
    %620 = math.exp %619 : vector<8x128xf32>
    %cst_161 = arith.constant 1.000000e+00 : f32
    %621 = vector.broadcast %cst_161 : f32 to vector<8x128xf32>
    %622 = arith.addf %621, %620 : vector<8x128xf32>
    %623 = arith.divf %621, %622 : vector<8x128xf32>
    %624 = arith.mulf %615, %548 : vector<8x128xf32>
    %625 = arith.mulf %609, %617 : vector<8x128xf32>
    %626 = arith.addf %624, %625 : vector<8x128xf32>
    %627 = math.tanh %626 : vector<8x128xf32>
    %628 = arith.mulf %623, %627 : vector<8x128xf32>
    %629 = arith.truncf %603 : vector<8x128xf32> to vector<8x128xbf16>
    %630 = arith.index_cast %c7_i32_147 : i32 to index
    %c0_162 = arith.constant 0 : index
    %c0_163 = arith.constant 0 : index
    %631 = vector.load %arg11[%630, %c0_162, %c0_163] : memref<8x8x128xbf16, #tpu.memory_space<vmem>>, vector<1x8x128xbf16>
    %632 = vector.shape_cast %631 : vector<1x8x128xbf16> to vector<8x128xbf16>
    %633 = vector.shape_cast %629 : vector<8x128xbf16> to vector<1x8x128xbf16>
    tpu.vector_store %arg11[%630, %c0_162, %c0_163], %633 {strides = array<i32>} : memref<8x8x128xbf16, #tpu.memory_space<vmem>>, vector<1x8x128xbf16>,
    %634 = arith.truncf %628 : vector<8x128xf32> to vector<8x128xbf16>
    %c7_i32_164 = arith.constant 7 : i32
    %635 = arith.subi %c7_i32_164, %c7_i32_147 : i32
    %636 = arith.index_cast %635 : i32 to index
    %c0_165 = arith.constant 0 : index
    %c0_166 = arith.constant 0 : index
    %637 = vector.load %arg12[%636, %c0_165, %c0_166] : memref<8x8x128xbf16, #tpu.memory_space<vmem>>, vector<1x8x128xbf16>
    %638 = vector.shape_cast %637 : vector<1x8x128xbf16> to vector<8x128xbf16>
    %639 = vector.shape_cast %634 : vector<8x128xbf16> to vector<1x8x128xbf16>
    tpu.vector_store %arg12[%636, %c0_165, %c0_166], %639 {strides = array<i32>} : memref<8x8x128xbf16, #tpu.memory_space<vmem>>, vector<1x8x128xbf16>,
    %640 = tpu.concatenate %603, %628 in 1 : vector<8x128xf32>, vector<8x128xf32> -> vector<8x256xf32>
    %641 = arith.truncf %640 : vector<8x256xf32> to vector<8x256xbf16>
    %c8_i32 = arith.constant 8 : i32
    %c0_167 = arith.constant 0 : index
    %c0_168 = arith.constant 0 : index
    %c0_169 = arith.constant 0 : index
    %642 = vector.load %arg11[%c0_167, %c0_168, %c0_169] : memref<8x8x128xbf16, #tpu.memory_space<vmem>>, vector<8x8x128xbf16>
    %643 = vector.shape_cast %642 : vector<8x8x128xbf16> to vector<64x128xbf16>
    %c0_170 = arith.constant 0 : index
    %c0_171 = arith.constant 0 : index
    %c0_172 = arith.constant 0 : index
    %644 = vector.load %arg12[%c0_170, %c0_171, %c0_172] : memref<8x8x128xbf16, #tpu.memory_space<vmem>>, vector<8x8x128xbf16>
    %645 = vector.shape_cast %644 : vector<8x8x128xbf16> to vector<64x128xbf16>
    %c0_173 = arith.constant 0 : index
    %c0_174 = arith.constant 0 : index
    %646 = vector.load %arg5[%c0_173, %c0_174] : memref<128x128xbf16, #tpu.memory_space<vmem>>, vector<128x128xbf16>
    %cst_175 = arith.constant dense<0.000000e+00> : vector<64x128xf32>
    %647 = tpu.matmul %643, %646, %cst_175 {dimension_numbers = #tpu.dot_dimension_numbers<[1], [0], [0], [1], [0, 0, 1, 1], [], []>} : vector<64x128xbf16>, vector<128x128xbf16>, vector<64x128xf32> -> vector<64x128xf32>
    %c0_176 = arith.constant 0 : index
    %c0_177 = arith.constant 0 : index
    %648 = vector.load %arg6[%c0_176, %c0_177] : memref<128x128xbf16, #tpu.memory_space<vmem>>, vector<128x128xbf16>
    %cst_178 = arith.constant dense<0.000000e+00> : vector<64x128xf32>
    %649 = tpu.matmul %645, %648, %cst_178 {dimension_numbers = #tpu.dot_dimension_numbers<[1], [0], [0], [1], [0, 0, 1, 1], [], []>} : vector<64x128xbf16>, vector<128x128xbf16>, vector<64x128xf32> -> vector<64x128xf32>
    %650 = arith.addf %647, %649 : vector<64x128xf32>
    %c0_179 = arith.constant 0 : index
    %c0_180 = arith.constant 0 : index
    %651 = vector.load %arg7[%c0_179, %c0_180] : memref<1x128xf32, #tpu.memory_space<vmem>>, vector<1x128xf32>
    %652 = vector.broadcast %651 : vector<1x128xf32> to vector<64x128xf32>
    %653 = arith.addf %650, %652 : vector<64x128xf32>
    %cst_181 = arith.constant dense<0xFF800000> : vector<64xf32>
    %654 = vector.multi_reduction <maximumf>, %653, %cst_181 [1] : vector<64x128xf32> to vector<64xf32>
    %655 = vector.shape_cast %654 : vector<64xf32> to vector<64x1xf32>
    %656 = vector.broadcast %655 : vector<64x1xf32> to vector<64x128xf32>
    %657 = arith.subf %653, %656 : vector<64x128xf32>
    %658 = math.exp %657 : vector<64x128xf32>
    %cst_182 = arith.constant dense<0.000000e+00> : vector<64xf32>
    %659 = vector.multi_reduction <add>, %658, %cst_182 [1] : vector<64x128xf32> to vector<64xf32>
    %660 = vector.shape_cast %659 : vector<64xf32> to vector<64x1xf32>
    %661 = vector.broadcast %660 : vector<64x1xf32> to vector<64x128xf32>
    %662 = arith.divf %658, %661 : vector<64x128xf32>
    %663 = vector.shape_cast %662 : vector<64x128xf32> to vector<8x8x128xf32>
    %c0_183 = arith.constant 0 : index
    %c0_184 = arith.constant 0 : index
    %c0_185 = arith.constant 0 : index
    %664 = vector.load %arg8[%c0_183, %c0_184, %c0_185] : memref<8x8x128xf32, #tpu.memory_space<vmem>>, vector<8x8x128xf32>
    tpu.vector_store %arg8[%c0_183, %c0_184, %c0_185], %663 {strides = array<i32>} : memref<8x8x128xf32, #tpu.memory_space<vmem>>, vector<8x8x128xf32>,
    return
  }
  func.func @transform_0(%arg0: i32) -> (i32, i32, i32) {
    %c0_i32 = arith.constant 0 : i32
    %c0_i32_0 = arith.constant 0 : i32
    %c0_i32_1 = arith.constant 0 : i32
    return %c0_i32, %arg0, %c0_i32_0 : i32, i32, i32
  }
  func.func @transform_1(%arg0: i32) -> (i32, i32) {
    %c0_i32 = arith.constant 0 : i32
    %c0_i32_0 = arith.constant 0 : i32
    %c0_i32_1 = arith.constant 0 : i32
    return %c0_i32, %c0_i32_0 : i32, i32
  }
  func.func @transform_2(%arg0: i32) -> (i32, i32) {
    %c0_i32 = arith.constant 0 : i32
    %c0_i32_0 = arith.constant 0 : i32
    %c0_i32_1 = arith.constant 0 : i32
    return %c0_i32, %c0_i32_0 : i32, i32
  }
  func.func @transform_3(%arg0: i32) -> (i32, i32) {
    %c0_i32 = arith.constant 0 : i32
    %c0_i32_0 = arith.constant 0 : i32
    %c0_i32_1 = arith.constant 0 : i32
    return %c0_i32, %c0_i32_0 : i32, i32
  }
  func.func @transform_4(%arg0: i32) -> (i32, i32) {
    %c0_i32 = arith.constant 0 : i32
    %c0_i32_0 = arith.constant 0 : i32
    %c0_i32_1 = arith.constant 0 : i32
    return %c0_i32, %c0_i32_0 : i32, i32
  }
  func.func @transform_5(%arg0: i32) -> (i32, i32) {
    %c0_i32 = arith.constant 0 : i32
    %c0_i32_0 = arith.constant 0 : i32
    %c0_i32_1 = arith.constant 0 : i32
    return %c0_i32, %c0_i32_0 : i32, i32
  }
  func.func @transform_6(%arg0: i32) -> (i32, i32) {
    %c0_i32 = arith.constant 0 : i32
    %c0_i32_0 = arith.constant 0 : i32
    %c0_i32_1 = arith.constant 0 : i32
    return %c0_i32, %c0_i32_0 : i32, i32
  }
  func.func @transform_7(%arg0: i32) -> (i32, i32, i32) {
    %c0_i32 = arith.constant 0 : i32
    %c0_i32_0 = arith.constant 0 : i32
    %c0_i32_1 = arith.constant 0 : i32
    return %c0_i32, %arg0, %c0_i32_0 : i32, i32, i32
  }
}

</mosaic_0001>

<llo_original>
// kernel: tpu_custom_call.1
$region0: #{tpu_custom_call.1}
  #allocation0 [shape = 'u32[]', space=smem, size = 0x4, offset = 0x4, fixed_abs, tag = 'smem constant byte address 0x4 - core index']
  #allocation1 [shape = 'u32[144,128]{1,0:T(1,128)}', space=vmem, size = 0x12000, scoped, tag = 'internal scratch']
  #allocation2 [shape = 'bf16[8,8,512]{2,1,0:T(8,128)(2,1)}', space=vmem, size = 0x10000, scoped, tag = 'scratch operand']
  #allocation3 [shape = 'bf16[8,8,512]{2,1,0:T(8,128)(2,1)}', space=vmem, size = 0x10000, scoped, tag = 'scratch operand']
  #allocation4 [shape = 'bf16[8,8,128]{2,1,0:T(8,128)(2,1)}', space=vmem, size = 0x4000, scoped, tag = 'scratch operand']
  #allocation5 [shape = 'bf16[8,8,128]{2,1,0:T(8,128)(2,1)}', space=vmem, size = 0x4000, scoped, tag = 'scratch operand']
  %s0 = inlined_call_operand.hbm [shape: bf16[8,8,32], index: 0, kind: input, shape index: {}]
  %s1 = inlined_call_operand.hbm [shape: bf16[32,1024], index: 1, kind: input, shape index: {}]
  %s2 = inlined_call_operand.hbm [shape: bf16[256,1024], index: 2, kind: input, shape index: {}]
  %s3 = inlined_call_operand.vmem [shape: f32[1,1024], index: 3, kind: input, shape index: {}]
  %s4 = inlined_call_operand.hbm [shape: bf16[128,128], index: 4, kind: input, shape index: {}]
  %s5 = inlined_call_operand.hbm [shape: bf16[128,128], index: 5, kind: input, shape index: {}]
  %s6 = inlined_call_operand.vmem [shape: f32[1,128], index: 6, kind: input, shape index: {}]
  %s7 = inlined_call_operand.hbm [shape: f32[8,8,128], index: 7, kind: output, shape index: {}]
  %s8 = sld [smem:[#allocation0]]
  $region58: #{tpu_custom_call.1} parent=0
    _
  %s10 = ssub.s32 1, %s8
  %s11 = scalar_select 0, %s10, %s8
  $region1: #{tpu_custom_call.1} parent=0
    #allocation6 [shape = 'u8[16384]{0}', space=vmem, size = 0x4000, scoped, tag = 'input window, operand 0, single buffered']
    #allocation7 [shape = 's32[1]{0}', space=sflag, size = 0x4, scoped, tag = 'scoped memory for tpu_custom_call.1']
    #allocation8 [shape = 's32[1]{0}', space=sflag, size = 0x4, scoped, tag = 'scoped memory for tpu_custom_call.1']
    #allocation9 [shape = 'u8[65536]{0}', space=vmem, size = 0x10000, scoped, tag = 'input window, operand 1, single buffered']
    #allocation10 [shape = 's32[1]{0}', space=sflag, size = 0x4, scoped, tag = 'scoped memory for tpu_custom_call.1']
    #allocation11 [shape = 'u8[524288]{0}', space=vmem, size = 0x80000, scoped, tag = 'input window, operand 2, single buffered']
    #allocation12 [shape = 'u8[32768]{0}', space=vmem, size = 0x8000, scoped, tag = 'input window, operand 4, single buffered']
    #allocation13 [shape = 's32[1]{0}', space=sflag, size = 0x4, scoped, tag = 'scoped memory for tpu_custom_call.1']
    #allocation14 [shape = 'u8[32768]{0}', space=vmem, size = 0x8000, scoped, tag = 'input window, operand 5, single buffered']
    #allocation15 [shape = 'u8[32768]{0}', space=vmem, size = 0x8000, scoped, tag = 'output window, operand 0, single buffered']
    %12 = vsyncpa [#allocation7], 0
    %13 = vsyncpa [#allocation10], 0
    %14 = vsyncpa [#allocation13], 0
    %15 = vsyncpa [#allocation8], 0
    // Predicated region
    $region2: #{tpu_custom_call.1} parent=1 // pred_check
      _
    $region3: #{tpu_custom_call.1} parent=1 // pred_check_branch
      %17 = sbr.rel (0) target = $region5
    $region4: #{tpu_custom_call.1} parent=1 // pred_region
      %s19 = ssub.s32 512, 512
      %20 = vsyncadd [#allocation7], %s19
      %s21 = sshll.u32 [#allocation6], 4
      %s22 = int_to_ptr.vmem [resolvable:$true] %s21
      %27 = dma.hbm_to_vmem [thread:$0]  %s0, 512, %s22, [#allocation7], 64, 64, 4
    $region5: #{tpu_custom_call.1} parent=1 // pred_fallthru
      _
    // Predicated region
    $region6: #{tpu_custom_call.1} parent=1 // pred_check
      _
    $region7: #{tpu_custom_call.1} parent=1 // pred_check_branch
      %29 = sbr.rel (0) target = $region9
    $region8: #{tpu_custom_call.1} parent=1 // pred_region
      %s31 = ssub.s32 2048, 2048
      %32 = vsyncadd [#allocation10], %s31
      %s33 = sshll.u32 [#allocation9], 4
      %s34 = int_to_ptr.vmem [resolvable:$true] %s33
      %39 = dma.hbm_to_vmem [thread:$0]  %s1, 2048, %s34, [#allocation10], 512, 512, 32
    $region9: #{tpu_custom_call.1} parent=1 // pred_fallthru
      _
    // Predicated region
    $region10: #{tpu_custom_call.1} parent=1 // pred_check
      _
    $region11: #{tpu_custom_call.1} parent=1 // pred_check_branch
      %41 = sbr.rel (0) target = $region13
    $region12: #{tpu_custom_call.1} parent=1 // pred_region
      %s43 = ssub.s32 16384, 16384
      %44 = vsyncadd [#allocation10], %s43
      %s45 = sshll.u32 [#allocation11], 4
      %s46 = int_to_ptr.vmem [resolvable:$true] %s45
      %51 = dma.hbm_to_vmem [thread:$0]  %s2, 16384, %s46, [#allocation10], 512, 512, 32
    $region13: #{tpu_custom_call.1} parent=1 // pred_fallthru
      _
    // Predicated region
    $region14: #{tpu_custom_call.1} parent=1 // pred_check
      _
    $region15: #{tpu_custom_call.1} parent=1 // pred_check_branch
      %53 = sbr.rel (0) target = $region17
    $region16: #{tpu_custom_call.1} parent=1 // pred_region
      _
    $region17: #{tpu_custom_call.1} parent=1 // pred_fallthru
      _
    // Predicated region
    $region18: #{tpu_custom_call.1} parent=1 // pred_check
      _
    $region19: #{tpu_custom_call.1} parent=1 // pred_check_branch
      %55 = sbr.rel (0) target = $region21
    $region20: #{tpu_custom_call.1} parent=1 // pred_region
      %s57 = ssub.s32 1024, 1024
      %58 = vsyncadd [#allocation13], %s57
      %s59 = sshll.u32 [#allocation12], 4
      %s60 = int_to_ptr.vmem [resolvable:$true] %s59
      %65 = dma.hbm_to_vmem [thread:$0]  %s4, 1024, %s60, [#allocation13], 64, 64, 4
    $region21: #{tpu_custom_call.1} parent=1 // pred_fallthru
      _
    // Predicated region
    $region22: #{tpu_custom_call.1} parent=1 // pred_check
      _
    $region23: #{tpu_custom_call.1} parent=1 // pred_check_branch
      %67 = sbr.rel (0) target = $region25
    $region24: #{tpu_custom_call.1} parent=1 // pred_region
      %s69 = ssub.s32 1024, 1024
      %70 = vsyncadd [#allocation13], %s69
      %s71 = sshll.u32 [#allocation14], 4
      %s72 = int_to_ptr.vmem [resolvable:$true] %s71
      %77 = dma.hbm_to_vmem [thread:$0]  %s5, 1024, %s72, [#allocation13], 64, 64, 4
    $region25: #{tpu_custom_call.1} parent=1 // pred_fallthru
      _
    // Predicated region
    $region26: #{tpu_custom_call.1} parent=1 // pred_check
      _
    $region27: #{tpu_custom_call.1} parent=1 // pred_check_branch
      %79 = sbr.rel (0) target = $region29
    $region28: #{tpu_custom_call.1} parent=1 // pred_region
      _
    $region29: #{tpu_custom_call.1} parent=1 // pred_fallthru
      _
    // Predicated region
    $region30: #{tpu_custom_call.1} parent=1 // pred_check
      _
    $region31: #{tpu_custom_call.1} parent=1 // pred_check_branch
      %81 = sbr.rel (0) target = $region33
    $region32: #{tpu_custom_call.1} parent=1 // pred_region
      %82 = dma.done [#allocation7], 512
    $region33: #{tpu_custom_call.1} parent=1 // pred_fallthru
      _
    // Predicated region
    $region34: #{tpu_custom_call.1} parent=1 // pred_check
      _
    $region35: #{tpu_custom_call.1} parent=1 // pred_check_branch
      %84 = sbr.rel (0) target = $region37
    $region36: #{tpu_custom_call.1} parent=1 // pred_region
      %85 = dma.done [#allocation10], 2048
    $region37: #{tpu_custom_call.1} parent=1 // pred_fallthru
      _
    // Predicated region
    $region38: #{tpu_custom_call.1} parent=1 // pred_check
      _
    $region39: #{tpu_custom_call.1} parent=1 // pred_check_branch
      %87 = sbr.rel (0) target = $region41
    $region40: #{tpu_custom_call.1} parent=1 // pred_region
      %88 = dma.done [#allocation10], 16384
    $region41: #{tpu_custom_call.1} parent=1 // pred_fallthru
      _
    // Predicated region
    $region42: #{tpu_custom_call.1} parent=1 // pred_check
      _
    $region43: #{tpu_custom_call.1} parent=1 // pred_check_branch
      %90 = sbr.rel (0) target = $region45
    $region44: #{tpu_custom_call.1} parent=1 // pred_region
      %91 = dma.done [#allocation13], 1024
    $region45: #{tpu_custom_call.1} parent=1 // pred_fallthru
      _
    // Predicated region
    $region46: #{tpu_custom_call.1} parent=1 // pred_check
      _
    $region47: #{tpu_custom_call.1} parent=1 // pred_check_branch
      %93 = sbr.rel (0) target = $region49
    $region48: #{tpu_custom_call.1} parent=1 // pred_region
      %94 = dma.done [#allocation13], 1024
    $region49: #{tpu_custom_call.1} parent=1 // pred_fallthru
      _
    %v96 = vld [vmem:[#allocation6] sm:$0xf]
    %v97 = vld [vmem:[#allocation6 + $0x4] sm:$0xf]
    %v98 = vld [vmem:[#allocation6 + $0x8] sm:$0xf]
    %v99 = vld [vmem:[#allocation6 + $0xc] sm:$0xf]
    %v100 = vld [vmem:[#allocation6 + $0x10] sm:$0xf]
    %v101 = vld [vmem:[#allocation6 + $0x14] sm:$0xf]
    %v102 = vld [vmem:[#allocation6 + $0x18] sm:$0xf]
    %v103 = vld [vmem:[#allocation6 + $0x1c] sm:$0xf]
    %v104 = vld [vmem:[#allocation9] sm:$0xff]
    %v105 = vld [vmem:[#allocation9 + $0x8] sm:$0xff]
    %v106 = vld [vmem:[#allocation9 + $0x10] sm:$0xff]
    %v107 = vld [vmem:[#allocation9 + $0x18] sm:$0xff]
    %v108 = vld [vmem:[#allocation9 + $0x20] sm:$0xff]
    %v109 = vld [vmem:[#allocation9 + $0x28] sm:$0xff]
    %v110 = vld [vmem:[#allocation9 + $0x30] sm:$0xff]
    %v111 = vld [vmem:[#allocation9 + $0x38] sm:$0xff]
    %v112 = vld [vmem:[#allocation9 + $0x40] sm:$0xff]
    %v113 = vld [vmem:[#allocation9 + $0x48] sm:$0xff]
    %v114 = vld [vmem:[#allocation9 + $0x50] sm:$0xff]
    %v115 = vld [vmem:[#allocation9 + $0x58] sm:$0xff]
    %v116 = vld [vmem:[#allocation9 + $0x60] sm:$0xff]
    %v117 = vld [vmem:[#allocation9 + $0x68] sm:$0xff]
    %v118 = vld [vmem:[#allocation9 + $0x70] sm:$0xff]
    %v119 = vld [vmem:[#allocation9 + $0x78] sm:$0xff]
    %v120 = vld [vmem:[%s3] sm:$0xff]
    %v122 = vlaneseq
    %v123 = vshrl.u32 %v122, 7
    %v124 = vsub.s32 0, %v123
    %v125 = vrot.slane %v120, %v124
    %v126 = vlaneseq
    %v127 = vshrl.u32 %v126, 7
    %v128 = vsub.s32 1, %v127
    %v129 = vrot.slane %v120, %v128
    %v130 = vlaneseq
    %v131 = vshrl.u32 %v130, 7
    %v132 = vsub.s32 2, %v131
    %v133 = vrot.slane %v120, %v132
    %v134 = vlaneseq
    %v135 = vshrl.u32 %v134, 7
    %v136 = vsub.s32 3, %v135
    %v137 = vrot.slane %v120, %v136
    %v138 = vlaneseq
    %v139 = vshrl.u32 %v138, 7
    %v140 = vsub.s32 4, %v139
    %v141 = vrot.slane %v120, %v140
    %v142 = vlaneseq
    %v143 = vshrl.u32 %v142, 7
    %v144 = vsub.s32 5, %v143
    %v145 = vrot.slane %v120, %v144
    %v146 = vlaneseq
    %v147 = vshrl.u32 %v146, 7
    %v148 = vsub.s32 6, %v147
    %v149 = vrot.slane %v120, %v148
    %v150 = vlaneseq
    %v151 = vshrl.u32 %v150, 7
    %v152 = vsub.s32 7, %v151
    %v153 = vrot.slane %v120, %v152
    %v170 = vunpack.c.l.b16 %v96
    %v171 = vunpack.c.l.b16 %v97
    %v172 = vunpack.c.l.b16 %v98
    %v173 = vunpack.c.l.b16 %v99
    %v174 = vunpack.c.l.b16 %v100
    %v175 = vunpack.c.l.b16 %v101
    %v176 = vunpack.c.l.b16 %v102
    %v177 = vunpack.c.l.b16 %v103
    %v178 = vpack.c.b16 %v171, %v170
    %v179 = vpack.c.b16 %v173, %v172
    %v180 = vpack.c.b16 %v175, %v174
    %v181 = vpack.c.b16 %v177, %v176
    %v198 = vunpack.c.l.b16 %v104
    %v199 = vunpack.c.h.b16 %v104
    %v200 = vunpack.c.l.b16 %v105
    %v201 = vunpack.c.h.b16 %v105
    %v202 = vunpack.c.l.b16 %v106
    %v203 = vunpack.c.h.b16 %v106
    %v204 = vunpack.c.l.b16 %v107
    %v205 = vunpack.c.h.b16 %v107
    %v206 = vunpack.c.l.b16 %v108
    %v207 = vunpack.c.h.b16 %v108
    %v208 = vunpack.c.l.b16 %v109
    %v209 = vunpack.c.h.b16 %v109
    %v210 = vunpack.c.l.b16 %v110
    %v211 = vunpack.c.h.b16 %v110
    %v212 = vunpack.c.l.b16 %v111
    %v213 = vunpack.c.h.b16 %v111
    %v214 = vunpack.c.l.b16 %v112
    %v215 = vunpack.c.h.b16 %v112
    %v216 = vunpack.c.l.b16 %v113
    %v217 = vunpack.c.h.b16 %v113
    %v218 = vunpack.c.l.b16 %v114
    %v219 = vunpack.c.h.b16 %v114
    %v220 = vunpack.c.l.b16 %v115
    %v221 = vunpack.c.h.b16 %v115
    %v222 = vunpack.c.l.b16 %v116
    %v223 = vunpack.c.h.b16 %v116
    %v224 = vunpack.c.l.b16 %v117
    %v225 = vunpack.c.h.b16 %v117
    %v226 = vunpack.c.l.b16 %v118
    %v227 = vunpack.c.h.b16 %v118
    %v228 = vunpack.c.l.b16 %v119
    %v229 = vunpack.c.h.b16 %v119
    %v230 = vpack.c.b16 %v206, %v198
    %v231 = vpack.c.b16 %v207, %v199
    %v232 = vpack.c.b16 %v208, %v200
    %v233 = vpack.c.b16 %v209, %v201
    %v234 = vpack.c.b16 %v210, %v202
    %v235 = vpack.c.b16 %v211, %v203
    %v236 = vpack.c.b16 %v212, %v204
    %v237 = vpack.c.b16 %v213, %v205
    %v238 = vpack.c.b16 %v222, %v214
    %v239 = vpack.c.b16 %v223, %v215
    %v240 = vpack.c.b16 %v224, %v216
    %v241 = vpack.c.b16 %v225, %v217
    %v242 = vpack.c.b16 %v226, %v218
    %v243 = vpack.c.b16 %v227, %v219
    %v244 = vpack.c.b16 %v228, %v220
    %v245 = vpack.c.b16 %v229, %v221
    %vm262 = vcmask 261120
    %v264 = vsel %vm262, %v178, 0
    %v267 = vsel %vm262, %v179, 0
    %v270 = vsel %vm262, %v180, 0
    %v273 = vsel %vm262, %v181, 0
    %275 = vmatprep.subr.bf16.mxu0 %v231
    %276 = vmatpush1.bf16.msra.mxu0 %v230
    %277 = vmatprep.subr.bf16.mxu0 %v239
    %278 = vmatpush1.bf16.msra.mxu0 %v238
    %279 = vmatprep.subr.bf16.mxu0 0
    %280 = vmatpush1.bf16.msra.mxu0 0
    %281 = vmatprep.subr.bf16.mxu0 0
    %282 = vmatpush1.bf16.msra.mxu0 0
    %283 = vmatprep.subr.bf16.mxu0 0
    %284 = vmatpush1.bf16.msra.mxu0 0
    %285 = vmatprep.subr.bf16.mxu0 0
    %286 = vmatpush1.bf16.msra.mxu0 0
    %287 = vmatprep.subr.bf16.mxu0 0
    %288 = vmatpush1.bf16.msra.mxu0 0
    %289 = vmatprep.subr.bf16.mxu0 0
    %290 = vmatpush1.bf16.msra.mxu0 0
    %291 = vmatprep.subr.bf16.mxu0 0
    %292 = vmatpush1.bf16.msra.mxu0 0
    %293 = vmatprep.subr.bf16.mxu0 0
    %294 = vmatpush1.bf16.msra.mxu0 0
    %295 = vmatprep.subr.bf16.mxu0 0
    %296 = vmatpush1.bf16.msra.mxu0 0
    %297 = vmatprep.subr.bf16.mxu0 0
    %298 = vmatpush1.bf16.msra.mxu0 0
    %299 = vmatprep.subr.bf16.mxu0 0
    %300 = vmatpush1.bf16.msra.mxu0 0
    %301 = vmatprep.subr.bf16.mxu0 0
    %302 = vmatpush1.bf16.msra.mxu0 0
    %303 = vmatprep.subr.bf16.mxu0 0
    %304 = vmatpush1.bf16.msra.mxu0 0
    %305 = vmatprep.subr.bf16.mxu0 0
    %306 = vmatpush1.bf16.msra.mxu0 0
    %307 = vmatprep.mubr.bf16.mxu0 0
    %308 = vmatmul.mubr.bf16.gmra.mrb[0].mxu0 %v264
    %v309 = vpop.f32.mrb[0].mxu0
    %v310 = vadd.f32 %v125, %v309
    %v311 = vpop.f32.mrb[0].mxu0
    %v312 = vadd.f32 %v129, %v311
    %v313 = vpop.f32.mrb[0].mxu0
    %v314 = vadd.f32 %v125, %v313
    %v315 = vpop.f32.mrb[0].mxu0
    %v316 = vadd.f32 %v129, %v315
    %317 = vmatprep.mubr.bf16.mxu0 0
    %318 = vmatmul.mubr.bf16.gmra.mrb[0].mxu0 %v267
    %v319 = vpop.f32.mrb[0].mxu0
    %v320 = vadd.f32 %v125, %v319
    %v321 = vpop.f32.mrb[0].mxu0
    %v322 = vadd.f32 %v129, %v321
    %v323 = vpop.f32.mrb[0].mxu0
    %v324 = vadd.f32 %v125, %v323
    %v325 = vpop.f32.mrb[0].mxu0
    %v326 = vadd.f32 %v129, %v325
    %327 = vmatprep.mubr.bf16.mxu0 0
    %328 = vmatmul.mubr.bf16.gmra.mrb[0].mxu0 %v270
    %v329 = vpop.f32.mrb[0].mxu0
    %v330 = vadd.f32 %v125, %v329
    %v331 = vpop.f32.mrb[0].mxu0
    %v332 = vadd.f32 %v129, %v331
    %v333 = vpop.f32.mrb[0].mxu0
    %v334 = vadd.f32 %v125, %v333
    %v335 = vpop.f32.mrb[0].mxu0
    %v336 = vadd.f32 %v129, %v335
    %337 = vmatprep.mubr.bf16.mxu0 0
    %338 = vmatmul.mubr.bf16.gmra.mrb[0].mxu0 %v273
    %v339 = vpop.f32.mrb[0].mxu0
    %v340 = vadd.f32 %v125, %v339
    %v341 = vpop.f32.mrb[0].mxu0
    %v342 = vadd.f32 %v129, %v341
    %v343 = vpop.f32.mrb[0].mxu0
    %v344 = vadd.f32 %v125, %v343
    %v345 = vpop.f32.mrb[0].mxu0
    %v346 = vadd.f32 %v129, %v345
    %347 = vdwg.mxu0
    %348 = vmatprep.subr.bf16.mxu0 %v233
    %349 = vmatpush1.bf16.msra.mxu0 %v232
    %350 = vmatprep.subr.bf16.mxu0 %v241
    %351 = vmatpush1.bf16.msra.mxu0 %v240
    %352 = vmatprep.subr.bf16.mxu0 0
    %353 = vmatpush1.bf16.msra.mxu0 0
    %354 = vmatprep.subr.bf16.mxu0 0
    %355 = vmatpush1.bf16.msra.mxu0 0
    %356 = vmatprep.subr.bf16.mxu0 0
    %357 = vmatpush1.bf16.msra.mxu0 0
    %358 = vmatprep.subr.bf16.mxu0 0
    %359 = vmatpush1.bf16.msra.mxu0 0
    %360 = vmatprep.subr.bf16.mxu0 0
    %361 = vmatpush1.bf16.msra.mxu0 0
    %362 = vmatprep.subr.bf16.mxu0 0
    %363 = vmatpush1.bf16.msra.mxu0 0
    %364 = vmatprep.subr.bf16.mxu0 0
    %365 = vmatpush1.bf16.msra.mxu0 0
    %366 = vmatprep.subr.bf16.mxu0 0
    %367 = vmatpush1.bf16.msra.mxu0 0
    %368 = vmatprep.subr.bf16.mxu0 0
    %369 = vmatpush1.bf16.msra.mxu0 0
    %370 = vmatprep.subr.bf16.mxu0 0
    %371 = vmatpush1.bf16.msra.mxu0 0
    %372 = vmatprep.subr.bf16.mxu0 0
    %373 = vmatpush1.bf16.msra.mxu0 0
    %374 = vmatprep.subr.bf16.mxu0 0
    %375 = vmatpush1.bf16.msra.mxu0 0
    %376 = vmatprep.subr.bf16.mxu0 0
    %377 = vmatpush1.bf16.msra.mxu0 0
    %378 = vmatprep.subr.bf16.mxu0 0
    %379 = vmatpush1.bf16.msra.mxu0 0
    %380 = vmatprep.mubr.bf16.mxu0 0
    %381 = vmatmul.mubr.bf16.gmra.mrb[0].mxu0 %v264
    %v382 = vpop.f32.mrb[0].mxu0
    %v383 = vadd.f32 %v133, %v382
    %v384 = vpop.f32.mrb[0].mxu0
    %v385 = vadd.f32 %v137, %v384
    %v386 = vpop.f32.mrb[0].mxu0
    %v387 = vadd.f32 %v133, %v386
    %v388 = vpop.f32.mrb[0].mxu0
    %v389 = vadd.f32 %v137, %v388
    %390 = vmatprep.mubr.bf16.mxu0 0
    %391 = vmatmul.mubr.bf16.gmra.mrb[0].mxu0 %v267
    %v392 = vpop.f32.mrb[0].mxu0
    %v393 = vadd.f32 %v133, %v392
    %v394 = vpop.f32.mrb[0].mxu0
    %v395 = vadd.f32 %v137, %v394
    %v396 = vpop.f32.mrb[0].mxu0
    %v397 = vadd.f32 %v133, %v396
    %v398 = vpop.f32.mrb[0].mxu0
    %v399 = vadd.f32 %v137, %v398
    %400 = vmatprep.mubr.bf16.mxu0 0
    %401 = vmatmul.mubr.bf16.gmra.mrb[0].mxu0 %v270
    %v402 = vpop.f32.mrb[0].mxu0
    %v403 = vadd.f32 %v133, %v402
    %v404 = vpop.f32.mrb[0].mxu0
    %v405 = vadd.f32 %v137, %v404
    %v406 = vpop.f32.mrb[0].mxu0
    %v407 = vadd.f32 %v133, %v406
    %v408 = vpop.f32.mrb[0].mxu0
    %v409 = vadd.f32 %v137, %v408
    %410 = vmatprep.mubr.bf16.mxu0 0
    %411 = vmatmul.mubr.bf16.gmra.mrb[0].mxu0 %v273
    %v412 = vpop.f32.mrb[0].mxu0
    %v413 = vadd.f32 %v133, %v412
    %v414 = vpop.f32.mrb[0].mxu0
    %v415 = vadd.f32 %v137, %v414
    %v416 = vpop.f32.mrb[0].mxu0
    %v417 = vadd.f32 %v133, %v416
    %v418 = vpop.f32.mrb[0].mxu0
    %v419 = vadd.f32 %v137, %v418
    %420 = vdwg.mxu0
    %421 = vmatprep.subr.bf16.mxu0 %v235
    %422 = vmatpush1.bf16.msra.mxu0 %v234
    %423 = vmatprep.subr.bf16.mxu0 %v243
    %424 = vmatpush1.bf16.msra.mxu0 %v242
    %425 = vmatprep.subr.bf16.mxu0 0
    %426 = vmatpush1.bf16.msra.mxu0 0
    %427 = vmatprep.subr.bf16.mxu0 0
    %428 = vmatpush1.bf16.msra.mxu0 0
    %429 = vmatprep.subr.bf16.mxu0 0
    %430 = vmatpush1.bf16.msra.mxu0 0
    %431 = vmatprep.subr.bf16.mxu0 0
    %432 = vmatpush1.bf16.msra.mxu0 0
    %433 = vmatprep.subr.bf16.mxu0 0
    %434 = vmatpush1.bf16.msra.mxu0 0
    %435 = vmatprep.subr.bf16.mxu0 0
    %436 = vmatpush1.bf16.msra.mxu0 0
    %437 = vmatprep.subr.bf16.mxu0 0
    %438 = vmatpush1.bf16.msra.mxu0 0
    %439 = vmatprep.subr.bf16.mxu0 0
    %440 = vmatpush1.bf16.msra.mxu0 0
    %441 = vmatprep.subr.bf16.mxu0 0
    %442 = vmatpush1.bf16.msra.mxu0 0
    %443 = vmatprep.subr.bf16.mxu0 0
    %444 = vmatpush1.bf16.msra.mxu0 0
    %445 = vmatprep.subr.bf16.mxu0 0
    %446 = vmatpush1.bf16.msra.mxu0 0
    %447 = vmatprep.subr.bf16.mxu0 0
    %448 = vmatpush1.bf16.msra.mxu0 0
    %449 = vmatprep.subr.bf16.mxu0 0
    %450 = vmatpush1.bf16.msra.mxu0 0
    %451 = vmatprep.subr.bf16.mxu0 0
    %452 = vmatpush1.bf16.msra.mxu0 0
    %453 = vmatprep.mubr.bf16.mxu0 0
    %454 = vmatmul.mubr.bf16.gmra.mrb[0].mxu0 %v264
    %v455 = vpop.f32.mrb[0].mxu0
    %v456 = vadd.f32 %v141, %v455
    %v457 = vpop.f32.mrb[0].mxu0
    %v458 = vadd.f32 %v145, %v457
    %v459 = vpop.f32.mrb[0].mxu0
    %v460 = vadd.f32 %v141, %v459
    %v461 = vpop.f32.mrb[0].mxu0
    %v462 = vadd.f32 %v145, %v461
    %463 = vmatprep.mubr.bf16.mxu0 0
    %464 = vmatmul.mubr.bf16.gmra.mrb[0].mxu0 %v267
    %v465 = vpop.f32.mrb[0].mxu0
    %v466 = vadd.f32 %v141, %v465
    %v467 = vpop.f32.mrb[0].mxu0
    %v468 = vadd.f32 %v145, %v467
    %v469 = vpop.f32.mrb[0].mxu0
    %v470 = vadd.f32 %v141, %v469
    %v471 = vpop.f32.mrb[0].mxu0
    %v472 = vadd.f32 %v145, %v471
    %473 = vmatprep.mubr.bf16.mxu0 0
    %474 = vmatmul.mubr.bf16.gmra.mrb[0].mxu0 %v270
    %v475 = vpop.f32.mrb[0].mxu0
    %v476 = vadd.f32 %v141, %v475
    %v477 = vpop.f32.mrb[0].mxu0
    %v478 = vadd.f32 %v145, %v477
    %v479 = vpop.f32.mrb[0].mxu0
    %v480 = vadd.f32 %v141, %v479
    %v481 = vpop.f32.mrb[0].mxu0
    %v482 = vadd.f32 %v145, %v481
    %483 = vmatprep.mubr.bf16.mxu0 0
    %484 = vmatmul.mubr.bf16.gmra.mrb[0].mxu0 %v273
    %v485 = vpop.f32.mrb[0].mxu0
    %v486 = vadd.f32 %v141, %v485
    %v487 = vpop.f32.mrb[0].mxu0
    %v488 = vadd.f32 %v145, %v487
    %v489 = vpop.f32.mrb[0].mxu0
    %v490 = vadd.f32 %v141, %v489
    %v491 = vpop.f32.mrb[0].mxu0
    %v492 = vadd.f32 %v145, %v491
    %493 = vdwg.mxu0
    %494 = vmatprep.subr.bf16.mxu0 %v237
    %495 = vmatpush1.bf16.msra.mxu0 %v236
    %496 = vmatprep.subr.bf16.mxu0 %v245
    %497 = vmatpush1.bf16.msra.mxu0 %v244
    %498 = vmatprep.subr.bf16.mxu0 0
    %499 = vmatpush1.bf16.msra.mxu0 0
    %500 = vmatprep.subr.bf16.mxu0 0
    %501 = vmatpush1.bf16.msra.mxu0 0
    %502 = vmatprep.subr.bf16.mxu0 0
    %503 = vmatpush1.bf16.msra.mxu0 0
    %504 = vmatprep.subr.bf16.mxu0 0
    %505 = vmatpush1.bf16.msra.mxu0 0
    %506 = vmatprep.subr.bf16.mxu0 0
    %507 = vmatpush1.bf16.msra.mxu0 0
    %508 = vmatprep.subr.bf16.mxu0 0
    %509 = vmatpush1.bf16.msra.mxu0 0
    %510 = vmatprep.subr.bf16.mxu0 0
    %511 = vmatpush1.bf16.msra.mxu0 0
    %512 = vmatprep.subr.bf16.mxu0 0
    %513 = vmatpush1.bf16.msra.mxu0 0
    %514 = vmatprep.subr.bf16.mxu0 0
    %515 = vmatpush1.bf16.msra.mxu0 0
    %516 = vmatprep.subr.bf16.mxu0 0
    %517 = vmatpush1.bf16.msra.mxu0 0
    %518 = vmatprep.subr.bf16.mxu0 0
    %519 = vmatpush1.bf16.msra.mxu0 0
    %520 = vmatprep.subr.bf16.mxu0 0
    %521 = vmatpush1.bf16.msra.mxu0 0
    %522 = vmatprep.subr.bf16.mxu0 0
    %523 = vmatpush1.bf16.msra.mxu0 0
    %524 = vmatprep.subr.bf16.mxu0 0
    %525 = vmatpush1.bf16.msra.mxu0 0
    %526 = vmatprep.mubr.bf16.mxu0 0
    %527 = vmatmul.mubr.bf16.gmra.mrb[0].mxu0 %v264
    %v528 = vpop.f32.mrb[0].mxu0
    %v529 = vadd.f32 %v149, %v528
    %v530 = vpop.f32.mrb[0].mxu0
    %v531 = vadd.f32 %v153, %v530
    %v532 = vpop.f32.mrb[0].mxu0
    %v533 = vadd.f32 %v149, %v532
    %v534 = vpop.f32.mrb[0].mxu0
    %v535 = vadd.f32 %v153, %v534
    %536 = vmatprep.mubr.bf16.mxu0 0
    %537 = vmatmul.mubr.bf16.gmra.mrb[0].mxu0 %v267
    %v538 = vpop.f32.mrb[0].mxu0
    %v539 = vadd.f32 %v149, %v538
    %v540 = vpop.f32.mrb[0].mxu0
    %v541 = vadd.f32 %v153, %v540
    %v542 = vpop.f32.mrb[0].mxu0
    %v543 = vadd.f32 %v149, %v542
    %v544 = vpop.f32.mrb[0].mxu0
    %v545 = vadd.f32 %v153, %v544
    %546 = vmatprep.mubr.bf16.mxu0 0
    %547 = vmatmul.mubr.bf16.gmra.mrb[0].mxu0 %v270
    %v548 = vpop.f32.mrb[0].mxu0
    %v549 = vadd.f32 %v149, %v548
    %v550 = vpop.f32.mrb[0].mxu0
    %v551 = vadd.f32 %v153, %v550
    %v552 = vpop.f32.mrb[0].mxu0
    %v553 = vadd.f32 %v149, %v552
    %v554 = vpop.f32.mrb[0].mxu0
    %v555 = vadd.f32 %v153, %v554
    %556 = vmatprep.mubr.bf16.mxu0 0
    %557 = vmatmul.mubr.bf16.gmra.mrb[0].mxu0 %v273
    %v558 = vpop.f32.mrb[0].mxu0
    %v559 = vadd.f32 %v149, %v558
    %v560 = vpop.f32.mrb[0].mxu0
    %v561 = vadd.f32 %v153, %v560
    %v562 = vpop.f32.mrb[0].mxu0
    %v563 = vadd.f32 %v149, %v562
    %v564 = vpop.f32.mrb[0].mxu0
    %v565 = vadd.f32 %v153, %v564
    %566 = vdwg.mxu0
    %v567 = vpack.c.bf16 %v310, %v310
    %v568 = vpack.c.bf16 %v312, %v312
    %v569 = vpack.c.bf16 %v383, %v383
    %v570 = vpack.c.bf16 %v385, %v385
    %v571 = vpack.c.bf16 %v314, %v314
    %v572 = vpack.c.bf16 %v316, %v316
    %v573 = vpack.c.bf16 %v387, %v387
    %v574 = vpack.c.bf16 %v389, %v389
    %v575 = vpack.c.bf16 %v320, %v320
    %v576 = vpack.c.bf16 %v322, %v322
    %v577 = vpack.c.bf16 %v393, %v393
    %v578 = vpack.c.bf16 %v395, %v395
    %v579 = vpack.c.bf16 %v324, %v324
    %v580 = vpack.c.bf16 %v326, %v326
    %v581 = vpack.c.bf16 %v397, %v397
    %v582 = vpack.c.bf16 %v399, %v399
    %v583 = vpack.c.bf16 %v330, %v330
    %v584 = vpack.c.bf16 %v332, %v332
    %v585 = vpack.c.bf16 %v403, %v403
    %v586 = vpack.c.bf16 %v405, %v405
    %v587 = vpack.c.bf16 %v334, %v334
    %v588 = vpack.c.bf16 %v336, %v336
    %v589 = vpack.c.bf16 %v407, %v407
    %v590 = vpack.c.bf16 %v409, %v409
    %v591 = vpack.c.bf16 %v340, %v340
    %v592 = vpack.c.bf16 %v342, %v342
    %v593 = vpack.c.bf16 %v413, %v413
    %v594 = vpack.c.bf16 %v415, %v415
    %v595 = vpack.c.bf16 %v344, %v344
    %v596 = vpack.c.bf16 %v346, %v346
    %v597 = vpack.c.bf16 %v417, %v417
    %v598 = vpack.c.bf16 %v419, %v419
    %v631 = vunpack.c.l.b16 %v567
    %v632 = vunpack.c.l.b16 %v568
    %v633 = vunpack.c.l.b16 %v569
    %v634 = vunpack.c.l.b16 %v570
    %v635 = vunpack.c.l.b16 %v571
    %v636 = vunpack.c.l.b16 %v572
    %v637 = vunpack.c.l.b16 %v573
    %v638 = vunpack.c.l.b16 %v574
    %v639 = vunpack.c.l.b16 %v575
    %v640 = vunpack.c.l.b16 %v576
    %v641 = vunpack.c.l.b16 %v577
    %v642 = vunpack.c.l.b16 %v578
    %v643 = vunpack.c.l.b16 %v579
    %v644 = vunpack.c.l.b16 %v580
    %v645 = vunpack.c.l.b16 %v581
    %v646 = vunpack.c.l.b16 %v582
    %v647 = vunpack.c.l.b16 %v583
    %v648 = vunpack.c.l.b16 %v584
    %v649 = vunpack.c.l.b16 %v585
    %v650 = vunpack.c.l.b16 %v586
    %v651 = vunpack.c.l.b16 %v587
    %v652 = vunpack.c.l.b16 %v588
    %v653 = vunpack.c.l.b16 %v589
    %v654 = vunpack.c.l.b16 %v590
    %v655 = vunpack.c.l.b16 %v591
    %v656 = vunpack.c.l.b16 %v592
    %v657 = vunpack.c.l.b16 %v593
    %v658 = vunpack.c.l.b16 %v594
    %v659 = vunpack.c.l.b16 %v595
    %v660 = vunpack.c.l.b16 %v596
    %v661 = vunpack.c.l.b16 %v597
    %v662 = vunpack.c.l.b16 %v598
    %v663 = vpack.c.b16 %v632, %v631
    %v664 = vpack.c.b16 %v634, %v633
    %v665 = vpack.c.b16 %v636, %v635
    %v666 = vpack.c.b16 %v638, %v637
    %v667 = vpack.c.b16 %v640, %v639
    %v668 = vpack.c.b16 %v642, %v641
    %v669 = vpack.c.b16 %v644, %v643
    %v670 = vpack.c.b16 %v646, %v645
    %v671 = vpack.c.b16 %v648, %v647
    %v672 = vpack.c.b16 %v650, %v649
    %v673 = vpack.c.b16 %v652, %v651
    %v674 = vpack.c.b16 %v654, %v653
    %v675 = vpack.c.b16 %v656, %v655
    %v676 = vpack.c.b16 %v658, %v657
    %v677 = vpack.c.b16 %v660, %v659
    %v678 = vpack.c.b16 %v662, %v661
    %695 = vst [vmem:[#allocation2] sm:$0xff] %v663
    %696 = vst [vmem:[#allocation2 + $0x8] sm:$0xff] %v664
    %697 = vst [vmem:[#allocation2 + $0x10] sm:$0xff] %v665
    %698 = vst [vmem:[#allocation2 + $0x18] sm:$0xff] %v666
    %699 = vst [vmem:[#allocation2 + $0x20] sm:$0xff] %v667
    %700 = vst [vmem:[#allocation2 + $0x28] sm:$0xff] %v668
    %701 = vst [vmem:[#allocation2 + $0x30] sm:$0xff] %v669
    %702 = vst [vmem:[#allocation2 + $0x38] sm:$0xff] %v670
    %703 = vst [vmem:[#allocation2 + $0x40] sm:$0xff] %v671
    %704 = vst [vmem:[#allocation2 + $0x48] sm:$0xff] %v672
    %705 = vst [vmem:[#allocation2 + $0x50] sm:$0xff] %v673
    %706 = vst [vmem:[#allocation2 + $0x58] sm:$0xff] %v674
    %707 = vst [vmem:[#allocation2 + $0x60] sm:$0xff] %v675
    %708 = vst [vmem:[#allocation2 + $0x68] sm:$0xff] %v676
    %709 = vst [vmem:[#allocation2 + $0x70] sm:$0xff] %v677
    %710 = vst [vmem:[#allocation2 + $0x78] sm:$0xff] %v678
    %v711 = vpack.c.bf16 %v456, %v456
    %v712 = vpack.c.bf16 %v458, %v458
    %v713 = vpack.c.bf16 %v529, %v529
    %v714 = vpack.c.bf16 %v531, %v531
    %v715 = vpack.c.bf16 %v460, %v460
    %v716 = vpack.c.bf16 %v462, %v462
    %v717 = vpack.c.bf16 %v533, %v533
    %v718 = vpack.c.bf16 %v535, %v535
    %v719 = vpack.c.bf16 %v466, %v466
    %v720 = vpack.c.bf16 %v468, %v468
    %v721 = vpack.c.bf16 %v539, %v539
    %v722 = vpack.c.bf16 %v541, %v541
    %v723 = vpack.c.bf16 %v470, %v470
    %v724 = vpack.c.bf16 %v472, %v472
    %v725 = vpack.c.bf16 %v543, %v543
    %v726 = vpack.c.bf16 %v545, %v545
    %v727 = vpack.c.bf16 %v476, %v476
    %v728 = vpack.c.bf16 %v478, %v478
    %v729 = vpack.c.bf16 %v549, %v549
    %v730 = vpack.c.bf16 %v551, %v551
    %v731 = vpack.c.bf16 %v480, %v480
    %v732 = vpack.c.bf16 %v482, %v482
    %v733 = vpack.c.bf16 %v553, %v553
    %v734 = vpack.c.bf16 %v555, %v555
    %v735 = vpack.c.bf16 %v486, %v486
    %v736 = vpack.c.bf16 %v488, %v488
    %v737 = vpack.c.bf16 %v559, %v559
    %v738 = vpack.c.bf16 %v561, %v561
    %v739 = vpack.c.bf16 %v490, %v490
    %v740 = vpack.c.bf16 %v492, %v492
    %v741 = vpack.c.bf16 %v563, %v563
    %v742 = vpack.c.bf16 %v565, %v565
    %v775 = vunpack.c.l.b16 %v711
    %v776 = vunpack.c.l.b16 %v712
    %v777 = vunpack.c.l.b16 %v713
    %v778 = vunpack.c.l.b16 %v714
    %v779 = vunpack.c.l.b16 %v715
    %v780 = vunpack.c.l.b16 %v716
    %v781 = vunpack.c.l.b16 %v717
    %v782 = vunpack.c.l.b16 %v718
    %v783 = vunpack.c.l.b16 %v719
    %v784 = vunpack.c.l.b16 %v720
    %v785 = vunpack.c.l.b16 %v721
    %v786 = vunpack.c.l.b16 %v722
    %v787 = vunpack.c.l.b16 %v723
    %v788 = vunpack.c.l.b16 %v724
    %v789 = vunpack.c.l.b16 %v725
    %v790 = vunpack.c.l.b16 %v726
    %v791 = vunpack.c.l.b16 %v727
    %v792 = vunpack.c.l.b16 %v728
    %v793 = vunpack.c.l.b16 %v729
    %v794 = vunpack.c.l.b16 %v730
    %v795 = vunpack.c.l.b16 %v731
    %v796 = vunpack.c.l.b16 %v732
    %v797 = vunpack.c.l.b16 %v733
    %v798 = vunpack.c.l.b16 %v734
    %v799 = vunpack.c.l.b16 %v735
    %v800 = vunpack.c.l.b16 %v736
    %v801 = vunpack.c.l.b16 %v737
    %v802 = vunpack.c.l.b16 %v738
    %v803 = vunpack.c.l.b16 %v739
    %v804 = vunpack.c.l.b16 %v740
    %v805 = vunpack.c.l.b16 %v741
    %v806 = vunpack.c.l.b16 %v742
    %v807 = vpack.c.b16 %v776, %v775
    %v808 = vpack.c.b16 %v778, %v777
    %v809 = vpack.c.b16 %v780, %v779
    %v810 = vpack.c.b16 %v782, %v781
    %v811 = vpack.c.b16 %v784, %v783
    %v812 = vpack.c.b16 %v786, %v785
    %v813 = vpack.c.b16 %v788, %v787
    %v814 = vpack.c.b16 %v790, %v789
    %v815 = vpack.c.b16 %v792, %v791
    %v816 = vpack.c.b16 %v794, %v793
    %v817 = vpack.c.b16 %v796, %v795
    %v818 = vpack.c.b16 %v798, %v797
    %v819 = vpack.c.b16 %v800, %v799
    %v820 = vpack.c.b16 %v802, %v801
    %v821 = vpack.c.b16 %v804, %v803
    %v822 = vpack.c.b16 %v806, %v805
    %839 = vst [vmem:[#allocation3] sm:$0xff] %v807
    %840 = vst [vmem:[#allocation3 + $0x8] sm:$0xff] %v808
    %841 = vst [vmem:[#allocation3 + $0x10] sm:$0xff] %v809
    %842 = vst [vmem:[#allocation3 + $0x18] sm:$0xff] %v810
    %843 = vst [vmem:[#allocation3 + $0x20] sm:$0xff] %v811
    %844 = vst [vmem:[#allocation3 + $0x28] sm:$0xff] %v812
    %845 = vst [vmem:[#allocation3 + $0x30] sm:$0xff] %v813
    %846 = vst [vmem:[#allocation3 + $0x38] sm:$0xff] %v814
    %847 = vst [vmem:[#allocation3 + $0x40] sm:$0xff] %v815
    %848 = vst [vmem:[#allocation3 + $0x48] sm:$0xff] %v816
    %849 = vst [vmem:[#allocation3 + $0x50] sm:$0xff] %v817
    %850 = vst [vmem:[#allocation3 + $0x58] sm:$0xff] %v818
    %851 = vst [vmem:[#allocation3 + $0x60] sm:$0xff] %v819
    %852 = vst [vmem:[#allocation3 + $0x68] sm:$0xff] %v820
    %853 = vst [vmem:[#allocation3 + $0x70] sm:$0xff] %v821
    %854 = vst [vmem:[#allocation3 + $0x78] sm:$0xff] %v822
    %v855 = vld [vmem:[#allocation11] sm:$0xff]
    %v856 = vld [vmem:[#allocation11 + $0x8] sm:$0xff]
    %v857 = vld [vmem:[#allocation11 + $0x10] sm:$0xff]
    %v858 = vld [vmem:[#allocation11 + $0x18] sm:$0xff]
    %v859 = vld [vmem:[#allocation11 + $0x20] sm:$0xff]
    %v860 = vld [vmem:[#allocation11 + $0x28] sm:$0xff]
    %v861 = vld [vmem:[#allocation11 + $0x30] sm:$0xff]
    %v862 = vld [vmem:[#allocation11 + $0x38] sm:$0xff]
    %v863 = vld [vmem:[#allocation11 + $0x40] sm:$0xff]
    %v864 = vld [vmem:[#allocation11 + $0x48] sm:$0xff]
    %v865 = vld [vmem:[#allocation11 + $0x50] sm:$0xff]
    %v866 = vld [vmem:[#allocation11 + $0x58] sm:$0xff]
    %v867 = vld [vmem:[#allocation11 + $0x60] sm:$0xff]
    %v868 = vld [vmem:[#allocation11 + $0x68] sm:$0xff]
    %v869 = vld [vmem:[#allocation11 + $0x70] sm:$0xff]
    %v870 = vld [vmem:[#allocation11 + $0x78] sm:$0xff]
    %v871 = vld [vmem:[#allocation11 + $0x80] sm:$0xff]
    %v872 = vld [vmem:[#allocation11 + $0x88] sm:$0xff]
    %v873 = vld [vmem:[#allocation11 + $0x90] sm:$0xff]
    %v874 = vld [vmem:[#allocation11 + $0x98] sm:$0xff]
    %v875 = vld [vmem:[#allocation11 + $0xa0] sm:$0xff]
    %v876 = vld [vmem:[#allocation11 + $0xa8] sm:$0xff]
    %v877 = vld [vmem:[#allocation11 + $0xb0] sm:$0xff]
    %v878 = vld [vmem:[#allocation11 + $0xb8] sm:$0xff]
    %v879 = vld [vmem:[#allocation11 + $0xc0] sm:$0xff]
    %v880 = vld [vmem:[#allocation11 + $0xc8] sm:$0xff]
    %v881 = vld [vmem:[#allocation11 + $0xd0] sm:$0xff]
    %v882 = vld [vmem:[#allocation11 + $0xd8] sm:$0xff]
    %v883 = vld [vmem:[#allocation11 + $0xe0] sm:$0xff]
    %v884 = vld [vmem:[#allocation11 + $0xe8] sm:$0xff]
    %v885 = vld [vmem:[#allocation11 + $0xf0] sm:$0xff]
    %v886 = vld [vmem:[#allocation11 + $0xf8] sm:$0xff]
    %v887 = vld [vmem:[#allocation11 + $0x100] sm:$0xff]
    %v888 = vld [vmem:[#allocation11 + $0x108] sm:$0xff]
    %v889 = vld [vmem:[#allocation11 + $0x110] sm:$0xff]
    %v890 = vld [vmem:[#allocation11 + $0x118] sm:$0xff]
    %v891 = vld [vmem:[#allocation11 + $0x120] sm:$0xff]
    %v892 = vld [vmem:[#allocation11 + $0x128] sm:$0xff]
    %v893 = vld [vmem:[#allocation11 + $0x130] sm:$0xff]
    %v894 = vld [vmem:[#allocation11 + $0x138] sm:$0xff]
    %v895 = vld [vmem:[#allocation11 + $0x140] sm:$0xff]
    %v896 = vld [vmem:[#allocation11 + $0x148] sm:$0xff]
    %v897 = vld [vmem:[#allocation11 + $0x150] sm:$0xff]
    %v898 = vld [vmem:[#allocation11 + $0x158] sm:$0xff]
    %v899 = vld [vmem:[#allocation11 + $0x160] sm:$0xff]
    %v900 = vld [vmem:[#allocation11 + $0x168] sm:$0xff]
    %v901 = vld [vmem:[#allocation11 + $0x170] sm:$0xff]
    %v902 = vld [vmem:[#allocation11 + $0x178] sm:$0xff]
    %v903 = vld [vmem:[#allocation11 + $0x180] sm:$0xff]
    %v904 = vld [vmem:[#allocation11 + $0x188] sm:$0xff]
    %v905 = vld [vmem:[#allocation11 + $0x190] sm:$0xff]
    %v906 = vld [vmem:[#allocation11 + $0x198] sm:$0xff]
    %v907 = vld [vmem:[#allocation11 + $0x1a0] sm:$0xff]
    %v908 = vld [vmem:[#allocation11 + $0x1a8] sm:$0xff]
    %v909 = vld [vmem:[#allocation11 + $0x1b0] sm:$0xff]
    %v910 = vld [vmem:[#allocation11 + $0x1b8] sm:$0xff]
    %v911 = vld [vmem:[#allocation11 + $0x1c0] sm:$0xff]
    %v912 = vld [vmem:[#allocation11 + $0x1c8] sm:$0xff]
    %v913 = vld [vmem:[#allocation11 + $0x1d0] sm:$0xff]
    %v914 = vld [vmem:[#allocation11 + $0x1d8] sm:$0xff]
    %v915 = vld [vmem:[#allocation11 + $0x1e0] sm:$0xff]
    %v916 = vld [vmem:[#allocation11 + $0x1e8] sm:$0xff]
    %v917 = vld [vmem:[#allocation11 + $0x1f0] sm:$0xff]
    %v918 = vld [vmem:[#allocation11 + $0x1f8] sm:$0xff]
    %v919 = vld [vmem:[#allocation11 + $0x200] sm:$0xff]
    %v920 = vld [vmem:[#allocation11 + $0x208] sm:$0xff]
    %v921 = vld [vmem:[#allocation11 + $0x210] sm:$0xff]
    %v922 = vld [vmem:[#allocation11 + $0x218] sm:$0xff]
    %v923 = vld [vmem:[#allocation11 + $0x220] sm:$0xff]
    %v924 = vld [vmem:[#allocation11 + $0x228] sm:$0xff]
    %v925 = vld [vmem:[#allocation11 + $0x230] sm:$0xff]
    %v926 = vld [vmem:[#allocation11 + $0x238] sm:$0xff]
    %v927 = vld [vmem:[#allocation11 + $0x240] sm:$0xff]
    %v928 = vld [vmem:[#allocation11 + $0x248] sm:$0xff]
    %v929 = vld [vmem:[#allocation11 + $0x250] sm:$0xff]
    %v930 = vld [vmem:[#allocation11 + $0x258] sm:$0xff]
    %v931 = vld [vmem:[#allocation11 + $0x260] sm:$0xff]
    %v932 = vld [vmem:[#allocation11 + $0x268] sm:$0xff]
    %v933 = vld [vmem:[#allocation11 + $0x270] sm:$0xff]
    %v934 = vld [vmem:[#allocation11 + $0x278] sm:$0xff]
    %v935 = vld [vmem:[#allocation11 + $0x280] sm:$0xff]
    %v936 = vld [vmem:[#allocation11 + $0x288] sm:$0xff]
    %v937 = vld [vmem:[#allocation11 + $0x290] sm:$0xff]
    %v938 = vld [vmem:[#allocation11 + $0x298] sm:$0xff]
    %v939 = vld [vmem:[#allocation11 + $0x2a0] sm:$0xff]
    %v940 = vld [vmem:[#allocation11 + $0x2a8] sm:$0xff]
    %v941 = vld [vmem:[#allocation11 + $0x2b0] sm:$0xff]
    %v942 = vld [vmem:[#allocation11 + $0x2b8] sm:$0xff]
    %v943 = vld [vmem:[#allocation11 + $0x2c0] sm:$0xff]
    %v944 = vld [vmem:[#allocation11 + $0x2c8] sm:$0xff]
    %v945 = vld [vmem:[#allocation11 + $0x2d0] sm:$0xff]
    %v946 = vld [vmem:[#allocation11 + $0x2d8] sm:$0xff]
    %v947 = vld [vmem:[#allocation11 + $0x2e0] sm:$0xff]
    %v948 = vld [vmem:[#allocation11 + $0x2e8] sm:$0xff]
    %v949 = vld [vmem:[#allocation11 + $0x2f0] sm:$0xff]
    %v950 = vld [vmem:[#allocation11 + $0x2f8] sm:$0xff]
    %v951 = vld [vmem:[#allocation11 + $0x300] sm:$0xff]
    %v952 = vld [vmem:[#allocation11 + $0x308] sm:$0xff]
    %v953 = vld [vmem:[#allocation11 + $0x310] sm:$0xff]
    %v954 = vld [vmem:[#allocation11 + $0x318] sm:$0xff]
    %v955 = vld [vmem:[#allocation11 + $0x320] sm:$0xff]
    %v956 = vld [vmem:[#allocation11 + $0x328] sm:$0xff]
    %v957 = vld [vmem:[#allocation11 + $0x330] sm:$0xff]
    %v958 = vld [vmem:[#allocation11 + $0x338] sm:$0xff]
    %v959 = vld [vmem:[#allocation11 + $0x340] sm:$0xff]
    %v960 = vld [vmem:[#allocation11 + $0x348] sm:$0xff]
    %v961 = vld [vmem:[#allocation11 + $0x350] sm:$0xff]
    %v962 = vld [vmem:[#allocation11 + $0x358] sm:$0xff]
    %v963 = vld [vmem:[#allocation11 + $0x360] sm:$0xff]
    %v964 = vld [vmem:[#allocation11 + $0x368] sm:$0xff]
    %v965 = vld [vmem:[#allocation11 + $0x370] sm:$0xff]
    %v966 = vld [vmem:[#allocation11 + $0x378] sm:$0xff]
    %v967 = vld [vmem:[#allocation11 + $0x380] sm:$0xff]
    %v968 = vld [vmem:[#allocation11 + $0x388] sm:$0xff]
    %v969 = vld [vmem:[#allocation11 + $0x390] sm:$0xff]
    %v970 = vld [vmem:[#allocation11 + $0x398] sm:$0xff]
    %v971 = vld [vmem:[#allocation11 + $0x3a0] sm:$0xff]
    %v972 = vld [vmem:[#allocation11 + $0x3a8] sm:$0xff]
    %v973 = vld [vmem:[#allocation11 + $0x3b0] sm:$0xff]
    %v974 = vld [vmem:[#allocation11 + $0x3b8] sm:$0xff]
    %v975 = vld [vmem:[#allocation11 + $0x3c0] sm:$0xff]
    %v976 = vld [vmem:[#allocation11 + $0x3c8] sm:$0xff]
    %v977 = vld [vmem:[#allocation11 + $0x3d0] sm:$0xff]
    %v978 = vld [vmem:[#allocation11 + $0x3d8] sm:$0xff]
    %v979 = vld [vmem:[#allocation11 + $0x3e0] sm:$0xff]
    %v980 = vld [vmem:[#allocation11 + $0x3e8] sm:$0xff]
    %v981 = vld [vmem:[#allocation11 + $0x3f0] sm:$0xff]
    %v982 = vld [vmem:[#allocation11 + $0x3f8] sm:$0xff]
    %v1111 = vunpack.c.l.b16 %v855
    %v1112 = vunpack.c.h.b16 %v855
    %v1113 = vunpack.c.l.b16 %v856
    %v1114 = vunpack.c.h.b16 %v856
    %v1115 = vunpack.c.l.b16 %v857
    %v1116 = vunpack.c.h.b16 %v857
    %v1117 = vunpack.c.l.b16 %v858
    %v1118 = vunpack.c.h.b16 %v858
    %v1119 = vunpack.c.l.b16 %v859
    %v1120 = vunpack.c.h.b16 %v859
    %v1121 = vunpack.c.l.b16 %v860
    %v1122 = vunpack.c.h.b16 %v860
    %v1123 = vunpack.c.l.b16 %v861
    %v1124 = vunpack.c.h.b16 %v861
    %v1125 = vunpack.c.l.b16 %v862
    %v1126 = vunpack.c.h.b16 %v862
    %v1127 = vunpack.c.l.b16 %v863
    %v1128 = vunpack.c.h.b16 %v863
    %v1129 = vunpack.c.l.b16 %v864
    %v1130 = vunpack.c.h.b16 %v864
    %v1131 = vunpack.c.l.b16 %v865
    %v1132 = vunpack.c.h.b16 %v865
    %v1133 = vunpack.c.l.b16 %v866
    %v1134 = vunpack.c.h.b16 %v866
    %v1135 = vunpack.c.l.b16 %v867
    %v1136 = vunpack.c.h.b16 %v867
    %v1137 = vunpack.c.l.b16 %v868
    %v1138 = vunpack.c.h.b16 %v868
    %v1139 = vunpack.c.l.b16 %v869
    %v1140 = vunpack.c.h.b16 %v869
    %v1141 = vunpack.c.l.b16 %v870
    %v1142 = vunpack.c.h.b16 %v870
    %v1143 = vunpack.c.l.b16 %v871
    %v1144 = vunpack.c.h.b16 %v871
    %v1145 = vunpack.c.l.b16 %v872
    %v1146 = vunpack.c.h.b16 %v872
    %v1147 = vunpack.c.l.b16 %v873
    %v1148 = vunpack.c.h.b16 %v873
    %v1149 = vunpack.c.l.b16 %v874
    %v1150 = vunpack.c.h.b16 %v874
    %v1151 = vunpack.c.l.b16 %v875
    %v1152 = vunpack.c.h.b16 %v875
    %v1153 = vunpack.c.l.b16 %v876
    %v1154 = vunpack.c.h.b16 %v876
    %v1155 = vunpack.c.l.b16 %v877
    %v1156 = vunpack.c.h.b16 %v877
    %v1157 = vunpack.c.l.b16 %v878
    %v1158 = vunpack.c.h.b16 %v878
    %v1159 = vunpack.c.l.b16 %v879
    %v1160 = vunpack.c.h.b16 %v879
    %v1161 = vunpack.c.l.b16 %v880
    %v1162 = vunpack.c.h.b16 %v880
    %v1163 = vunpack.c.l.b16 %v881
    %v1164 = vunpack.c.h.b16 %v881
    %v1165 = vunpack.c.l.b16 %v882
    %v1166 = vunpack.c.h.b16 %v882
    %v1167 = vunpack.c.l.b16 %v883
    %v1168 = vunpack.c.h.b16 %v883
    %v1169 = vunpack.c.l.b16 %v884
    %v1170 = vunpack.c.h.b16 %v884
    %v1171 = vunpack.c.l.b16 %v885
    %v1172 = vunpack.c.h.b16 %v885
    %v1173 = vunpack.c.l.b16 %v886
    %v1174 = vunpack.c.h.b16 %v886
    %v1175 = vunpack.c.l.b16 %v887
    %v1176 = vunpack.c.h.b16 %v887
    %v1177 = vunpack.c.l.b16 %v888
    %v1178 = vunpack.c.h.b16 %v888
    %v1179 = vunpack.c.l.b16 %v889
    %v1180 = vunpack.c.h.b16 %v889
    %v1181 = vunpack.c.l.b16 %v890
    %v1182 = vunpack.c.h.b16 %v890
    %v1183 = vunpack.c.l.b16 %v891
    %v1184 = vunpack.c.h.b16 %v891
    %v1185 = vunpack.c.l.b16 %v892
    %v1186 = vunpack.c.h.b16 %v892
    %v1187 = vunpack.c.l.b16 %v893
    %v1188 = vunpack.c.h.b16 %v893
    %v1189 = vunpack.c.l.b16 %v894
    %v1190 = vunpack.c.h.b16 %v894
    %v1191 = vunpack.c.l.b16 %v895
    %v1192 = vunpack.c.h.b16 %v895
    %v1193 = vunpack.c.l.b16 %v896
    %v1194 = vunpack.c.h.b16 %v896
    %v1195 = vunpack.c.l.b16 %v897
    %v1196 = vunpack.c.h.b16 %v897
    %v1197 = vunpack.c.l.b16 %v898
    %v1198 = vunpack.c.h.b16 %v898
    %v1199 = vunpack.c.l.b16 %v899
    %v1200 = vunpack.c.h.b16 %v899
    %v1201 = vunpack.c.l.b16 %v900
    %v1202 = vunpack.c.h.b16 %v900
    %v1203 = vunpack.c.l.b16 %v901
    %v1204 = vunpack.c.h.b16 %v901
    %v1205 = vunpack.c.l.b16 %v902
    %v1206 = vunpack.c.h.b16 %v902
    %v1207 = vunpack.c.l.b16 %v903
    %v1208 = vunpack.c.h.b16 %v903
    %v1209 = vunpack.c.l.b16 %v904
    %v1210 = vunpack.c.h.b16 %v904
    %v1211 = vunpack.c.l.b16 %v905
    %v1212 = vunpack.c.h.b16 %v905
    %v1213 = vunpack.c.l.b16 %v906
    %v1214 = vunpack.c.h.b16 %v906
    %v1215 = vunpack.c.l.b16 %v907
    %v1216 = vunpack.c.h.b16 %v907
    %v1217 = vunpack.c.l.b16 %v908
    %v1218 = vunpack.c.h.b16 %v908
    %v1219 = vunpack.c.l.b16 %v909
    %v1220 = vunpack.c.h.b16 %v909
    %v1221 = vunpack.c.l.b16 %v910
    %v1222 = vunpack.c.h.b16 %v910
    %v1223 = vunpack.c.l.b16 %v911
    %v1224 = vunpack.c.h.b16 %v911
    %v1225 = vunpack.c.l.b16 %v912
    %v1226 = vunpack.c.h.b16 %v912
    %v1227 = vunpack.c.l.b16 %v913
    %v1228 = vunpack.c.h.b16 %v913
    %v1229 = vunpack.c.l.b16 %v914
    %v1230 = vunpack.c.h.b16 %v914
    %v1231 = vunpack.c.l.b16 %v915
    %v1232 = vunpack.c.h.b16 %v915
    %v1233 = vunpack.c.l.b16 %v916
    %v1234 = vunpack.c.h.b16 %v916
    %v1235 = vunpack.c.l.b16 %v917
    %v1236 = vunpack.c.h.b16 %v917
    %v1237 = vunpack.c.l.b16 %v918
    %v1238 = vunpack.c.h.b16 %v918
    %v1239 = vunpack.c.l.b16 %v919
    %v1240 = vunpack.c.h.b16 %v919
    %v1241 = vunpack.c.l.b16 %v920
    %v1242 = vunpack.c.h.b16 %v920
    %v1243 = vunpack.c.l.b16 %v921
    %v1244 = vunpack.c.h.b16 %v921
    %v1245 = vunpack.c.l.b16 %v922
    %v1246 = vunpack.c.h.b16 %v922
    %v1247 = vunpack.c.l.b16 %v923
    %v1248 = vunpack.c.h.b16 %v923
    %v1249 = vunpack.c.l.b16 %v924
    %v1250 = vunpack.c.h.b16 %v924
    %v1251 = vunpack.c.l.b16 %v925
    %v1252 = vunpack.c.h.b16 %v925
    %v1253 = vunpack.c.l.b16 %v926
    %v1254 = vunpack.c.h.b16 %v926
    %v1255 = vunpack.c.l.b16 %v927
    %v1256 = vunpack.c.h.b16 %v927
    %v1257 = vunpack.c.l.b16 %v928
    %v1258 = vunpack.c.h.b16 %v928
    %v1259 = vunpack.c.l.b16 %v929
    %v1260 = vunpack.c.h.b16 %v929
    %v1261 = vunpack.c.l.b16 %v930
    %v1262 = vunpack.c.h.b16 %v930
    %v1263 = vunpack.c.l.b16 %v931
    %v1264 = vunpack.c.h.b16 %v931
    %v1265 = vunpack.c.l.b16 %v932
    %v1266 = vunpack.c.h.b16 %v932
    %v1267 = vunpack.c.l.b16 %v933
    %v1268 = vunpack.c.h.b16 %v933
    %v1269 = vunpack.c.l.b16 %v934
    %v1270 = vunpack.c.h.b16 %v934
    %v1271 = vunpack.c.l.b16 %v935
    %v1272 = vunpack.c.h.b16 %v935
    %v1273 = vunpack.c.l.b16 %v936
    %v1274 = vunpack.c.h.b16 %v936
    %v1275 = vunpack.c.l.b16 %v937
    %v1276 = vunpack.c.h.b16 %v937
    %v1277 = vunpack.c.l.b16 %v938
    %v1278 = vunpack.c.h.b16 %v938
    %v1279 = vunpack.c.l.b16 %v939
    %v1280 = vunpack.c.h.b16 %v939
    %v1281 = vunpack.c.l.b16 %v940
    %v1282 = vunpack.c.h.b16 %v940
    %v1283 = vunpack.c.l.b16 %v941
    %v1284 = vunpack.c.h.b16 %v941
    %v1285 = vunpack.c.l.b16 %v942
    %v1286 = vunpack.c.h.b16 %v942
    %v1287 = vunpack.c.l.b16 %v943
    %v1288 = vunpack.c.h.b16 %v943
    %v1289 = vunpack.c.l.b16 %v944
    %v1290 = vunpack.c.h.b16 %v944
    %v1291 = vunpack.c.l.b16 %v945
    %v1292 = vunpack.c.h.b16 %v945
    %v1293 = vunpack.c.l.b16 %v946
    %v1294 = vunpack.c.h.b16 %v946
    %v1295 = vunpack.c.l.b16 %v947
    %v1296 = vunpack.c.h.b16 %v947
    %v1297 = vunpack.c.l.b16 %v948
    %v1298 = vunpack.c.h.b16 %v948
    %v1299 = vunpack.c.l.b16 %v949
    %v1300 = vunpack.c.h.b16 %v949
    %v1301 = vunpack.c.l.b16 %v950
    %v1302 = vunpack.c.h.b16 %v950
    %v1303 = vunpack.c.l.b16 %v951
    %v1304 = vunpack.c.h.b16 %v951
    %v1305 = vunpack.c.l.b16 %v952
    %v1306 = vunpack.c.h.b16 %v952
    %v1307 = vunpack.c.l.b16 %v953
    %v1308 = vunpack.c.h.b16 %v953
    %v1309 = vunpack.c.l.b16 %v954
    %v1310 = vunpack.c.h.b16 %v954
    %v1311 = vunpack.c.l.b16 %v955
    %v1312 = vunpack.c.h.b16 %v955
    %v1313 = vunpack.c.l.b16 %v956
    %v1314 = vunpack.c.h.b16 %v956
    %v1315 = vunpack.c.l.b16 %v957
    %v1316 = vunpack.c.h.b16 %v957
    %v1317 = vunpack.c.l.b16 %v958
    %v1318 = vunpack.c.h.b16 %v958
    %v1319 = vunpack.c.l.b16 %v959
    %v1320 = vunpack.c.h.b16 %v959
    %v1321 = vunpack.c.l.b16 %v960
    %v1322 = vunpack.c.h.b16 %v960
    %v1323 = vunpack.c.l.b16 %v961
    %v1324 = vunpack.c.h.b16 %v961
    %v1325 = vunpack.c.l.b16 %v962
    %v1326 = vunpack.c.h.b16 %v962
    %v1327 = vunpack.c.l.b16 %v963
    %v1328 = vunpack.c.h.b16 %v963
    %v1329 = vunpack.c.l.b16 %v964
    %v1330 = vunpack.c.h.b16 %v964
    %v1331 = vunpack.c.l.b16 %v965
    %v1332 = vunpack.c.h.b16 %v965
    %v1333 = vunpack.c.l.b16 %v966
    %v1334 = vunpack.c.h.b16 %v966
    %v1335 = vunpack.c.l.b16 %v967
    %v1336 = vunpack.c.h.b16 %v967
    %v1337 = vunpack.c.l.b16 %v968
    %v1338 = vunpack.c.h.b16 %v968
    %v1339 = vunpack.c.l.b16 %v969
    %v1340 = vunpack.c.h.b16 %v969
    %v1341 = vunpack.c.l.b16 %v970
    %v1342 = vunpack.c.h.b16 %v970
    %v1343 = vunpack.c.l.b16 %v971
    %v1344 = vunpack.c.h.b16 %v971
    %v1345 = vunpack.c.l.b16 %v972
    %v1346 = vunpack.c.h.b16 %v972
    %v1347 = vunpack.c.l.b16 %v973
    %v1348 = vunpack.c.h.b16 %v973
    %v1349 = vunpack.c.l.b16 %v974
    %v1350 = vunpack.c.h.b16 %v974
    %v1351 = vunpack.c.l.b16 %v975
    %v1352 = vunpack.c.h.b16 %v975
    %v1353 = vunpack.c.l.b16 %v976
    %v1354 = vunpack.c.h.b16 %v976
    %v1355 = vunpack.c.l.b16 %v977
    %v1356 = vunpack.c.h.b16 %v977
    %v1357 = vunpack.c.l.b16 %v978
    %v1358 = vunpack.c.h.b16 %v978
    %v1359 = vunpack.c.l.b16 %v979
    %v1360 = vunpack.c.h.b16 %v979
    %v1361 = vunpack.c.l.b16 %v980
    %v1362 = vunpack.c.h.b16 %v980
    %v1363 = vunpack.c.l.b16 %v981
    %v1364 = vunpack.c.h.b16 %v981
    %v1365 = vunpack.c.l.b16 %v982
    %v1366 = vunpack.c.h.b16 %v982
    %v1367 = vpack.c.b16 %v1119, %v1111
    %v1368 = vpack.c.b16 %v1120, %v1112
    %v1369 = vpack.c.b16 %v1121, %v1113
    %v1370 = vpack.c.b16 %v1122, %v1114
    %v1371 = vpack.c.b16 %v1123, %v1115
    %v1372 = vpack.c.b16 %v1124, %v1116
    %v1373 = vpack.c.b16 %v1125, %v1117
    %v1374 = vpack.c.b16 %v1126, %v1118
    %v1375 = vpack.c.b16 %v1135, %v1127
    %v1376 = vpack.c.b16 %v1136, %v1128
    %v1377 = vpack.c.b16 %v1137, %v1129
    %v1378 = vpack.c.b16 %v1138, %v1130
    %v1379 = vpack.c.b16 %v1139, %v1131
    %v1380 = vpack.c.b16 %v1140, %v1132
    %v1381 = vpack.c.b16 %v1141, %v1133
    %v1382 = vpack.c.b16 %v1142, %v1134
    %v1383 = vpack.c.b16 %v1151, %v1143
    %v1384 = vpack.c.b16 %v1152, %v1144
    %v1385 = vpack.c.b16 %v1153, %v1145
    %v1386 = vpack.c.b16 %v1154, %v1146
    %v1387 = vpack.c.b16 %v1155, %v1147
    %v1388 = vpack.c.b16 %v1156, %v1148
    %v1389 = vpack.c.b16 %v1157, %v1149
    %v1390 = vpack.c.b16 %v1158, %v1150
    %v1391 = vpack.c.b16 %v1167, %v1159
    %v1392 = vpack.c.b16 %v1168, %v1160
    %v1393 = vpack.c.b16 %v1169, %v1161
    %v1394 = vpack.c.b16 %v1170, %v1162
    %v1395 = vpack.c.b16 %v1171, %v1163
    %v1396 = vpack.c.b16 %v1172, %v1164
    %v1397 = vpack.c.b16 %v1173, %v1165
    %v1398 = vpack.c.b16 %v1174, %v1166
    %v1399 = vpack.c.b16 %v1183, %v1175
    %v1400 = vpack.c.b16 %v1184, %v1176
    %v1401 = vpack.c.b16 %v1185, %v1177
    %v1402 = vpack.c.b16 %v1186, %v1178
    %v1403 = vpack.c.b16 %v1187, %v1179
    %v1404 = vpack.c.b16 %v1188, %v1180
    %v1405 = vpack.c.b16 %v1189, %v1181
    %v1406 = vpack.c.b16 %v1190, %v1182
    %v1407 = vpack.c.b16 %v1199, %v1191
    %v1408 = vpack.c.b16 %v1200, %v1192
    %v1409 = vpack.c.b16 %v1201, %v1193
    %v1410 = vpack.c.b16 %v1202, %v1194
    %v1411 = vpack.c.b16 %v1203, %v1195
    %v1412 = vpack.c.b16 %v1204, %v1196
    %v1413 = vpack.c.b16 %v1205, %v1197
    %v1414 = vpack.c.b16 %v1206, %v1198
    %v1415 = vpack.c.b16 %v1215, %v1207
    %v1416 = vpack.c.b16 %v1216, %v1208
    %v1417 = vpack.c.b16 %v1217, %v1209
    %v1418 = vpack.c.b16 %v1218, %v1210
    %v1419 = vpack.c.b16 %v1219, %v1211
    %v1420 = vpack.c.b16 %v1220, %v1212
    %v1421 = vpack.c.b16 %v1221, %v1213
    %v1422 = vpack.c.b16 %v1222, %v1214
    %v1423 = vpack.c.b16 %v1231, %v1223
    %v1424 = vpack.c.b16 %v1232, %v1224
    %v1425 = vpack.c.b16 %v1233, %v1225
    %v1426 = vpack.c.b16 %v1234, %v1226
    %v1427 = vpack.c.b16 %v1235, %v1227
    %v1428 = vpack.c.b16 %v1236, %v1228
    %v1429 = vpack.c.b16 %v1237, %v1229
    %v1430 = vpack.c.b16 %v1238, %v1230
    %v1431 = vpack.c.b16 %v1247, %v1239
    %v1432 = vpack.c.b16 %v1248, %v1240
    %v1433 = vpack.c.b16 %v1249, %v1241
    %v1434 = vpack.c.b16 %v1250, %v1242
    %v1435 = vpack.c.b16 %v1251, %v1243
    %v1436 = vpack.c.b16 %v1252, %v1244
    %v1437 = vpack.c.b16 %v1253, %v1245
    %v1438 = vpack.c.b16 %v1254, %v1246
    %v1439 = vpack.c.b16 %v1263, %v1255
    %v1440 = vpack.c.b16 %v1264, %v1256
    %v1441 = vpack.c.b16 %v1265, %v1257
    %v1442 = vpack.c.b16 %v1266, %v1258
    %v1443 = vpack.c.b16 %v1267, %v1259
    %v1444 = vpack.c.b16 %v1268, %v1260
    %v1445 = vpack.c.b16 %v1269, %v1261
    %v1446 = vpack.c.b16 %v1270, %v1262
    %v1447 = vpack.c.b16 %v1279, %v1271
    %v1448 = vpack.c.b16 %v1280, %v1272
    %v1449 = vpack.c.b16 %v1281, %v1273
    %v1450 = vpack.c.b16 %v1282, %v1274
    %v1451 = vpack.c.b16 %v1283, %v1275
    %v1452 = vpack.c.b16 %v1284, %v1276
    %v1453 = vpack.c.b16 %v1285, %v1277
    %v1454 = vpack.c.b16 %v1286, %v1278
    %v1455 = vpack.c.b16 %v1295, %v1287
    %v1456 = vpack.c.b16 %v1296, %v1288
    %v1457 = vpack.c.b16 %v1297, %v1289
    %v1458 = vpack.c.b16 %v1298, %v1290
    %v1459 = vpack.c.b16 %v1299, %v1291
    %v1460 = vpack.c.b16 %v1300, %v1292
    %v1461 = vpack.c.b16 %v1301, %v1293
    %v1462 = vpack.c.b16 %v1302, %v1294
    %v1463 = vpack.c.b16 %v1311, %v1303
    %v1464 = vpack.c.b16 %v1312, %v1304
    %v1465 = vpack.c.b16 %v1313, %v1305
    %v1466 = vpack.c.b16 %v1314, %v1306
    %v1467 = vpack.c.b16 %v1315, %v1307
    %v1468 = vpack.c.b16 %v1316, %v1308
    %v1469 = vpack.c.b16 %v1317, %v1309
    %v1470 = vpack.c.b16 %v1318, %v1310
    %v1471 = vpack.c.b16 %v1327, %v1319
    %v1472 = vpack.c.b16 %v1328, %v1320
    %v1473 = vpack.c.b16 %v1329, %v1321
    %v1474 = vpack.c.b16 %v1330, %v1322
    %v1475 = vpack.c.b16 %v1331, %v1323
    %v1476 = vpack.c.b16 %v1332, %v1324
    %v1477 = vpack.c.b16 %v1333, %v1325
    %v1478 = vpack.c.b16 %v1334, %v1326
    %v1479 = vpack.c.b16 %v1343, %v1335
    %v1480 = vpack.c.b16 %v1344, %v1336
    %v1481 = vpack.c.b16 %v1345, %v1337
    %v1482 = vpack.c.b16 %v1346, %v1338
    %v1483 = vpack.c.b16 %v1347, %v1339
    %v1484 = vpack.c.b16 %v1348, %v1340
    %v1485 = vpack.c.b16 %v1349, %v1341
    %v1486 = vpack.c.b16 %v1350, %v1342
    %v1487 = vpack.c.b16 %v1359, %v1351
    %v1488 = vpack.c.b16 %v1360, %v1352
    %v1489 = vpack.c.b16 %v1361, %v1353
    %v1490 = vpack.c.b16 %v1362, %v1354
    %v1491 = vpack.c.b16 %v1363, %v1355
    %v1492 = vpack.c.b16 %v1364, %v1356
    %v1493 = vpack.c.b16 %v1365, %v1357
    %v1494 = vpack.c.b16 %v1366, %v1358
    %1623 = vmatprep.subr.bf16.mxu0 %v1368
    %1624 = vmatpush1.bf16.msra.mxu0 %v1367
    %1625 = vmatprep.subr.bf16.mxu0 %v1376
    %1626 = vmatpush1.bf16.msra.mxu0 %v1375
    %1627 = vmatprep.subr.bf16.mxu0 %v1384
    %1628 = vmatpush1.bf16.msra.mxu0 %v1383
    %1629 = vmatprep.subr.bf16.mxu0 %v1392
    %1630 = vmatpush1.bf16.msra.mxu0 %v1391
    %1631 = vmatprep.subr.bf16.mxu0 %v1400
    %1632 = vmatpush1.bf16.msra.mxu0 %v1399
    %1633 = vmatprep.subr.bf16.mxu0 %v1408
    %1634 = vmatpush1.bf16.msra.mxu0 %v1407
    %1635 = vmatprep.subr.bf16.mxu0 %v1416
    %1636 = vmatpush1.bf16.msra.mxu0 %v1415
    %1637 = vmatprep.subr.bf16.mxu0 %v1424
    %1638 = vmatpush1.bf16.msra.mxu0 %v1423
    %1639 = vmatprep.subr.bf16.mxu0 %v1432
    %1640 = vmatpush1.bf16.msra.mxu0 %v1431
    %1641 = vmatprep.subr.bf16.mxu0 %v1440
    %1642 = vmatpush1.bf16.msra.mxu0 %v1439
    %1643 = vmatprep.subr.bf16.mxu0 %v1448
    %1644 = vmatpush1.bf16.msra.mxu0 %v1447
    %1645 = vmatprep.subr.bf16.mxu0 %v1456
    %1646 = vmatpush1.bf16.msra.mxu0 %v1455
    %1647 = vmatprep.subr.bf16.mxu0 %v1464
    %1648 = vmatpush1.bf16.msra.mxu0 %v1463
    %1649 = vmatprep.subr.bf16.mxu0 %v1472
    %1650 = vmatpush1.bf16.msra.mxu0 %v1471
    %1651 = vmatprep.subr.bf16.mxu0 %v1480
    %1652 = vmatpush1.bf16.msra.mxu0 %v1479
    %1653 = vmatprep.subr.bf16.mxu0 %v1488
    %1654 = vmatpush1.bf16.msra.mxu0 %v1487
    %1655 = vmatprep.mubr.bf16.mxu0 0
    %1656 = vmatmul.mubr.bf16.gmra.mrb[0].mxu0 0
    %v1657 = vpop.f32.mrb[0].mxu0
    %v1658 = vadd.f32 0.0, %v1657
    %v1659 = vpop.f32.mrb[0].mxu0
    %v1660 = vadd.f32 0.0, %v1659
    %v1661 = vpop.f32.mrb[0].mxu0
    %v1662 = vpop.f32.mrb[0].mxu0
    %1663 = vdwg.mxu0
    %1664 = vmatprep.subr.bf16.mxu0 %v1370
    %1665 = vmatpush1.bf16.msra.mxu0 %v1369
    %1666 = vmatprep.subr.bf16.mxu0 %v1378
    %1667 = vmatpush1.bf16.msra.mxu0 %v1377
    %1668 = vmatprep.subr.bf16.mxu0 %v1386
    %1669 = vmatpush1.bf16.msra.mxu0 %v1385
    %1670 = vmatprep.subr.bf16.mxu0 %v1394
    %1671 = vmatpush1.bf16.msra.mxu0 %v1393
    %1672 = vmatprep.subr.bf16.mxu0 %v1402
    %1673 = vmatpush1.bf16.msra.mxu0 %v1401
    %1674 = vmatprep.subr.bf16.mxu0 %v1410
    %1675 = vmatpush1.bf16.msra.mxu0 %v1409
    %1676 = vmatprep.subr.bf16.mxu0 %v1418
    %1677 = vmatpush1.bf16.msra.mxu0 %v1417
    %1678 = vmatprep.subr.bf16.mxu0 %v1426
    %1679 = vmatpush1.bf16.msra.mxu0 %v1425
    %1680 = vmatprep.subr.bf16.mxu0 %v1434
    %1681 = vmatpush1.bf16.msra.mxu0 %v1433
    %1682 = vmatprep.subr.bf16.mxu0 %v1442
    %1683 = vmatpush1.bf16.msra.mxu0 %v1441
    %1684 = vmatprep.subr.bf16.mxu0 %v1450
    %1685 = vmatpush1.bf16.msra.mxu0 %v1449
    %1686 = vmatprep.subr.bf16.mxu0 %v1458
    %1687 = vmatpush1.bf16.msra.mxu0 %v1457
    %1688 = vmatprep.subr.bf16.mxu0 %v1466
    %1689 = vmatpush1.bf16.msra.mxu0 %v1465
    %1690 = vmatprep.subr.bf16.mxu0 %v1474
    %1691 = vmatpush1.bf16.msra.mxu0 %v1473
    %1692 = vmatprep.subr.bf16.mxu0 %v1482
    %1693 = vmatpush1.bf16.msra.mxu0 %v1481
    %1694 = vmatprep.subr.bf16.mxu0 %v1490
    %1695 = vmatpush1.bf16.msra.mxu0 %v1489
    %1696 = vmatprep.mubr.bf16.mxu0 0
    %1697 = vmatmul.mubr.bf16.gmra.mrb[0].mxu0 0
    %v1698 = vpop.f32.mrb[0].mxu0
    %v1699 = vadd.f32 0.0, %v1698
    %v1700 = vpop.f32.mrb[0].mxu0
    %v1701 = vadd.f32 0.0, %v1700
    %v1702 = vpop.f32.mrb[0].mxu0
    %v1703 = vpop.f32.mrb[0].mxu0
    %1704 = vdwg.mxu0
    %1705 = vmatprep.subr.bf16.mxu0 %v1372
    %1706 = vmatpush1.bf16.msra.mxu0 %v1371
    %1707 = vmatprep.subr.bf16.mxu0 %v1380
    %1708 = vmatpush1.bf16.msra.mxu0 %v1379
    %1709 = vmatprep.subr.bf16.mxu0 %v1388
    %1710 = vmatpush1.bf16.msra.mxu0 %v1387
    %1711 = vmatprep.subr.bf16.mxu0 %v1396
    %1712 = vmatpush1.bf16.msra.mxu0 %v1395
    %1713 = vmatprep.subr.bf16.mxu0 %v1404
    %1714 = vmatpush1.bf16.msra.mxu0 %v1403
    %1715 = vmatprep.subr.bf16.mxu0 %v1412
    %1716 = vmatpush1.bf16.msra.mxu0 %v1411
    %1717 = vmatprep.subr.bf16.mxu0 %v1420
    %1718 = vmatpush1.bf16.msra.mxu0 %v1419
    %1719 = vmatprep.subr.bf16.mxu0 %v1428
    %1720 = vmatpush1.bf16.msra.mxu0 %v1427
    %1721 = vmatprep.subr.bf16.mxu0 %v1436
    %1722 = vmatpush1.bf16.msra.mxu0 %v1435
    %1723 = vmatprep.subr.bf16.mxu0 %v1444
    %1724 = vmatpush1.bf16.msra.mxu0 %v1443
    %1725 = vmatprep.subr.bf16.mxu0 %v1452
    %1726 = vmatpush1.bf16.msra.mxu0 %v1451
    %1727 = vmatprep.subr.bf16.mxu0 %v1460
    %1728 = vmatpush1.bf16.msra.mxu0 %v1459
    %1729 = vmatprep.subr.bf16.mxu0 %v1468
    %1730 = vmatpush1.bf16.msra.mxu0 %v1467
    %1731 = vmatprep.subr.bf16.mxu0 %v1476
    %1732 = vmatpush1.bf16.msra.mxu0 %v1475
    %1733 = vmatprep.subr.bf16.mxu0 %v1484
    %1734 = vmatpush1.bf16.msra.mxu0 %v1483
    %1735 = vmatprep.subr.bf16.mxu0 %v1492
    %1736 = vmatpush1.bf16.msra.mxu0 %v1491
    %1737 = vmatprep.mubr.bf16.mxu0 0
    %1738 = vmatmul.mubr.bf16.gmra.mrb[0].mxu0 0
    %v1739 = vpop.f32.mrb[0].mxu0
    %v1740 = vadd.f32 0.0, %v1739
    %v1741 = vpop.f32.mrb[0].mxu0
    %v1742 = vadd.f32 0.0, %v1741
    %v1743 = vpop.f32.mrb[0].mxu0
    %v1744 = vpop.f32.mrb[0].mxu0
    %1745 = vdwg.mxu0
    %1746 = vmatprep.subr.bf16.mxu0 %v1374
    %1747 = vmatpush1.bf16.msra.mxu0 %v1373
    %1748 = vmatprep.subr.bf16.mxu0 %v1382
    %1749 = vmatpush1.bf16.msra.mxu0 %v1381
    %1750 = vmatprep.subr.bf16.mxu0 %v1390
    %1751 = vmatpush1.bf16.msra.mxu0 %v1389
    %1752 = vmatprep.subr.bf16.mxu0 %v1398
    %1753 = vmatpush1.bf16.msra.mxu0 %v1397
    %1754 = vmatprep.subr.bf16.mxu0 %v1406
    %1755 = vmatpush1.bf16.msra.mxu0 %v1405
    %1756 = vmatprep.subr.bf16.mxu0 %v1414
    %1757 = vmatpush1.bf16.msra.mxu0 %v1413
    %1758 = vmatprep.subr.bf16.mxu0 %v1422
    %1759 = vmatpush1.bf16.msra.mxu0 %v1421
    %1760 = vmatprep.subr.bf16.mxu0 %v1430
    %1761 = vmatpush1.bf16.msra.mxu0 %v1429
    %1762 = vmatprep.subr.bf16.mxu0 %v1438
    %1763 = vmatpush1.bf16.msra.mxu0 %v1437
    %1764 = vmatprep.subr.bf16.mxu0 %v1446
    %1765 = vmatpush1.bf16.msra.mxu0 %v1445
    %1766 = vmatprep.subr.bf16.mxu0 %v1454
    %1767 = vmatpush1.bf16.msra.mxu0 %v1453
    %1768 = vmatprep.subr.bf16.mxu0 %v1462
    %1769 = vmatpush1.bf16.msra.mxu0 %v1461
    %1770 = vmatprep.subr.bf16.mxu0 %v1470
    %1771 = vmatpush1.bf16.msra.mxu0 %v1469
    %1772 = vmatprep.subr.bf16.mxu0 %v1478
    %1773 = vmatpush1.bf16.msra.mxu0 %v1477
    %1774 = vmatprep.subr.bf16.mxu0 %v1486
    %1775 = vmatpush1.bf16.msra.mxu0 %v1485
    %1776 = vmatprep.subr.bf16.mxu0 %v1494
    %1777 = vmatpush1.bf16.msra.mxu0 %v1493
    %1778 = vmatprep.mubr.bf16.mxu0 0
    %1779 = vmatmul.mubr.bf16.gmra.mrb[0].mxu0 0
    %v1780 = vpop.f32.mrb[0].mxu0
    %v1781 = vadd.f32 0.0, %v1780
    %v1782 = vpop.f32.mrb[0].mxu0
    %v1783 = vadd.f32 0.0, %v1782
    %v1784 = vpop.f32.mrb[0].mxu0
    %v1785 = vpop.f32.mrb[0].mxu0
    %1786 = vdwg.mxu0
    %v1787 = vld [vmem:[#allocation2] sm:$0xff]
    %v1788 = vld [vmem:[#allocation2 + $0x8] sm:$0xff]
    %v1789 = vunpack.c.l.bf16 %v1787
    %v1790 = vunpack.c.h.bf16 %v1787
    %v1791 = vunpack.c.l.bf16 %v1788
    %v1792 = vunpack.c.h.bf16 %v1788
    %v1793 = vadd.f32 %v1658, %v1789
    %v1794 = vadd.f32 %v1660, %v1790
    %v1795 = vadd.f32 %v1699, %v1791
    %v1796 = vadd.f32 %v1701, %v1792
    %s1797 = scalar_lea.vmem [#allocation3], 112
    %v1798 = vld [vmem:[%s1797] sm:$0xff]
    %v1799 = vld [vmem:[%s1797 + $0x8] sm:$0xff]
    %v1800 = vunpack.c.l.bf16 %v1798
    %v1801 = vunpack.c.h.bf16 %v1798
    %v1802 = vunpack.c.l.bf16 %v1799
    %v1803 = vunpack.c.h.bf16 %v1799
    %v1804 = vadd.f32 %v1740, %v1800
    %v1805 = vadd.f32 %v1742, %v1801
    %v1806 = vadd.f32 %v1781, %v1802
    %v1807 = vadd.f32 %v1783, %v1803
    %v1808 = vxor.u32 %v1793, 2147483648
    %v1809 = vmul.f32 %v1808, 1.442695
    %v1810 = vpow.pop %v1809
    %v1811 = vadd.f32 %v1810, 1.0
    %v1812 = vrcp.pop %v1811
    %v1813 = vmul.f32 1.0, %v1812
    %v1814 = vxor.u32 %v1794, 2147483648
    %v1815 = vmul.f32 %v1814, 1.442695
    %v1816 = vpow.pop %v1815
    %v1817 = vadd.f32 %v1816, 1.0
    %v1818 = vrcp.pop %v1817
    %v1819 = vmul.f32 1.0, %v1818
    %v1820 = vtanh.pop %v1795
    %v1821 = vxor.u32 %v1796, 2147483648
    %v1822 = vmul.f32 %v1821, 1.442695
    %v1823 = vpow.pop %v1822
    %v1824 = vadd.f32 %v1823, 1.0
    %v1825 = vrcp.pop %v1824
    %v1826 = vmul.f32 1.0, %v1825
    %v1827 = vmul.f32 %v1819, 0.0
    %v1828 = vmul.f32 %v1813, %v1820
    %v1829 = vadd.f32 %v1827, %v1828
    %v1830 = vtanh.pop %v1829
    %v1831 = vmul.f32 %v1826, %v1830
    %v1832 = vxor.u32 %v1804, 2147483648
    %v1833 = vmul.f32 %v1832, 1.442695
    %v1834 = vpow.pop %v1833
    %v1835 = vadd.f32 %v1834, 1.0
    %v1836 = vrcp.pop %v1835
    %v1837 = vmul.f32 1.0, %v1836
    %v1838 = vxor.u32 %v1805, 2147483648
    %v1839 = vmul.f32 %v1838, 1.442695
    %v1840 = vpow.pop %v1839
    %v1841 = vadd.f32 %v1840, 1.0
    %v1842 = vrcp.pop %v1841
    %v1843 = vmul.f32 1.0, %v1842
    %v1844 = vtanh.pop %v1806
    %v1845 = vxor.u32 %v1807, 2147483648
    %v1846 = vmul.f32 %v1845, 1.442695
    %v1847 = vpow.pop %v1846
    %v1848 = vadd.f32 %v1847, 1.0
    %v1849 = vrcp.pop %v1848
    %v1850 = vmul.f32 1.0, %v1849
    %v1851 = vmul.f32 %v1843, 0.0
    %v1852 = vmul.f32 %v1837, %v1844
    %v1853 = vadd.f32 %v1851, %v1852
    %v1854 = vtanh.pop %v1853
    %v1855 = vmul.f32 %v1850, %v1854
    %v1856 = vpack.c.bf16 %v1831, %v1831
    %1857 = vst [vmem:[#allocation4] sm:$0xf] %v1856
    %v1858 = vpack.c.bf16 %v1855, %v1855
    %s1859 = scalar_lea.vmem [#allocation5], 28
    %1860 = vst [vmem:[%s1859] sm:$0xf] %v1858
    %v1861 = vld [vmem:[#allocation11] sm:$0xff]
    %v1862 = vld [vmem:[#allocation11 + $0x8] sm:$0xff]
    %v1863 = vld [vmem:[#allocation11 + $0x10] sm:$0xff]
    %v1864 = vld [vmem:[#allocation11 + $0x18] sm:$0xff]
    %v1865 = vld [vmem:[#allocation11 + $0x20] sm:$0xff]
    %v1866 = vld [vmem:[#allocation11 + $0x28] sm:$0xff]
    %v1867 = vld [vmem:[#allocation11 + $0x30] sm:$0xff]
    %v1868 = vld [vmem:[#allocation11 + $0x38] sm:$0xff]
    %v1869 = vld [vmem:[#allocation11 + $0x40] sm:$0xff]
    %v1870 = vld [vmem:[#allocation11 + $0x48] sm:$0xff]
    %v1871 = vld [vmem:[#allocation11 + $0x50] sm:$0xff]
    %v1872 = vld [vmem:[#allocation11 + $0x58] sm:$0xff]
    %v1873 = vld [vmem:[#allocation11 + $0x60] sm:$0xff]
    %v1874 = vld [vmem:[#allocation11 + $0x68] sm:$0xff]
    %v1875 = vld [vmem:[#allocation11 + $0x70] sm:$0xff]
    %v1876 = vld [vmem:[#allocation11 + $0x78] sm:$0xff]
    %v1877 = vld [vmem:[#allocation11 + $0x80] sm:$0xff]
    %v1878 = vld [vmem:[#allocation11 + $0x88] sm:$0xff]
    %v1879 = vld [vmem:[#allocation11 + $0x90] sm:$0xff]
    %v1880 = vld [vmem:[#allocation11 + $0x98] sm:$0xff]
    %v1881 = vld [vmem:[#allocation11 + $0xa0] sm:$0xff]
    %v1882 = vld [vmem:[#allocation11 + $0xa8] sm:$0xff]
    %v1883 = vld [vmem:[#allocation11 + $0xb0] sm:$0xff]
    %v1884 = vld [vmem:[#allocation11 + $0xb8] sm:$0xff]
    %v1885 = vld [vmem:[#allocation11 + $0xc0] sm:$0xff]
    %v1886 = vld [vmem:[#allocation11 + $0xc8] sm:$0xff]
    %v1887 = vld [vmem:[#allocation11 + $0xd0] sm:$0xff]
    %v1888 = vld [vmem:[#allocation11 + $0xd8] sm:$0xff]
    %v1889 = vld [vmem:[#allocation11 + $0xe0] sm:$0xff]
    %v1890 = vld [vmem:[#allocation11 + $0xe8] sm:$0xff]
    %v1891 = vld [vmem:[#allocation11 + $0xf0] sm:$0xff]
    %v1892 = vld [vmem:[#allocation11 + $0xf8] sm:$0xff]
    %v1893 = vld [vmem:[#allocation11 + $0x100] sm:$0xff]
    %v1894 = vld [vmem:[#allocation11 + $0x108] sm:$0xff]
    %v1895 = vld [vmem:[#allocation11 + $0x110] sm:$0xff]
    %v1896 = vld [vmem:[#allocation11 + $0x118] sm:$0xff]
    %v1897 = vld [vmem:[#allocation11 + $0x120] sm:$0xff]
    %v1898 = vld [vmem:[#allocation11 + $0x128] sm:$0xff]
    %v1899 = vld [vmem:[#allocation11 + $0x130] sm:$0xff]
    %v1900 = vld [vmem:[#allocation11 + $0x138] sm:$0xff]
    %v1901 = vld [vmem:[#allocation11 + $0x140] sm:$0xff]
    %v1902 = vld [vmem:[#allocation11 + $0x148] sm:$0xff]
    %v1903 = vld [vmem:[#allocation11 + $0x150] sm:$0xff]
    %v1904 = vld [vmem:[#allocation11 + $0x158] sm:$0xff]
    %v1905 = vld [vmem:[#allocation11 + $0x160] sm:$0xff]
    %v1906 = vld [vmem:[#allocation11 + $0x168] sm:$0xff]
    %v1907 = vld [vmem:[#allocation11 + $0x170] sm:$0xff]
    %v1908 = vld [vmem:[#allocation11 + $0x178] sm:$0xff]
    %v1909 = vld [vmem:[#allocation11 + $0x180] sm:$0xff]
    %v1910 = vld [vmem:[#allocation11 + $0x188] sm:$0xff]
    %v1911 = vld [vmem:[#allocation11 + $0x190] sm:$0xff]
    %v1912 = vld [vmem:[#allocation11 + $0x198] sm:$0xff]
    %v1913 = vld [vmem:[#allocation11 + $0x1a0] sm:$0xff]
    %v1914 = vld [vmem:[#allocation11 + $0x1a8] sm:$0xff]
    %v1915 = vld [vmem:[#allocation11 + $0x1b0] sm:$0xff]
    %v1916 = vld [vmem:[#allocation11 + $0x1b8] sm:$0xff]
    %v1917 = vld [vmem:[#allocation11 + $0x1c0] sm:$0xff]
    %v1918 = vld [vmem:[#allocation11 + $0x1c8] sm:$0xff]
    %v1919 = vld [vmem:[#allocation11 + $0x1d0] sm:$0xff]
    %v1920 = vld [vmem:[#allocation11 + $0x1d8] sm:$0xff]
    %v1921 = vld [vmem:[#allocation11 + $0x1e0] sm:$0xff]
    %v1922 = vld [vmem:[#allocation11 + $0x1e8] sm:$0xff]
    %v1923 = vld [vmem:[#allocation11 + $0x1f0] sm:$0xff]
    %v1924 = vld [vmem:[#allocation11 + $0x1f8] sm:$0xff]
    %v1925 = vld [vmem:[#allocation11 + $0x200] sm:$0xff]
    %v1926 = vld [vmem:[#allocation11 + $0x208] sm:$0xff]
    %v1927 = vld [vmem:[#allocation11 + $0x210] sm:$0xff]
    %v1928 = vld [vmem:[#allocation11 + $0x218] sm:$0xff]
    %v1929 = vld [vmem:[#allocation11 + $0x220] sm:$0xff]
    %v1930 = vld [vmem:[#allocation11 + $0x228] sm:$0xff]
    %v1931 = vld [vmem:[#allocation11 + $0x230] sm:$0xff]
    %v1932 = vld [vmem:[#allocation11 + $0x238] sm:$0xff]
    %v1933 = vld [vmem:[#allocation11 + $0x240] sm:$0xff]
    %v1934 = vld [vmem:[#allocation11 + $0x248] sm:$0xff]
    %v1935 = vld [vmem:[#allocation11 + $0x250] sm:$0xff]
    %v1936 = vld [vmem:[#allocation11 + $0x258] sm:$0xff]
    %v1937 = vld [vmem:[#allocation11 + $0x260] sm:$0xff]
    %v1938 = vld [vmem:[#allocation11 + $0x268] sm:$0xff]
    %v1939 = vld [vmem:[#allocation11 + $0x270] sm:$0xff]
    %v1940 = vld [vmem:[#allocation11 + $0x278] sm:$0xff]
    %v1941 = vld [vmem:[#allocation11 + $0x280] sm:$0xff]
    %v1942 = vld [vmem:[#allocation11 + $0x288] sm:$0xff]
    %v1943 = vld [vmem:[#allocation11 + $0x290] sm:$0xff]
    %v1944 = vld [vmem:[#allocation11 + $0x298] sm:$0xff]
    %v1945 = vld [vmem:[#allocation11 + $0x2a0] sm:$0xff]
    %v1946 = vld [vmem:[#allocation11 + $0x2a8] sm:$0xff]
    %v1947 = vld [vmem:[#allocation11 + $0x2b0] sm:$0xff]
    %v1948 = vld [vmem:[#allocation11 + $0x2b8] sm:$0xff]
    %v1949 = vld [vmem:[#allocation11 + $0x2c0] sm:$0xff]
    %v1950 = vld [vmem:[#allocation11 + $0x2c8] sm:$0xff]
    %v1951 = vld [vmem:[#allocation11 + $0x2d0] sm:$0xff]
    %v1952 = vld [vmem:[#allocation11 + $0x2d8] sm:$0xff]
    %v1953 = vld [vmem:[#allocation11 + $0x2e0] sm:$0xff]
    %v1954 = vld [vmem:[#allocation11 + $0x2e8] sm:$0xff]
    %v1955 = vld [vmem:[#allocation11 + $0x2f0] sm:$0xff]
    %v1956 = vld [vmem:[#allocation11 + $0x2f8] sm:$0xff]
    %v1957 = vld [vmem:[#allocation11 + $0x300] sm:$0xff]
    %v1958 = vld [vmem:[#allocation11 + $0x308] sm:$0xff]
    %v1959 = vld [vmem:[#allocation11 + $0x310] sm:$0xff]
    %v1960 = vld [vmem:[#allocation11 + $0x318] sm:$0xff]
    %v1961 = vld [vmem:[#allocation11 + $0x320] sm:$0xff]
    %v1962 = vld [vmem:[#allocation11 + $0x328] sm:$0xff]
    %v1963 = vld [vmem:[#allocation11 + $0x330] sm:$0xff]
    %v1964 = vld [vmem:[#allocation11 + $0x338] sm:$0xff]
    %v1965 = vld [vmem:[#allocation11 + $0x340] sm:$0xff]
    %v1966 = vld [vmem:[#allocation11 + $0x348] sm:$0xff]
    %v1967 = vld [vmem:[#allocation11 + $0x350] sm:$0xff]
    %v1968 = vld [vmem:[#allocation11 + $0x358] sm:$0xff]
    %v1969 = vld [vmem:[#allocation11 + $0x360] sm:$0xff]
    %v1970 = vld [vmem:[#allocation11 + $0x368] sm:$0xff]
    %v1971 = vld [vmem:[#allocation11 + $0x370] sm:$0xff]
    %v1972 = vld [vmem:[#allocation11 + $0x378] sm:$0xff]
    %v1973 = vld [vmem:[#allocation11 + $0x380] sm:$0xff]
    %v1974 = vld [vmem:[#allocation11 + $0x388] sm:$0xff]
    %v1975 = vld [vmem:[#allocation11 + $0x390] sm:$0xff]
    %v1976 = vld [vmem:[#allocation11 + $0x398] sm:$0xff]
    %v1977 = vld [vmem:[#allocation11 + $0x3a0] sm:$0xff]
    %v1978 = vld [vmem:[#allocation11 + $0x3a8] sm:$0xff]
    %v1979 = vld [vmem:[#allocation11 + $0x3b0] sm:$0xff]
    %v1980 = vld [vmem:[#allocation11 + $0x3b8] sm:$0xff]
    %v1981 = vld [vmem:[#allocation11 + $0x3c0] sm:$0xff]
    %v1982 = vld [vmem:[#allocation11 + $0x3c8] sm:$0xff]
    %v1983 = vld [vmem:[#allocation11 + $0x3d0] sm:$0xff]
    %v1984 = vld [vmem:[#allocation11 + $0x3d8] sm:$0xff]
    %v1985 = vld [vmem:[#allocation11 + $0x3e0] sm:$0xff]
    %v1986 = vld [vmem:[#allocation11 + $0x3e8] sm:$0xff]
    %v1987 = vld [vmem:[#allocation11 + $0x3f0] sm:$0xff]
    %v1988 = vld [vmem:[#allocation11 + $0x3f8] sm:$0xff]
    %v2117 = vunpack.c.l.b16 %v1861
    %v2118 = vunpack.c.h.b16 %v1861
    %v2119 = vunpack.c.l.b16 %v1862
    %v2120 = vunpack.c.h.b16 %v1862
    %v2121 = vunpack.c.l.b16 %v1863
    %v2122 = vunpack.c.h.b16 %v1863
    %v2123 = vunpack.c.l.b16 %v1864
    %v2124 = vunpack.c.h.b16 %v1864
    %v2125 = vunpack.c.l.b16 %v1865
    %v2126 = vunpack.c.h.b16 %v1865
    %v2127 = vunpack.c.l.b16 %v1866
    %v2128 = vunpack.c.h.b16 %v1866
    %v2129 = vunpack.c.l.b16 %v1867
    %v2130 = vunpack.c.h.b16 %v1867
    %v2131 = vunpack.c.l.b16 %v1868
    %v2132 = vunpack.c.h.b16 %v1868
    %v2133 = vunpack.c.l.b16 %v1869
    %v2134 = vunpack.c.h.b16 %v1869
    %v2135 = vunpack.c.l.b16 %v1870
    %v2136 = vunpack.c.h.b16 %v1870
    %v2137 = vunpack.c.l.b16 %v1871
    %v2138 = vunpack.c.h.b16 %v1871
    %v2139 = vunpack.c.l.b16 %v1872
    %v2140 = vunpack.c.h.b16 %v1872
    %v2141 = vunpack.c.l.b16 %v1873
    %v2142 = vunpack.c.h.b16 %v1873
    %v2143 = vunpack.c.l.b16 %v1874
    %v2144 = vunpack.c.h.b16 %v1874
    %v2145 = vunpack.c.l.b16 %v1875
    %v2146 = vunpack.c.h.b16 %v1875
    %v2147 = vunpack.c.l.b16 %v1876
    %v2148 = vunpack.c.h.b16 %v1876
    %v2149 = vunpack.c.l.b16 %v1877
    %v2150 = vunpack.c.h.b16 %v1877
    %v2151 = vunpack.c.l.b16 %v1878
    %v2152 = vunpack.c.h.b16 %v1878
    %v2153 = vunpack.c.l.b16 %v1879
    %v2154 = vunpack.c.h.b16 %v1879
    %v2155 = vunpack.c.l.b16 %v1880
    %v2156 = vunpack.c.h.b16 %v1880
    %v2157 = vunpack.c.l.b16 %v1881
    %v2158 = vunpack.c.h.b16 %v1881
    %v2159 = vunpack.c.l.b16 %v1882
    %v2160 = vunpack.c.h.b16 %v1882
    %v2161 = vunpack.c.l.b16 %v1883
    %v2162 = vunpack.c.h.b16 %v1883
    %v2163 = vunpack.c.l.b16 %v1884
    %v2164 = vunpack.c.h.b16 %v1884
    %v2165 = vunpack.c.l.b16 %v1885
    %v2166 = vunpack.c.h.b16 %v1885
    %v2167 = vunpack.c.l.b16 %v1886
    %v2168 = vunpack.c.h.b16 %v1886
    %v2169 = vunpack.c.l.b16 %v1887
    %v2170 = vunpack.c.h.b16 %v1887
    %v2171 = vunpack.c.l.b16 %v1888
    %v2172 = vunpack.c.h.b16 %v1888
    %v2173 = vunpack.c.l.b16 %v1889
    %v2174 = vunpack.c.h.b16 %v1889
    %v2175 = vunpack.c.l.b16 %v1890
    %v2176 = vunpack.c.h.b16 %v1890
    %v2177 = vunpack.c.l.b16 %v1891
    %v2178 = vunpack.c.h.b16 %v1891
    %v2179 = vunpack.c.l.b16 %v1892
    %v2180 = vunpack.c.h.b16 %v1892
    %v2181 = vunpack.c.l.b16 %v1893
    %v2182 = vunpack.c.h.b16 %v1893
    %v2183 = vunpack.c.l.b16 %v1894
    %v2184 = vunpack.c.h.b16 %v1894
    %v2185 = vunpack.c.l.b16 %v1895
    %v2186 = vunpack.c.h.b16 %v1895
    %v2187 = vunpack.c.l.b16 %v1896
    %v2188 = vunpack.c.h.b16 %v1896
    %v2189 = vunpack.c.l.b16 %v1897
    %v2190 = vunpack.c.h.b16 %v1897
    %v2191 = vunpack.c.l.b16 %v1898
    %v2192 = vunpack.c.h.b16 %v1898
    %v2193 = vunpack.c.l.b16 %v1899
    %v2194 = vunpack.c.h.b16 %v1899
    %v2195 = vunpack.c.l.b16 %v1900
    %v2196 = vunpack.c.h.b16 %v1900
    %v2197 = vunpack.c.l.b16 %v1901
    %v2198 = vunpack.c.h.b16 %v1901
    %v2199 = vunpack.c.l.b16 %v1902
    %v2200 = vunpack.c.h.b16 %v1902
    %v2201 = vunpack.c.l.b16 %v1903
    %v2202 = vunpack.c.h.b16 %v1903
    %v2203 = vunpack.c.l.b16 %v1904
    %v2204 = vunpack.c.h.b16 %v1904
    %v2205 = vunpack.c.l.b16 %v1905
    %v2206 = vunpack.c.h.b16 %v1905
    %v2207 = vunpack.c.l.b16 %v1906
    %v2208 = vunpack.c.h.b16 %v1906
    %v2209 = vunpack.c.l.b16 %v1907
    %v2210 = vunpack.c.h.b16 %v1907
    %v2211 = vunpack.c.l.b16 %v1908
    %v2212 = vunpack.c.h.b16 %v1908
    %v2213 = vunpack.c.l.b16 %v1909
    %v2214 = vunpack.c.h.b16 %v1909
    %v2215 = vunpack.c.l.b16 %v1910
    %v2216 = vunpack.c.h.b16 %v1910
    %v2217 = vunpack.c.l.b16 %v1911
    %v2218 = vunpack.c.h.b16 %v1911
    %v2219 = vunpack.c.l.b16 %v1912
    %v2220 = vunpack.c.h.b16 %v1912
    %v2221 = vunpack.c.l.b16 %v1913
    %v2222 = vunpack.c.h.b16 %v1913
    %v2223 = vunpack.c.l.b16 %v1914
    %v2224 = vunpack.c.h.b16 %v1914
    %v2225 = vunpack.c.l.b16 %v1915
    %v2226 = vunpack.c.h.b16 %v1915
    %v2227 = vunpack.c.l.b16 %v1916
    %v2228 = vunpack.c.h.b16 %v1916
    %v2229 = vunpack.c.l.b16 %v1917
    %v2230 = vunpack.c.h.b16 %v1917
    %v2231 = vunpack.c.l.b16 %v1918
    %v2232 = vunpack.c.h.b16 %v1918
    %v2233 = vunpack.c.l.b16 %v1919
    %v2234 = vunpack.c.h.b16 %v1919
    %v2235 = vunpack.c.l.b16 %v1920
    %v2236 = vunpack.c.h.b16 %v1920
    %v2237 = vunpack.c.l.b16 %v1921
    %v2238 = vunpack.c.h.b16 %v1921
    %v2239 = vunpack.c.l.b16 %v1922
    %v2240 = vunpack.c.h.b16 %v1922
    %v2241 = vunpack.c.l.b16 %v1923
    %v2242 = vunpack.c.h.b16 %v1923
    %v2243 = vunpack.c.l.b16 %v1924
    %v2244 = vunpack.c.h.b16 %v1924
    %v2245 = vunpack.c.l.b16 %v1925
    %v2246 = vunpack.c.h.b16 %v1925
    %v2247 = vunpack.c.l.b16 %v1926
    %v2248 = vunpack.c.h.b16 %v1926
    %v2249 = vunpack.c.l.b16 %v1927
    %v2250 = vunpack.c.h.b16 %v1927
    %v2251 = vunpack.c.l.b16 %v1928
    %v2252 = vunpack.c.h.b16 %v1928
    %v2253 = vunpack.c.l.b16 %v1929
    %v2254 = vunpack.c.h.b16 %v1929
    %v2255 = vunpack.c.l.b16 %v1930
    %v2256 = vunpack.c.h.b16 %v1930
    %v2257 = vunpack.c.l.b16 %v1931
    %v2258 = vunpack.c.h.b16 %v1931
    %v2259 = vunpack.c.l.b16 %v1932
    %v2260 = vunpack.c.h.b16 %v1932
    %v2261 = vunpack.c.l.b16 %v1933
    %v2262 = vunpack.c.h.b16 %v1933
    %v2263 = vunpack.c.l.b16 %v1934
    %v2264 = vunpack.c.h.b16 %v1934
    %v2265 = vunpack.c.l.b16 %v1935
    %v2266 = vunpack.c.h.b16 %v1935
    %v2267 = vunpack.c.l.b16 %v1936
    %v2268 = vunpack.c.h.b16 %v1936
    %v2269 = vunpack.c.l.b16 %v1937
    %v2270 = vunpack.c.h.b16 %v1937
    %v2271 = vunpack.c.l.b16 %v1938
    %v2272 = vunpack.c.h.b16 %v1938
    %v2273 = vunpack.c.l.b16 %v1939
    %v2274 = vunpack.c.h.b16 %v1939
    %v2275 = vunpack.c.l.b16 %v1940
    %v2276 = vunpack.c.h.b16 %v1940
    %v2277 = vunpack.c.l.b16 %v1941
    %v2278 = vunpack.c.h.b16 %v1941
    %v2279 = vunpack.c.l.b16 %v1942
    %v2280 = vunpack.c.h.b16 %v1942
    %v2281 = vunpack.c.l.b16 %v1943
    %v2282 = vunpack.c.h.b16 %v1943
    %v2283 = vunpack.c.l.b16 %v1944
    %v2284 = vunpack.c.h.b16 %v1944
    %v2285 = vunpack.c.l.b16 %v1945
    %v2286 = vunpack.c.h.b16 %v1945
    %v2287 = vunpack.c.l.b16 %v1946
    %v2288 = vunpack.c.h.b16 %v1946
    %v2289 = vunpack.c.l.b16 %v1947
    %v2290 = vunpack.c.h.b16 %v1947
    %v2291 = vunpack.c.l.b16 %v1948
    %v2292 = vunpack.c.h.b16 %v1948
    %v2293 = vunpack.c.l.b16 %v1949
    %v2294 = vunpack.c.h.b16 %v1949
    %v2295 = vunpack.c.l.b16 %v1950
    %v2296 = vunpack.c.h.b16 %v1950
    %v2297 = vunpack.c.l.b16 %v1951
    %v2298 = vunpack.c.h.b16 %v1951
    %v2299 = vunpack.c.l.b16 %v1952
    %v2300 = vunpack.c.h.b16 %v1952
    %v2301 = vunpack.c.l.b16 %v1953
    %v2302 = vunpack.c.h.b16 %v1953
    %v2303 = vunpack.c.l.b16 %v1954
    %v2304 = vunpack.c.h.b16 %v1954
    %v2305 = vunpack.c.l.b16 %v1955
    %v2306 = vunpack.c.h.b16 %v1955
    %v2307 = vunpack.c.l.b16 %v1956
    %v2308 = vunpack.c.h.b16 %v1956
    %v2309 = vunpack.c.l.b16 %v1957
    %v2310 = vunpack.c.h.b16 %v1957
    %v2311 = vunpack.c.l.b16 %v1958
    %v2312 = vunpack.c.h.b16 %v1958
    %v2313 = vunpack.c.l.b16 %v1959
    %v2314 = vunpack.c.h.b16 %v1959
    %v2315 = vunpack.c.l.b16 %v1960
    %v2316 = vunpack.c.h.b16 %v1960
    %v2317 = vunpack.c.l.b16 %v1961
    %v2318 = vunpack.c.h.b16 %v1961
    %v2319 = vunpack.c.l.b16 %v1962
    %v2320 = vunpack.c.h.b16 %v1962
    %v2321 = vunpack.c.l.b16 %v1963
    %v2322 = vunpack.c.h.b16 %v1963
    %v2323 = vunpack.c.l.b16 %v1964
    %v2324 = vunpack.c.h.b16 %v1964
    %v2325 = vunpack.c.l.b16 %v1965
    %v2326 = vunpack.c.h.b16 %v1965
    %v2327 = vunpack.c.l.b16 %v1966
    %v2328 = vunpack.c.h.b16 %v1966
    %v2329 = vunpack.c.l.b16 %v1967
    %v2330 = vunpack.c.h.b16 %v1967
    %v2331 = vunpack.c.l.b16 %v1968
    %v2332 = vunpack.c.h.b16 %v1968
    %v2333 = vunpack.c.l.b16 %v1969
    %v2334 = vunpack.c.h.b16 %v1969
    %v2335 = vunpack.c.l.b16 %v1970
    %v2336 = vunpack.c.h.b16 %v1970
    %v2337 = vunpack.c.l.b16 %v1971
    %v2338 = vunpack.c.h.b16 %v1971
    %v2339 = vunpack.c.l.b16 %v1972
    %v2340 = vunpack.c.h.b16 %v1972
    %v2341 = vunpack.c.l.b16 %v1973
    %v2342 = vunpack.c.h.b16 %v1973
    %v2343 = vunpack.c.l.b16 %v1974
    %v2344 = vunpack.c.h.b16 %v1974
    %v2345 = vunpack.c.l.b16 %v1975
    %v2346 = vunpack.c.h.b16 %v1975
    %v2347 = vunpack.c.l.b16 %v1976
    %v2348 = vunpack.c.h.b16 %v1976
    %v2349 = vunpack.c.l.b16 %v1977
    %v2350 = vunpack.c.h.b16 %v1977
    %v2351 = vunpack.c.l.b16 %v1978
    %v2352 = vunpack.c.h.b16 %v1978
    %v2353 = vunpack.c.l.b16 %v1979
    %v2354 = vunpack.c.h.b16 %v1979
    %v2355 = vunpack.c.l.b16 %v1980
    %v2356 = vunpack.c.h.b16 %v1980
    %v2357 = vunpack.c.l.b16 %v1981
    %v2358 = vunpack.c.h.b16 %v1981
    %v2359 = vunpack.c.l.b16 %v1982
    %v2360 = vunpack.c.h.b16 %v1982
    %v2361 = vunpack.c.l.b16 %v1983
    %v2362 = vunpack.c.h.b16 %v1983
    %v2363 = vunpack.c.l.b16 %v1984
    %v2364 = vunpack.c.h.b16 %v1984
    %v2365 = vunpack.c.l.b16 %v1985
    %v2366 = vunpack.c.h.b16 %v1985
    %v2367 = vunpack.c.l.b16 %v1986
    %v2368 = vunpack.c.h.b16 %v1986
    %v2369 = vunpack.c.l.b16 %v1987
    %v2370 = vunpack.c.h.b16 %v1987
    %v2371 = vunpack.c.l.b16 %v1988
    %v2372 = vunpack.c.h.b16 %v1988
    %v2373 = vpack.c.b16 %v2125, %v2117
    %v2374 = vpack.c.b16 %v2126, %v2118
    %v2375 = vpack.c.b16 %v2127, %v2119
    %v2376 = vpack.c.b16 %v2128, %v2120
    %v2377 = vpack.c.b16 %v2129, %v2121
    %v2378 = vpack.c.b16 %v2130, %v2122
    %v2379 = vpack.c.b16 %v2131, %v2123
    %v2380 = vpack.c.b16 %v2132, %v2124
    %v2381 = vpack.c.b16 %v2141, %v2133
    %v2382 = vpack.c.b16 %v2142, %v2134
    %v2383 = vpack.c.b16 %v2143, %v2135
    %v2384 = vpack.c.b16 %v2144, %v2136
    %v2385 = vpack.c.b16 %v2145, %v2137
    %v2386 = vpack.c.b16 %v2146, %v2138
    %v2387 = vpack.c.b16 %v2147, %v2139
    %v2388 = vpack.c.b16 %v2148, %v2140
    %v2389 = vpack.c.b16 %v2157, %v2149
    %v2390 = vpack.c.b16 %v2158, %v2150
    %v2391 = vpack.c.b16 %v2159, %v2151
    %v2392 = vpack.c.b16 %v2160, %v2152
    %v2393 = vpack.c.b16 %v2161, %v2153
    %v2394 = vpack.c.b16 %v2162, %v2154
    %v2395 = vpack.c.b16 %v2163, %v2155
    %v2396 = vpack.c.b16 %v2164, %v2156
    %v2397 = vpack.c.b16 %v2173, %v2165
    %v2398 = vpack.c.b16 %v2174, %v2166
    %v2399 = vpack.c.b16 %v2175, %v2167
    %v2400 = vpack.c.b16 %v2176, %v2168
    %v2401 = vpack.c.b16 %v2177, %v2169
    %v2402 = vpack.c.b16 %v2178, %v2170
    %v2403 = vpack.c.b16 %v2179, %v2171
    %v2404 = vpack.c.b16 %v2180, %v2172
    %v2405 = vpack.c.b16 %v2189, %v2181
    %v2406 = vpack.c.b16 %v2190, %v2182
    %v2407 = vpack.c.b16 %v2191, %v2183
    %v2408 = vpack.c.b16 %v2192, %v2184
    %v2409 = vpack.c.b16 %v2193, %v2185
    %v2410 = vpack.c.b16 %v2194, %v2186
    %v2411 = vpack.c.b16 %v2195, %v2187
    %v2412 = vpack.c.b16 %v2196, %v2188
    %v2413 = vpack.c.b16 %v2205, %v2197
    %v2414 = vpack.c.b16 %v2206, %v2198
    %v2415 = vpack.c.b16 %v2207, %v2199
    %v2416 = vpack.c.b16 %v2208, %v2200
    %v2417 = vpack.c.b16 %v2209, %v2201
    %v2418 = vpack.c.b16 %v2210, %v2202
    %v2419 = vpack.c.b16 %v2211, %v2203
    %v2420 = vpack.c.b16 %v2212, %v2204
    %v2421 = vpack.c.b16 %v2221, %v2213
    %v2422 = vpack.c.b16 %v2222, %v2214
    %v2423 = vpack.c.b16 %v2223, %v2215
    %v2424 = vpack.c.b16 %v2224, %v2216
    %v2425 = vpack.c.b16 %v2225, %v2217
    %v2426 = vpack.c.b16 %v2226, %v2218
    %v2427 = vpack.c.b16 %v2227, %v2219
    %v2428 = vpack.c.b16 %v2228, %v2220
    %v2429 = vpack.c.b16 %v2237, %v2229
    %v2430 = vpack.c.b16 %v2238, %v2230
    %v2431 = vpack.c.b16 %v2239, %v2231
    %v2432 = vpack.c.b16 %v2240, %v2232
    %v2433 = vpack.c.b16 %v2241, %v2233
    %v2434 = vpack.c.b16 %v2242, %v2234
    %v2435 = vpack.c.b16 %v2243, %v2235
    %v2436 = vpack.c.b16 %v2244, %v2236
    %v2437 = vpack.c.b16 %v2253, %v2245
    %v2438 = vpack.c.b16 %v2254, %v2246
    %v2439 = vpack.c.b16 %v2255, %v2247
    %v2440 = vpack.c.b16 %v2256, %v2248
    %v2441 = vpack.c.b16 %v2257, %v2249
    %v2442 = vpack.c.b16 %v2258, %v2250
    %v2443 = vpack.c.b16 %v2259, %v2251
    %v2444 = vpack.c.b16 %v2260, %v2252
    %v2445 = vpack.c.b16 %v2269, %v2261
    %v2446 = vpack.c.b16 %v2270, %v2262
    %v2447 = vpack.c.b16 %v2271, %v2263
    %v2448 = vpack.c.b16 %v2272, %v2264
    %v2449 = vpack.c.b16 %v2273, %v2265
    %v2450 = vpack.c.b16 %v2274, %v2266
    %v2451 = vpack.c.b16 %v2275, %v2267
    %v2452 = vpack.c.b16 %v2276, %v2268
    %v2453 = vpack.c.b16 %v2285, %v2277
    %v2454 = vpack.c.b16 %v2286, %v2278
    %v2455 = vpack.c.b16 %v2287, %v2279
    %v2456 = vpack.c.b16 %v2288, %v2280
    %v2457 = vpack.c.b16 %v2289, %v2281
    %v2458 = vpack.c.b16 %v2290, %v2282
    %v2459 = vpack.c.b16 %v2291, %v2283
    %v2460 = vpack.c.b16 %v2292, %v2284
    %v2461 = vpack.c.b16 %v2301, %v2293
    %v2462 = vpack.c.b16 %v2302, %v2294
    %v2463 = vpack.c.b16 %v2303, %v2295
    %v2464 = vpack.c.b16 %v2304, %v2296
    %v2465 = vpack.c.b16 %v2305, %v2297
    %v2466 = vpack.c.b16 %v2306, %v2298
    %v2467 = vpack.c.b16 %v2307, %v2299
    %v2468 = vpack.c.b16 %v2308, %v2300
    %v2469 = vpack.c.b16 %v2317, %v2309
    %v2470 = vpack.c.b16 %v2318, %v2310
    %v2471 = vpack.c.b16 %v2319, %v2311
    %v2472 = vpack.c.b16 %v2320, %v2312
    %v2473 = vpack.c.b16 %v2321, %v2313
    %v2474 = vpack.c.b16 %v2322, %v2314
    %v2475 = vpack.c.b16 %v2323, %v2315
    %v2476 = vpack.c.b16 %v2324, %v2316
    %v2477 = vpack.c.b16 %v2333, %v2325
    %v2478 = vpack.c.b16 %v2334, %v2326
    %v2479 = vpack.c.b16 %v2335, %v2327
    %v2480 = vpack.c.b16 %v2336, %v2328
    %v2481 = vpack.c.b16 %v2337, %v2329
    %v2482 = vpack.c.b16 %v2338, %v2330
    %v2483 = vpack.c.b16 %v2339, %v2331
    %v2484 = vpack.c.b16 %v2340, %v2332
    %v2485 = vpack.c.b16 %v2349, %v2341
    %v2486 = vpack.c.b16 %v2350, %v2342
    %v2487 = vpack.c.b16 %v2351, %v2343
    %v2488 = vpack.c.b16 %v2352, %v2344
    %v2489 = vpack.c.b16 %v2353, %v2345
    %v2490 = vpack.c.b16 %v2354, %v2346
    %v2491 = vpack.c.b16 %v2355, %v2347
    %v2492 = vpack.c.b16 %v2356, %v2348
    %v2493 = vpack.c.b16 %v2365, %v2357
    %v2494 = vpack.c.b16 %v2366, %v2358
    %v2495 = vpack.c.b16 %v2367, %v2359
    %v2496 = vpack.c.b16 %v2368, %v2360
    %v2497 = vpack.c.b16 %v2369, %v2361
    %v2498 = vpack.c.b16 %v2370, %v2362
    %v2499 = vpack.c.b16 %v2371, %v2363
    %v2500 = vpack.c.b16 %v2372, %v2364
    %2629 = vmatprep.subr.bf16.mxu0 %v2374
    %2630 = vmatpush1.bf16.msra.mxu0 %v2373
    %2631 = vmatprep.subr.bf16.mxu0 %v2382
    %2632 = vmatpush1.bf16.msra.mxu0 %v2381
    %2633 = vmatprep.subr.bf16.mxu0 %v2390
    %2634 = vmatpush1.bf16.msra.mxu0 %v2389
    %2635 = vmatprep.subr.bf16.mxu0 %v2398
    %2636 = vmatpush1.bf16.msra.mxu0 %v2397
    %2637 = vmatprep.subr.bf16.mxu0 %v2406
    %2638 = vmatpush1.bf16.msra.mxu0 %v2405
    %2639 = vmatprep.subr.bf16.mxu0 %v2414
    %2640 = vmatpush1.bf16.msra.mxu0 %v2413
    %2641 = vmatprep.subr.bf16.mxu0 %v2422
    %2642 = vmatpush1.bf16.msra.mxu0 %v2421
    %2643 = vmatprep.subr.bf16.mxu0 %v2430
    %2644 = vmatpush1.bf16.msra.mxu0 %v2429
    %2645 = vmatprep.subr.bf16.mxu0 %v2438
    %2646 = vmatpush1.bf16.msra.mxu0 %v2437
    %2647 = vmatprep.subr.bf16.mxu0 %v2446
    %2648 = vmatpush1.bf16.msra.mxu0 %v2445
    %2649 = vmatprep.subr.bf16.mxu0 %v2454
    %2650 = vmatpush1.bf16.msra.mxu0 %v2453
    %2651 = vmatprep.subr.bf16.mxu0 %v2462
    %2652 = vmatpush1.bf16.msra.mxu0 %v2461
    %2653 = vmatprep.subr.bf16.mxu0 %v2470
    %2654 = vmatpush1.bf16.msra.mxu0 %v2469
    %2655 = vmatprep.subr.bf16.mxu0 %v2478
    %2656 = vmatpush1.bf16.msra.mxu0 %v2477
    %2657 = vmatprep.subr.bf16.mxu0 %v2486
    %2658 = vmatpush1.bf16.msra.mxu0 %v2485
    %2659 = vmatprep.subr.bf16.mxu0 %v2494
    %2660 = vmatpush1.bf16.msra.mxu0 %v2493
    %2661 = vmatprep.mubr.bf16.mxu0 %v1858
    %2662 = vmatmul.mubr.bf16.gmra.mrb[0].mxu0 %v1856
    %v2663 = vpop.f32.mrb[0].mxu0
    %v2664 = vadd.f32 0.0, %v2663
    %v2665 = vpop.f32.mrb[0].mxu0
    %v2666 = vadd.f32 0.0, %v2665
    %v2667 = vpop.f32.mrb[0].mxu0
    %v2668 = vpop.f32.mrb[0].mxu0
    %2669 = vdwg.mxu0
    %2670 = vmatprep.subr.bf16.mxu0 %v2376
    %2671 = vmatpush1.bf16.msra.mxu0 %v2375
    %2672 = vmatprep.subr.bf16.mxu0 %v2384
    %2673 = vmatpush1.bf16.msra.mxu0 %v2383
    %2674 = vmatprep.subr.bf16.mxu0 %v2392
    %2675 = vmatpush1.bf16.msra.mxu0 %v2391
    %2676 = vmatprep.subr.bf16.mxu0 %v2400
    %2677 = vmatpush1.bf16.msra.mxu0 %v2399
    %2678 = vmatprep.subr.bf16.mxu0 %v2408
    %2679 = vmatpush1.bf16.msra.mxu0 %v2407
    %2680 = vmatprep.subr.bf16.mxu0 %v2416
    %2681 = vmatpush1.bf16.msra.mxu0 %v2415
    %2682 = vmatprep.subr.bf16.mxu0 %v2424
    %2683 = vmatpush1.bf16.msra.mxu0 %v2423
    %2684 = vmatprep.subr.bf16.mxu0 %v2432
    %2685 = vmatpush1.bf16.msra.mxu0 %v2431
    %2686 = vmatprep.subr.bf16.mxu0 %v2440
    %2687 = vmatpush1.bf16.msra.mxu0 %v2439
    %2688 = vmatprep.subr.bf16.mxu0 %v2448
    %2689 = vmatpush1.bf16.msra.mxu0 %v2447
    %2690 = vmatprep.subr.bf16.mxu0 %v2456
    %2691 = vmatpush1.bf16.msra.mxu0 %v2455
    %2692 = vmatprep.subr.bf16.mxu0 %v2464
    %2693 = vmatpush1.bf16.msra.mxu0 %v2463
    %2694 = vmatprep.subr.bf16.mxu0 %v2472
    %2695 = vmatpush1.bf16.msra.mxu0 %v2471
    %2696 = vmatprep.subr.bf16.mxu0 %v2480
    %2697 = vmatpush1.bf16.msra.mxu0 %v2479
    %2698 = vmatprep.subr.bf16.mxu0 %v2488
    %2699 = vmatpush1.bf16.msra.mxu0 %v2487
    %2700 = vmatprep.subr.bf16.mxu0 %v2496
    %2701 = vmatpush1.bf16.msra.mxu0 %v2495
    %2702 = vmatprep.mubr.bf16.mxu0 %v1858
    %2703 = vmatmul.mubr.bf16.gmra.mrb[0].mxu0 %v1856
    %v2704 = vpop.f32.mrb[0].mxu0
    %v2705 = vadd.f32 0.0, %v2704
    %v2706 = vpop.f32.mrb[0].mxu0
    %v2707 = vadd.f32 0.0, %v2706
    %v2708 = vpop.f32.mrb[0].mxu0
    %v2709 = vpop.f32.mrb[0].mxu0
    %2710 = vdwg.mxu0
    %2711 = vmatprep.subr.bf16.mxu0 %v2378
    %2712 = vmatpush1.bf16.msra.mxu0 %v2377
    %2713 = vmatprep.subr.bf16.mxu0 %v2386
    %2714 = vmatpush1.bf16.msra.mxu0 %v2385
    %2715 = vmatprep.subr.bf16.mxu0 %v2394
    %2716 = vmatpush1.bf16.msra.mxu0 %v2393
    %2717 = vmatprep.subr.bf16.mxu0 %v2402
    %2718 = vmatpush1.bf16.msra.mxu0 %v2401
    %2719 = vmatprep.subr.bf16.mxu0 %v2410
    %2720 = vmatpush1.bf16.msra.mxu0 %v2409
    %2721 = vmatprep.subr.bf16.mxu0 %v2418
    %2722 = vmatpush1.bf16.msra.mxu0 %v2417
    %2723 = vmatprep.subr.bf16.mxu0 %v2426
    %2724 = vmatpush1.bf16.msra.mxu0 %v2425
    %2725 = vmatprep.subr.bf16.mxu0 %v2434
    %2726 = vmatpush1.bf16.msra.mxu0 %v2433
    %2727 = vmatprep.subr.bf16.mxu0 %v2442
    %2728 = vmatpush1.bf16.msra.mxu0 %v2441
    %2729 = vmatprep.subr.bf16.mxu0 %v2450
    %2730 = vmatpush1.bf16.msra.mxu0 %v2449
    %2731 = vmatprep.subr.bf16.mxu0 %v2458
    %2732 = vmatpush1.bf16.msra.mxu0 %v2457
    %2733 = vmatprep.subr.bf16.mxu0 %v2466
    %2734 = vmatpush1.bf16.msra.mxu0 %v2465
    %2735 = vmatprep.subr.bf16.mxu0 %v2474
    %2736 = vmatpush1.bf16.msra.mxu0 %v2473
    %2737 = vmatprep.subr.bf16.mxu0 %v2482
    %2738 = vmatpush1.bf16.msra.mxu0 %v2481
    %2739 = vmatprep.subr.bf16.mxu0 %v2490
    %2740 = vmatpush1.bf16.msra.mxu0 %v2489
    %2741 = vmatprep.subr.bf16.mxu0 %v2498
    %2742 = vmatpush1.bf16.msra.mxu0 %v2497
    %2743 = vmatprep.mubr.bf16.mxu0 %v1858
    %2744 = vmatmul.mubr.bf16.gmra.mrb[0].mxu0 %v1856
    %v2745 = vpop.f32.mrb[0].mxu0
    %v2746 = vadd.f32 0.0, %v2745
    %v2747 = vpop.f32.mrb[0].mxu0
    %v2748 = vadd.f32 0.0, %v2747
    %v2749 = vpop.f32.mrb[0].mxu0
    %v2750 = vpop.f32.mrb[0].mxu0
    %2751 = vdwg.mxu0
    %2752 = vmatprep.subr.bf16.mxu0 %v2380
    %2753 = vmatpush1.bf16.msra.mxu0 %v2379
    %2754 = vmatprep.subr.bf16.mxu0 %v2388
    %2755 = vmatpush1.bf16.msra.mxu0 %v2387
    %2756 = vmatprep.subr.bf16.mxu0 %v2396
    %2757 = vmatpush1.bf16.msra.mxu0 %v2395
    %2758 = vmatprep.subr.bf16.mxu0 %v2404
    %2759 = vmatpush1.bf16.msra.mxu0 %v2403
    %2760 = vmatprep.subr.bf16.mxu0 %v2412
    %2761 = vmatpush1.bf16.msra.mxu0 %v2411
    %2762 = vmatprep.subr.bf16.mxu0 %v2420
    %2763 = vmatpush1.bf16.msra.mxu0 %v2419
    %2764 = vmatprep.subr.bf16.mxu0 %v2428
    %2765 = vmatpush1.bf16.msra.mxu0 %v2427
    %2766 = vmatprep.subr.bf16.mxu0 %v2436
    %2767 = vmatpush1.bf16.msra.mxu0 %v2435
    %2768 = vmatprep.subr.bf16.mxu0 %v2444
    %2769 = vmatpush1.bf16.msra.mxu0 %v2443
    %2770 = vmatprep.subr.bf16.mxu0 %v2452
    %2771 = vmatpush1.bf16.msra.mxu0 %v2451
    %2772 = vmatprep.subr.bf16.mxu0 %v2460
    %2773 = vmatpush1.bf16.msra.mxu0 %v2459
    %2774 = vmatprep.subr.bf16.mxu0 %v2468
    %2775 = vmatpush1.bf16.msra.mxu0 %v2467
    %2776 = vmatprep.subr.bf16.mxu0 %v2476
    %2777 = vmatpush1.bf16.msra.mxu0 %v2475
    %2778 = vmatprep.subr.bf16.mxu0 %v2484
    %2779 = vmatpush1.bf16.msra.mxu0 %v2483
    %2780 = vmatprep.subr.bf16.mxu0 %v2492
    %2781 = vmatpush1.bf16.msra.mxu0 %v2491
    %2782 = vmatprep.subr.bf16.mxu0 %v2500
    %2783 = vmatpush1.bf16.msra.mxu0 %v2499
    %2784 = vmatprep.mubr.bf16.mxu0 %v1858
    %2785 = vmatmul.mubr.bf16.gmra.mrb[0].mxu0 %v1856
    %v2786 = vpop.f32.mrb[0].mxu0
    %v2787 = vadd.f32 0.0, %v2786
    %v2788 = vpop.f32.mrb[0].mxu0
    %v2789 = vadd.f32 0.0, %v2788
    %v2790 = vpop.f32.mrb[0].mxu0
    %v2791 = vpop.f32.mrb[0].mxu0
    %2792 = vdwg.mxu0
    %s2793 = scalar_lea.vmem [#allocation2], 16
    %v2794 = vld [vmem:[%s2793] sm:$0xff]
    %v2795 = vld [vmem:[%s2793 + $0x8] sm:$0xff]
    %v2796 = vunpack.c.l.bf16 %v2794
    %v2797 = vunpack.c.h.bf16 %v2794
    %v2798 = vunpack.c.l.bf16 %v2795
    %v2799 = vunpack.c.h.bf16 %v2795
    %v2800 = vadd.f32 %v2664, %v2796
    %v2801 = vadd.f32 %v2666, %v2797
    %v2802 = vadd.f32 %v2705, %v2798
    %v2803 = vadd.f32 %v2707, %v2799
    %s2804 = scalar_lea.vmem [#allocation3], 96
    %v2805 = vld [vmem:[%s2804] sm:$0xff]
    %v2806 = vld [vmem:[%s2804 + $0x8] sm:$0xff]
    %v2807 = vunpack.c.l.bf16 %v2805
    %v2808 = vunpack.c.h.bf16 %v2805
    %v2809 = vunpack.c.l.bf16 %v2806
    %v2810 = vunpack.c.h.bf16 %v2806
    %v2811 = vadd.f32 %v2746, %v2807
    %v2812 = vadd.f32 %v2748, %v2808
    %v2813 = vadd.f32 %v2787, %v2809
    %v2814 = vadd.f32 %v2789, %v2810
    %v2815 = vxor.u32 %v2800, 2147483648
    %v2816 = vmul.f32 %v2815, 1.442695
    %v2817 = vpow.pop %v2816
    %v2818 = vadd.f32 %v2817, 1.0
    %v2819 = vrcp.pop %v2818
    %v2820 = vmul.f32 1.0, %v2819
    %v2821 = vxor.u32 %v2801, 2147483648
    %v2822 = vmul.f32 %v2821, 1.442695
    %v2823 = vpow.pop %v2822
    %v2824 = vadd.f32 %v2823, 1.0
    %v2825 = vrcp.pop %v2824
    %v2826 = vmul.f32 1.0, %v2825
    %v2827 = vtanh.pop %v2802
    %v2828 = vxor.u32 %v2803, 2147483648
    %v2829 = vmul.f32 %v2828, 1.442695
    %v2830 = vpow.pop %v2829
    %v2831 = vadd.f32 %v2830, 1.0
    %v2832 = vrcp.pop %v2831
    %v2833 = vmul.f32 1.0, %v2832
    %v2834 = vmul.f32 %v2826, %v1829
    %v2835 = vmul.f32 %v2820, %v2827
    %v2836 = vadd.f32 %v2834, %v2835
    %v2837 = vtanh.pop %v2836
    %v2838 = vmul.f32 %v2833, %v2837
    %v2839 = vxor.u32 %v2811, 2147483648
    %v2840 = vmul.f32 %v2839, 1.442695
    %v2841 = vpow.pop %v2840
    %v2842 = vadd.f32 %v2841, 1.0
    %v2843 = vrcp.pop %v2842
    %v2844 = vmul.f32 1.0, %v2843
    %v2845 = vxor.u32 %v2812, 2147483648
    %v2846 = vmul.f32 %v2845, 1.442695
    %v2847 = vpow.pop %v2846
    %v2848 = vadd.f32 %v2847, 1.0
    %v2849 = vrcp.pop %v2848
    %v2850 = vmul.f32 1.0, %v2849
    %v2851 = vtanh.pop %v2813
    %v2852 = vxor.u32 %v2814, 2147483648
    %v2853 = vmul.f32 %v2852, 1.442695
    %v2854 = vpow.pop %v2853
    %v2855 = vadd.f32 %v2854, 1.0
    %v2856 = vrcp.pop %v2855
    %v2857 = vmul.f32 1.0, %v2856
    %v2858 = vmul.f32 %v2850, %v1853
    %v2859 = vmul.f32 %v2844, %v2851
    %v2860 = vadd.f32 %v2858, %v2859
    %v2861 = vtanh.pop %v2860
    %v2862 = vmul.f32 %v2857, %v2861
    %v2863 = vpack.c.bf16 %v2838, %v2838
    %s2864 = scalar_lea.vmem [#allocation4], 4
    %2865 = vst [vmem:[%s2864] sm:$0xf] %v2863
    %v2866 = vpack.c.bf16 %v2862, %v2862
    %s2867 = scalar_lea.vmem [#allocation5], 24
    %2868 = vst [vmem:[%s2867] sm:$0xf] %v2866
    %v2869 = vld [vmem:[#allocation11] sm:$0xff]
    %v2870 = vld [vmem:[#allocation11 + $0x8] sm:$0xff]
    %v2871 = vld [vmem:[#allocation11 + $0x10] sm:$0xff]
    %v2872 = vld [vmem:[#allocation11 + $0x18] sm:$0xff]
    %v2873 = vld [vmem:[#allocation11 + $0x20] sm:$0xff]
    %v2874 = vld [vmem:[#allocation11 + $0x28] sm:$0xff]
    %v2875 = vld [vmem:[#allocation11 + $0x30] sm:$0xff]
    %v2876 = vld [vmem:[#allocation11 + $0x38] sm:$0xff]
    %v2877 = vld [vmem:[#allocation11 + $0x40] sm:$0xff]
    %v2878 = vld [vmem:[#allocation11 + $0x48] sm:$0xff]
    %v2879 = vld [vmem:[#allocation11 + $0x50] sm:$0xff]
    %v2880 = vld [vmem:[#allocation11 + $0x58] sm:$0xff]
    %v2881 = vld [vmem:[#allocation11 + $0x60] sm:$0xff]
    %v2882 = vld [vmem:[#allocation11 + $0x68] sm:$0xff]
    %v2883 = vld [vmem:[#allocation11 + $0x70] sm:$0xff]
    %v2884 = vld [vmem:[#allocation11 + $0x78] sm:$0xff]
    %v2885 = vld [vmem:[#allocation11 + $0x80] sm:$0xff]
    %v2886 = vld [vmem:[#allocation11 + $0x88] sm:$0xff]
    %v2887 = vld [vmem:[#allocation11 + $0x90] sm:$0xff]
    %v2888 = vld [vmem:[#allocation11 + $0x98] sm:$0xff]
    %v2889 = vld [vmem:[#allocation11 + $0xa0] sm:$0xff]
    %v2890 = vld [vmem:[#allocation11 + $0xa8] sm:$0xff]
    %v2891 = vld [vmem:[#allocation11 + $0xb0] sm:$0xff]
    %v2892 = vld [vmem:[#allocation11 + $0xb8] sm:$0xff]
    %v2893 = vld [vmem:[#allocation11 + $0xc0] sm:$0xff]
    %v2894 = vld [vmem:[#allocation11 + $0xc8] sm:$0xff]
    %v2895 = vld [vmem:[#allocation11 + $0xd0] sm:$0xff]
    %v2896 = vld [vmem:[#allocation11 + $0xd8] sm:$0xff]
    %v2897 = vld [vmem:[#allocation11 + $0xe0] sm:$0xff]
    %v2898 = vld [vmem:[#allocation11 + $0xe8] sm:$0xff]
    %v2899 = vld [vmem:[#allocation11 + $0xf0] sm:$0xff]
    %v2900 = vld [vmem:[#allocation11 + $0xf8] sm:$0xff]
    %v2901 = vld [vmem:[#allocation11 + $0x100] sm:$0xff]
    %v2902 = vld [vmem:[#allocation11 + $0x108] sm:$0xff]
    %v2903 = vld [vmem:[#allocation11 + $0x110] sm:$0xff]
    %v2904 = vld [vmem:[#allocation11 + $0x118] sm:$0xff]
    %v2905 = vld [vmem:[#allocation11 + $0x120] sm:$0xff]
    %v2906 = vld [vmem:[#allocation11 + $0x128] sm:$0xff]
    %v2907 = vld [vmem:[#allocation11 + $0x130] sm:$0xff]
    %v2908 = vld [vmem:[#allocation11 + $0x138] sm:$0xff]
    %v2909 = vld [vmem:[#allocation11 + $0x140] sm:$0xff]
    %v2910 = vld [vmem:[#allocation11 + $0x148] sm:$0xff]
    %v2911 = vld [vmem:[#allocation11 + $0x150] sm:$0xff]
    %v2912 = vld [vmem:[#allocation11 + $0x158] sm:$0xff]
    %v2913 = vld [vmem:[#allocation11 + $0x160] sm:$0xff]
    %v2914 = vld [vmem:[#allocation11 + $0x168] sm:$0xff]
    %v2915 = vld [vmem:[#allocation11 + $0x170] sm:$0xff]
    %v2916 = vld [vmem:[#allocation11 + $0x178] sm:$0xff]
    %v2917 = vld [vmem:[#allocation11 + $0x180] sm:$0xff]
    %v2918 = vld [vmem:[#allocation11 + $0x188] sm:$0xff]
    %v2919 = vld [vmem:[#allocation11 + $0x190] sm:$0xff]
    %v2920 = vld [vmem:[#allocation11 + $0x198] sm:$0xff]
    %v2921 = vld [vmem:[#allocation11 + $0x1a0] sm:$0xff]
    %v2922 = vld [vmem:[#allocation11 + $0x1a8] sm:$0xff]
    %v2923 = vld [vmem:[#allocation11 + $0x1b0] sm:$0xff]
    %v2924 = vld [vmem:[#allocation11 + $0x1b8] sm:$0xff]
    %v2925 = vld [vmem:[#allocation11 + $0x1c0] sm:$0xff]
    %v2926 = vld [vmem:[#allocation11 + $0x1c8] sm:$0xff]
    %v2927 = vld [vmem:[#allocation11 + $0x1d0] sm:$0xff]
    %v2928 = vld [vmem:[#allocation11 + $0x1d8] sm:$0xff]
    %v2929 = vld [vmem:[#allocation11 + $0x1e0] sm:$0xff]
    %v2930 = vld [vmem:[#allocation11 + $0x1e8] sm:$0xff]
    %v2931 = vld [vmem:[#allocation11 + $0x1f0] sm:$0xff]
    %v2932 = vld [vmem:[#allocation11 + $0x1f8] sm:$0xff]
    %v2933 = vld [vmem:[#allocation11 + $0x200] sm:$0xff]
    %v2934 = vld [vmem:[#allocation11 + $0x208] sm:$0xff]
    %v2935 = vld [vmem:[#allocation11 + $0x210] sm:$0xff]
    %v2936 = vld [vmem:[#allocation11 + $0x218] sm:$0xff]
    %v2937 = vld [vmem:[#allocation11 + $0x220] sm:$0xff]
    %v2938 = vld [vmem:[#allocation11 + $0x228] sm:$0xff]
    %v2939 = vld [vmem:[#allocation11 + $0x230] sm:$0xff]
    %v2940 = vld [vmem:[#allocation11 + $0x238] sm:$0xff]
    %v2941 = vld [vmem:[#allocation11 + $0x240] sm:$0xff]
    %v2942 = vld [vmem:[#allocation11 + $0x248] sm:$0xff]
    %v2943 = vld [vmem:[#allocation11 + $0x250] sm:$0xff]
    %v2944 = vld [vmem:[#allocation11 + $0x258] sm:$0xff]
    %v2945 = vld [vmem:[#allocation11 + $0x260] sm:$0xff]
    %v2946 = vld [vmem:[#allocation11 + $0x268] sm:$0xff]
    %v2947 = vld [vmem:[#allocation11 + $0x270] sm:$0xff]
    %v2948 = vld [vmem:[#allocation11 + $0x278] sm:$0xff]
    %v2949 = vld [vmem:[#allocation11 + $0x280] sm:$0xff]
    %v2950 = vld [vmem:[#allocation11 + $0x288] sm:$0xff]
    %v2951 = vld [vmem:[#allocation11 + $0x290] sm:$0xff]
    %v2952 = vld [vmem:[#allocation11 + $0x298] sm:$0xff]
    %v2953 = vld [vmem:[#allocation11 + $0x2a0] sm:$0xff]
    %v2954 = vld [vmem:[#allocation11 + $0x2a8] sm:$0xff]
    %v2955 = vld [vmem:[#allocation11 + $0x2b0] sm:$0xff]
    %v2956 = vld [vmem:[#allocation11 + $0x2b8] sm:$0xff]
    %v2957 = vld [vmem:[#allocation11 + $0x2c0] sm:$0xff]
    %v2958 = vld [vmem:[#allocation11 + $0x2c8] sm:$0xff]
    %v2959 = vld [vmem:[#allocation11 + $0x2d0] sm:$0xff]
    %v2960 = vld [vmem:[#allocation11 + $0x2d8] sm:$0xff]
    %v2961 = vld [vmem:[#allocation11 + $0x2e0] sm:$0xff]
    %v2962 = vld [vmem:[#allocation11 + $0x2e8] sm:$0xff]
    %v2963 = vld [vmem:[#allocation11 + $0x2f0] sm:$0xff]
    %v2964 = vld [vmem:[#allocation11 + $0x2f8] sm:$0xff]
    %v2965 = vld [vmem:[#allocation11 + $0x300] sm:$0xff]
    %v2966 = vld [vmem:[#allocation11 + $0x308] sm:$0xff]
    %v2967 = vld [vmem:[#allocation11 + $0x310] sm:$0xff]
    %v2968 = vld [vmem:[#allocation11 + $0x318] sm:$0xff]
    %v2969 = vld [vmem:[#allocation11 + $0x320] sm:$0xff]
    %v2970 = vld [vmem:[#allocation11 + $0x328] sm:$0xff]
    %v2971 = vld [vmem:[#allocation11 + $0x330] sm:$0xff]
    %v2972 = vld [vmem:[#allocation11 + $0x338] sm:$0xff]
    %v2973 = vld [vmem:[#allocation11 + $0x340] sm:$0xff]
    %v2974 = vld [vmem:[#allocation11 + $0x348] sm:$0xff]
    %v2975 = vld [vmem:[#allocation11 + $0x350] sm:$0xff]
    %v2976 = vld [vmem:[#allocation11 + $0x358] sm:$0xff]
    %v2977 = vld [vmem:[#allocation11 + $0x360] sm:$0xff]
    %v2978 = vld [vmem:[#allocation11 + $0x368] sm:$0xff]
    %v2979 = vld [vmem:[#allocation11 + $0x370] sm:$0xff]
    %v2980 = vld [vmem:[#allocation11 + $0x378] sm:$0xff]
    %v2981 = vld [vmem:[#allocation11 + $0x380] sm:$0xff]
    %v2982 = vld [vmem:[#allocation11 + $0x388] sm:$0xff]
    %v2983 = vld [vmem:[#allocation11 + $0x390] sm:$0xff]
    %v2984 = vld [vmem:[#allocation11 + $0x398] sm:$0xff]
    %v2985 = vld [vmem:[#allocation11 + $0x3a0] sm:$0xff]
    %v2986 = vld [vmem:[#allocation11 + $0x3a8] sm:$0xff]
    %v2987 = vld [vmem:[#allocation11 + $0x3b0] sm:$0xff]
    %v2988 = vld [vmem:[#allocation11 + $0x3b8] sm:$0xff]
    %v2989 = vld [vmem:[#allocation11 + $0x3c0] sm:$0xff]
    %v2990 = vld [vmem:[#allocation11 + $0x3c8] sm:$0xff]
    %v2991 = vld [vmem:[#allocation11 + $0x3d0] sm:$0xff]
    %v2992 = vld [vmem:[#allocation11 + $0x3d8] sm:$0xff]
    %v2993 = vld [vmem:[#allocation11 + $0x3e0] sm:$0xff]
    %v2994 = vld [vmem:[#allocation11 + $0x3e8] sm:$0xff]
    %v2995 = vld [vmem:[#allocation11 + $0x3f0] sm:$0xff]
    %v2996 = vld [vmem:[#allocation11 + $0x3f8] sm:$0xff]
    %v3125 = vunpack.c.l.b16 %v2869
    %v3126 = vunpack.c.h.b16 %v2869
    %v3127 = vunpack.c.l.b16 %v2870
    %v3128 = vunpack.c.h.b16 %v2870
    %v3129 = vunpack.c.l.b16 %v2871
    %v3130 = vunpack.c.h.b16 %v2871
    %v3131 = vunpack.c.l.b16 %v2872
    %v3132 = vunpack.c.h.b16 %v2872
    %v3133 = vunpack.c.l.b16 %v2873
    %v3134 = vunpack.c.h.b16 %v2873
    %v3135 = vunpack.c.l.b16 %v2874
    %v3136 = vunpack.c.h.b16 %v2874
    %v3137 = vunpack.c.l.b16 %v2875
    %v3138 = vunpack.c.h.b16 %v2875
    %v3139 = vunpack.c.l.b16 %v2876
    %v3140 = vunpack.c.h.b16 %v2876
    %v3141 = vunpack.c.l.b16 %v2877
    %v3142 = vunpack.c.h.b16 %v2877
    %v3143 = vunpack.c.l.b16 %v2878
    %v3144 = vunpack.c.h.b16 %v2878
    %v3145 = vunpack.c.l.b16 %v2879
    %v3146 = vunpack.c.h.b16 %v2879
    %v3147 = vunpack.c.l.b16 %v2880
    %v3148 = vunpack.c.h.b16 %v2880
    %v3149 = vunpack.c.l.b16 %v2881
    %v3150 = vunpack.c.h.b16 %v2881
    %v3151 = vunpack.c.l.b16 %v2882
    %v3152 = vunpack.c.h.b16 %v2882
    %v3153 = vunpack.c.l.b16 %v2883
    %v3154 = vunpack.c.h.b16 %v2883
    %v3155 = vunpack.c.l.b16 %v2884
    %v3156 = vunpack.c.h.b16 %v2884
    %v3157 = vunpack.c.l.b16 %v2885
    %v3158 = vunpack.c.h.b16 %v2885
    %v3159 = vunpack.c.l.b16 %v2886
    %v3160 = vunpack.c.h.b16 %v2886
    %v3161 = vunpack.c.l.b16 %v2887
    %v3162 = vunpack.c.h.b16 %v2887
    %v3163 = vunpack.c.l.b16 %v2888
    %v3164 = vunpack.c.h.b16 %v2888
    %v3165 = vunpack.c.l.b16 %v2889
    %v3166 = vunpack.c.h.b16 %v2889
    %v3167 = vunpack.c.l.b16 %v2890
    %v3168 = vunpack.c.h.b16 %v2890
    %v3169 = vunpack.c.l.b16 %v2891
    %v3170 = vunpack.c.h.b16 %v2891
    %v3171 = vunpack.c.l.b16 %v2892
    %v3172 = vunpack.c.h.b16 %v2892
    %v3173 = vunpack.c.l.b16 %v2893
    %v3174 = vunpack.c.h.b16 %v2893
    %v3175 = vunpack.c.l.b16 %v2894
    %v3176 = vunpack.c.h.b16 %v2894
    %v3177 = vunpack.c.l.b16 %v2895
    %v3178 = vunpack.c.h.b16 %v2895
    %v3179 = vunpack.c.l.b16 %v2896
    %v3180 = vunpack.c.h.b16 %v2896
    %v3181 = vunpack.c.l.b16 %v2897
    %v3182 = vunpack.c.h.b16 %v2897
    %v3183 = vunpack.c.l.b16 %v2898
    %v3184 = vunpack.c.h.b16 %v2898
    %v3185 = vunpack.c.l.b16 %v2899
    %v3186 = vunpack.c.h.b16 %v2899
    %v3187 = vunpack.c.l.b16 %v2900
    %v3188 = vunpack.c.h.b16 %v2900
    %v3189 = vunpack.c.l.b16 %v2901
    %v3190 = vunpack.c.h.b16 %v2901
    %v3191 = vunpack.c.l.b16 %v2902
    %v3192 = vunpack.c.h.b16 %v2902
    %v3193 = vunpack.c.l.b16 %v2903
    %v3194 = vunpack.c.h.b16 %v2903
    %v3195 = vunpack.c.l.b16 %v2904
    %v3196 = vunpack.c.h.b16 %v2904
    %v3197 = vunpack.c.l.b16 %v2905
    %v3198 = vunpack.c.h.b16 %v2905
    %v3199 = vunpack.c.l.b16 %v2906
    %v3200 = vunpack.c.h.b16 %v2906
    %v3201 = vunpack.c.l.b16 %v2907
    %v3202 = vunpack.c.h.b16 %v2907
    %v3203 = vunpack.c.l.b16 %v2908
    %v3204 = vunpack.c.h.b16 %v2908
    %v3205 = vunpack.c.l.b16 %v2909
    %v3206 = vunpack.c.h.b16 %v2909
    %v3207 = vunpack.c.l.b16 %v2910
    %v3208 = vunpack.c.h.b16 %v2910
    %v3209 = vunpack.c.l.b16 %v2911
    %v3210 = vunpack.c.h.b16 %v2911
    %v3211 = vunpack.c.l.b16 %v2912
    %v3212 = vunpack.c.h.b16 %v2912
    %v3213 = vunpack.c.l.b16 %v2913
    %v3214 = vunpack.c.h.b16 %v2913
    %v3215 = vunpack.c.l.b16 %v2914
    %v3216 = vunpack.c.h.b16 %v2914
    %v3217 = vunpack.c.l.b16 %v2915
    %v3218 = vunpack.c.h.b16 %v2915
    %v3219 = vunpack.c.l.b16 %v2916
    %v3220 = vunpack.c.h.b16 %v2916
    %v3221 = vunpack.c.l.b16 %v2917
    %v3222 = vunpack.c.h.b16 %v2917
    %v3223 = vunpack.c.l.b16 %v2918
    %v3224 = vunpack.c.h.b16 %v2918
    %v3225 = vunpack.c.l.b16 %v2919
    %v3226 = vunpack.c.h.b16 %v2919
    %v3227 = vunpack.c.l.b16 %v2920
    %v3228 = vunpack.c.h.b16 %v2920
    %v3229 = vunpack.c.l.b16 %v2921
    %v3230 = vunpack.c.h.b16 %v2921
    %v3231 = vunpack.c.l.b16 %v2922
    %v3232 = vunpack.c.h.b16 %v2922
    %v3233 = vunpack.c.l.b16 %v2923
    %v3234 = vunpack.c.h.b16 %v2923
    %v3235 = vunpack.c.l.b16 %v2924
    %v3236 = vunpack.c.h.b16 %v2924
    %v3237 = vunpack.c.l.b16 %v2925
    %v3238 = vunpack.c.h.b16 %v2925
    %v3239 = vunpack.c.l.b16 %v2926
    %v3240 = vunpack.c.h.b16 %v2926
    %v3241 = vunpack.c.l.b16 %v2927
    %v3242 = vunpack.c.h.b16 %v2927
    %v3243 = vunpack.c.l.b16 %v2928
    %v3244 = vunpack.c.h.b16 %v2928
    %v3245 = vunpack.c.l.b16 %v2929
    %v3246 = vunpack.c.h.b16 %v2929
    %v3247 = vunpack.c.l.b16 %v2930
    %v3248 = vunpack.c.h.b16 %v2930
    %v3249 = vunpack.c.l.b16 %v2931
    %v3250 = vunpack.c.h.b16 %v2931
    %v3251 = vunpack.c.l.b16 %v2932
    %v3252 = vunpack.c.h.b16 %v2932
    %v3253 = vunpack.c.l.b16 %v2933
    %v3254 = vunpack.c.h.b16 %v2933
    %v3255 = vunpack.c.l.b16 %v2934
    %v3256 = vunpack.c.h.b16 %v2934
    %v3257 = vunpack.c.l.b16 %v2935
    %v3258 = vunpack.c.h.b16 %v2935
    %v3259 = vunpack.c.l.b16 %v2936
    %v3260 = vunpack.c.h.b16 %v2936
    %v3261 = vunpack.c.l.b16 %v2937
    %v3262 = vunpack.c.h.b16 %v2937
    %v3263 = vunpack.c.l.b16 %v2938
    %v3264 = vunpack.c.h.b16 %v2938
    %v3265 = vunpack.c.l.b16 %v2939
    %v3266 = vunpack.c.h.b16 %v2939
    %v3267 = vunpack.c.l.b16 %v2940
    %v3268 = vunpack.c.h.b16 %v2940
    %v3269 = vunpack.c.l.b16 %v2941
    %v3270 = vunpack.c.h.b16 %v2941
    %v3271 = vunpack.c.l.b16 %v2942
    %v3272 = vunpack.c.h.b16 %v2942
    %v3273 = vunpack.c.l.b16 %v2943
    %v3274 = vunpack.c.h.b16 %v2943
    %v3275 = vunpack.c.l.b16 %v2944
    %v3276 = vunpack.c.h.b16 %v2944
    %v3277 = vunpack.c.l.b16 %v2945
    %v3278 = vunpack.c.h.b16 %v2945
    %v3279 = vunpack.c.l.b16 %v2946
    %v3280 = vunpack.c.h.b16 %v2946
    %v3281 = vunpack.c.l.b16 %v2947
    %v3282 = vunpack.c.h.b16 %v2947
    %v3283 = vunpack.c.l.b16 %v2948
    %v3284 = vunpack.c.h.b16 %v2948
    %v3285 = vunpack.c.l.b16 %v2949
    %v3286 = vunpack.c.h.b16 %v2949
    %v3287 = vunpack.c.l.b16 %v2950
    %v3288 = vunpack.c.h.b16 %v2950
    %v3289 = vunpack.c.l.b16 %v2951
    %v3290 = vunpack.c.h.b16 %v2951
    %v3291 = vunpack.c.l.b16 %v2952
    %v3292 = vunpack.c.h.b16 %v2952
    %v3293 = vunpack.c.l.b16 %v2953
    %v3294 = vunpack.c.h.b16 %v2953
    %v3295 = vunpack.c.l.b16 %v2954
    %v3296 = vunpack.c.h.b16 %v2954
    %v3297 = vunpack.c.l.b16 %v2955
    %v3298 = vunpack.c.h.b16 %v2955
    %v3299 = vunpack.c.l.b16 %v2956
    %v3300 = vunpack.c.h.b16 %v2956
    %v3301 = vunpack.c.l.b16 %v2957
    %v3302 = vunpack.c.h.b16 %v2957
    %v3303 = vunpack.c.l.b16 %v2958
    %v3304 = vunpack.c.h.b16 %v2958
    %v3305 = vunpack.c.l.b16 %v2959
    %v3306 = vunpack.c.h.b16 %v2959
    %v3307 = vunpack.c.l.b16 %v2960
    %v3308 = vunpack.c.h.b16 %v2960
    %v3309 = vunpack.c.l.b16 %v2961
    %v3310 = vunpack.c.h.b16 %v2961
    %v3311 = vunpack.c.l.b16 %v2962
    %v3312 = vunpack.c.h.b16 %v2962
    %v3313 = vunpack.c.l.b16 %v2963
    %v3314 = vunpack.c.h.b16 %v2963
    %v3315 = vunpack.c.l.b16 %v2964
    %v3316 = vunpack.c.h.b16 %v2964
    %v3317 = vunpack.c.l.b16 %v2965
    %v3318 = vunpack.c.h.b16 %v2965
    %v3319 = vunpack.c.l.b16 %v2966
    %v3320 = vunpack.c.h.b16 %v2966
    %v3321 = vunpack.c.l.b16 %v2967
    %v3322 = vunpack.c.h.b16 %v2967
    %v3323 = vunpack.c.l.b16 %v2968
    %v3324 = vunpack.c.h.b16 %v2968
    %v3325 = vunpack.c.l.b16 %v2969
    %v3326 = vunpack.c.h.b16 %v2969
    %v3327 = vunpack.c.l.b16 %v2970
    %v3328 = vunpack.c.h.b16 %v2970
    %v3329 = vunpack.c.l.b16 %v2971
    %v3330 = vunpack.c.h.b16 %v2971
    %v3331 = vunpack.c.l.b16 %v2972
    %v3332 = vunpack.c.h.b16 %v2972
    %v3333 = vunpack.c.l.b16 %v2973
    %v3334 = vunpack.c.h.b16 %v2973
    %v3335 = vunpack.c.l.b16 %v2974
    %v3336 = vunpack.c.h.b16 %v2974
    %v3337 = vunpack.c.l.b16 %v2975
    %v3338 = vunpack.c.h.b16 %v2975
    %v3339 = vunpack.c.l.b16 %v2976
    %v3340 = vunpack.c.h.b16 %v2976
    %v3341 = vunpack.c.l.b16 %v2977
    %v3342 = vunpack.c.h.b16 %v2977
    %v3343 = vunpack.c.l.b16 %v2978
    %v3344 = vunpack.c.h.b16 %v2978
    %v3345 = vunpack.c.l.b16 %v2979
    %v3346 = vunpack.c.h.b16 %v2979
    %v3347 = vunpack.c.l.b16 %v2980
    %v3348 = vunpack.c.h.b16 %v2980
    %v3349 = vunpack.c.l.b16 %v2981
    %v3350 = vunpack.c.h.b16 %v2981
    %v3351 = vunpack.c.l.b16 %v2982
    %v3352 = vunpack.c.h.b16 %v2982
    %v3353 = vunpack.c.l.b16 %v2983
    %v3354 = vunpack.c.h.b16 %v2983
    %v3355 = vunpack.c.l.b16 %v2984
    %v3356 = vunpack.c.h.b16 %v2984
    %v3357 = vunpack.c.l.b16 %v2985
    %v3358 = vunpack.c.h.b16 %v2985
    %v3359 = vunpack.c.l.b16 %v2986
    %v3360 = vunpack.c.h.b16 %v2986
    %v3361 = vunpack.c.l.b16 %v2987
    %v3362 = vunpack.c.h.b16 %v2987
    %v3363 = vunpack.c.l.b16 %v2988
    %v3364 = vunpack.c.h.b16 %v2988
    %v3365 = vunpack.c.l.b16 %v2989
    %v3366 = vunpack.c.h.b16 %v2989
    %v3367 = vunpack.c.l.b16 %v2990
    %v3368 = vunpack.c.h.b16 %v2990
    %v3369 = vunpack.c.l.b16 %v2991
    %v3370 = vunpack.c.h.b16 %v2991
    %v3371 = vunpack.c.l.b16 %v2992
    %v3372 = vunpack.c.h.b16 %v2992
    %v3373 = vunpack.c.l.b16 %v2993
    %v3374 = vunpack.c.h.b16 %v2993
    %v3375 = vunpack.c.l.b16 %v2994
    %v3376 = vunpack.c.h.b16 %v2994
    %v3377 = vunpack.c.l.b16 %v2995
    %v3378 = vunpack.c.h.b16 %v2995
    %v3379 = vunpack.c.l.b16 %v2996
    %v3380 = vunpack.c.h.b16 %v2996
    %v3381 = vpack.c.b16 %v3133, %v3125
    %v3382 = vpack.c.b16 %v3134, %v3126
    %v3383 = vpack.c.b16 %v3135, %v3127
    %v3384 = vpack.c.b16 %v3136, %v3128
    %v3385 = vpack.c.b16 %v3137, %v3129
    %v3386 = vpack.c.b16 %v3138, %v3130
    %v3387 = vpack.c.b16 %v3139, %v3131
    %v3388 = vpack.c.b16 %v3140, %v3132
    %v3389 = vpack.c.b16 %v3149, %v3141
    %v3390 = vpack.c.b16 %v3150, %v3142
    %v3391 = vpack.c.b16 %v3151, %v3143
    %v3392 = vpack.c.b16 %v3152, %v3144
    %v3393 = vpack.c.b16 %v3153, %v3145
    %v3394 = vpack.c.b16 %v3154, %v3146
    %v3395 = vpack.c.b16 %v3155, %v3147
    %v3396 = vpack.c.b16 %v3156, %v3148
    %v3397 = vpack.c.b16 %v3165, %v3157
    %v3398 = vpack.c.b16 %v3166, %v3158
    %v3399 = vpack.c.b16 %v3167, %v3159
    %v3400 = vpack.c.b16 %v3168, %v3160
    %v3401 = vpack.c.b16 %v3169, %v3161
    %v3402 = vpack.c.b16 %v3170, %v3162
    %v3403 = vpack.c.b16 %v3171, %v3163
    %v3404 = vpack.c.b16 %v3172, %v3164
    %v3405 = vpack.c.b16 %v3181, %v3173
    %v3406 = vpack.c.b16 %v3182, %v3174
    %v3407 = vpack.c.b16 %v3183, %v3175
    %v3408 = vpack.c.b16 %v3184, %v3176
    %v3409 = vpack.c.b16 %v3185, %v3177
    %v3410 = vpack.c.b16 %v3186, %v3178
    %v3411 = vpack.c.b16 %v3187, %v3179
    %v3412 = vpack.c.b16 %v3188, %v3180
    %v3413 = vpack.c.b16 %v3197, %v3189
    %v3414 = vpack.c.b16 %v3198, %v3190
    %v3415 = vpack.c.b16 %v3199, %v3191
    %v3416 = vpack.c.b16 %v3200, %v3192
    %v3417 = vpack.c.b16 %v3201, %v3193
    %v3418 = vpack.c.b16 %v3202, %v3194
    %v3419 = vpack.c.b16 %v3203, %v3195
    %v3420 = vpack.c.b16 %v3204, %v3196
    %v3421 = vpack.c.b16 %v3213, %v3205
    %v3422 = vpack.c.b16 %v3214, %v3206
    %v3423 = vpack.c.b16 %v3215, %v3207
    %v3424 = vpack.c.b16 %v3216, %v3208
    %v3425 = vpack.c.b16 %v3217, %v3209
    %v3426 = vpack.c.b16 %v3218, %v3210
    %v3427 = vpack.c.b16 %v3219, %v3211
    %v3428 = vpack.c.b16 %v3220, %v3212
    %v3429 = vpack.c.b16 %v3229, %v3221
    %v3430 = vpack.c.b16 %v3230, %v3222
    %v3431 = vpack.c.b16 %v3231, %v3223
    %v3432 = vpack.c.b16 %v3232, %v3224
    %v3433 = vpack.c.b16 %v3233, %v3225
    %v3434 = vpack.c.b16 %v3234, %v3226
    %v3435 = vpack.c.b16 %v3235, %v3227
    %v3436 = vpack.c.b16 %v3236, %v3228
    %v3437 = vpack.c.b16 %v3245, %v3237
    %v3438 = vpack.c.b16 %v3246, %v3238
    %v3439 = vpack.c.b16 %v3247, %v3239
    %v3440 = vpack.c.b16 %v3248, %v3240
    %v3441 = vpack.c.b16 %v3249, %v3241
    %v3442 = vpack.c.b16 %v3250, %v3242
    %v3443 = vpack.c.b16 %v3251, %v3243
    %v3444 = vpack.c.b16 %v3252, %v3244
    %v3445 = vpack.c.b16 %v3261, %v3253
    %v3446 = vpack.c.b16 %v3262, %v3254
    %v3447 = vpack.c.b16 %v3263, %v3255
    %v3448 = vpack.c.b16 %v3264, %v3256
    %v3449 = vpack.c.b16 %v3265, %v3257
    %v3450 = vpack.c.b16 %v3266, %v3258
    %v3451 = vpack.c.b16 %v3267, %v3259
    %v3452 = vpack.c.b16 %v3268, %v3260
    %v3453 = vpack.c.b16 %v3277, %v3269
    %v3454 = vpack.c.b16 %v3278, %v3270
    %v3455 = vpack.c.b16 %v3279, %v3271
    %v3456 = vpack.c.b16 %v3280, %v3272
    %v3457 = vpack.c.b16 %v3281, %v3273
    %v3458 = vpack.c.b16 %v3282, %v3274
    %v3459 = vpack.c.b16 %v3283, %v3275
    %v3460 = vpack.c.b16 %v3284, %v3276
    %v3461 = vpack.c.b16 %v3293, %v3285
    %v3462 = vpack.c.b16 %v3294, %v3286
    %v3463 = vpack.c.b16 %v3295, %v3287
    %v3464 = vpack.c.b16 %v3296, %v3288
    %v3465 = vpack.c.b16 %v3297, %v3289
    %v3466 = vpack.c.b16 %v3298, %v3290
    %v3467 = vpack.c.b16 %v3299, %v3291
    %v3468 = vpack.c.b16 %v3300, %v3292
    %v3469 = vpack.c.b16 %v3309, %v3301
    %v3470 = vpack.c.b16 %v3310, %v3302
    %v3471 = vpack.c.b16 %v3311, %v3303
    %v3472 = vpack.c.b16 %v3312, %v3304
    %v3473 = vpack.c.b16 %v3313, %v3305
    %v3474 = vpack.c.b16 %v3314, %v3306
    %v3475 = vpack.c.b16 %v3315, %v3307
    %v3476 = vpack.c.b16 %v3316, %v3308
    %v3477 = vpack.c.b16 %v3325, %v3317
    %v3478 = vpack.c.b16 %v3326, %v3318
    %v3479 = vpack.c.b16 %v3327, %v3319
    %v3480 = vpack.c.b16 %v3328, %v3320
    %v3481 = vpack.c.b16 %v3329, %v3321
    %v3482 = vpack.c.b16 %v3330, %v3322
    %v3483 = vpack.c.b16 %v3331, %v3323
    %v3484 = vpack.c.b16 %v3332, %v3324
    %v3485 = vpack.c.b16 %v3341, %v3333
    %v3486 = vpack.c.b16 %v3342, %v3334
    %v3487 = vpack.c.b16 %v3343, %v3335
    %v3488 = vpack.c.b16 %v3344, %v3336
    %v3489 = vpack.c.b16 %v3345, %v3337
    %v3490 = vpack.c.b16 %v3346, %v3338
    %v3491 = vpack.c.b16 %v3347, %v3339
    %v3492 = vpack.c.b16 %v3348, %v3340
    %v3493 = vpack.c.b16 %v3357, %v3349
    %v3494 = vpack.c.b16 %v3358, %v3350
    %v3495 = vpack.c.b16 %v3359, %v3351
    %v3496 = vpack.c.b16 %v3360, %v3352
    %v3497 = vpack.c.b16 %v3361, %v3353
    %v3498 = vpack.c.b16 %v3362, %v3354
    %v3499 = vpack.c.b16 %v3363, %v3355
    %v3500 = vpack.c.b16 %v3364, %v3356
    %v3501 = vpack.c.b16 %v3373, %v3365
    %v3502 = vpack.c.b16 %v3374, %v3366
    %v3503 = vpack.c.b16 %v3375, %v3367
    %v3504 = vpack.c.b16 %v3376, %v3368
    %v3505 = vpack.c.b16 %v3377, %v3369
    %v3506 = vpack.c.b16 %v3378, %v3370
    %v3507 = vpack.c.b16 %v3379, %v3371
    %v3508 = vpack.c.b16 %v3380, %v3372
    %3637 = vmatprep.subr.bf16.mxu0 %v3382
    %3638 = vmatpush1.bf16.msra.mxu0 %v3381
    %3639 = vmatprep.subr.bf16.mxu0 %v3390
    %3640 = vmatpush1.bf16.msra.mxu0 %v3389
    %3641 = vmatprep.subr.bf16.mxu0 %v3398
    %3642 = vmatpush1.bf16.msra.mxu0 %v3397
    %3643 = vmatprep.subr.bf16.mxu0 %v3406
    %3644 = vmatpush1.bf16.msra.mxu0 %v3405
    %3645 = vmatprep.subr.bf16.mxu0 %v3414
    %3646 = vmatpush1.bf16.msra.mxu0 %v3413
    %3647 = vmatprep.subr.bf16.mxu0 %v3422
    %3648 = vmatpush1.bf16.msra.mxu0 %v3421
    %3649 = vmatprep.subr.bf16.mxu0 %v3430
    %3650 = vmatpush1.bf16.msra.mxu0 %v3429
    %3651 = vmatprep.subr.bf16.mxu0 %v3438
    %3652 = vmatpush1.bf16.msra.mxu0 %v3437
    %3653 = vmatprep.subr.bf16.mxu0 %v3446
    %3654 = vmatpush1.bf16.msra.mxu0 %v3445
    %3655 = vmatprep.subr.bf16.mxu0 %v3454
    %3656 = vmatpush1.bf16.msra.mxu0 %v3453
    %3657 = vmatprep.subr.bf16.mxu0 %v3462
    %3658 = vmatpush1.bf16.msra.mxu0 %v3461
    %3659 = vmatprep.subr.bf16.mxu0 %v3470
    %3660 = vmatpush1.bf16.msra.mxu0 %v3469
    %3661 = vmatprep.subr.bf16.mxu0 %v3478
    %3662 = vmatpush1.bf16.msra.mxu0 %v3477
    %3663 = vmatprep.subr.bf16.mxu0 %v3486
    %3664 = vmatpush1.bf16.msra.mxu0 %v3485
    %3665 = vmatprep.subr.bf16.mxu0 %v3494
    %3666 = vmatpush1.bf16.msra.mxu0 %v3493
    %3667 = vmatprep.subr.bf16.mxu0 %v3502
    %3668 = vmatpush1.bf16.msra.mxu0 %v3501
    %3669 = vmatprep.mubr.bf16.mxu0 %v2866
    %3670 = vmatmul.mubr.bf16.gmra.mrb[0].mxu0 %v2863
    %v3671 = vpop.f32.mrb[0].mxu0
    %v3672 = vadd.f32 0.0, %v3671
    %v3673 = vpop.f32.mrb[0].mxu0
    %v3674 = vadd.f32 0.0, %v3673
    %v3675 = vpop.f32.mrb[0].mxu0
    %v3676 = vpop.f32.mrb[0].mxu0
    %3677 = vdwg.mxu0
    %3678 = vmatprep.subr.bf16.mxu0 %v3384
    %3679 = vmatpush1.bf16.msra.mxu0 %v3383
    %3680 = vmatprep.subr.bf16.mxu0 %v3392
    %3681 = vmatpush1.bf16.msra.mxu0 %v3391
    %3682 = vmatprep.subr.bf16.mxu0 %v3400
    %3683 = vmatpush1.bf16.msra.mxu0 %v3399
    %3684 = vmatprep.subr.bf16.mxu0 %v3408
    %3685 = vmatpush1.bf16.msra.mxu0 %v3407
    %3686 = vmatprep.subr.bf16.mxu0 %v3416
    %3687 = vmatpush1.bf16.msra.mxu0 %v3415
    %3688 = vmatprep.subr.bf16.mxu0 %v3424
    %3689 = vmatpush1.bf16.msra.mxu0 %v3423
    %3690 = vmatprep.subr.bf16.mxu0 %v3432
    %3691 = vmatpush1.bf16.msra.mxu0 %v3431
    %3692 = vmatprep.subr.bf16.mxu0 %v3440
    %3693 = vmatpush1.bf16.msra.mxu0 %v3439
    %3694 = vmatprep.subr.bf16.mxu0 %v3448
    %3695 = vmatpush1.bf16.msra.mxu0 %v3447
    %3696 = vmatprep.subr.bf16.mxu0 %v3456
    %3697 = vmatpush1.bf16.msra.mxu0 %v3455
    %3698 = vmatprep.subr.bf16.mxu0 %v3464
    %3699 = vmatpush1.bf16.msra.mxu0 %v3463
    %3700 = vmatprep.subr.bf16.mxu0 %v3472
    %3701 = vmatpush1.bf16.msra.mxu0 %v3471
    %3702 = vmatprep.subr.bf16.mxu0 %v3480
    %3703 = vmatpush1.bf16.msra.mxu0 %v3479
    %3704 = vmatprep.subr.bf16.mxu0 %v3488
    %3705 = vmatpush1.bf16.msra.mxu0 %v3487
    %3706 = vmatprep.subr.bf16.mxu0 %v3496
    %3707 = vmatpush1.bf16.msra.mxu0 %v3495
    %3708 = vmatprep.subr.bf16.mxu0 %v3504
    %3709 = vmatpush1.bf16.msra.mxu0 %v3503
    %3710 = vmatprep.mubr.bf16.mxu0 %v2866
    %3711 = vmatmul.mubr.bf16.gmra.mrb[0].mxu0 %v2863
    %v3712 = vpop.f32.mrb[0].mxu0
    %v3713 = vadd.f32 0.0, %v3712
    %v3714 = vpop.f32.mrb[0].mxu0
    %v3715 = vadd.f32 0.0, %v3714
    %v3716 = vpop.f32.mrb[0].mxu0
    %v3717 = vpop.f32.mrb[0].mxu0
    %3718 = vdwg.mxu0
    %3719 = vmatprep.subr.bf16.mxu0 %v3386
    %3720 = vmatpush1.bf16.msra.mxu0 %v3385
    %3721 = vmatprep.subr.bf16.mxu0 %v3394
    %3722 = vmatpush1.bf16.msra.mxu0 %v3393
    %3723 = vmatprep.subr.bf16.mxu0 %v3402
    %3724 = vmatpush1.bf16.msra.mxu0 %v3401
    %3725 = vmatprep.subr.bf16.mxu0 %v3410
    %3726 = vmatpush1.bf16.msra.mxu0 %v3409
    %3727 = vmatprep.subr.bf16.mxu0 %v3418
    %3728 = vmatpush1.bf16.msra.mxu0 %v3417
    %3729 = vmatprep.subr.bf16.mxu0 %v3426
    %3730 = vmatpush1.bf16.msra.mxu0 %v3425
    %3731 = vmatprep.subr.bf16.mxu0 %v3434
    %3732 = vmatpush1.bf16.msra.mxu0 %v3433
    %3733 = vmatprep.subr.bf16.mxu0 %v3442
    %3734 = vmatpush1.bf16.msra.mxu0 %v3441
    %3735 = vmatprep.subr.bf16.mxu0 %v3450
    %3736 = vmatpush1.bf16.msra.mxu0 %v3449
    %3737 = vmatprep.subr.bf16.mxu0 %v3458
    %3738 = vmatpush1.bf16.msra.mxu0 %v3457
    %3739 = vmatprep.subr.bf16.mxu0 %v3466
    %3740 = vmatpush1.bf16.msra.mxu0 %v3465
    %3741 = vmatprep.subr.bf16.mxu0 %v3474
    %3742 = vmatpush1.bf16.msra.mxu0 %v3473
    %3743 = vmatprep.subr.bf16.mxu0 %v3482
    %3744 = vmatpush1.bf16.msra.mxu0 %v3481
    %3745 = vmatprep.subr.bf16.mxu0 %v3490
    %3746 = vmatpush1.bf16.msra.mxu0 %v3489
    %3747 = vmatprep.subr.bf16.mxu0 %v3498
    %3748 = vmatpush1.bf16.msra.mxu0 %v3497
    %3749 = vmatprep.subr.bf16.mxu0 %v3506
    %3750 = vmatpush1.bf16.msra.mxu0 %v3505
    %3751 = vmatprep.mubr.bf16.mxu0 %v2866
    %3752 = vmatmul.mubr.bf16.gmra.mrb[0].mxu0 %v2863
    %v3753 = vpop.f32.mrb[0].mxu0
    %v3754 = vadd.f32 0.0, %v3753
    %v3755 = vpop.f32.mrb[0].mxu0
    %v3756 = vadd.f32 0.0, %v3755
    %v3757 = vpop.f32.mrb[0].mxu0
    %v3758 = vpop.f32.mrb[0].mxu0
    %3759 = vdwg.mxu0
    %3760 = vmatprep.subr.bf16.mxu0 %v3388
    %3761 = vmatpush1.bf16.msra.mxu0 %v3387
    %3762 = vmatprep.subr.bf16.mxu0 %v3396
    %3763 = vmatpush1.bf16.msra.mxu0 %v3395
    %3764 = vmatprep.subr.bf16.mxu0 %v3404
    %3765 = vmatpush1.bf16.msra.mxu0 %v3403
    %3766 = vmatprep.subr.bf16.mxu0 %v3412
    %3767 = vmatpush1.bf16.msra.mxu0 %v3411
    %3768 = vmatprep.subr.bf16.mxu0 %v3420
    %3769 = vmatpush1.bf16.msra.mxu0 %v3419
    %3770 = vmatprep.subr.bf16.mxu0 %v3428
    %3771 = vmatpush1.bf16.msra.mxu0 %v3427
    %3772 = vmatprep.subr.bf16.mxu0 %v3436
    %3773 = vmatpush1.bf16.msra.mxu0 %v3435
    %3774 = vmatprep.subr.bf16.mxu0 %v3444
    %3775 = vmatpush1.bf16.msra.mxu0 %v3443
    %3776 = vmatprep.subr.bf16.mxu0 %v3452
    %3777 = vmatpush1.bf16.msra.mxu0 %v3451
    %3778 = vmatprep.subr.bf16.mxu0 %v3460
    %3779 = vmatpush1.bf16.msra.mxu0 %v3459
    %3780 = vmatprep.subr.bf16.mxu0 %v3468
    %3781 = vmatpush1.bf16.msra.mxu0 %v3467
    %3782 = vmatprep.subr.bf16.mxu0 %v3476
    %3783 = vmatpush1.bf16.msra.mxu0 %v3475
    %3784 = vmatprep.subr.bf16.mxu0 %v3484
    %3785 = vmatpush1.bf16.msra.mxu0 %v3483
    %3786 = vmatprep.subr.bf16.mxu0 %v3492
    %3787 = vmatpush1.bf16.msra.mxu0 %v3491
    %3788 = vmatprep.subr.bf16.mxu0 %v3500
    %3789 = vmatpush1.bf16.msra.mxu0 %v3499
    %3790 = vmatprep.subr.bf16.mxu0 %v3508
    %3791 = vmatpush1.bf16.msra.mxu0 %v3507
    %3792 = vmatprep.mubr.bf16.mxu0 %v2866
    %3793 = vmatmul.mubr.bf16.gmra.mrb[0].mxu0 %v2863
    %v3794 = vpop.f32.mrb[0].mxu0
    %v3795 = vadd.f32 0.0, %v3794
    %v3796 = vpop.f32.mrb[0].mxu0
    %v3797 = vadd.f32 0.0, %v3796
    %v3798 = vpop.f32.mrb[0].mxu0
    %v3799 = vpop.f32.mrb[0].mxu0
    %3800 = vdwg.mxu0
    %s3801 = scalar_lea.vmem [#allocation2], 32
    %v3802 = vld [vmem:[%s3801] sm:$0xff]
    %v3803 = vld [vmem:[%s3801 + $0x8] sm:$0xff]
    %v3804 = vunpack.c.l.bf16 %v3802
    %v3805 = vunpack.c.h.bf16 %v3802
    %v3806 = vunpack.c.l.bf16 %v3803
    %v3807 = vunpack.c.h.bf16 %v3803
    %v3808 = vadd.f32 %v3672, %v3804
    %v3809 = vadd.f32 %v3674, %v3805
    %v3810 = vadd.f32 %v3713, %v3806
    %v3811 = vadd.f32 %v3715, %v3807
    %s3812 = scalar_lea.vmem [#allocation3], 80
    %v3813 = vld [vmem:[%s3812] sm:$0xff]
    %v3814 = vld [vmem:[%s3812 + $0x8] sm:$0xff]
    %v3815 = vunpack.c.l.bf16 %v3813
    %v3816 = vunpack.c.h.bf16 %v3813
    %v3817 = vunpack.c.l.bf16 %v3814
    %v3818 = vunpack.c.h.bf16 %v3814
    %v3819 = vadd.f32 %v3754, %v3815
    %v3820 = vadd.f32 %v3756, %v3816
    %v3821 = vadd.f32 %v3795, %v3817
    %v3822 = vadd.f32 %v3797, %v3818
    %v3823 = vxor.u32 %v3808, 2147483648
    %v3824 = vmul.f32 %v3823, 1.442695
    %v3825 = vpow.pop %v3824
    %v3826 = vadd.f32 %v3825, 1.0
    %v3827 = vrcp.pop %v3826
    %v3828 = vmul.f32 1.0, %v3827
    %v3829 = vxor.u32 %v3809, 2147483648
    %v3830 = vmul.f32 %v3829, 1.442695
    %v3831 = vpow.pop %v3830
    %v3832 = vadd.f32 %v3831, 1.0
    %v3833 = vrcp.pop %v3832
    %v3834 = vmul.f32 1.0, %v3833
    %v3835 = vtanh.pop %v3810
    %v3836 = vxor.u32 %v3811, 2147483648
    %v3837 = vmul.f32 %v3836, 1.442695
    %v3838 = vpow.pop %v3837
    %v3839 = vadd.f32 %v3838, 1.0
    %v3840 = vrcp.pop %v3839
    %v3841 = vmul.f32 1.0, %v3840
    %v3842 = vmul.f32 %v3834, %v2836
    %v3843 = vmul.f32 %v3828, %v3835
    %v3844 = vadd.f32 %v3842, %v3843
    %v3845 = vtanh.pop %v3844
    %v3846 = vmul.f32 %v3841, %v3845
    %v3847 = vxor.u32 %v3819, 2147483648
    %v3848 = vmul.f32 %v3847, 1.442695
    %v3849 = vpow.pop %v3848
    %v3850 = vadd.f32 %v3849, 1.0
    %v3851 = vrcp.pop %v3850
    %v3852 = vmul.f32 1.0, %v3851
    %v3853 = vxor.u32 %v3820, 2147483648
    %v3854 = vmul.f32 %v3853, 1.442695
    %v3855 = vpow.pop %v3854
    %v3856 = vadd.f32 %v3855, 1.0
    %v3857 = vrcp.pop %v3856
    %v3858 = vmul.f32 1.0, %v3857
    %v3859 = vtanh.pop %v3821
    %v3860 = vxor.u32 %v3822, 2147483648
    %v3861 = vmul.f32 %v3860, 1.442695
    %v3862 = vpow.pop %v3861
    %v3863 = vadd.f32 %v3862, 1.0
    %v3864 = vrcp.pop %v3863
    %v3865 = vmul.f32 1.0, %v3864
    %v3866 = vmul.f32 %v3858, %v2860
    %v3867 = vmul.f32 %v3852, %v3859
    %v3868 = vadd.f32 %v3866, %v3867
    %v3869 = vtanh.pop %v3868
    %v3870 = vmul.f32 %v3865, %v3869
    %v3871 = vpack.c.bf16 %v3846, %v3846
    %s3872 = scalar_lea.vmem [#allocation4], 8
    %3873 = vst [vmem:[%s3872] sm:$0xf] %v3871
    %v3874 = vpack.c.bf16 %v3870, %v3870
    %s3875 = scalar_lea.vmem [#allocation5], 20
    %3876 = vst [vmem:[%s3875] sm:$0xf] %v3874
    %v3877 = vld [vmem:[#allocation11] sm:$0xff]
    %v3878 = vld [vmem:[#allocation11 + $0x8] sm:$0xff]
    %v3879 = vld [vmem:[#allocation11 + $0x10] sm:$0xff]
    %v3880 = vld [vmem:[#allocation11 + $0x18] sm:$0xff]
    %v3881 = vld [vmem:[#allocation11 + $0x20] sm:$0xff]
    %v3882 = vld [vmem:[#allocation11 + $0x28] sm:$0xff]
    %v3883 = vld [vmem:[#allocation11 + $0x30] sm:$0xff]
    %v3884 = vld [vmem:[#allocation11 + $0x38] sm:$0xff]
    %v3885 = vld [vmem:[#allocation11 + $0x40] sm:$0xff]
    %v3886 = vld [vmem:[#allocation11 + $0x48] sm:$0xff]
    %v3887 = vld [vmem:[#allocation11 + $0x50] sm:$0xff]
    %v3888 = vld [vmem:[#allocation11 + $0x58] sm:$0xff]
    %v3889 = vld [vmem:[#allocation11 + $0x60] sm:$0xff]
    %v3890 = vld [vmem:[#allocation11 + $0x68] sm:$0xff]
    %v3891 = vld [vmem:[#allocation11 + $0x70] sm:$0xff]
    %v3892 = vld [vmem:[#allocation11 + $0x78] sm:$0xff]
    %v3893 = vld [vmem:[#allocation11 + $0x80] sm:$0xff]
    %v3894 = vld [vmem:[#allocation11 + $0x88] sm:$0xff]
    %v3895 = vld [vmem:[#allocation11 + $0x90] sm:$0xff]
    %v3896 = vld [vmem:[#allocation11 + $0x98] sm:$0xff]
    %v3897 = vld [vmem:[#allocation11 + $0xa0] sm:$0xff]
    %v3898 = vld [vmem:[#allocation11 + $0xa8] sm:$0xff]
    %v3899 = vld [vmem:[#allocation11 + $0xb0] sm:$0xff]
    %v3900 = vld [vmem:[#allocation11 + $0xb8] sm:$0xff]
    %v3901 = vld [vmem:[#allocation11 + $0xc0] sm:$0xff]
    %v3902 = vld [vmem:[#allocation11 + $0xc8] sm:$0xff]
    %v3903 = vld [vmem:[#allocation11 + $0xd0] sm:$0xff]
    %v3904 = vld [vmem:[#allocation11 + $0xd8] sm:$0xff]
    %v3905 = vld [vmem:[#allocation11 + $0xe0] sm:$0xff]
    %v3906 = vld [vmem:[#allocation11 + $0xe8] sm:$0xff]
    %v3907 = vld [vmem:[#allocation11 + $0xf0] sm:$0xff]
    %v3908 = vld [vmem:[#allocation11 + $0xf8] sm:$0xff]
    %v3909 = vld [vmem:[#allocation11 + $0x100] sm:$0xff]
    %v3910 = vld [vmem:[#allocation11 + $0x108] sm:$0xff]
    %v3911 = vld [vmem:[#allocation11 + $0x110] sm:$0xff]
    %v3912 = vld [vmem:[#allocation11 + $0x118] sm:$0xff]
    %v3913 = vld [vmem:[#allocation11 + $0x120] sm:$0xff]
    %v3914 = vld [vmem:[#allocation11 + $0x128] sm:$0xff]
    %v3915 = vld [vmem:[#allocation11 + $0x130] sm:$0xff]
    %v3916 = vld [vmem:[#allocation11 + $0x138] sm:$0xff]
    %v3917 = vld [vmem:[#allocation11 + $0x140] sm:$0xff]
    %v3918 = vld [vmem:[#allocation11 + $0x148] sm:$0xff]
    %v3919 = vld [vmem:[#allocation11 + $0x150] sm:$0xff]
    %v3920 = vld [vmem:[#allocation11 + $0x158] sm:$0xff]
    %v3921 = vld [vmem:[#allocation11 + $0x160] sm:$0xff]
    %v3922 = vld [vmem:[#allocation11 + $0x168] sm:$0xff]
    %v3923 = vld [vmem:[#allocation11 + $0x170] sm:$0xff]
    %v3924 = vld [vmem:[#allocation11 + $0x178] sm:$0xff]
    %v3925 = vld [vmem:[#allocation11 + $0x180] sm:$0xff]
    %v3926 = vld [vmem:[#allocation11 + $0x188] sm:$0xff]
    %v3927 = vld [vmem:[#allocation11 + $0x190] sm:$0xff]
    %v3928 = vld [vmem:[#allocation11 + $0x198] sm:$0xff]
    %v3929 = vld [vmem:[#allocation11 + $0x1a0] sm:$0xff]
    %v3930 = vld [vmem:[#allocation11 + $0x1a8] sm:$0xff]
    %v3931 = vld [vmem:[#allocation11 + $0x1b0] sm:$0xff]
    %v3932 = vld [vmem:[#allocation11 + $0x1b8] sm:$0xff]
    %v3933 = vld [vmem:[#allocation11 + $0x1c0] sm:$0xff]
    %v3934 = vld [vmem:[#allocation11 + $0x1c8] sm:$0xff]
    %v3935 = vld [vmem:[#allocation11 + $0x1d0] sm:$0xff]
    %v3936 = vld [vmem:[#allocation11 + $0x1d8] sm:$0xff]
    %v3937 = vld [vmem:[#allocation11 + $0x1e0] sm:$0xff]
    %v3938 = vld [vmem:[#allocation11 + $0x1e8] sm:$0xff]
    %v3939 = vld [vmem:[#allocation11 + $0x1f0] sm:$0xff]
    %v3940 = vld [vmem:[#allocation11 + $0x1f8] sm:$0xff]
    %v3941 = vld [vmem:[#allocation11 + $0x200] sm:$0xff]
    %v3942 = vld [vmem:[#allocation11 + $0x208] sm:$0xff]
    %v3943 = vld [vmem:[#allocation11 + $0x210] sm:$0xff]
    %v3944 = vld [vmem:[#allocation11 + $0x218] sm:$0xff]
    %v3945 = vld [vmem:[#allocation11 + $0x220] sm:$0xff]
    %v3946 = vld [vmem:[#allocation11 + $0x228] sm:$0xff]
    %v3947 = vld [vmem:[#allocation11 + $0x230] sm:$0xff]
    %v3948 = vld [vmem:[#allocation11 + $0x238] sm:$0xff]
    %v3949 = vld [vmem:[#allocation11 + $0x240] sm:$0xff]
    %v3950 = vld [vmem:[#allocation11 + $0x248] sm:$0xff]
    %v3951 = vld [vmem:[#allocation11 + $0x250] sm:$0xff]
    %v3952 = vld [vmem:[#allocation11 + $0x258] sm:$0xff]
    %v3953 = vld [vmem:[#allocation11 + $0x260] sm:$0xff]
    %v3954 = vld [vmem:[#allocation11 + $0x268] sm:$0xff]
    %v3955 = vld [vmem:[#allocation11 + $0x270] sm:$0xff]
    %v3956 = vld [vmem:[#allocation11 + $0x278] sm:$0xff]
    %v3957 = vld [vmem:[#allocation11 + $0x280] sm:$0xff]
    %v3958 = vld [vmem:[#allocation11 + $0x288] sm:$0xff]
    %v3959 = vld [vmem:[#allocation11 + $0x290] sm:$0xff]
    %v3960 = vld [vmem:[#allocation11 + $0x298] sm:$0xff]
    %v3961 = vld [vmem:[#allocation11 + $0x2a0] sm:$0xff]
    %v3962 = vld [vmem:[#allocation11 + $0x2a8] sm:$0xff]
    %v3963 = vld [vmem:[#allocation11 + $0x2b0] sm:$0xff]
    %v3964 = vld [vmem:[#allocation11 + $0x2b8] sm:$0xff]
    %v3965 = vld [vmem:[#allocation11 + $0x2c0] sm:$0xff]
    %v3966 = vld [vmem:[#allocation11 + $0x2c8] sm:$0xff]
    %v3967 = vld [vmem:[#allocation11 + $0x2d0] sm:$0xff]
    %v3968 = vld [vmem:[#allocation11 + $0x2d8] sm:$0xff]
    %v3969 = vld [vmem:[#allocation11 + $0x2e0] sm:$0xff]
    %v3970 = vld [vmem:[#allocation11 + $0x2e8] sm:$0xff]
    %v3971 = vld [vmem:[#allocation11 + $0x2f0] sm:$0xff]
    %v3972 = vld [vmem:[#allocation11 + $0x2f8] sm:$0xff]
    %v3973 = vld [vmem:[#allocation11 + $0x300] sm:$0xff]
    %v3974 = vld [vmem:[#allocation11 + $0x308] sm:$0xff]
    %v3975 = vld [vmem:[#allocation11 + $0x310] sm:$0xff]
    %v3976 = vld [vmem:[#allocation11 + $0x318] sm:$0xff]
    %v3977 = vld [vmem:[#allocation11 + $0x320] sm:$0xff]
    %v3978 = vld [vmem:[#allocation11 + $0x328] sm:$0xff]
    %v3979 = vld [vmem:[#allocation11 + $0x330] sm:$0xff]
    %v3980 = vld [vmem:[#allocation11 + $0x338] sm:$0xff]
    %v3981 = vld [vmem:[#allocation11 + $0x340] sm:$0xff]
    %v3982 = vld [vmem:[#allocation11 + $0x348] sm:$0xff]
    %v3983 = vld [vmem:[#allocation11 + $0x350] sm:$0xff]
    %v3984 = vld [vmem:[#allocation11 + $0x358] sm:$0xff]
    %v3985 = vld [vmem:[#allocation11 + $0x360] sm:$0xff]
    %v3986 = vld [vmem:[#allocation11 + $0x368] sm:$0xff]
    %v3987 = vld [vmem:[#allocation11 + $0x370] sm:$0xff]
    %v3988 = vld [vmem:[#allocation11 + $0x378] sm:$0xff]
    %v3989 = vld [vmem:[#allocation11 + $0x380] sm:$0xff]
    %v3990 = vld [vmem:[#allocation11 + $0x388] sm:$0xff]
    %v3991 = vld [vmem:[#allocation11 + $0x390] sm:$0xff]
    %v3992 = vld [vmem:[#allocation11 + $0x398] sm:$0xff]
    %v3993 = vld [vmem:[#allocation11 + $0x3a0] sm:$0xff]
    %v3994 = vld [vmem:[#allocation11 + $0x3a8] sm:$0xff]
    %v3995 = vld [vmem:[#allocation11 + $0x3b0] sm:$0xff]
    %v3996 = vld [vmem:[#allocation11 + $0x3b8] sm:$0xff]
    %v3997 = vld [vmem:[#allocation11 + $0x3c0] sm:$0xff]
    %v3998 = vld [vmem:[#allocation11 + $0x3c8] sm:$0xff]
    %v3999 = vld [vmem:[#allocation11 + $0x3d0] sm:$0xff]
    %v4000 = vld [vmem:[#allocation11 + $0x3d8] sm:$0xff]
    %v4001 = vld [vmem:[#allocation11 + $0x3e0] sm:$0xff]
    %v4002 = vld [vmem:[#allocation11 + $0x3e8] sm:$0xff]
    %v4003 = vld [vmem:[#allocation11 + $0x3f0] sm:$0xff]
    %v4004 = vld [vmem:[#allocation11 + $0x3f8] sm:$0xff]
    %v4133 = vunpack.c.l.b16 %v3877
    %v4134 = vunpack.c.h.b16 %v3877
    %v4135 = vunpack.c.l.b16 %v3878
    %v4136 = vunpack.c.h.b16 %v3878
    %v4137 = vunpack.c.l.b16 %v3879
    %v4138 = vunpack.c.h.b16 %v3879
    %v4139 = vunpack.c.l.b16 %v3880
    %v4140 = vunpack.c.h.b16 %v3880
    %v4141 = vunpack.c.l.b16 %v3881
    %v4142 = vunpack.c.h.b16 %v3881
    %v4143 = vunpack.c.l.b16 %v3882
    %v4144 = vunpack.c.h.b16 %v3882
    %v4145 = vunpack.c.l.b16 %v3883
    %v4146 = vunpack.c.h.b16 %v3883
    %v4147 = vunpack.c.l.b16 %v3884
    %v4148 = vunpack.c.h.b16 %v3884
    %v4149 = vunpack.c.l.b16 %v3885
    %v4150 = vunpack.c.h.b16 %v3885
    %v4151 = vunpack.c.l.b16 %v3886
    %v4152 = vunpack.c.h.b16 %v3886
    %v4153 = vunpack.c.l.b16 %v3887
    %v4154 = vunpack.c.h.b16 %v3887
    %v4155 = vunpack.c.l.b16 %v3888
    %v4156 = vunpack.c.h.b16 %v3888
    %v4157 = vunpack.c.l.b16 %v3889
    %v4158 = vunpack.c.h.b16 %v3889
    %v4159 = vunpack.c.l.b16 %v3890
    %v4160 = vunpack.c.h.b16 %v3890
    %v4161 = vunpack.c.l.b16 %v3891
    %v4162 = vunpack.c.h.b16 %v3891
    %v4163 = vunpack.c.l.b16 %v3892
    %v4164 = vunpack.c.h.b16 %v3892
    %v4165 = vunpack.c.l.b16 %v3893
    %v4166 = vunpack.c.h.b16 %v3893
    %v4167 = vunpack.c.l.b16 %v3894
    %v4168 = vunpack.c.h.b16 %v3894
    %v4169 = vunpack.c.l.b16 %v3895
    %v4170 = vunpack.c.h.b16 %v3895
    %v4171 = vunpack.c.l.b16 %v3896
    %v4172 = vunpack.c.h.b16 %v3896
    %v4173 = vunpack.c.l.b16 %v3897
    %v4174 = vunpack.c.h.b16 %v3897
    %v4175 = vunpack.c.l.b16 %v3898
    %v4176 = vunpack.c.h.b16 %v3898
    %v4177 = vunpack.c.l.b16 %v3899
    %v4178 = vunpack.c.h.b16 %v3899
    %v4179 = vunpack.c.l.b16 %v3900
    %v4180 = vunpack.c.h.b16 %v3900
    %v4181 = vunpack.c.l.b16 %v3901
    %v4182 = vunpack.c.h.b16 %v3901
    %v4183 = vunpack.c.l.b16 %v3902
    %v4184 = vunpack.c.h.b16 %v3902
    %v4185 = vunpack.c.l.b16 %v3903
    %v4186 = vunpack.c.h.b16 %v3903
    %v4187 = vunpack.c.l.b16 %v3904
    %v4188 = vunpack.c.h.b16 %v3904
    %v4189 = vunpack.c.l.b16 %v3905
    %v4190 = vunpack.c.h.b16 %v3905
    %v4191 = vunpack.c.l.b16 %v3906
    %v4192 = vunpack.c.h.b16 %v3906
    %v4193 = vunpack.c.l.b16 %v3907
    %v4194 = vunpack.c.h.b16 %v3907
    %v4195 = vunpack.c.l.b16 %v3908
    %v4196 = vunpack.c.h.b16 %v3908
    %v4197 = vunpack.c.l.b16 %v3909
    %v4198 = vunpack.c.h.b16 %v3909
    %v4199 = vunpack.c.l.b16 %v3910
    %v4200 = vunpack.c.h.b16 %v3910
    %v4201 = vunpack.c.l.b16 %v3911
    %v4202 = vunpack.c.h.b16 %v3911
    %v4203 = vunpack.c.l.b16 %v3912
    %v4204 = vunpack.c.h.b16 %v3912
    %v4205 = vunpack.c.l.b16 %v3913
    %v4206 = vunpack.c.h.b16 %v3913
    %v4207 = vunpack.c.l.b16 %v3914
    %v4208 = vunpack.c.h.b16 %v3914
    %v4209 = vunpack.c.l.b16 %v3915
    %v4210 = vunpack.c.h.b16 %v3915
    %v4211 = vunpack.c.l.b16 %v3916
    %v4212 = vunpack.c.h.b16 %v3916
    %v4213 = vunpack.c.l.b16 %v3917
    %v4214 = vunpack.c.h.b16 %v3917
    %v4215 = vunpack.c.l.b16 %v3918
    %v4216 = vunpack.c.h.b16 %v3918
    %v4217 = vunpack.c.l.b16 %v3919
    %v4218 = vunpack.c.h.b16 %v3919
    %v4219 = vunpack.c.l.b16 %v3920
    %v4220 = vunpack.c.h.b16 %v3920
    %v4221 = vunpack.c.l.b16 %v3921
    %v4222 = vunpack.c.h.b16 %v3921
    %v4223 = vunpack.c.l.b16 %v3922
    %v4224 = vunpack.c.h.b16 %v3922
    %v4225 = vunpack.c.l.b16 %v3923
    %v4226 = vunpack.c.h.b16 %v3923
    %v4227 = vunpack.c.l.b16 %v3924
    %v4228 = vunpack.c.h.b16 %v3924
    %v4229 = vunpack.c.l.b16 %v3925
    %v4230 = vunpack.c.h.b16 %v3925
    %v4231 = vunpack.c.l.b16 %v3926
    %v4232 = vunpack.c.h.b16 %v3926
    %v4233 = vunpack.c.l.b16 %v3927
    %v4234 = vunpack.c.h.b16 %v3927
    %v4235 = vunpack.c.l.b16 %v3928
    %v4236 = vunpack.c.h.b16 %v3928
    %v4237 = vunpack.c.l.b16 %v3929
    %v4238 = vunpack.c.h.b16 %v3929
    %v4239 = vunpack.c.l.b16 %v3930
    %v4240 = vunpack.c.h.b16 %v3930
    %v4241 = vunpack.c.l.b16 %v3931
    %v4242 = vunpack.c.h.b16 %v3931
    %v4243 = vunpack.c.l.b16 %v3932
    %v4244 = vunpack.c.h.b16 %v3932
    %v4245 = vunpack.c.l.b16 %v3933
    %v4246 = vunpack.c.h.b16 %v3933
    %v4247 = vunpack.c.l.b16 %v3934
    %v4248 = vunpack.c.h.b16 %v3934
    %v4249 = vunpack.c.l.b16 %v3935
    %v4250 = vunpack.c.h.b16 %v3935
    %v4251 = vunpack.c.l.b16 %v3936
    %v4252 = vunpack.c.h.b16 %v3936
    %v4253 = vunpack.c.l.b16 %v3937
    %v4254 = vunpack.c.h.b16 %v3937
    %v4255 = vunpack.c.l.b16 %v3938
    %v4256 = vunpack.c.h.b16 %v3938
    %v4257 = vunpack.c.l.b16 %v3939
    %v4258 = vunpack.c.h.b16 %v3939
    %v4259 = vunpack.c.l.b16 %v3940
    %v4260 = vunpack.c.h.b16 %v3940
    %v4261 = vunpack.c.l.b16 %v3941
    %v4262 = vunpack.c.h.b16 %v3941
    %v4263 = vunpack.c.l.b16 %v3942
    %v4264 = vunpack.c.h.b16 %v3942
    %v4265 = vunpack.c.l.b16 %v3943
    %v4266 = vunpack.c.h.b16 %v3943
    %v4267 = vunpack.c.l.b16 %v3944
    %v4268 = vunpack.c.h.b16 %v3944
    %v4269 = vunpack.c.l.b16 %v3945
    %v4270 = vunpack.c.h.b16 %v3945
    %v4271 = vunpack.c.l.b16 %v3946
    %v4272 = vunpack.c.h.b16 %v3946
    %v4273 = vunpack.c.l.b16 %v3947
    %v4274 = vunpack.c.h.b16 %v3947
    %v4275 = vunpack.c.l.b16 %v3948
    %v4276 = vunpack.c.h.b16 %v3948
    %v4277 = vunpack.c.l.b16 %v3949
    %v4278 = vunpack.c.h.b16 %v3949
    %v4279 = vunpack.c.l.b16 %v3950
    %v4280 = vunpack.c.h.b16 %v3950
    %v4281 = vunpack.c.l.b16 %v3951
    %v4282 = vunpack.c.h.b16 %v3951
    %v4283 = vunpack.c.l.b16 %v3952
    %v4284 = vunpack.c.h.b16 %v3952
    %v4285 = vunpack.c.l.b16 %v3953
    %v4286 = vunpack.c.h.b16 %v3953
    %v4287 = vunpack.c.l.b16 %v3954
    %v4288 = vunpack.c.h.b16 %v3954
    %v4289 = vunpack.c.l.b16 %v3955
    %v4290 = vunpack.c.h.b16 %v3955
    %v4291 = vunpack.c.l.b16 %v3956
    %v4292 = vunpack.c.h.b16 %v3956
    %v4293 = vunpack.c.l.b16 %v3957
    %v4294 = vunpack.c.h.b16 %v3957
    %v4295 = vunpack.c.l.b16 %v3958
    %v4296 = vunpack.c.h.b16 %v3958
    %v4297 = vunpack.c.l.b16 %v3959
    %v4298 = vunpack.c.h.b16 %v3959
    %v4299 = vunpack.c.l.b16 %v3960
    %v4300 = vunpack.c.h.b16 %v3960
    %v4301 = vunpack.c.l.b16 %v3961
    %v4302 = vunpack.c.h.b16 %v3961
    %v4303 = vunpack.c.l.b16 %v3962
    %v4304 = vunpack.c.h.b16 %v3962
    %v4305 = vunpack.c.l.b16 %v3963
    %v4306 = vunpack.c.h.b16 %v3963
    %v4307 = vunpack.c.l.b16 %v3964
    %v4308 = vunpack.c.h.b16 %v3964
    %v4309 = vunpack.c.l.b16 %v3965
    %v4310 = vunpack.c.h.b16 %v3965
    %v4311 = vunpack.c.l.b16 %v3966
    %v4312 = vunpack.c.h.b16 %v3966
    %v4313 = vunpack.c.l.b16 %v3967
    %v4314 = vunpack.c.h.b16 %v3967
    %v4315 = vunpack.c.l.b16 %v3968
    %v4316 = vunpack.c.h.b16 %v3968
    %v4317 = vunpack.c.l.b16 %v3969
    %v4318 = vunpack.c.h.b16 %v3969
    %v4319 = vunpack.c.l.b16 %v3970
    %v4320 = vunpack.c.h.b16 %v3970
    %v4321 = vunpack.c.l.b16 %v3971
    %v4322 = vunpack.c.h.b16 %v3971
    %v4323 = vunpack.c.l.b16 %v3972
    %v4324 = vunpack.c.h.b16 %v3972
    %v4325 = vunpack.c.l.b16 %v3973
    %v4326 = vunpack.c.h.b16 %v3973
    %v4327 = vunpack.c.l.b16 %v3974
    %v4328 = vunpack.c.h.b16 %v3974
    %v4329 = vunpack.c.l.b16 %v3975
    %v4330 = vunpack.c.h.b16 %v3975
    %v4331 = vunpack.c.l.b16 %v3976
    %v4332 = vunpack.c.h.b16 %v3976
    %v4333 = vunpack.c.l.b16 %v3977
    %v4334 = vunpack.c.h.b16 %v3977
    %v4335 = vunpack.c.l.b16 %v3978
    %v4336 = vunpack.c.h.b16 %v3978
    %v4337 = vunpack.c.l.b16 %v3979
    %v4338 = vunpack.c.h.b16 %v3979
    %v4339 = vunpack.c.l.b16 %v3980
    %v4340 = vunpack.c.h.b16 %v3980
    %v4341 = vunpack.c.l.b16 %v3981
    %v4342 = vunpack.c.h.b16 %v3981
    %v4343 = vunpack.c.l.b16 %v3982
    %v4344 = vunpack.c.h.b16 %v3982
    %v4345 = vunpack.c.l.b16 %v3983
    %v4346 = vunpack.c.h.b16 %v3983
    %v4347 = vunpack.c.l.b16 %v3984
    %v4348 = vunpack.c.h.b16 %v3984
    %v4349 = vunpack.c.l.b16 %v3985
    %v4350 = vunpack.c.h.b16 %v3985
    %v4351 = vunpack.c.l.b16 %v3986
    %v4352 = vunpack.c.h.b16 %v3986
    %v4353 = vunpack.c.l.b16 %v3987
    %v4354 = vunpack.c.h.b16 %v3987
    %v4355 = vunpack.c.l.b16 %v3988
    %v4356 = vunpack.c.h.b16 %v3988
    %v4357 = vunpack.c.l.b16 %v3989
    %v4358 = vunpack.c.h.b16 %v3989
    %v4359 = vunpack.c.l.b16 %v3990
    %v4360 = vunpack.c.h.b16 %v3990
    %v4361 = vunpack.c.l.b16 %v3991
    %v4362 = vunpack.c.h.b16 %v3991
    %v4363 = vunpack.c.l.b16 %v3992
    %v4364 = vunpack.c.h.b16 %v3992
    %v4365 = vunpack.c.l.b16 %v3993
    %v4366 = vunpack.c.h.b16 %v3993
    %v4367 = vunpack.c.l.b16 %v3994
    %v4368 = vunpack.c.h.b16 %v3994
    %v4369 = vunpack.c.l.b16 %v3995
    %v4370 = vunpack.c.h.b16 %v3995
    %v4371 = vunpack.c.l.b16 %v3996
    %v4372 = vunpack.c.h.b16 %v3996
    %v4373 = vunpack.c.l.b16 %v3997
    %v4374 = vunpack.c.h.b16 %v3997
    %v4375 = vunpack.c.l.b16 %v3998
    %v4376 = vunpack.c.h.b16 %v3998
    %v4377 = vunpack.c.l.b16 %v3999
    %v4378 = vunpack.c.h.b16 %v3999
    %v4379 = vunpack.c.l.b16 %v4000
    %v4380 = vunpack.c.h.b16 %v4000
    %v4381 = vunpack.c.l.b16 %v4001
    %v4382 = vunpack.c.h.b16 %v4001
    %v4383 = vunpack.c.l.b16 %v4002
    %v4384 = vunpack.c.h.b16 %v4002
    %v4385 = vunpack.c.l.b16 %v4003
    %v4386 = vunpack.c.h.b16 %v4003
    %v4387 = vunpack.c.l.b16 %v4004
    %v4388 = vunpack.c.h.b16 %v4004
    %v4389 = vpack.c.b16 %v4141, %v4133
    %v4390 = vpack.c.b16 %v4142, %v4134
    %v4391 = vpack.c.b16 %v4143, %v4135
    %v4392 = vpack.c.b16 %v4144, %v4136
    %v4393 = vpack.c.b16 %v4145, %v4137
    %v4394 = vpack.c.b16 %v4146, %v4138
    %v4395 = vpack.c.b16 %v4147, %v4139
    %v4396 = vpack.c.b16 %v4148, %v4140
    %v4397 = vpack.c.b16 %v4157, %v4149
    %v4398 = vpack.c.b16 %v4158, %v4150
    %v4399 = vpack.c.b16 %v4159, %v4151
    %v4400 = vpack.c.b16 %v4160, %v4152
    %v4401 = vpack.c.b16 %v4161, %v4153
    %v4402 = vpack.c.b16 %v4162, %v4154
    %v4403 = vpack.c.b16 %v4163, %v4155
    %v4404 = vpack.c.b16 %v4164, %v4156
    %v4405 = vpack.c.b16 %v4173, %v4165
    %v4406 = vpack.c.b16 %v4174, %v4166
    %v4407 = vpack.c.b16 %v4175, %v4167
    %v4408 = vpack.c.b16 %v4176, %v4168
    %v4409 = vpack.c.b16 %v4177, %v4169
    %v4410 = vpack.c.b16 %v4178, %v4170
    %v4411 = vpack.c.b16 %v4179, %v4171
    %v4412 = vpack.c.b16 %v4180, %v4172
    %v4413 = vpack.c.b16 %v4189, %v4181
    %v4414 = vpack.c.b16 %v4190, %v4182
    %v4415 = vpack.c.b16 %v4191, %v4183
    %v4416 = vpack.c.b16 %v4192, %v4184
    %v4417 = vpack.c.b16 %v4193, %v4185
    %v4418 = vpack.c.b16 %v4194, %v4186
    %v4419 = vpack.c.b16 %v4195, %v4187
    %v4420 = vpack.c.b16 %v4196, %v4188
    %v4421 = vpack.c.b16 %v4205, %v4197
    %v4422 = vpack.c.b16 %v4206, %v4198
    %v4423 = vpack.c.b16 %v4207, %v4199
    %v4424 = vpack.c.b16 %v4208, %v4200
    %v4425 = vpack.c.b16 %v4209, %v4201
    %v4426 = vpack.c.b16 %v4210, %v4202
    %v4427 = vpack.c.b16 %v4211, %v4203
    %v4428 = vpack.c.b16 %v4212, %v4204
    %v4429 = vpack.c.b16 %v4221, %v4213
    %v4430 = vpack.c.b16 %v4222, %v4214
    %v4431 = vpack.c.b16 %v4223, %v4215
    %v4432 = vpack.c.b16 %v4224, %v4216
    %v4433 = vpack.c.b16 %v4225, %v4217
    %v4434 = vpack.c.b16 %v4226, %v4218
    %v4435 = vpack.c.b16 %v4227, %v4219
    %v4436 = vpack.c.b16 %v4228, %v4220
    %v4437 = vpack.c.b16 %v4237, %v4229
    %v4438 = vpack.c.b16 %v4238, %v4230
    %v4439 = vpack.c.b16 %v4239, %v4231
    %v4440 = vpack.c.b16 %v4240, %v4232
    %v4441 = vpack.c.b16 %v4241, %v4233
    %v4442 = vpack.c.b16 %v4242, %v4234
    %v4443 = vpack.c.b16 %v4243, %v4235
    %v4444 = vpack.c.b16 %v4244, %v4236
    %v4445 = vpack.c.b16 %v4253, %v4245
    %v4446 = vpack.c.b16 %v4254, %v4246
    %v4447 = vpack.c.b16 %v4255, %v4247
    %v4448 = vpack.c.b16 %v4256, %v4248
    %v4449 = vpack.c.b16 %v4257, %v4249
    %v4450 = vpack.c.b16 %v4258, %v4250
    %v4451 = vpack.c.b16 %v4259, %v4251
    %v4452 = vpack.c.b16 %v4260, %v4252
    %v4453 = vpack.c.b16 %v4269, %v4261
    %v4454 = vpack.c.b16 %v4270, %v4262
    %v4455 = vpack.c.b16 %v4271, %v4263
    %v4456 = vpack.c.b16 %v4272, %v4264
    %v4457 = vpack.c.b16 %v4273, %v4265
    %v4458 = vpack.c.b16 %v4274, %v4266
    %v4459 = vpack.c.b16 %v4275, %v4267
    %v4460 = vpack.c.b16 %v4276, %v4268
    %v4461 = vpack.c.b16 %v4285, %v4277
    %v4462 = vpack.c.b16 %v4286, %v4278
    %v4463 = vpack.c.b16 %v4287, %v4279
    %v4464 = vpack.c.b16 %v4288, %v4280
    %v4465 = vpack.c.b16 %v4289, %v4281
    %v4466 = vpack.c.b16 %v4290, %v4282
    %v4467 = vpack.c.b16 %v4291, %v4283
    %v4468 = vpack.c.b16 %v4292, %v4284
    %v4469 = vpack.c.b16 %v4301, %v4293
    %v4470 = vpack.c.b16 %v4302, %v4294
    %v4471 = vpack.c.b16 %v4303, %v4295
    %v4472 = vpack.c.b16 %v4304, %v4296
    %v4473 = vpack.c.b16 %v4305, %v4297
    %v4474 = vpack.c.b16 %v4306, %v4298
    %v4475 = vpack.c.b16 %v4307, %v4299
    %v4476 = vpack.c.b16 %v4308, %v4300
    %v4477 = vpack.c.b16 %v4317, %v4309
    %v4478 = vpack.c.b16 %v4318, %v4310
    %v4479 = vpack.c.b16 %v4319, %v4311
    %v4480 = vpack.c.b16 %v4320, %v4312
    %v4481 = vpack.c.b16 %v4321, %v4313
    %v4482 = vpack.c.b16 %v4322, %v4314
    %v4483 = vpack.c.b16 %v4323, %v4315
    %v4484 = vpack.c.b16 %v4324, %v4316
    %v4485 = vpack.c.b16 %v4333, %v4325
    %v4486 = vpack.c.b16 %v4334, %v4326
    %v4487 = vpack.c.b16 %v4335, %v4327
    %v4488 = vpack.c.b16 %v4336, %v4328
    %v4489 = vpack.c.b16 %v4337, %v4329
    %v4490 = vpack.c.b16 %v4338, %v4330
    %v4491 = vpack.c.b16 %v4339, %v4331
    %v4492 = vpack.c.b16 %v4340, %v4332
    %v4493 = vpack.c.b16 %v4349, %v4341
    %v4494 = vpack.c.b16 %v4350, %v4342
    %v4495 = vpack.c.b16 %v4351, %v4343
    %v4496 = vpack.c.b16 %v4352, %v4344
    %v4497 = vpack.c.b16 %v4353, %v4345
    %v4498 = vpack.c.b16 %v4354, %v4346
    %v4499 = vpack.c.b16 %v4355, %v4347
    %v4500 = vpack.c.b16 %v4356, %v4348
    %v4501 = vpack.c.b16 %v4365, %v4357
    %v4502 = vpack.c.b16 %v4366, %v4358
    %v4503 = vpack.c.b16 %v4367, %v4359
    %v4504 = vpack.c.b16 %v4368, %v4360
    %v4505 = vpack.c.b16 %v4369, %v4361
    %v4506 = vpack.c.b16 %v4370, %v4362
    %v4507 = vpack.c.b16 %v4371, %v4363
    %v4508 = vpack.c.b16 %v4372, %v4364
    %v4509 = vpack.c.b16 %v4381, %v4373
    %v4510 = vpack.c.b16 %v4382, %v4374
    %v4511 = vpack.c.b16 %v4383, %v4375
    %v4512 = vpack.c.b16 %v4384, %v4376
    %v4513 = vpack.c.b16 %v4385, %v4377
    %v4514 = vpack.c.b16 %v4386, %v4378
    %v4515 = vpack.c.b16 %v4387, %v4379
    %v4516 = vpack.c.b16 %v4388, %v4380
    %4645 = vmatprep.subr.bf16.mxu0 %v4390
    %4646 = vmatpush1.bf16.msra.mxu0 %v4389
    %4647 = vmatprep.subr.bf16.mxu0 %v4398
    %4648 = vmatpush1.bf16.msra.mxu0 %v4397
    %4649 = vmatprep.subr.bf16.mxu0 %v4406
    %4650 = vmatpush1.bf16.msra.mxu0 %v4405
    %4651 = vmatprep.subr.bf16.mxu0 %v4414
    %4652 = vmatpush1.bf16.msra.mxu0 %v4413
    %4653 = vmatprep.subr.bf16.mxu0 %v4422
    %4654 = vmatpush1.bf16.msra.mxu0 %v4421
    %4655 = vmatprep.subr.bf16.mxu0 %v4430
    %4656 = vmatpush1.bf16.msra.mxu0 %v4429
    %4657 = vmatprep.subr.bf16.mxu0 %v4438
    %4658 = vmatpush1.bf16.msra.mxu0 %v4437
    %4659 = vmatprep.subr.bf16.mxu0 %v4446
    %4660 = vmatpush1.bf16.msra.mxu0 %v4445
    %4661 = vmatprep.subr.bf16.mxu0 %v4454
    %4662 = vmatpush1.bf16.msra.mxu0 %v4453
    %4663 = vmatprep.subr.bf16.mxu0 %v4462
    %4664 = vmatpush1.bf16.msra.mxu0 %v4461
    %4665 = vmatprep.subr.bf16.mxu0 %v4470
    %4666 = vmatpush1.bf16.msra.mxu0 %v4469
    %4667 = vmatprep.subr.bf16.mxu0 %v4478
    %4668 = vmatpush1.bf16.msra.mxu0 %v4477
    %4669 = vmatprep.subr.bf16.mxu0 %v4486
    %4670 = vmatpush1.bf16.msra.mxu0 %v4485
    %4671 = vmatprep.subr.bf16.mxu0 %v4494
    %4672 = vmatpush1.bf16.msra.mxu0 %v4493
    %4673 = vmatprep.subr.bf16.mxu0 %v4502
    %4674 = vmatpush1.bf16.msra.mxu0 %v4501
    %4675 = vmatprep.subr.bf16.mxu0 %v4510
    %4676 = vmatpush1.bf16.msra.mxu0 %v4509
    %4677 = vmatprep.mubr.bf16.mxu0 %v3874
    %4678 = vmatmul.mubr.bf16.gmra.mrb[0].mxu0 %v3871
    %v4679 = vpop.f32.mrb[0].mxu0
    %v4680 = vadd.f32 0.0, %v4679
    %v4681 = vpop.f32.mrb[0].mxu0
    %v4682 = vadd.f32 0.0, %v4681
    %v4683 = vpop.f32.mrb[0].mxu0
    %v4684 = vpop.f32.mrb[0].mxu0
    %4685 = vdwg.mxu0
    %4686 = vmatprep.subr.bf16.mxu0 %v4392
    %4687 = vmatpush1.bf16.msra.mxu0 %v4391
    %4688 = vmatprep.subr.bf16.mxu0 %v4400
    %4689 = vmatpush1.bf16.msra.mxu0 %v4399
    %4690 = vmatprep.subr.bf16.mxu0 %v4408
    %4691 = vmatpush1.bf16.msra.mxu0 %v4407
    %4692 = vmatprep.subr.bf16.mxu0 %v4416
    %4693 = vmatpush1.bf16.msra.mxu0 %v4415
    %4694 = vmatprep.subr.bf16.mxu0 %v4424
    %4695 = vmatpush1.bf16.msra.mxu0 %v4423
    %4696 = vmatprep.subr.bf16.mxu0 %v4432
    %4697 = vmatpush1.bf16.msra.mxu0 %v4431
    %4698 = vmatprep.subr.bf16.mxu0 %v4440
    %4699 = vmatpush1.bf16.msra.mxu0 %v4439
    %4700 = vmatprep.subr.bf16.mxu0 %v4448
    %4701 = vmatpush1.bf16.msra.mxu0 %v4447
    %4702 = vmatprep.subr.bf16.mxu0 %v4456
    %4703 = vmatpush1.bf16.msra.mxu0 %v4455
    %4704 = vmatprep.subr.bf16.mxu0 %v4464
    %4705 = vmatpush1.bf16.msra.mxu0 %v4463
    %4706 = vmatprep.subr.bf16.mxu0 %v4472
    %4707 = vmatpush1.bf16.msra.mxu0 %v4471
    %4708 = vmatprep.subr.bf16.mxu0 %v4480
    %4709 = vmatpush1.bf16.msra.mxu0 %v4479
    %4710 = vmatprep.subr.bf16.mxu0 %v4488
    %4711 = vmatpush1.bf16.msra.mxu0 %v4487
    %4712 = vmatprep.subr.bf16.mxu0 %v4496
    %4713 = vmatpush1.bf16.msra.mxu0 %v4495
    %4714 = vmatprep.subr.bf16.mxu0 %v4504
    %4715 = vmatpush1.bf16.msra.mxu0 %v4503
    %4716 = vmatprep.subr.bf16.mxu0 %v4512
    %4717 = vmatpush1.bf16.msra.mxu0 %v4511
    %4718 = vmatprep.mubr.bf16.mxu0 %v3874
    %4719 = vmatmul.mubr.bf16.gmra.mrb[0].mxu0 %v3871
    %v4720 = vpop.f32.mrb[0].mxu0
    %v4721 = vadd.f32 0.0, %v4720
    %v4722 = vpop.f32.mrb[0].mxu0
    %v4723 = vadd.f32 0.0, %v4722
    %v4724 = vpop.f32.mrb[0].mxu0
    %v4725 = vpop.f32.mrb[0].mxu0
    %4726 = vdwg.mxu0
    %4727 = vmatprep.subr.bf16.mxu0 %v4394
    %4728 = vmatpush1.bf16.msra.mxu0 %v4393
    %4729 = vmatprep.subr.bf16.mxu0 %v4402
    %4730 = vmatpush1.bf16.msra.mxu0 %v4401
    %4731 = vmatprep.subr.bf16.mxu0 %v4410
    %4732 = vmatpush1.bf16.msra.mxu0 %v4409
    %4733 = vmatprep.subr.bf16.mxu0 %v4418
    %4734 = vmatpush1.bf16.msra.mxu0 %v4417
    %4735 = vmatprep.subr.bf16.mxu0 %v4426
    %4736 = vmatpush1.bf16.msra.mxu0 %v4425
    %4737 = vmatprep.subr.bf16.mxu0 %v4434
    %4738 = vmatpush1.bf16.msra.mxu0 %v4433
    %4739 = vmatprep.subr.bf16.mxu0 %v4442
    %4740 = vmatpush1.bf16.msra.mxu0 %v4441
    %4741 = vmatprep.subr.bf16.mxu0 %v4450
    %4742 = vmatpush1.bf16.msra.mxu0 %v4449
    %4743 = vmatprep.subr.bf16.mxu0 %v4458
    %4744 = vmatpush1.bf16.msra.mxu0 %v4457
    %4745 = vmatprep.subr.bf16.mxu0 %v4466
    %4746 = vmatpush1.bf16.msra.mxu0 %v4465
    %4747 = vmatprep.subr.bf16.mxu0 %v4474
    %4748 = vmatpush1.bf16.msra.mxu0 %v4473
    %4749 = vmatprep.subr.bf16.mxu0 %v4482
    %4750 = vmatpush1.bf16.msra.mxu0 %v4481
    %4751 = vmatprep.subr.bf16.mxu0 %v4490
    %4752 = vmatpush1.bf16.msra.mxu0 %v4489
    %4753 = vmatprep.subr.bf16.mxu0 %v4498
    %4754 = vmatpush1.bf16.msra.mxu0 %v4497
    %4755 = vmatprep.subr.bf16.mxu0 %v4506
    %4756 = vmatpush1.bf16.msra.mxu0 %v4505
    %4757 = vmatprep.subr.bf16.mxu0 %v4514
    %4758 = vmatpush1.bf16.msra.mxu0 %v4513
    %4759 = vmatprep.mubr.bf16.mxu0 %v3874
    %4760 = vmatmul.mubr.bf16.gmra.mrb[0].mxu0 %v3871
    %v4761 = vpop.f32.mrb[0].mxu0
    %v4762 = vadd.f32 0.0, %v4761
    %v4763 = vpop.f32.mrb[0].mxu0
    %v4764 = vadd.f32 0.0, %v4763
    %v4765 = vpop.f32.mrb[0].mxu0
    %v4766 = vpop.f32.mrb[0].mxu0
    %4767 = vdwg.mxu0
    %4768 = vmatprep.subr.bf16.mxu0 %v4396
    %4769 = vmatpush1.bf16.msra.mxu0 %v4395
    %4770 = vmatprep.subr.bf16.mxu0 %v4404
    %4771 = vmatpush1.bf16.msra.mxu0 %v4403
    %4772 = vmatprep.subr.bf16.mxu0 %v4412
    %4773 = vmatpush1.bf16.msra.mxu0 %v4411
    %4774 = vmatprep.subr.bf16.mxu0 %v4420
    %4775 = vmatpush1.bf16.msra.mxu0 %v4419
    %4776 = vmatprep.subr.bf16.mxu0 %v4428
    %4777 = vmatpush1.bf16.msra.mxu0 %v4427
    %4778 = vmatprep.subr.bf16.mxu0 %v4436
    %4779 = vmatpush1.bf16.msra.mxu0 %v4435
    %4780 = vmatprep.subr.bf16.mxu0 %v4444
    %4781 = vmatpush1.bf16.msra.mxu0 %v4443
    %4782 = vmatprep.subr.bf16.mxu0 %v4452
    %4783 = vmatpush1.bf16.msra.mxu0 %v4451
    %4784 = vmatprep.subr.bf16.mxu0 %v4460
    %4785 = vmatpush1.bf16.msra.mxu0 %v4459
    %4786 = vmatprep.subr.bf16.mxu0 %v4468
    %4787 = vmatpush1.bf16.msra.mxu0 %v4467
    %4788 = vmatprep.subr.bf16.mxu0 %v4476
    %4789 = vmatpush1.bf16.msra.mxu0 %v4475
    %4790 = vmatprep.subr.bf16.mxu0 %v4484
    %4791 = vmatpush1.bf16.msra.mxu0 %v4483
    %4792 = vmatprep.subr.bf16.mxu0 %v4492
    %4793 = vmatpush1.bf16.msra.mxu0 %v4491
    %4794 = vmatprep.subr.bf16.mxu0 %v4500
    %4795 = vmatpush1.bf16.msra.mxu0 %v4499
    %4796 = vmatprep.subr.bf16.mxu0 %v4508
    %4797 = vmatpush1.bf16.msra.mxu0 %v4507
    %4798 = vmatprep.subr.bf16.mxu0 %v4516
    %4799 = vmatpush1.bf16.msra.mxu0 %v4515
    %4800 = vmatprep.mubr.bf16.mxu0 %v3874
    %4801 = vmatmul.mubr.bf16.gmra.mrb[0].mxu0 %v3871
    %v4802 = vpop.f32.mrb[0].mxu0
    %v4803 = vadd.f32 0.0, %v4802
    %v4804 = vpop.f32.mrb[0].mxu0
    %v4805 = vadd.f32 0.0, %v4804
    %v4806 = vpop.f32.mrb[0].mxu0
    %v4807 = vpop.f32.mrb[0].mxu0
    %4808 = vdwg.mxu0
    %s4809 = scalar_lea.vmem [#allocation2], 48
    %v4810 = vld [vmem:[%s4809] sm:$0xff]
    %v4811 = vld [vmem:[%s4809 + $0x8] sm:$0xff]
    %v4812 = vunpack.c.l.bf16 %v4810
    %v4813 = vunpack.c.h.bf16 %v4810
    %v4814 = vunpack.c.l.bf16 %v4811
    %v4815 = vunpack.c.h.bf16 %v4811
    %v4816 = vadd.f32 %v4680, %v4812
    %v4817 = vadd.f32 %v4682, %v4813
    %v4818 = vadd.f32 %v4721, %v4814
    %v4819 = vadd.f32 %v4723, %v4815
    %s4820 = scalar_lea.vmem [#allocation3], 64
    %v4821 = vld [vmem:[%s4820] sm:$0xff]
    %v4822 = vld [vmem:[%s4820 + $0x8] sm:$0xff]
    %v4823 = vunpack.c.l.bf16 %v4821
    %v4824 = vunpack.c.h.bf16 %v4821
    %v4825 = vunpack.c.l.bf16 %v4822
    %v4826 = vunpack.c.h.bf16 %v4822
    %v4827 = vadd.f32 %v4762, %v4823
    %v4828 = vadd.f32 %v4764, %v4824
    %v4829 = vadd.f32 %v4803, %v4825
    %v4830 = vadd.f32 %v4805, %v4826
    %v4831 = vxor.u32 %v4816, 2147483648
    %v4832 = vmul.f32 %v4831, 1.442695
    %v4833 = vpow.pop %v4832
    %v4834 = vadd.f32 %v4833, 1.0
    %v4835 = vrcp.pop %v4834
    %v4836 = vmul.f32 1.0, %v4835
    %v4837 = vxor.u32 %v4817, 2147483648
    %v4838 = vmul.f32 %v4837, 1.442695
    %v4839 = vpow.pop %v4838
    %v4840 = vadd.f32 %v4839, 1.0
    %v4841 = vrcp.pop %v4840
    %v4842 = vmul.f32 1.0, %v4841
    %v4843 = vtanh.pop %v4818
    %v4844 = vxor.u32 %v4819, 2147483648
    %v4845 = vmul.f32 %v4844, 1.442695
    %v4846 = vpow.pop %v4845
    %v4847 = vadd.f32 %v4846, 1.0
    %v4848 = vrcp.pop %v4847
    %v4849 = vmul.f32 1.0, %v4848
    %v4850 = vmul.f32 %v4842, %v3844
    %v4851 = vmul.f32 %v4836, %v4843
    %v4852 = vadd.f32 %v4850, %v4851
    %v4853 = vtanh.pop %v4852
    %v4854 = vmul.f32 %v4849, %v4853
    %v4855 = vxor.u32 %v4827, 2147483648
    %v4856 = vmul.f32 %v4855, 1.442695
    %v4857 = vpow.pop %v4856
    %v4858 = vadd.f32 %v4857, 1.0
    %v4859 = vrcp.pop %v4858
    %v4860 = vmul.f32 1.0, %v4859
    %v4861 = vxor.u32 %v4828, 2147483648
    %v4862 = vmul.f32 %v4861, 1.442695
    %v4863 = vpow.pop %v4862
    %v4864 = vadd.f32 %v4863, 1.0
    %v4865 = vrcp.pop %v4864
    %v4866 = vmul.f32 1.0, %v4865
    %v4867 = vtanh.pop %v4829
    %v4868 = vxor.u32 %v4830, 2147483648
    %v4869 = vmul.f32 %v4868, 1.442695
    %v4870 = vpow.pop %v4869
    %v4871 = vadd.f32 %v4870, 1.0
    %v4872 = vrcp.pop %v4871
    %v4873 = vmul.f32 1.0, %v4872
    %v4874 = vmul.f32 %v4866, %v3868
    %v4875 = vmul.f32 %v4860, %v4867
    %v4876 = vadd.f32 %v4874, %v4875
    %v4877 = vtanh.pop %v4876
    %v4878 = vmul.f32 %v4873, %v4877
    %v4879 = vpack.c.bf16 %v4854, %v4854
    %s4880 = scalar_lea.vmem [#allocation4], 12
    %4881 = vst [vmem:[%s4880] sm:$0xf] %v4879
    %v4882 = vpack.c.bf16 %v4878, %v4878
    %s4883 = scalar_lea.vmem [#allocation5], 16
    %4884 = vst [vmem:[%s4883] sm:$0xf] %v4882
    %v4885 = vld [vmem:[#allocation11] sm:$0xff]
    %v4886 = vld [vmem:[#allocation11 + $0x8] sm:$0xff]
    %v4887 = vld [vmem:[#allocation11 + $0x10] sm:$0xff]
    %v4888 = vld [vmem:[#allocation11 + $0x18] sm:$0xff]
    %v4889 = vld [vmem:[#allocation11 + $0x20] sm:$0xff]
    %v4890 = vld [vmem:[#allocation11 + $0x28] sm:$0xff]
    %v4891 = vld [vmem:[#allocation11 + $0x30] sm:$0xff]
    %v4892 = vld [vmem:[#allocation11 + $0x38] sm:$0xff]
    %v4893 = vld [vmem:[#allocation11 + $0x40] sm:$0xff]
    %v4894 = vld [vmem:[#allocation11 + $0x48] sm:$0xff]
    %v4895 = vld [vmem:[#allocation11 + $0x50] sm:$0xff]
    %v4896 = vld [vmem:[#allocation11 + $0x58] sm:$0xff]
    %v4897 = vld [vmem:[#allocation11 + $0x60] sm:$0xff]
    %v4898 = vld [vmem:[#allocation11 + $0x68] sm:$0xff]
    %v4899 = vld [vmem:[#allocation11 + $0x70] sm:$0xff]
    %v4900 = vld [vmem:[#allocation11 + $0x78] sm:$0xff]
    %v4901 = vld [vmem:[#allocation11 + $0x80] sm:$0xff]
    %v4902 = vld [vmem:[#allocation11 + $0x88] sm:$0xff]
    %v4903 = vld [vmem:[#allocation11 + $0x90] sm:$0xff]
    %v4904 = vld [vmem:[#allocation11 + $0x98] sm:$0xff]
    %v4905 = vld [vmem:[#allocation11 + $0xa0] sm:$0xff]
    %v4906 = vld [vmem:[#allocation11 + $0xa8] sm:$0xff]
    %v4907 = vld [vmem:[#allocation11 + $0xb0] sm:$0xff]
    %v4908 = vld [vmem:[#allocation11 + $0xb8] sm:$0xff]
    %v4909 = vld [vmem:[#allocation11 + $0xc0] sm:$0xff]
    %v4910 = vld [vmem:[#allocation11 + $0xc8] sm:$0xff]
    %v4911 = vld [vmem:[#allocation11 + $0xd0] sm:$0xff]
    %v4912 = vld [vmem:[#allocation11 + $0xd8] sm:$0xff]
    %v4913 = vld [vmem:[#allocation11 + $0xe0] sm:$0xff]
    %v4914 = vld [vmem:[#allocation11 + $0xe8] sm:$0xff]
    %v4915 = vld [vmem:[#allocation11 + $0xf0] sm:$0xff]
    %v4916 = vld [vmem:[#allocation11 + $0xf8] sm:$0xff]
    %v4917 = vld [vmem:[#allocation11 + $0x100] sm:$0xff]
    %v4918 = vld [vmem:[#allocation11 + $0x108] sm:$0xff]
    %v4919 = vld [vmem:[#allocation11 + $0x110] sm:$0xff]
    %v4920 = vld [vmem:[#allocation11 + $0x118] sm:$0xff]
    %v4921 = vld [vmem:[#allocation11 + $0x120] sm:$0xff]
    %v4922 = vld [vmem:[#allocation11 + $0x128] sm:$0xff]
    %v4923 = vld [vmem:[#allocation11 + $0x130] sm:$0xff]
    %v4924 = vld [vmem:[#allocation11 + $0x138] sm:$0xff]
    %v4925 = vld [vmem:[#allocation11 + $0x140] sm:$0xff]
    %v4926 = vld [vmem:[#allocation11 + $0x148] sm:$0xff]
    %v4927 = vld [vmem:[#allocation11 + $0x150] sm:$0xff]
    %v4928 = vld [vmem:[#allocation11 + $0x158] sm:$0xff]
    %v4929 = vld [vmem:[#allocation11 + $0x160] sm:$0xff]
    %v4930 = vld [vmem:[#allocation11 + $0x168] sm:$0xff]
    %v4931 = vld [vmem:[#allocation11 + $0x170] sm:$0xff]
    %v4932 = vld [vmem:[#allocation11 + $0x178] sm:$0xff]
    %v4933 = vld [vmem:[#allocation11 + $0x180] sm:$0xff]
    %v4934 = vld [vmem:[#allocation11 + $0x188] sm:$0xff]
    %v4935 = vld [vmem:[#allocation11 + $0x190] sm:$0xff]
    %v4936 = vld [vmem:[#allocation11 + $0x198] sm:$0xff]
    %v4937 = vld [vmem:[#allocation11 + $0x1a0] sm:$0xff]
    %v4938 = vld [vmem:[#allocation11 + $0x1a8] sm:$0xff]
    %v4939 = vld [vmem:[#allocation11 + $0x1b0] sm:$0xff]
    %v4940 = vld [vmem:[#allocation11 + $0x1b8] sm:$0xff]
    %v4941 = vld [vmem:[#allocation11 + $0x1c0] sm:$0xff]
    %v4942 = vld [vmem:[#allocation11 + $0x1c8] sm:$0xff]
    %v4943 = vld [vmem:[#allocation11 + $0x1d0] sm:$0xff]
    %v4944 = vld [vmem:[#allocation11 + $0x1d8] sm:$0xff]
    %v4945 = vld [vmem:[#allocation11 + $0x1e0] sm:$0xff]
    %v4946 = vld [vmem:[#allocation11 + $0x1e8] sm:$0xff]
    %v4947 = vld [vmem:[#allocation11 + $0x1f0] sm:$0xff]
    %v4948 = vld [vmem:[#allocation11 + $0x1f8] sm:$0xff]
    %v4949 = vld [vmem:[#allocation11 + $0x200] sm:$0xff]
    %v4950 = vld [vmem:[#allocation11 + $0x208] sm:$0xff]
    %v4951 = vld [vmem:[#allocation11 + $0x210] sm:$0xff]
    %v4952 = vld [vmem:[#allocation11 + $0x218] sm:$0xff]
    %v4953 = vld [vmem:[#allocation11 + $0x220] sm:$0xff]
    %v4954 = vld [vmem:[#allocation11 + $0x228] sm:$0xff]
    %v4955 = vld [vmem:[#allocation11 + $0x230] sm:$0xff]
    %v4956 = vld [vmem:[#allocation11 + $0x238] sm:$0xff]
    %v4957 = vld [vmem:[#allocation11 + $0x240] sm:$0xff]
    %v4958 = vld [vmem:[#allocation11 + $0x248] sm:$0xff]
    %v4959 = vld [vmem:[#allocation11 + $0x250] sm:$0xff]
    %v4960 = vld [vmem:[#allocation11 + $0x258] sm:$0xff]
    %v4961 = vld [vmem:[#allocation11 + $0x260] sm:$0xff]
    %v4962 = vld [vmem:[#allocation11 + $0x268] sm:$0xff]
    %v4963 = vld [vmem:[#allocation11 + $0x270] sm:$0xff]
    %v4964 = vld [vmem:[#allocation11 + $0x278] sm:$0xff]
    %v4965 = vld [vmem:[#allocation11 + $0x280] sm:$0xff]
    %v4966 = vld [vmem:[#allocation11 + $0x288] sm:$0xff]
    %v4967 = vld [vmem:[#allocation11 + $0x290] sm:$0xff]
    %v4968 = vld [vmem:[#allocation11 + $0x298] sm:$0xff]
    %v4969 = vld [vmem:[#allocation11 + $0x2a0] sm:$0xff]
    %v4970 = vld [vmem:[#allocation11 + $0x2a8] sm:$0xff]
    %v4971 = vld [vmem:[#allocation11 + $0x2b0] sm:$0xff]
    %v4972 = vld [vmem:[#allocation11 + $0x2b8] sm:$0xff]
    %v4973 = vld [vmem:[#allocation11 + $0x2c0] sm:$0xff]
    %v4974 = vld [vmem:[#allocation11 + $0x2c8] sm:$0xff]
    %v4975 = vld [vmem:[#allocation11 + $0x2d0] sm:$0xff]
    %v4976 = vld [vmem:[#allocation11 + $0x2d8] sm:$0xff]
    %v4977 = vld [vmem:[#allocation11 + $0x2e0] sm:$0xff]
    %v4978 = vld [vmem:[#allocation11 + $0x2e8] sm:$0xff]
    %v4979 = vld [vmem:[#allocation11 + $0x2f0] sm:$0xff]
    %v4980 = vld [vmem:[#allocation11 + $0x2f8] sm:$0xff]
    %v4981 = vld [vmem:[#allocation11 + $0x300] sm:$0xff]
    %v4982 = vld [vmem:[#allocation11 + $0x308] sm:$0xff]
    %v4983 = vld [vmem:[#allocation11 + $0x310] sm:$0xff]
    %v4984 = vld [vmem:[#allocation11 + $0x318] sm:$0xff]
    %v4985 = vld [vmem:[#allocation11 + $0x320] sm:$0xff]
    %v4986 = vld [vmem:[#allocation11 + $0x328] sm:$0xff]
    %v4987 = vld [vmem:[#allocation11 + $0x330] sm:$0xff]
    %v4988 = vld [vmem:[#allocation11 + $0x338] sm:$0xff]
    %v4989 = vld [vmem:[#allocation11 + $0x340] sm:$0xff]
    %v4990 = vld [vmem:[#allocation11 + $0x348] sm:$0xff]
    %v4991 = vld [vmem:[#allocation11 + $0x350] sm:$0xff]
    %v4992 = vld [vmem:[#allocation11 + $0x358] sm:$0xff]
    %v4993 = vld [vmem:[#allocation11 + $0x360] sm:$0xff]
    %v4994 = vld [vmem:[#allocation11 + $0x368] sm:$0xff]
    %v4995 = vld [vmem:[#allocation11 + $0x370] sm:$0xff]
    %v4996 = vld [vmem:[#allocation11 + $0x378] sm:$0xff]
    %v4997 = vld [vmem:[#allocation11 + $0x380] sm:$0xff]
    %v4998 = vld [vmem:[#allocation11 + $0x388] sm:$0xff]
    %v4999 = vld [vmem:[#allocation11 + $0x390] sm:$0xff]
    %v5000 = vld [vmem:[#allocation11 + $0x398] sm:$0xff]
    %v5001 = vld [vmem:[#allocation11 + $0x3a0] sm:$0xff]
    %v5002 = vld [vmem:[#allocation11 + $0x3a8] sm:$0xff]
    %v5003 = vld [vmem:[#allocation11 + $0x3b0] sm:$0xff]
    %v5004 = vld [vmem:[#allocation11 + $0x3b8] sm:$0xff]
    %v5005 = vld [vmem:[#allocation11 + $0x3c0] sm:$0xff]
    %v5006 = vld [vmem:[#allocation11 + $0x3c8] sm:$0xff]
    %v5007 = vld [vmem:[#allocation11 + $0x3d0] sm:$0xff]
    %v5008 = vld [vmem:[#allocation11 + $0x3d8] sm:$0xff]
    %v5009 = vld [vmem:[#allocation11 + $0x3e0] sm:$0xff]
    %v5010 = vld [vmem:[#allocation11 + $0x3e8] sm:$0xff]
    %v5011 = vld [vmem:[#allocation11 + $0x3f0] sm:$0xff]
    %v5012 = vld [vmem:[#allocation11 + $0x3f8] sm:$0xff]
    %v5141 = vunpack.c.l.b16 %v4885
    %v5142 = vunpack.c.h.b16 %v4885
    %v5143 = vunpack.c.l.b16 %v4886
    %v5144 = vunpack.c.h.b16 %v4886
    %v5145 = vunpack.c.l.b16 %v4887
    %v5146 = vunpack.c.h.b16 %v4887
    %v5147 = vunpack.c.l.b16 %v4888
    %v5148 = vunpack.c.h.b16 %v4888
    %v5149 = vunpack.c.l.b16 %v4889
    %v5150 = vunpack.c.h.b16 %v4889
    %v5151 = vunpack.c.l.b16 %v4890
    %v5152 = vunpack.c.h.b16 %v4890
    %v5153 = vunpack.c.l.b16 %v4891
    %v5154 = vunpack.c.h.b16 %v4891
    %v5155 = vunpack.c.l.b16 %v4892
    %v5156 = vunpack.c.h.b16 %v4892
    %v5157 = vunpack.c.l.b16 %v4893
    %v5158 = vunpack.c.h.b16 %v4893
    %v5159 = vunpack.c.l.b16 %v4894
    %v5160 = vunpack.c.h.b16 %v4894
    %v5161 = vunpack.c.l.b16 %v4895
    %v5162 = vunpack.c.h.b16 %v4895
    %v5163 = vunpack.c.l.b16 %v4896
    %v5164 = vunpack.c.h.b16 %v4896
    %v5165 = vunpack.c.l.b16 %v4897
    %v5166 = vunpack.c.h.b16 %v4897
    %v5167 = vunpack.c.l.b16 %v4898
    %v5168 = vunpack.c.h.b16 %v4898
    %v5169 = vunpack.c.l.b16 %v4899
    %v5170 = vunpack.c.h.b16 %v4899
    %v5171 = vunpack.c.l.b16 %v4900
    %v5172 = vunpack.c.h.b16 %v4900
    %v5173 = vunpack.c.l.b16 %v4901
    %v5174 = vunpack.c.h.b16 %v4901
    %v5175 = vunpack.c.l.b16 %v4902
    %v5176 = vunpack.c.h.b16 %v4902
    %v5177 = vunpack.c.l.b16 %v4903
    %v5178 = vunpack.c.h.b16 %v4903
    %v5179 = vunpack.c.l.b16 %v4904
    %v5180 = vunpack.c.h.b16 %v4904
    %v5181 = vunpack.c.l.b16 %v4905
    %v5182 = vunpack.c.h.b16 %v4905
    %v5183 = vunpack.c.l.b16 %v4906
    %v5184 = vunpack.c.h.b16 %v4906
    %v5185 = vunpack.c.l.b16 %v4907
    %v5186 = vunpack.c.h.b16 %v4907
    %v5187 = vunpack.c.l.b16 %v4908
    %v5188 = vunpack.c.h.b16 %v4908
    %v5189 = vunpack.c.l.b16 %v4909
    %v5190 = vunpack.c.h.b16 %v4909
    %v5191 = vunpack.c.l.b16 %v4910
    %v5192 = vunpack.c.h.b16 %v4910
    %v5193 = vunpack.c.l.b16 %v4911
    %v5194 = vunpack.c.h.b16 %v4911
    %v5195 = vunpack.c.l.b16 %v4912
    %v5196 = vunpack.c.h.b16 %v4912
    %v5197 = vunpack.c.l.b16 %v4913
    %v5198 = vunpack.c.h.b16 %v4913
    %v5199 = vunpack.c.l.b16 %v4914
    %v5200 = vunpack.c.h.b16 %v4914
    %v5201 = vunpack.c.l.b16 %v4915
    %v5202 = vunpack.c.h.b16 %v4915
    %v5203 = vunpack.c.l.b16 %v4916
    %v5204 = vunpack.c.h.b16 %v4916
    %v5205 = vunpack.c.l.b16 %v4917
    %v5206 = vunpack.c.h.b16 %v4917
    %v5207 = vunpack.c.l.b16 %v4918
    %v5208 = vunpack.c.h.b16 %v4918
    %v5209 = vunpack.c.l.b16 %v4919
    %v5210 = vunpack.c.h.b16 %v4919
    %v5211 = vunpack.c.l.b16 %v4920
    %v5212 = vunpack.c.h.b16 %v4920
    %v5213 = vunpack.c.l.b16 %v4921
    %v5214 = vunpack.c.h.b16 %v4921
    %v5215 = vunpack.c.l.b16 %v4922
    %v5216 = vunpack.c.h.b16 %v4922
    %v5217 = vunpack.c.l.b16 %v4923
    %v5218 = vunpack.c.h.b16 %v4923
    %v5219 = vunpack.c.l.b16 %v4924
    %v5220 = vunpack.c.h.b16 %v4924
    %v5221 = vunpack.c.l.b16 %v4925
    %v5222 = vunpack.c.h.b16 %v4925
    %v5223 = vunpack.c.l.b16 %v4926
    %v5224 = vunpack.c.h.b16 %v4926
    %v5225 = vunpack.c.l.b16 %v4927
    %v5226 = vunpack.c.h.b16 %v4927
    %v5227 = vunpack.c.l.b16 %v4928
    %v5228 = vunpack.c.h.b16 %v4928
    %v5229 = vunpack.c.l.b16 %v4929
    %v5230 = vunpack.c.h.b16 %v4929
    %v5231 = vunpack.c.l.b16 %v4930
    %v5232 = vunpack.c.h.b16 %v4930
    %v5233 = vunpack.c.l.b16 %v4931
    %v5234 = vunpack.c.h.b16 %v4931
    %v5235 = vunpack.c.l.b16 %v4932
    %v5236 = vunpack.c.h.b16 %v4932
    %v5237 = vunpack.c.l.b16 %v4933
    %v5238 = vunpack.c.h.b16 %v4933
    %v5239 = vunpack.c.l.b16 %v4934
    %v5240 = vunpack.c.h.b16 %v4934
    %v5241 = vunpack.c.l.b16 %v4935
    %v5242 = vunpack.c.h.b16 %v4935
    %v5243 = vunpack.c.l.b16 %v4936
    %v5244 = vunpack.c.h.b16 %v4936
    %v5245 = vunpack.c.l.b16 %v4937
    %v5246 = vunpack.c.h.b16 %v4937
    %v5247 = vunpack.c.l.b16 %v4938
    %v5248 = vunpack.c.h.b16 %v4938
    %v5249 = vunpack.c.l.b16 %v4939
    %v5250 = vunpack.c.h.b16 %v4939
    %v5251 = vunpack.c.l.b16 %v4940
    %v5252 = vunpack.c.h.b16 %v4940
    %v5253 = vunpack.c.l.b16 %v4941
    %v5254 = vunpack.c.h.b16 %v4941
    %v5255 = vunpack.c.l.b16 %v4942
    %v5256 = vunpack.c.h.b16 %v4942
    %v5257 = vunpack.c.l.b16 %v4943
    %v5258 = vunpack.c.h.b16 %v4943
    %v5259 = vunpack.c.l.b16 %v4944
    %v5260 = vunpack.c.h.b16 %v4944
    %v5261 = vunpack.c.l.b16 %v4945
    %v5262 = vunpack.c.h.b16 %v4945
    %v5263 = vunpack.c.l.b16 %v4946
    %v5264 = vunpack.c.h.b16 %v4946
    %v5265 = vunpack.c.l.b16 %v4947
    %v5266 = vunpack.c.h.b16 %v4947
    %v5267 = vunpack.c.l.b16 %v4948
    %v5268 = vunpack.c.h.b16 %v4948
    %v5269 = vunpack.c.l.b16 %v4949
    %v5270 = vunpack.c.h.b16 %v4949
    %v5271 = vunpack.c.l.b16 %v4950
    %v5272 = vunpack.c.h.b16 %v4950
    %v5273 = vunpack.c.l.b16 %v4951
    %v5274 = vunpack.c.h.b16 %v4951
    %v5275 = vunpack.c.l.b16 %v4952
    %v5276 = vunpack.c.h.b16 %v4952
    %v5277 = vunpack.c.l.b16 %v4953
    %v5278 = vunpack.c.h.b16 %v4953
    %v5279 = vunpack.c.l.b16 %v4954
    %v5280 = vunpack.c.h.b16 %v4954
    %v5281 = vunpack.c.l.b16 %v4955
    %v5282 = vunpack.c.h.b16 %v4955
    %v5283 = vunpack.c.l.b16 %v4956
    %v5284 = vunpack.c.h.b16 %v4956
    %v5285 = vunpack.c.l.b16 %v4957
    %v5286 = vunpack.c.h.b16 %v4957
    %v5287 = vunpack.c.l.b16 %v4958
    %v5288 = vunpack.c.h.b16 %v4958
    %v5289 = vunpack.c.l.b16 %v4959
    %v5290 = vunpack.c.h.b16 %v4959
    %v5291 = vunpack.c.l.b16 %v4960
    %v5292 = vunpack.c.h.b16 %v4960
    %v5293 = vunpack.c.l.b16 %v4961
    %v5294 = vunpack.c.h.b16 %v4961
    %v5295 = vunpack.c.l.b16 %v4962
    %v5296 = vunpack.c.h.b16 %v4962
    %v5297 = vunpack.c.l.b16 %v4963
    %v5298 = vunpack.c.h.b16 %v4963
    %v5299 = vunpack.c.l.b16 %v4964
    %v5300 = vunpack.c.h.b16 %v4964
    %v5301 = vunpack.c.l.b16 %v4965
    %v5302 = vunpack.c.h.b16 %v4965
    %v5303 = vunpack.c.l.b16 %v4966
    %v5304 = vunpack.c.h.b16 %v4966
    %v5305 = vunpack.c.l.b16 %v4967
    %v5306 = vunpack.c.h.b16 %v4967
    %v5307 = vunpack.c.l.b16 %v4968
    %v5308 = vunpack.c.h.b16 %v4968
    %v5309 = vunpack.c.l.b16 %v4969
    %v5310 = vunpack.c.h.b16 %v4969
    %v5311 = vunpack.c.l.b16 %v4970
    %v5312 = vunpack.c.h.b16 %v4970
    %v5313 = vunpack.c.l.b16 %v4971
    %v5314 = vunpack.c.h.b16 %v4971
    %v5315 = vunpack.c.l.b16 %v4972
    %v5316 = vunpack.c.h.b16 %v4972
    %v5317 = vunpack.c.l.b16 %v4973
    %v5318 = vunpack.c.h.b16 %v4973
    %v5319 = vunpack.c.l.b16 %v4974
    %v5320 = vunpack.c.h.b16 %v4974
    %v5321 = vunpack.c.l.b16 %v4975
    %v5322 = vunpack.c.h.b16 %v4975
    %v5323 = vunpack.c.l.b16 %v4976
    %v5324 = vunpack.c.h.b16 %v4976
    %v5325 = vunpack.c.l.b16 %v4977
    %v5326 = vunpack.c.h.b16 %v4977
    %v5327 = vunpack.c.l.b16 %v4978
    %v5328 = vunpack.c.h.b16 %v4978
    %v5329 = vunpack.c.l.b16 %v4979
    %v5330 = vunpack.c.h.b16 %v4979
    %v5331 = vunpack.c.l.b16 %v4980
    %v5332 = vunpack.c.h.b16 %v4980
    %v5333 = vunpack.c.l.b16 %v4981
    %v5334 = vunpack.c.h.b16 %v4981
    %v5335 = vunpack.c.l.b16 %v4982
    %v5336 = vunpack.c.h.b16 %v4982
    %v5337 = vunpack.c.l.b16 %v4983
    %v5338 = vunpack.c.h.b16 %v4983
    %v5339 = vunpack.c.l.b16 %v4984
    %v5340 = vunpack.c.h.b16 %v4984
    %v5341 = vunpack.c.l.b16 %v4985
    %v5342 = vunpack.c.h.b16 %v4985
    %v5343 = vunpack.c.l.b16 %v4986
    %v5344 = vunpack.c.h.b16 %v4986
    %v5345 = vunpack.c.l.b16 %v4987
    %v5346 = vunpack.c.h.b16 %v4987
    %v5347 = vunpack.c.l.b16 %v4988
    %v5348 = vunpack.c.h.b16 %v4988
    %v5349 = vunpack.c.l.b16 %v4989
    %v5350 = vunpack.c.h.b16 %v4989
    %v5351 = vunpack.c.l.b16 %v4990
    %v5352 = vunpack.c.h.b16 %v4990
    %v5353 = vunpack.c.l.b16 %v4991
    %v5354 = vunpack.c.h.b16 %v4991
    %v5355 = vunpack.c.l.b16 %v4992
    %v5356 = vunpack.c.h.b16 %v4992
    %v5357 = vunpack.c.l.b16 %v4993
    %v5358 = vunpack.c.h.b16 %v4993
    %v5359 = vunpack.c.l.b16 %v4994
    %v5360 = vunpack.c.h.b16 %v4994
    %v5361 = vunpack.c.l.b16 %v4995
    %v5362 = vunpack.c.h.b16 %v4995
    %v5363 = vunpack.c.l.b16 %v4996
    %v5364 = vunpack.c.h.b16 %v4996
    %v5365 = vunpack.c.l.b16 %v4997
    %v5366 = vunpack.c.h.b16 %v4997
    %v5367 = vunpack.c.l.b16 %v4998
    %v5368 = vunpack.c.h.b16 %v4998
    %v5369 = vunpack.c.l.b16 %v4999
    %v5370 = vunpack.c.h.b16 %v4999
    %v5371 = vunpack.c.l.b16 %v5000
    %v5372 = vunpack.c.h.b16 %v5000
    %v5373 = vunpack.c.l.b16 %v5001
    %v5374 = vunpack.c.h.b16 %v5001
    %v5375 = vunpack.c.l.b16 %v5002
    %v5376 = vunpack.c.h.b16 %v5002
    %v5377 = vunpack.c.l.b16 %v5003
    %v5378 = vunpack.c.h.b16 %v5003
    %v5379 = vunpack.c.l.b16 %v5004
    %v5380 = vunpack.c.h.b16 %v5004
    %v5381 = vunpack.c.l.b16 %v5005
    %v5382 = vunpack.c.h.b16 %v5005
    %v5383 = vunpack.c.l.b16 %v5006
    %v5384 = vunpack.c.h.b16 %v5006
    %v5385 = vunpack.c.l.b16 %v5007
    %v5386 = vunpack.c.h.b16 %v5007
    %v5387 = vunpack.c.l.b16 %v5008
    %v5388 = vunpack.c.h.b16 %v5008
    %v5389 = vunpack.c.l.b16 %v5009
    %v5390 = vunpack.c.h.b16 %v5009
    %v5391 = vunpack.c.l.b16 %v5010
    %v5392 = vunpack.c.h.b16 %v5010
    %v5393 = vunpack.c.l.b16 %v5011
    %v5394 = vunpack.c.h.b16 %v5011
    %v5395 = vunpack.c.l.b16 %v5012
    %v5396 = vunpack.c.h.b16 %v5012
    %v5397 = vpack.c.b16 %v5149, %v5141
    %v5398 = vpack.c.b16 %v5150, %v5142
    %v5399 = vpack.c.b16 %v5151, %v5143
    %v5400 = vpack.c.b16 %v5152, %v5144
    %v5401 = vpack.c.b16 %v5153, %v5145
    %v5402 = vpack.c.b16 %v5154, %v5146
    %v5403 = vpack.c.b16 %v5155, %v5147
    %v5404 = vpack.c.b16 %v5156, %v5148
    %v5405 = vpack.c.b16 %v5165, %v5157
    %v5406 = vpack.c.b16 %v5166, %v5158
    %v5407 = vpack.c.b16 %v5167, %v5159
    %v5408 = vpack.c.b16 %v5168, %v5160
    %v5409 = vpack.c.b16 %v5169, %v5161
    %v5410 = vpack.c.b16 %v5170, %v5162
    %v5411 = vpack.c.b16 %v5171, %v5163
    %v5412 = vpack.c.b16 %v5172, %v5164
    %v5413 = vpack.c.b16 %v5181, %v5173
    %v5414 = vpack.c.b16 %v5182, %v5174
    %v5415 = vpack.c.b16 %v5183, %v5175
    %v5416 = vpack.c.b16 %v5184, %v5176
    %v5417 = vpack.c.b16 %v5185, %v5177
    %v5418 = vpack.c.b16 %v5186, %v5178
    %v5419 = vpack.c.b16 %v5187, %v5179
    %v5420 = vpack.c.b16 %v5188, %v5180
    %v5421 = vpack.c.b16 %v5197, %v5189
    %v5422 = vpack.c.b16 %v5198, %v5190
    %v5423 = vpack.c.b16 %v5199, %v5191
    %v5424 = vpack.c.b16 %v5200, %v5192
    %v5425 = vpack.c.b16 %v5201, %v5193
    %v5426 = vpack.c.b16 %v5202, %v5194
    %v5427 = vpack.c.b16 %v5203, %v5195
    %v5428 = vpack.c.b16 %v5204, %v5196
    %v5429 = vpack.c.b16 %v5213, %v5205
    %v5430 = vpack.c.b16 %v5214, %v5206
    %v5431 = vpack.c.b16 %v5215, %v5207
    %v5432 = vpack.c.b16 %v5216, %v5208
    %v5433 = vpack.c.b16 %v5217, %v5209
    %v5434 = vpack.c.b16 %v5218, %v5210
    %v5435 = vpack.c.b16 %v5219, %v5211
    %v5436 = vpack.c.b16 %v5220, %v5212
    %v5437 = vpack.c.b16 %v5229, %v5221
    %v5438 = vpack.c.b16 %v5230, %v5222
    %v5439 = vpack.c.b16 %v5231, %v5223
    %v5440 = vpack.c.b16 %v5232, %v5224
    %v5441 = vpack.c.b16 %v5233, %v5225
    %v5442 = vpack.c.b16 %v5234, %v5226
    %v5443 = vpack.c.b16 %v5235, %v5227
    %v5444 = vpack.c.b16 %v5236, %v5228
    %v5445 = vpack.c.b16 %v5245, %v5237
    %v5446 = vpack.c.b16 %v5246, %v5238
    %v5447 = vpack.c.b16 %v5247, %v5239
    %v5448 = vpack.c.b16 %v5248, %v5240
    %v5449 = vpack.c.b16 %v5249, %v5241
    %v5450 = vpack.c.b16 %v5250, %v5242
    %v5451 = vpack.c.b16 %v5251, %v5243
    %v5452 = vpack.c.b16 %v5252, %v5244
    %v5453 = vpack.c.b16 %v5261, %v5253
    %v5454 = vpack.c.b16 %v5262, %v5254
    %v5455 = vpack.c.b16 %v5263, %v5255
    %v5456 = vpack.c.b16 %v5264, %v5256
    %v5457 = vpack.c.b16 %v5265, %v5257
    %v5458 = vpack.c.b16 %v5266, %v5258
    %v5459 = vpack.c.b16 %v5267, %v5259
    %v5460 = vpack.c.b16 %v5268, %v5260
    %v5461 = vpack.c.b16 %v5277, %v5269
    %v5462 = vpack.c.b16 %v5278, %v5270
    %v5463 = vpack.c.b16 %v5279, %v5271
    %v5464 = vpack.c.b16 %v5280, %v5272
    %v5465 = vpack.c.b16 %v5281, %v5273
    %v5466 = vpack.c.b16 %v5282, %v5274
    %v5467 = vpack.c.b16 %v5283, %v5275
    %v5468 = vpack.c.b16 %v5284, %v5276
    %v5469 = vpack.c.b16 %v5293, %v5285
    %v5470 = vpack.c.b16 %v5294, %v5286
    %v5471 = vpack.c.b16 %v5295, %v5287
    %v5472 = vpack.c.b16 %v5296, %v5288
    %v5473 = vpack.c.b16 %v5297, %v5289
    %v5474 = vpack.c.b16 %v5298, %v5290
    %v5475 = vpack.c.b16 %v5299, %v5291
    %v5476 = vpack.c.b16 %v5300, %v5292
    %v5477 = vpack.c.b16 %v5309, %v5301
    %v5478 = vpack.c.b16 %v5310, %v5302
    %v5479 = vpack.c.b16 %v5311, %v5303
    %v5480 = vpack.c.b16 %v5312, %v5304
    %v5481 = vpack.c.b16 %v5313, %v5305
    %v5482 = vpack.c.b16 %v5314, %v5306
    %v5483 = vpack.c.b16 %v5315, %v5307
    %v5484 = vpack.c.b16 %v5316, %v5308
    %v5485 = vpack.c.b16 %v5325, %v5317
    %v5486 = vpack.c.b16 %v5326, %v5318
    %v5487 = vpack.c.b16 %v5327, %v5319
    %v5488 = vpack.c.b16 %v5328, %v5320
    %v5489 = vpack.c.b16 %v5329, %v5321
    %v5490 = vpack.c.b16 %v5330, %v5322
    %v5491 = vpack.c.b16 %v5331, %v5323
    %v5492 = vpack.c.b16 %v5332, %v5324
    %v5493 = vpack.c.b16 %v5341, %v5333
    %v5494 = vpack.c.b16 %v5342, %v5334
    %v5495 = vpack.c.b16 %v5343, %v5335
    %v5496 = vpack.c.b16 %v5344, %v5336
    %v5497 = vpack.c.b16 %v5345, %v5337
    %v5498 = vpack.c.b16 %v5346, %v5338
    %v5499 = vpack.c.b16 %v5347, %v5339
    %v5500 = vpack.c.b16 %v5348, %v5340
    %v5501 = vpack.c.b16 %v5357, %v5349
    %v5502 = vpack.c.b16 %v5358, %v5350
    %v5503 = vpack.c.b16 %v5359, %v5351
    %v5504 = vpack.c.b16 %v5360, %v5352
    %v5505 = vpack.c.b16 %v5361, %v5353
    %v5506 = vpack.c.b16 %v5362, %v5354
    %v5507 = vpack.c.b16 %v5363, %v5355
    %v5508 = vpack.c.b16 %v5364, %v5356
    %v5509 = vpack.c.b16 %v5373, %v5365
    %v5510 = vpack.c.b16 %v5374, %v5366
    %v5511 = vpack.c.b16 %v5375, %v5367
    %v5512 = vpack.c.b16 %v5376, %v5368
    %v5513 = vpack.c.b16 %v5377, %v5369
    %v5514 = vpack.c.b16 %v5378, %v5370
    %v5515 = vpack.c.b16 %v5379, %v5371
    %v5516 = vpack.c.b16 %v5380, %v5372
    %v5517 = vpack.c.b16 %v5389, %v5381
    %v5518 = vpack.c.b16 %v5390, %v5382
    %v5519 = vpack.c.b16 %v5391, %v5383
    %v5520 = vpack.c.b16 %v5392, %v5384
    %v5521 = vpack.c.b16 %v5393, %v5385
    %v5522 = vpack.c.b16 %v5394, %v5386
    %v5523 = vpack.c.b16 %v5395, %v5387
    %v5524 = vpack.c.b16 %v5396, %v5388
    %5653 = vmatprep.subr.bf16.mxu0 %v5398
    %5654 = vmatpush1.bf16.msra.mxu0 %v5397
    %5655 = vmatprep.subr.bf16.mxu0 %v5406
    %5656 = vmatpush1.bf16.msra.mxu0 %v5405
    %5657 = vmatprep.subr.bf16.mxu0 %v5414
    %5658 = vmatpush1.bf16.msra.mxu0 %v5413
    %5659 = vmatprep.subr.bf16.mxu0 %v5422
    %5660 = vmatpush1.bf16.msra.mxu0 %v5421
    %5661 = vmatprep.subr.bf16.mxu0 %v5430
    %5662 = vmatpush1.bf16.msra.mxu0 %v5429
    %5663 = vmatprep.subr.bf16.mxu0 %v5438
    %5664 = vmatpush1.bf16.msra.mxu0 %v5437
    %5665 = vmatprep.subr.bf16.mxu0 %v5446
    %5666 = vmatpush1.bf16.msra.mxu0 %v5445
    %5667 = vmatprep.subr.bf16.mxu0 %v5454
    %5668 = vmatpush1.bf16.msra.mxu0 %v5453
    %5669 = vmatprep.subr.bf16.mxu0 %v5462
    %5670 = vmatpush1.bf16.msra.mxu0 %v5461
    %5671 = vmatprep.subr.bf16.mxu0 %v5470
    %5672 = vmatpush1.bf16.msra.mxu0 %v5469
    %5673 = vmatprep.subr.bf16.mxu0 %v5478
    %5674 = vmatpush1.bf16.msra.mxu0 %v5477
    %5675 = vmatprep.subr.bf16.mxu0 %v5486
    %5676 = vmatpush1.bf16.msra.mxu0 %v5485
    %5677 = vmatprep.subr.bf16.mxu0 %v5494
    %5678 = vmatpush1.bf16.msra.mxu0 %v5493
    %5679 = vmatprep.subr.bf16.mxu0 %v5502
    %5680 = vmatpush1.bf16.msra.mxu0 %v5501
    %5681 = vmatprep.subr.bf16.mxu0 %v5510
    %5682 = vmatpush1.bf16.msra.mxu0 %v5509
    %5683 = vmatprep.subr.bf16.mxu0 %v5518
    %5684 = vmatpush1.bf16.msra.mxu0 %v5517
    %5685 = vmatprep.mubr.bf16.mxu0 %v4882
    %5686 = vmatmul.mubr.bf16.gmra.mrb[0].mxu0 %v4879
    %v5687 = vpop.f32.mrb[0].mxu0
    %v5688 = vadd.f32 0.0, %v5687
    %v5689 = vpop.f32.mrb[0].mxu0
    %v5690 = vadd.f32 0.0, %v5689
    %v5691 = vpop.f32.mrb[0].mxu0
    %v5692 = vpop.f32.mrb[0].mxu0
    %5693 = vdwg.mxu0
    %5694 = vmatprep.subr.bf16.mxu0 %v5400
    %5695 = vmatpush1.bf16.msra.mxu0 %v5399
    %5696 = vmatprep.subr.bf16.mxu0 %v5408
    %5697 = vmatpush1.bf16.msra.mxu0 %v5407
    %5698 = vmatprep.subr.bf16.mxu0 %v5416
    %5699 = vmatpush1.bf16.msra.mxu0 %v5415
    %5700 = vmatprep.subr.bf16.mxu0 %v5424
    %5701 = vmatpush1.bf16.msra.mxu0 %v5423
    %5702 = vmatprep.subr.bf16.mxu0 %v5432
    %5703 = vmatpush1.bf16.msra.mxu0 %v5431
    %5704 = vmatprep.subr.bf16.mxu0 %v5440
    %5705 = vmatpush1.bf16.msra.mxu0 %v5439
    %5706 = vmatprep.subr.bf16.mxu0 %v5448
    %5707 = vmatpush1.bf16.msra.mxu0 %v5447
    %5708 = vmatprep.subr.bf16.mxu0 %v5456
    %5709 = vmatpush1.bf16.msra.mxu0 %v5455
    %5710 = vmatprep.subr.bf16.mxu0 %v5464
    %5711 = vmatpush1.bf16.msra.mxu0 %v5463
    %5712 = vmatprep.subr.bf16.mxu0 %v5472
    %5713 = vmatpush1.bf16.msra.mxu0 %v5471
    %5714 = vmatprep.subr.bf16.mxu0 %v5480
    %5715 = vmatpush1.bf16.msra.mxu0 %v5479
    %5716 = vmatprep.subr.bf16.mxu0 %v5488
    %5717 = vmatpush1.bf16.msra.mxu0 %v5487
    %5718 = vmatprep.subr.bf16.mxu0 %v5496
    %5719 = vmatpush1.bf16.msra.mxu0 %v5495
    %5720 = vmatprep.subr.bf16.mxu0 %v5504
    %5721 = vmatpush1.bf16.msra.mxu0 %v5503
    %5722 = vmatprep.subr.bf16.mxu0 %v5512
    %5723 = vmatpush1.bf16.msra.mxu0 %v5511
    %5724 = vmatprep.subr.bf16.mxu0 %v5520
    %5725 = vmatpush1.bf16.msra.mxu0 %v5519
    %5726 = vmatprep.mubr.bf16.mxu0 %v4882
    %5727 = vmatmul.mubr.bf16.gmra.mrb[0].mxu0 %v4879
    %v5728 = vpop.f32.mrb[0].mxu0
    %v5729 = vadd.f32 0.0, %v5728
    %v5730 = vpop.f32.mrb[0].mxu0
    %v5731 = vadd.f32 0.0, %v5730
    %v5732 = vpop.f32.mrb[0].mxu0
    %v5733 = vpop.f32.mrb[0].mxu0
    %5734 = vdwg.mxu0
    %5735 = vmatprep.subr.bf16.mxu0 %v5402
    %5736 = vmatpush1.bf16.msra.mxu0 %v5401
    %5737 = vmatprep.subr.bf16.mxu0 %v5410
    %5738 = vmatpush1.bf16.msra.mxu0 %v5409
    %5739 = vmatprep.subr.bf16.mxu0 %v5418
    %5740 = vmatpush1.bf16.msra.mxu0 %v5417
    %5741 = vmatprep.subr.bf16.mxu0 %v5426
    %5742 = vmatpush1.bf16.msra.mxu0 %v5425
    %5743 = vmatprep.subr.bf16.mxu0 %v5434
    %5744 = vmatpush1.bf16.msra.mxu0 %v5433
    %5745 = vmatprep.subr.bf16.mxu0 %v5442
    %5746 = vmatpush1.bf16.msra.mxu0 %v5441
    %5747 = vmatprep.subr.bf16.mxu0 %v5450
    %5748 = vmatpush1.bf16.msra.mxu0 %v5449
    %5749 = vmatprep.subr.bf16.mxu0 %v5458
    %5750 = vmatpush1.bf16.msra.mxu0 %v5457
    %5751 = vmatprep.subr.bf16.mxu0 %v5466
    %5752 = vmatpush1.bf16.msra.mxu0 %v5465
    %5753 = vmatprep.subr.bf16.mxu0 %v5474
    %5754 = vmatpush1.bf16.msra.mxu0 %v5473
    %5755 = vmatprep.subr.bf16.mxu0 %v5482
    %5756 = vmatpush1.bf16.msra.mxu0 %v5481
    %5757 = vmatprep.subr.bf16.mxu0 %v5490
    %5758 = vmatpush1.bf16.msra.mxu0 %v5489
    %5759 = vmatprep.subr.bf16.mxu0 %v5498
    %5760 = vmatpush1.bf16.msra.mxu0 %v5497
    %5761 = vmatprep.subr.bf16.mxu0 %v5506
    %5762 = vmatpush1.bf16.msra.mxu0 %v5505
    %5763 = vmatprep.subr.bf16.mxu0 %v5514
    %5764 = vmatpush1.bf16.msra.mxu0 %v5513
    %5765 = vmatprep.subr.bf16.mxu0 %v5522
    %5766 = vmatpush1.bf16.msra.mxu0 %v5521
    %5767 = vmatprep.mubr.bf16.mxu0 %v4882
    %5768 = vmatmul.mubr.bf16.gmra.mrb[0].mxu0 %v4879
    %v5769 = vpop.f32.mrb[0].mxu0
    %v5770 = vadd.f32 0.0, %v5769
    %v5771 = vpop.f32.mrb[0].mxu0
    %v5772 = vadd.f32 0.0, %v5771
    %v5773 = vpop.f32.mrb[0].mxu0
    %v5774 = vpop.f32.mrb[0].mxu0
    %5775 = vdwg.mxu0
    %5776 = vmatprep.subr.bf16.mxu0 %v5404
    %5777 = vmatpush1.bf16.msra.mxu0 %v5403
    %5778 = vmatprep.subr.bf16.mxu0 %v5412
    %5779 = vmatpush1.bf16.msra.mxu0 %v5411
    %5780 = vmatprep.subr.bf16.mxu0 %v5420
    %5781 = vmatpush1.bf16.msra.mxu0 %v5419
    %5782 = vmatprep.subr.bf16.mxu0 %v5428
    %5783 = vmatpush1.bf16.msra.mxu0 %v5427
    %5784 = vmatprep.subr.bf16.mxu0 %v5436
    %5785 = vmatpush1.bf16.msra.mxu0 %v5435
    %5786 = vmatprep.subr.bf16.mxu0 %v5444
    %5787 = vmatpush1.bf16.msra.mxu0 %v5443
    %5788 = vmatprep.subr.bf16.mxu0 %v5452
    %5789 = vmatpush1.bf16.msra.mxu0 %v5451
    %5790 = vmatprep.subr.bf16.mxu0 %v5460
    %5791 = vmatpush1.bf16.msra.mxu0 %v5459
    %5792 = vmatprep.subr.bf16.mxu0 %v5468
    %5793 = vmatpush1.bf16.msra.mxu0 %v5467
    %5794 = vmatprep.subr.bf16.mxu0 %v5476
    %5795 = vmatpush1.bf16.msra.mxu0 %v5475
    %5796 = vmatprep.subr.bf16.mxu0 %v5484
    %5797 = vmatpush1.bf16.msra.mxu0 %v5483
    %5798 = vmatprep.subr.bf16.mxu0 %v5492
    %5799 = vmatpush1.bf16.msra.mxu0 %v5491
    %5800 = vmatprep.subr.bf16.mxu0 %v5500
    %5801 = vmatpush1.bf16.msra.mxu0 %v5499
    %5802 = vmatprep.subr.bf16.mxu0 %v5508
    %5803 = vmatpush1.bf16.msra.mxu0 %v5507
    %5804 = vmatprep.subr.bf16.mxu0 %v5516
    %5805 = vmatpush1.bf16.msra.mxu0 %v5515
    %5806 = vmatprep.subr.bf16.mxu0 %v5524
    %5807 = vmatpush1.bf16.msra.mxu0 %v5523
    %5808 = vmatprep.mubr.bf16.mxu0 %v4882
    %5809 = vmatmul.mubr.bf16.gmra.mrb[0].mxu0 %v4879
    %v5810 = vpop.f32.mrb[0].mxu0
    %v5811 = vadd.f32 0.0, %v5810
    %v5812 = vpop.f32.mrb[0].mxu0
    %v5813 = vadd.f32 0.0, %v5812
    %v5814 = vpop.f32.mrb[0].mxu0
    %v5815 = vpop.f32.mrb[0].mxu0
    %5816 = vdwg.mxu0
    %s5817 = scalar_lea.vmem [#allocation2], 64
    %v5818 = vld [vmem:[%s5817] sm:$0xff]
    %v5819 = vld [vmem:[%s5817 + $0x8] sm:$0xff]
    %v5820 = vunpack.c.l.bf16 %v5818
    %v5821 = vunpack.c.h.bf16 %v5818
    %v5822 = vunpack.c.l.bf16 %v5819
    %v5823 = vunpack.c.h.bf16 %v5819
    %v5824 = vadd.f32 %v5688, %v5820
    %v5825 = vadd.f32 %v5690, %v5821
    %v5826 = vadd.f32 %v5729, %v5822
    %v5827 = vadd.f32 %v5731, %v5823
    %s5828 = scalar_lea.vmem [#allocation3], 48
    %v5829 = vld [vmem:[%s5828] sm:$0xff]
    %v5830 = vld [vmem:[%s5828 + $0x8] sm:$0xff]
    %v5831 = vunpack.c.l.bf16 %v5829
    %v5832 = vunpack.c.h.bf16 %v5829
    %v5833 = vunpack.c.l.bf16 %v5830
    %v5834 = vunpack.c.h.bf16 %v5830
    %v5835 = vadd.f32 %v5770, %v5831
    %v5836 = vadd.f32 %v5772, %v5832
    %v5837 = vadd.f32 %v5811, %v5833
    %v5838 = vadd.f32 %v5813, %v5834
    %v5839 = vxor.u32 %v5824, 2147483648
    %v5840 = vmul.f32 %v5839, 1.442695
    %v5841 = vpow.pop %v5840
    %v5842 = vadd.f32 %v5841, 1.0
    %v5843 = vrcp.pop %v5842
    %v5844 = vmul.f32 1.0, %v5843
    %v5845 = vxor.u32 %v5825, 2147483648
    %v5846 = vmul.f32 %v5845, 1.442695
    %v5847 = vpow.pop %v5846
    %v5848 = vadd.f32 %v5847, 1.0
    %v5849 = vrcp.pop %v5848
    %v5850 = vmul.f32 1.0, %v5849
    %v5851 = vtanh.pop %v5826
    %v5852 = vxor.u32 %v5827, 2147483648
    %v5853 = vmul.f32 %v5852, 1.442695
    %v5854 = vpow.pop %v5853
    %v5855 = vadd.f32 %v5854, 1.0
    %v5856 = vrcp.pop %v5855
    %v5857 = vmul.f32 1.0, %v5856
    %v5858 = vmul.f32 %v5850, %v4852
    %v5859 = vmul.f32 %v5844, %v5851
    %v5860 = vadd.f32 %v5858, %v5859
    %v5861 = vtanh.pop %v5860
    %v5862 = vmul.f32 %v5857, %v5861
    %v5863 = vxor.u32 %v5835, 2147483648
    %v5864 = vmul.f32 %v5863, 1.442695
    %v5865 = vpow.pop %v5864
    %v5866 = vadd.f32 %v5865, 1.0
    %v5867 = vrcp.pop %v5866
    %v5868 = vmul.f32 1.0, %v5867
    %v5869 = vxor.u32 %v5836, 2147483648
    %v5870 = vmul.f32 %v5869, 1.442695
    %v5871 = vpow.pop %v5870
    %v5872 = vadd.f32 %v5871, 1.0
    %v5873 = vrcp.pop %v5872
    %v5874 = vmul.f32 1.0, %v5873
    %v5875 = vtanh.pop %v5837
    %v5876 = vxor.u32 %v5838, 2147483648
    %v5877 = vmul.f32 %v5876, 1.442695
    %v5878 = vpow.pop %v5877
    %v5879 = vadd.f32 %v5878, 1.0
    %v5880 = vrcp.pop %v5879
    %v5881 = vmul.f32 1.0, %v5880
    %v5882 = vmul.f32 %v5874, %v4876
    %v5883 = vmul.f32 %v5868, %v5875
    %v5884 = vadd.f32 %v5882, %v5883
    %v5885 = vtanh.pop %v5884
    %v5886 = vmul.f32 %v5881, %v5885
    %v5887 = vpack.c.bf16 %v5862, %v5862
    %s5888 = scalar_lea.vmem [#allocation4], 16
    %5889 = vst [vmem:[%s5888] sm:$0xf] %v5887
    %v5890 = vpack.c.bf16 %v5886, %v5886
    %s5891 = scalar_lea.vmem [#allocation5], 12
    %5892 = vst [vmem:[%s5891] sm:$0xf] %v5890
    %v5893 = vld [vmem:[#allocation11] sm:$0xff]
    %v5894 = vld [vmem:[#allocation11 + $0x8] sm:$0xff]
    %v5895 = vld [vmem:[#allocation11 + $0x10] sm:$0xff]
    %v5896 = vld [vmem:[#allocation11 + $0x18] sm:$0xff]
    %v5897 = vld [vmem:[#allocation11 + $0x20] sm:$0xff]
    %v5898 = vld [vmem:[#allocation11 + $0x28] sm:$0xff]
    %v5899 = vld [vmem:[#allocation11 + $0x30] sm:$0xff]
    %v5900 = vld [vmem:[#allocation11 + $0x38] sm:$0xff]
    %v5901 = vld [vmem:[#allocation11 + $0x40] sm:$0xff]
    %v5902 = vld [vmem:[#allocation11 + $0x48] sm:$0xff]
    %v5903 = vld [vmem:[#allocation11 + $0x50] sm:$0xff]
    %v5904 = vld [vmem:[#allocation11 + $0x58] sm:$0xff]
    %v5905 = vld [vmem:[#allocation11 + $0x60] sm:$0xff]
    %v5906 = vld [vmem:[#allocation11 + $0x68] sm:$0xff]
    %v5907 = vld [vmem:[#allocation11 + $0x70] sm:$0xff]
    %v5908 = vld [vmem:[#allocation11 + $0x78] sm:$0xff]
    %v5909 = vld [vmem:[#allocation11 + $0x80] sm:$0xff]
    %v5910 = vld [vmem:[#allocation11 + $0x88] sm:$0xff]
    %v5911 = vld [vmem:[#allocation11 + $0x90] sm:$0xff]
    %v5912 = vld [vmem:[#allocation11 + $0x98] sm:$0xff]
    %v5913 = vld [vmem:[#allocation11 + $0xa0] sm:$0xff]
    %v5914 = vld [vmem:[#allocation11 + $0xa8] sm:$0xff]
    %v5915 = vld [vmem:[#allocation11 + $0xb0] sm:$0xff]
    %v5916 = vld [vmem:[#allocation11 + $0xb8] sm:$0xff]
    %v5917 = vld [vmem:[#allocation11 + $0xc0] sm:$0xff]
    %v5918 = vld [vmem:[#allocation11 + $0xc8] sm:$0xff]
    %v5919 = vld [vmem:[#allocation11 + $0xd0] sm:$0xff]
    %v5920 = vld [vmem:[#allocation11 + $0xd8] sm:$0xff]
    %v5921 = vld [vmem:[#allocation11 + $0xe0] sm:$0xff]
    %v5922 = vld [vmem:[#allocation11 + $0xe8] sm:$0xff]
    %v5923 = vld [vmem:[#allocation11 + $0xf0] sm:$0xff]
    %v5924 = vld [vmem:[#allocation11 + $0xf8] sm:$0xff]
    %v5925 = vld [vmem:[#allocation11 + $0x100] sm:$0xff]
    %v5926 = vld [vmem:[#allocation11 + $0x108] sm:$0xff]
    %v5927 = vld [vmem:[#allocation11 + $0x110] sm:$0xff]
    %v5928 = vld [vmem:[#allocation11 + $0x118] sm:$0xff]
    %v5929 = vld [vmem:[#allocation11 + $0x120] sm:$0xff]
    %v5930 = vld [vmem:[#allocation11 + $0x128] sm:$0xff]
    %v5931 = vld [vmem:[#allocation11 + $0x130] sm:$0xff]
    %v5932 = vld [vmem:[#allocation11 + $0x138] sm:$0xff]
    %v5933 = vld [vmem:[#allocation11 + $0x140] sm:$0xff]
    %v5934 = vld [vmem:[#allocation11 + $0x148] sm:$0xff]
    %v5935 = vld [vmem:[#allocation11 + $0x150] sm:$0xff]
    %v5936 = vld [vmem:[#allocation11 + $0x158] sm:$0xff]
    %v5937 = vld [vmem:[#allocation11 + $0x160] sm:$0xff]
    %v5938 = vld [vmem:[#allocation11 + $0x168] sm:$0xff]
    %v5939 = vld [vmem:[#allocation11 + $0x170] sm:$0xff]
    %v5940 = vld [vmem:[#allocation11 + $0x178] sm:$0xff]
    %v5941 = vld [vmem:[#allocation11 + $0x180] sm:$0xff]
    %v5942 = vld [vmem:[#allocation11 + $0x188] sm:$0xff]
    %v5943 = vld [vmem:[#allocation11 + $0x190] sm:$0xff]
    %v5944 = vld [vmem:[#allocation11 + $0x198] sm:$0xff]
    %v5945 = vld [vmem:[#allocation11 + $0x1a0] sm:$0xff]
    %v5946 = vld [vmem:[#allocation11 + $0x1a8] sm:$0xff]
    %v5947 = vld [vmem:[#allocation11 + $0x1b0] sm:$0xff]
    %v5948 = vld [vmem:[#allocation11 + $0x1b8] sm:$0xff]
    %v5949 = vld [vmem:[#allocation11 + $0x1c0] sm:$0xff]
    %v5950 = vld [vmem:[#allocation11 + $0x1c8] sm:$0xff]
    %v5951 = vld [vmem:[#allocation11 + $0x1d0] sm:$0xff]
    %v5952 = vld [vmem:[#allocation11 + $0x1d8] sm:$0xff]
    %v5953 = vld [vmem:[#allocation11 + $0x1e0] sm:$0xff]
    %v5954 = vld [vmem:[#allocation11 + $0x1e8] sm:$0xff]
    %v5955 = vld [vmem:[#allocation11 + $0x1f0] sm:$0xff]
    %v5956 = vld [vmem:[#allocation11 + $0x1f8] sm:$0xff]
    %v5957 = vld [vmem:[#allocation11 + $0x200] sm:$0xff]
    %v5958 = vld [vmem:[#allocation11 + $0x208] sm:$0xff]
    %v5959 = vld [vmem:[#allocation11 + $0x210] sm:$0xff]
    %v5960 = vld [vmem:[#allocation11 + $0x218] sm:$0xff]
    %v5961 = vld [vmem:[#allocation11 + $0x220] sm:$0xff]
    %v5962 = vld [vmem:[#allocation11 + $0x228] sm:$0xff]
    %v5963 = vld [vmem:[#allocation11 + $0x230] sm:$0xff]
    %v5964 = vld [vmem:[#allocation11 + $0x238] sm:$0xff]
    %v5965 = vld [vmem:[#allocation11 + $0x240] sm:$0xff]
    %v5966 = vld [vmem:[#allocation11 + $0x248] sm:$0xff]
    %v5967 = vld [vmem:[#allocation11 + $0x250] sm:$0xff]
    %v5968 = vld [vmem:[#allocation11 + $0x258] sm:$0xff]
    %v5969 = vld [vmem:[#allocation11 + $0x260] sm:$0xff]
    %v5970 = vld [vmem:[#allocation11 + $0x268] sm:$0xff]
    %v5971 = vld [vmem:[#allocation11 + $0x270] sm:$0xff]
    %v5972 = vld [vmem:[#allocation11 + $0x278] sm:$0xff]
    %v5973 = vld [vmem:[#allocation11 + $0x280] sm:$0xff]
    %v5974 = vld [vmem:[#allocation11 + $0x288] sm:$0xff]
    %v5975 = vld [vmem:[#allocation11 + $0x290] sm:$0xff]
    %v5976 = vld [vmem:[#allocation11 + $0x298] sm:$0xff]
    %v5977 = vld [vmem:[#allocation11 + $0x2a0] sm:$0xff]
    %v5978 = vld [vmem:[#allocation11 + $0x2a8] sm:$0xff]
    %v5979 = vld [vmem:[#allocation11 + $0x2b0] sm:$0xff]
    %v5980 = vld [vmem:[#allocation11 + $0x2b8] sm:$0xff]
    %v5981 = vld [vmem:[#allocation11 + $0x2c0] sm:$0xff]
    %v5982 = vld [vmem:[#allocation11 + $0x2c8] sm:$0xff]
    %v5983 = vld [vmem:[#allocation11 + $0x2d0] sm:$0xff]
    %v5984 = vld [vmem:[#allocation11 + $0x2d8] sm:$0xff]
    %v5985 = vld [vmem:[#allocation11 + $0x2e0] sm:$0xff]
    %v5986 = vld [vmem:[#allocation11 + $0x2e8] sm:$0xff]
    %v5987 = vld [vmem:[#allocation11 + $0x2f0] sm:$0xff]
    %v5988 = vld [vmem:[#allocation11 + $0x2f8] sm:$0xff]
    %v5989 = vld [vmem:[#allocation11 + $0x300] sm:$0xff]
    %v5990 = vld [vmem:[#allocation11 + $0x308] sm:$0xff]
    %v5991 = vld [vmem:[#allocation11 + $0x310] sm:$0xff]
    %v5992 = vld [vmem:[#allocation11 + $0x318] sm:$0xff]
    %v5993 = vld [vmem:[#allocation11 + $0x320] sm:$0xff]
    %v5994 = vld [vmem:[#allocation11 + $0x328] sm:$0xff]
    %v5995 = vld [vmem:[#allocation11 + $0x330] sm:$0xff]
    %v5996 = vld [vmem:[#allocation11 + $0x338] sm:$0xff]
    %v5997 = vld [vmem:[#allocation11 + $0x340] sm:$0xff]
    %v5998 = vld [vmem:[#allocation11 + $0x348] sm:$0xff]
    %v5999 = vld [vmem:[#allocation11 + $0x350] sm:$0xff]
    %v6000 = vld [vmem:[#allocation11 + $0x358] sm:$0xff]
    %v6001 = vld [vmem:[#allocation11 + $0x360] sm:$0xff]
    %v6002 = vld [vmem:[#allocation11 + $0x368] sm:$0xff]
    %v6003 = vld [vmem:[#allocation11 + $0x370] sm:$0xff]
    %v6004 = vld [vmem:[#allocation11 + $0x378] sm:$0xff]
    %v6005 = vld [vmem:[#allocation11 + $0x380] sm:$0xff]
    %v6006 = vld [vmem:[#allocation11 + $0x388] sm:$0xff]
    %v6007 = vld [vmem:[#allocation11 + $0x390] sm:$0xff]
    %v6008 = vld [vmem:[#allocation11 + $0x398] sm:$0xff]
    %v6009 = vld [vmem:[#allocation11 + $0x3a0] sm:$0xff]
    %v6010 = vld [vmem:[#allocation11 + $0x3a8] sm:$0xff]
    %v6011 = vld [vmem:[#allocation11 + $0x3b0] sm:$0xff]
    %v6012 = vld [vmem:[#allocation11 + $0x3b8] sm:$0xff]
    %v6013 = vld [vmem:[#allocation11 + $0x3c0] sm:$0xff]
    %v6014 = vld [vmem:[#allocation11 + $0x3c8] sm:$0xff]
    %v6015 = vld [vmem:[#allocation11 + $0x3d0] sm:$0xff]
    %v6016 = vld [vmem:[#allocation11 + $0x3d8] sm:$0xff]
    %v6017 = vld [vmem:[#allocation11 + $0x3e0] sm:$0xff]
    %v6018 = vld [vmem:[#allocation11 + $0x3e8] sm:$0xff]
    %v6019 = vld [vmem:[#allocation11 + $0x3f0] sm:$0xff]
    %v6020 = vld [vmem:[#allocation11 + $0x3f8] sm:$0xff]
    %v6149 = vunpack.c.l.b16 %v5893
    %v6150 = vunpack.c.h.b16 %v5893
    %v6151 = vunpack.c.l.b16 %v5894
    %v6152 = vunpack.c.h.b16 %v5894
    %v6153 = vunpack.c.l.b16 %v5895
    %v6154 = vunpack.c.h.b16 %v5895
    %v6155 = vunpack.c.l.b16 %v5896
    %v6156 = vunpack.c.h.b16 %v5896
    %v6157 = vunpack.c.l.b16 %v5897
    %v6158 = vunpack.c.h.b16 %v5897
    %v6159 = vunpack.c.l.b16 %v5898
    %v6160 = vunpack.c.h.b16 %v5898
    %v6161 = vunpack.c.l.b16 %v5899
    %v6162 = vunpack.c.h.b16 %v5899
    %v6163 = vunpack.c.l.b16 %v5900
    %v6164 = vunpack.c.h.b16 %v5900
    %v6165 = vunpack.c.l.b16 %v5901
    %v6166 = vunpack.c.h.b16 %v5901
    %v6167 = vunpack.c.l.b16 %v5902
    %v6168 = vunpack.c.h.b16 %v5902
    %v6169 = vunpack.c.l.b16 %v5903
    %v6170 = vunpack.c.h.b16 %v5903
    %v6171 = vunpack.c.l.b16 %v5904
    %v6172 = vunpack.c.h.b16 %v5904
    %v6173 = vunpack.c.l.b16 %v5905
    %v6174 = vunpack.c.h.b16 %v5905
    %v6175 = vunpack.c.l.b16 %v5906
    %v6176 = vunpack.c.h.b16 %v5906
    %v6177 = vunpack.c.l.b16 %v5907
    %v6178 = vunpack.c.h.b16 %v5907
    %v6179 = vunpack.c.l.b16 %v5908
    %v6180 = vunpack.c.h.b16 %v5908
    %v6181 = vunpack.c.l.b16 %v5909
    %v6182 = vunpack.c.h.b16 %v5909
    %v6183 = vunpack.c.l.b16 %v5910
    %v6184 = vunpack.c.h.b16 %v5910
    %v6185 = vunpack.c.l.b16 %v5911
    %v6186 = vunpack.c.h.b16 %v5911
    %v6187 = vunpack.c.l.b16 %v5912
    %v6188 = vunpack.c.h.b16 %v5912
    %v6189 = vunpack.c.l.b16 %v5913
    %v6190 = vunpack.c.h.b16 %v5913
    %v6191 = vunpack.c.l.b16 %v5914
    %v6192 = vunpack.c.h.b16 %v5914
    %v6193 = vunpack.c.l.b16 %v5915
    %v6194 = vunpack.c.h.b16 %v5915
    %v6195 = vunpack.c.l.b16 %v5916
    %v6196 = vunpack.c.h.b16 %v5916
    %v6197 = vunpack.c.l.b16 %v5917
    %v6198 = vunpack.c.h.b16 %v5917
    %v6199 = vunpack.c.l.b16 %v5918
    %v6200 = vunpack.c.h.b16 %v5918
    %v6201 = vunpack.c.l.b16 %v5919
    %v6202 = vunpack.c.h.b16 %v5919
    %v6203 = vunpack.c.l.b16 %v5920
    %v6204 = vunpack.c.h.b16 %v5920
    %v6205 = vunpack.c.l.b16 %v5921
    %v6206 = vunpack.c.h.b16 %v5921
    %v6207 = vunpack.c.l.b16 %v5922
    %v6208 = vunpack.c.h.b16 %v5922
    %v6209 = vunpack.c.l.b16 %v5923
    %v6210 = vunpack.c.h.b16 %v5923
    %v6211 = vunpack.c.l.b16 %v5924
    %v6212 = vunpack.c.h.b16 %v5924
    %v6213 = vunpack.c.l.b16 %v5925
    %v6214 = vunpack.c.h.b16 %v5925
    %v6215 = vunpack.c.l.b16 %v5926
    %v6216 = vunpack.c.h.b16 %v5926
    %v6217 = vunpack.c.l.b16 %v5927
    %v6218 = vunpack.c.h.b16 %v5927
    %v6219 = vunpack.c.l.b16 %v5928
    %v6220 = vunpack.c.h.b16 %v5928
    %v6221 = vunpack.c.l.b16 %v5929
    %v6222 = vunpack.c.h.b16 %v5929
    %v6223 = vunpack.c.l.b16 %v5930
    %v6224 = vunpack.c.h.b16 %v5930
    %v6225 = vunpack.c.l.b16 %v5931
    %v6226 = vunpack.c.h.b16 %v5931
    %v6227 = vunpack.c.l.b16 %v5932
    %v6228 = vunpack.c.h.b16 %v5932
    %v6229 = vunpack.c.l.b16 %v5933
    %v6230 = vunpack.c.h.b16 %v5933
    %v6231 = vunpack.c.l.b16 %v5934
    %v6232 = vunpack.c.h.b16 %v5934
    %v6233 = vunpack.c.l.b16 %v5935
    %v6234 = vunpack.c.h.b16 %v5935
    %v6235 = vunpack.c.l.b16 %v5936
    %v6236 = vunpack.c.h.b16 %v5936
    %v6237 = vunpack.c.l.b16 %v5937
    %v6238 = vunpack.c.h.b16 %v5937
    %v6239 = vunpack.c.l.b16 %v5938
    %v6240 = vunpack.c.h.b16 %v5938
    %v6241 = vunpack.c.l.b16 %v5939
    %v6242 = vunpack.c.h.b16 %v5939
    %v6243 = vunpack.c.l.b16 %v5940
    %v6244 = vunpack.c.h.b16 %v5940
    %v6245 = vunpack.c.l.b16 %v5941
    %v6246 = vunpack.c.h.b16 %v5941
    %v6247 = vunpack.c.l.b16 %v5942
    %v6248 = vunpack.c.h.b16 %v5942
    %v6249 = vunpack.c.l.b16 %v5943
    %v6250 = vunpack.c.h.b16 %v5943
    %v6251 = vunpack.c.l.b16 %v5944
    %v6252 = vunpack.c.h.b16 %v5944
    %v6253 = vunpack.c.l.b16 %v5945
    %v6254 = vunpack.c.h.b16 %v5945
    %v6255 = vunpack.c.l.b16 %v5946
    %v6256 = vunpack.c.h.b16 %v5946
    %v6257 = vunpack.c.l.b16 %v5947
    %v6258 = vunpack.c.h.b16 %v5947
    %v6259 = vunpack.c.l.b16 %v5948
    %v6260 = vunpack.c.h.b16 %v5948
    %v6261 = vunpack.c.l.b16 %v5949
    %v6262 = vunpack.c.h.b16 %v5949
    %v6263 = vunpack.c.l.b16 %v5950
    %v6264 = vunpack.c.h.b16 %v5950
    %v6265 = vunpack.c.l.b16 %v5951
    %v6266 = vunpack.c.h.b16 %v5951
    %v6267 = vunpack.c.l.b16 %v5952
    %v6268 = vunpack.c.h.b16 %v5952
    %v6269 = vunpack.c.l.b16 %v5953
    %v6270 = vunpack.c.h.b16 %v5953
    %v6271 = vunpack.c.l.b16 %v5954
    %v6272 = vunpack.c.h.b16 %v5954
    %v6273 = vunpack.c.l.b16 %v5955
    %v6274 = vunpack.c.h.b16 %v5955
    %v6275 = vunpack.c.l.b16 %v5956
    %v6276 = vunpack.c.h.b16 %v5956
    %v6277 = vunpack.c.l.b16 %v5957
    %v6278 = vunpack.c.h.b16 %v5957
    %v6279 = vunpack.c.l.b16 %v5958
    %v6280 = vunpack.c.h.b16 %v5958
    %v6281 = vunpack.c.l.b16 %v5959
    %v6282 = vunpack.c.h.b16 %v5959
    %v6283 = vunpack.c.l.b16 %v5960
    %v6284 = vunpack.c.h.b16 %v5960
    %v6285 = vunpack.c.l.b16 %v5961
    %v6286 = vunpack.c.h.b16 %v5961
    %v6287 = vunpack.c.l.b16 %v5962
    %v6288 = vunpack.c.h.b16 %v5962
    %v6289 = vunpack.c.l.b16 %v5963
    %v6290 = vunpack.c.h.b16 %v5963
    %v6291 = vunpack.c.l.b16 %v5964
    %v6292 = vunpack.c.h.b16 %v5964
    %v6293 = vunpack.c.l.b16 %v5965
    %v6294 = vunpack.c.h.b16 %v5965
    %v6295 = vunpack.c.l.b16 %v5966
    %v6296 = vunpack.c.h.b16 %v5966
    %v6297 = vunpack.c.l.b16 %v5967
    %v6298 = vunpack.c.h.b16 %v5967
    %v6299 = vunpack.c.l.b16 %v5968
    %v6300 = vunpack.c.h.b16 %v5968
    %v6301 = vunpack.c.l.b16 %v5969
    %v6302 = vunpack.c.h.b16 %v5969
    %v6303 = vunpack.c.l.b16 %v5970
    %v6304 = vunpack.c.h.b16 %v5970
    %v6305 = vunpack.c.l.b16 %v5971
    %v6306 = vunpack.c.h.b16 %v5971
    %v6307 = vunpack.c.l.b16 %v5972
    %v6308 = vunpack.c.h.b16 %v5972
    %v6309 = vunpack.c.l.b16 %v5973
    %v6310 = vunpack.c.h.b16 %v5973
    %v6311 = vunpack.c.l.b16 %v5974
    %v6312 = vunpack.c.h.b16 %v5974
    %v6313 = vunpack.c.l.b16 %v5975
    %v6314 = vunpack.c.h.b16 %v5975
    %v6315 = vunpack.c.l.b16 %v5976
    %v6316 = vunpack.c.h.b16 %v5976
    %v6317 = vunpack.c.l.b16 %v5977
    %v6318 = vunpack.c.h.b16 %v5977
    %v6319 = vunpack.c.l.b16 %v5978
    %v6320 = vunpack.c.h.b16 %v5978
    %v6321 = vunpack.c.l.b16 %v5979
    %v6322 = vunpack.c.h.b16 %v5979
    %v6323 = vunpack.c.l.b16 %v5980
    %v6324 = vunpack.c.h.b16 %v5980
    %v6325 = vunpack.c.l.b16 %v5981
    %v6326 = vunpack.c.h.b16 %v5981
    %v6327 = vunpack.c.l.b16 %v5982
    %v6328 = vunpack.c.h.b16 %v5982
    %v6329 = vunpack.c.l.b16 %v5983
    %v6330 = vunpack.c.h.b16 %v5983
    %v6331 = vunpack.c.l.b16 %v5984
    %v6332 = vunpack.c.h.b16 %v5984
    %v6333 = vunpack.c.l.b16 %v5985
    %v6334 = vunpack.c.h.b16 %v5985
    %v6335 = vunpack.c.l.b16 %v5986
    %v6336 = vunpack.c.h.b16 %v5986
    %v6337 = vunpack.c.l.b16 %v5987
    %v6338 = vunpack.c.h.b16 %v5987
    %v6339 = vunpack.c.l.b16 %v5988
    %v6340 = vunpack.c.h.b16 %v5988
    %v6341 = vunpack.c.l.b16 %v5989
    %v6342 = vunpack.c.h.b16 %v5989
    %v6343 = vunpack.c.l.b16 %v5990
    %v6344 = vunpack.c.h.b16 %v5990
    %v6345 = vunpack.c.l.b16 %v5991
    %v6346 = vunpack.c.h.b16 %v5991
    %v6347 = vunpack.c.l.b16 %v5992
    %v6348 = vunpack.c.h.b16 %v5992
    %v6349 = vunpack.c.l.b16 %v5993
    %v6350 = vunpack.c.h.b16 %v5993
    %v6351 = vunpack.c.l.b16 %v5994
    %v6352 = vunpack.c.h.b16 %v5994
    %v6353 = vunpack.c.l.b16 %v5995
    %v6354 = vunpack.c.h.b16 %v5995
    %v6355 = vunpack.c.l.b16 %v5996
    %v6356 = vunpack.c.h.b16 %v5996
    %v6357 = vunpack.c.l.b16 %v5997
    %v6358 = vunpack.c.h.b16 %v5997
    %v6359 = vunpack.c.l.b16 %v5998
    %v6360 = vunpack.c.h.b16 %v5998
    %v6361 = vunpack.c.l.b16 %v5999
    %v6362 = vunpack.c.h.b16 %v5999
    %v6363 = vunpack.c.l.b16 %v6000
    %v6364 = vunpack.c.h.b16 %v6000
    %v6365 = vunpack.c.l.b16 %v6001
    %v6366 = vunpack.c.h.b16 %v6001
    %v6367 = vunpack.c.l.b16 %v6002
    %v6368 = vunpack.c.h.b16 %v6002
    %v6369 = vunpack.c.l.b16 %v6003
    %v6370 = vunpack.c.h.b16 %v6003
    %v6371 = vunpack.c.l.b16 %v6004
    %v6372 = vunpack.c.h.b16 %v6004
    %v6373 = vunpack.c.l.b16 %v6005
    %v6374 = vunpack.c.h.b16 %v6005
    %v6375 = vunpack.c.l.b16 %v6006
    %v6376 = vunpack.c.h.b16 %v6006
    %v6377 = vunpack.c.l.b16 %v6007
    %v6378 = vunpack.c.h.b16 %v6007
    %v6379 = vunpack.c.l.b16 %v6008
    %v6380 = vunpack.c.h.b16 %v6008
    %v6381 = vunpack.c.l.b16 %v6009
    %v6382 = vunpack.c.h.b16 %v6009
    %v6383 = vunpack.c.l.b16 %v6010
    %v6384 = vunpack.c.h.b16 %v6010
    %v6385 = vunpack.c.l.b16 %v6011
    %v6386 = vunpack.c.h.b16 %v6011
    %v6387 = vunpack.c.l.b16 %v6012
    %v6388 = vunpack.c.h.b16 %v6012
    %v6389 = vunpack.c.l.b16 %v6013
    %v6390 = vunpack.c.h.b16 %v6013
    %v6391 = vunpack.c.l.b16 %v6014
    %v6392 = vunpack.c.h.b16 %v6014
    %v6393 = vunpack.c.l.b16 %v6015
    %v6394 = vunpack.c.h.b16 %v6015
    %v6395 = vunpack.c.l.b16 %v6016
    %v6396 = vunpack.c.h.b16 %v6016
    %v6397 = vunpack.c.l.b16 %v6017
    %v6398 = vunpack.c.h.b16 %v6017
    %v6399 = vunpack.c.l.b16 %v6018
    %v6400 = vunpack.c.h.b16 %v6018
    %v6401 = vunpack.c.l.b16 %v6019
    %v6402 = vunpack.c.h.b16 %v6019
    %v6403 = vunpack.c.l.b16 %v6020
    %v6404 = vunpack.c.h.b16 %v6020
    %v6405 = vpack.c.b16 %v6157, %v6149
    %v6406 = vpack.c.b16 %v6158, %v6150
    %v6407 = vpack.c.b16 %v6159, %v6151
    %v6408 = vpack.c.b16 %v6160, %v6152
    %v6409 = vpack.c.b16 %v6161, %v6153
    %v6410 = vpack.c.b16 %v6162, %v6154
    %v6411 = vpack.c.b16 %v6163, %v6155
    %v6412 = vpack.c.b16 %v6164, %v6156
    %v6413 = vpack.c.b16 %v6173, %v6165
    %v6414 = vpack.c.b16 %v6174, %v6166
    %v6415 = vpack.c.b16 %v6175, %v6167
    %v6416 = vpack.c.b16 %v6176, %v6168
    %v6417 = vpack.c.b16 %v6177, %v6169
    %v6418 = vpack.c.b16 %v6178, %v6170
    %v6419 = vpack.c.b16 %v6179, %v6171
    %v6420 = vpack.c.b16 %v6180, %v6172
    %v6421 = vpack.c.b16 %v6189, %v6181
    %v6422 = vpack.c.b16 %v6190, %v6182
    %v6423 = vpack.c.b16 %v6191, %v6183
    %v6424 = vpack.c.b16 %v6192, %v6184
    %v6425 = vpack.c.b16 %v6193, %v6185
    %v6426 = vpack.c.b16 %v6194, %v6186
    %v6427 = vpack.c.b16 %v6195, %v6187
    %v6428 = vpack.c.b16 %v6196, %v6188
    %v6429 = vpack.c.b16 %v6205, %v6197
    %v6430 = vpack.c.b16 %v6206, %v6198
    %v6431 = vpack.c.b16 %v6207, %v6199
    %v6432 = vpack.c.b16 %v6208, %v6200
    %v6433 = vpack.c.b16 %v6209, %v6201
    %v6434 = vpack.c.b16 %v6210, %v6202
    %v6435 = vpack.c.b16 %v6211, %v6203
    %v6436 = vpack.c.b16 %v6212, %v6204
    %v6437 = vpack.c.b16 %v6221, %v6213
    %v6438 = vpack.c.b16 %v6222, %v6214
    %v6439 = vpack.c.b16 %v6223, %v6215
    %v6440 = vpack.c.b16 %v6224, %v6216
    %v6441 = vpack.c.b16 %v6225, %v6217
    %v6442 = vpack.c.b16 %v6226, %v6218
    %v6443 = vpack.c.b16 %v6227, %v6219
    %v6444 = vpack.c.b16 %v6228, %v6220
    %v6445 = vpack.c.b16 %v6237, %v6229
    %v6446 = vpack.c.b16 %v6238, %v6230
    %v6447 = vpack.c.b16 %v6239, %v6231
    %v6448 = vpack.c.b16 %v6240, %v6232
    %v6449 = vpack.c.b16 %v6241, %v6233
    %v6450 = vpack.c.b16 %v6242, %v6234
    %v6451 = vpack.c.b16 %v6243, %v6235
    %v6452 = vpack.c.b16 %v6244, %v6236
    %v6453 = vpack.c.b16 %v6253, %v6245
    %v6454 = vpack.c.b16 %v6254, %v6246
    %v6455 = vpack.c.b16 %v6255, %v6247
    %v6456 = vpack.c.b16 %v6256, %v6248
    %v6457 = vpack.c.b16 %v6257, %v6249
    %v6458 = vpack.c.b16 %v6258, %v6250
    %v6459 = vpack.c.b16 %v6259, %v6251
    %v6460 = vpack.c.b16 %v6260, %v6252
    %v6461 = vpack.c.b16 %v6269, %v6261
    %v6462 = vpack.c.b16 %v6270, %v6262
    %v6463 = vpack.c.b16 %v6271, %v6263
    %v6464 = vpack.c.b16 %v6272, %v6264
    %v6465 = vpack.c.b16 %v6273, %v6265
    %v6466 = vpack.c.b16 %v6274, %v6266
    %v6467 = vpack.c.b16 %v6275, %v6267
    %v6468 = vpack.c.b16 %v6276, %v6268
    %v6469 = vpack.c.b16 %v6285, %v6277
    %v6470 = vpack.c.b16 %v6286, %v6278
    %v6471 = vpack.c.b16 %v6287, %v6279
    %v6472 = vpack.c.b16 %v6288, %v6280
    %v6473 = vpack.c.b16 %v6289, %v6281
    %v6474 = vpack.c.b16 %v6290, %v6282
    %v6475 = vpack.c.b16 %v6291, %v6283
    %v6476 = vpack.c.b16 %v6292, %v6284
    %v6477 = vpack.c.b16 %v6301, %v6293
    %v6478 = vpack.c.b16 %v6302, %v6294
    %v6479 = vpack.c.b16 %v6303, %v6295
    %v6480 = vpack.c.b16 %v6304, %v6296
    %v6481 = vpack.c.b16 %v6305, %v6297
    %v6482 = vpack.c.b16 %v6306, %v6298
    %v6483 = vpack.c.b16 %v6307, %v6299
    %v6484 = vpack.c.b16 %v6308, %v6300
    %v6485 = vpack.c.b16 %v6317, %v6309
    %v6486 = vpack.c.b16 %v6318, %v6310
    %v6487 = vpack.c.b16 %v6319, %v6311
    %v6488 = vpack.c.b16 %v6320, %v6312
    %v6489 = vpack.c.b16 %v6321, %v6313
    %v6490 = vpack.c.b16 %v6322, %v6314
    %v6491 = vpack.c.b16 %v6323, %v6315
    %v6492 = vpack.c.b16 %v6324, %v6316
    %v6493 = vpack.c.b16 %v6333, %v6325
    %v6494 = vpack.c.b16 %v6334, %v6326
    %v6495 = vpack.c.b16 %v6335, %v6327
    %v6496 = vpack.c.b16 %v6336, %v6328
    %v6497 = vpack.c.b16 %v6337, %v6329
    %v6498 = vpack.c.b16 %v6338, %v6330
    %v6499 = vpack.c.b16 %v6339, %v6331
    %v6500 = vpack.c.b16 %v6340, %v6332
    %v6501 = vpack.c.b16 %v6349, %v6341
    %v6502 = vpack.c.b16 %v6350, %v6342
    %v6503 = vpack.c.b16 %v6351, %v6343
    %v6504 = vpack.c.b16 %v6352, %v6344
    %v6505 = vpack.c.b16 %v6353, %v6345
    %v6506 = vpack.c.b16 %v6354, %v6346
    %v6507 = vpack.c.b16 %v6355, %v6347
    %v6508 = vpack.c.b16 %v6356, %v6348
    %v6509 = vpack.c.b16 %v6365, %v6357
    %v6510 = vpack.c.b16 %v6366, %v6358
    %v6511 = vpack.c.b16 %v6367, %v6359
    %v6512 = vpack.c.b16 %v6368, %v6360
    %v6513 = vpack.c.b16 %v6369, %v6361
    %v6514 = vpack.c.b16 %v6370, %v6362
    %v6515 = vpack.c.b16 %v6371, %v6363
    %v6516 = vpack.c.b16 %v6372, %v6364
    %v6517 = vpack.c.b16 %v6381, %v6373
    %v6518 = vpack.c.b16 %v6382, %v6374
    %v6519 = vpack.c.b16 %v6383, %v6375
    %v6520 = vpack.c.b16 %v6384, %v6376
    %v6521 = vpack.c.b16 %v6385, %v6377
    %v6522 = vpack.c.b16 %v6386, %v6378
    %v6523 = vpack.c.b16 %v6387, %v6379
    %v6524 = vpack.c.b16 %v6388, %v6380
    %v6525 = vpack.c.b16 %v6397, %v6389
    %v6526 = vpack.c.b16 %v6398, %v6390
    %v6527 = vpack.c.b16 %v6399, %v6391
    %v6528 = vpack.c.b16 %v6400, %v6392
    %v6529 = vpack.c.b16 %v6401, %v6393
    %v6530 = vpack.c.b16 %v6402, %v6394
    %v6531 = vpack.c.b16 %v6403, %v6395
    %v6532 = vpack.c.b16 %v6404, %v6396
    %6661 = vmatprep.subr.bf16.mxu0 %v6406
    %6662 = vmatpush1.bf16.msra.mxu0 %v6405
    %6663 = vmatprep.subr.bf16.mxu0 %v6414
    %6664 = vmatpush1.bf16.msra.mxu0 %v6413
    %6665 = vmatprep.subr.bf16.mxu0 %v6422
    %6666 = vmatpush1.bf16.msra.mxu0 %v6421
    %6667 = vmatprep.subr.bf16.mxu0 %v6430
    %6668 = vmatpush1.bf16.msra.mxu0 %v6429
    %6669 = vmatprep.subr.bf16.mxu0 %v6438
    %6670 = vmatpush1.bf16.msra.mxu0 %v6437
    %6671 = vmatprep.subr.bf16.mxu0 %v6446
    %6672 = vmatpush1.bf16.msra.mxu0 %v6445
    %6673 = vmatprep.subr.bf16.mxu0 %v6454
    %6674 = vmatpush1.bf16.msra.mxu0 %v6453
    %6675 = vmatprep.subr.bf16.mxu0 %v6462
    %6676 = vmatpush1.bf16.msra.mxu0 %v6461
    %6677 = vmatprep.subr.bf16.mxu0 %v6470
    %6678 = vmatpush1.bf16.msra.mxu0 %v6469
    %6679 = vmatprep.subr.bf16.mxu0 %v6478
    %6680 = vmatpush1.bf16.msra.mxu0 %v6477
    %6681 = vmatprep.subr.bf16.mxu0 %v6486
    %6682 = vmatpush1.bf16.msra.mxu0 %v6485
    %6683 = vmatprep.subr.bf16.mxu0 %v6494
    %6684 = vmatpush1.bf16.msra.mxu0 %v6493
    %6685 = vmatprep.subr.bf16.mxu0 %v6502
    %6686 = vmatpush1.bf16.msra.mxu0 %v6501
    %6687 = vmatprep.subr.bf16.mxu0 %v6510
    %6688 = vmatpush1.bf16.msra.mxu0 %v6509
    %6689 = vmatprep.subr.bf16.mxu0 %v6518
    %6690 = vmatpush1.bf16.msra.mxu0 %v6517
    %6691 = vmatprep.subr.bf16.mxu0 %v6526
    %6692 = vmatpush1.bf16.msra.mxu0 %v6525
    %6693 = vmatprep.mubr.bf16.mxu0 %v5890
    %6694 = vmatmul.mubr.bf16.gmra.mrb[0].mxu0 %v5887
    %v6695 = vpop.f32.mrb[0].mxu0
    %v6696 = vadd.f32 0.0, %v6695
    %v6697 = vpop.f32.mrb[0].mxu0
    %v6698 = vadd.f32 0.0, %v6697
    %v6699 = vpop.f32.mrb[0].mxu0
    %v6700 = vpop.f32.mrb[0].mxu0
    %6701 = vdwg.mxu0
    %6702 = vmatprep.subr.bf16.mxu0 %v6408
    %6703 = vmatpush1.bf16.msra.mxu0 %v6407
    %6704 = vmatprep.subr.bf16.mxu0 %v6416
    %6705 = vmatpush1.bf16.msra.mxu0 %v6415
    %6706 = vmatprep.subr.bf16.mxu0 %v6424
    %6707 = vmatpush1.bf16.msra.mxu0 %v6423
    %6708 = vmatprep.subr.bf16.mxu0 %v6432
    %6709 = vmatpush1.bf16.msra.mxu0 %v6431
    %6710 = vmatprep.subr.bf16.mxu0 %v6440
    %6711 = vmatpush1.bf16.msra.mxu0 %v6439
    %6712 = vmatprep.subr.bf16.mxu0 %v6448
    %6713 = vmatpush1.bf16.msra.mxu0 %v6447
    %6714 = vmatprep.subr.bf16.mxu0 %v6456
    %6715 = vmatpush1.bf16.msra.mxu0 %v6455
    %6716 = vmatprep.subr.bf16.mxu0 %v6464
    %6717 = vmatpush1.bf16.msra.mxu0 %v6463
    %6718 = vmatprep.subr.bf16.mxu0 %v6472
    %6719 = vmatpush1.bf16.msra.mxu0 %v6471
    %6720 = vmatprep.subr.bf16.mxu0 %v6480
    %6721 = vmatpush1.bf16.msra.mxu0 %v6479
    %6722 = vmatprep.subr.bf16.mxu0 %v6488
    %6723 = vmatpush1.bf16.msra.mxu0 %v6487
    %6724 = vmatprep.subr.bf16.mxu0 %v6496
    %6725 = vmatpush1.bf16.msra.mxu0 %v6495
    %6726 = vmatprep.subr.bf16.mxu0 %v6504
    %6727 = vmatpush1.bf16.msra.mxu0 %v6503
    %6728 = vmatprep.subr.bf16.mxu0 %v6512
    %6729 = vmatpush1.bf16.msra.mxu0 %v6511
    %6730 = vmatprep.subr.bf16.mxu0 %v6520
    %6731 = vmatpush1.bf16.msra.mxu0 %v6519
    %6732 = vmatprep.subr.bf16.mxu0 %v6528
    %6733 = vmatpush1.bf16.msra.mxu0 %v6527
    %6734 = vmatprep.mubr.bf16.mxu0 %v5890
    %6735 = vmatmul.mubr.bf16.gmra.mrb[0].mxu0 %v5887
    %v6736 = vpop.f32.mrb[0].mxu0
    %v6737 = vadd.f32 0.0, %v6736
    %v6738 = vpop.f32.mrb[0].mxu0
    %v6739 = vadd.f32 0.0, %v6738
    %v6740 = vpop.f32.mrb[0].mxu0
    %v6741 = vpop.f32.mrb[0].mxu0
    %6742 = vdwg.mxu0
    %6743 = vmatprep.subr.bf16.mxu0 %v6410
    %6744 = vmatpush1.bf16.msra.mxu0 %v6409
    %6745 = vmatprep.subr.bf16.mxu0 %v6418
    %6746 = vmatpush1.bf16.msra.mxu0 %v6417
    %6747 = vmatprep.subr.bf16.mxu0 %v6426
    %6748 = vmatpush1.bf16.msra.mxu0 %v6425
    %6749 = vmatprep.subr.bf16.mxu0 %v6434
    %6750 = vmatpush1.bf16.msra.mxu0 %v6433
    %6751 = vmatprep.subr.bf16.mxu0 %v6442
    %6752 = vmatpush1.bf16.msra.mxu0 %v6441
    %6753 = vmatprep.subr.bf16.mxu0 %v6450
    %6754 = vmatpush1.bf16.msra.mxu0 %v6449
    %6755 = vmatprep.subr.bf16.mxu0 %v6458
    %6756 = vmatpush1.bf16.msra.mxu0 %v6457
    %6757 = vmatprep.subr.bf16.mxu0 %v6466
    %6758 = vmatpush1.bf16.msra.mxu0 %v6465
    %6759 = vmatprep.subr.bf16.mxu0 %v6474
    %6760 = vmatpush1.bf16.msra.mxu0 %v6473
    %6761 = vmatprep.subr.bf16.mxu0 %v6482
    %6762 = vmatpush1.bf16.msra.mxu0 %v6481
    %6763 = vmatprep.subr.bf16.mxu0 %v6490
    %6764 = vmatpush1.bf16.msra.mxu0 %v6489
    %6765 = vmatprep.subr.bf16.mxu0 %v6498
    %6766 = vmatpush1.bf16.msra.mxu0 %v6497
    %6767 = vmatprep.subr.bf16.mxu0 %v6506
    %6768 = vmatpush1.bf16.msra.mxu0 %v6505
    %6769 = vmatprep.subr.bf16.mxu0 %v6514
    %6770 = vmatpush1.bf16.msra.mxu0 %v6513
    %6771 = vmatprep.subr.bf16.mxu0 %v6522
    %6772 = vmatpush1.bf16.msra.mxu0 %v6521
    %6773 = vmatprep.subr.bf16.mxu0 %v6530
    %6774 = vmatpush1.bf16.msra.mxu0 %v6529
    %6775 = vmatprep.mubr.bf16.mxu0 %v5890
    %6776 = vmatmul.mubr.bf16.gmra.mrb[0].mxu0 %v5887
    %v6777 = vpop.f32.mrb[0].mxu0
    %v6778 = vadd.f32 0.0, %v6777
    %v6779 = vpop.f32.mrb[0].mxu0
    %v6780 = vadd.f32 0.0, %v6779
    %v6781 = vpop.f32.mrb[0].mxu0
    %v6782 = vpop.f32.mrb[0].mxu0
    %6783 = vdwg.mxu0
    %6784 = vmatprep.subr.bf16.mxu0 %v6412
    %6785 = vmatpush1.bf16.msra.mxu0 %v6411
    %6786 = vmatprep.subr.bf16.mxu0 %v6420
    %6787 = vmatpush1.bf16.msra.mxu0 %v6419
    %6788 = vmatprep.subr.bf16.mxu0 %v6428
    %6789 = vmatpush1.bf16.msra.mxu0 %v6427
    %6790 = vmatprep.subr.bf16.mxu0 %v6436
    %6791 = vmatpush1.bf16.msra.mxu0 %v6435
    %6792 = vmatprep.subr.bf16.mxu0 %v6444
    %6793 = vmatpush1.bf16.msra.mxu0 %v6443
    %6794 = vmatprep.subr.bf16.mxu0 %v6452
    %6795 = vmatpush1.bf16.msra.mxu0 %v6451
    %6796 = vmatprep.subr.bf16.mxu0 %v6460
    %6797 = vmatpush1.bf16.msra.mxu0 %v6459
    %6798 = vmatprep.subr.bf16.mxu0 %v6468
    %6799 = vmatpush1.bf16.msra.mxu0 %v6467
    %6800 = vmatprep.subr.bf16.mxu0 %v6476
    %6801 = vmatpush1.bf16.msra.mxu0 %v6475
    %6802 = vmatprep.subr.bf16.mxu0 %v6484
    %6803 = vmatpush1.bf16.msra.mxu0 %v6483
    %6804 = vmatprep.subr.bf16.mxu0 %v6492
    %6805 = vmatpush1.bf16.msra.mxu0 %v6491
    %6806 = vmatprep.subr.bf16.mxu0 %v6500
    %6807 = vmatpush1.bf16.msra.mxu0 %v6499
    %6808 = vmatprep.subr.bf16.mxu0 %v6508
    %6809 = vmatpush1.bf16.msra.mxu0 %v6507
    %6810 = vmatprep.subr.bf16.mxu0 %v6516
    %6811 = vmatpush1.bf16.msra.mxu0 %v6515
    %6812 = vmatprep.subr.bf16.mxu0 %v6524
    %6813 = vmatpush1.bf16.msra.mxu0 %v6523
    %6814 = vmatprep.subr.bf16.mxu0 %v6532
    %6815 = vmatpush1.bf16.msra.mxu0 %v6531
    %6816 = vmatprep.mubr.bf16.mxu0 %v5890
    %6817 = vmatmul.mubr.bf16.gmra.mrb[0].mxu0 %v5887
    %v6818 = vpop.f32.mrb[0].mxu0
    %v6819 = vadd.f32 0.0, %v6818
    %v6820 = vpop.f32.mrb[0].mxu0
    %v6821 = vadd.f32 0.0, %v6820
    %v6822 = vpop.f32.mrb[0].mxu0
    %v6823 = vpop.f32.mrb[0].mxu0
    %6824 = vdwg.mxu0
    %s6825 = scalar_lea.vmem [#allocation2], 80
    %v6826 = vld [vmem:[%s6825] sm:$0xff]
    %v6827 = vld [vmem:[%s6825 + $0x8] sm:$0xff]
    %v6828 = vunpack.c.l.bf16 %v6826
    %v6829 = vunpack.c.h.bf16 %v6826
    %v6830 = vunpack.c.l.bf16 %v6827
    %v6831 = vunpack.c.h.bf16 %v6827
    %v6832 = vadd.f32 %v6696, %v6828
    %v6833 = vadd.f32 %v6698, %v6829
    %v6834 = vadd.f32 %v6737, %v6830
    %v6835 = vadd.f32 %v6739, %v6831
    %s6836 = scalar_lea.vmem [#allocation3], 32
    %v6837 = vld [vmem:[%s6836] sm:$0xff]
    %v6838 = vld [vmem:[%s6836 + $0x8] sm:$0xff]
    %v6839 = vunpack.c.l.bf16 %v6837
    %v6840 = vunpack.c.h.bf16 %v6837
    %v6841 = vunpack.c.l.bf16 %v6838
    %v6842 = vunpack.c.h.bf16 %v6838
    %v6843 = vadd.f32 %v6778, %v6839
    %v6844 = vadd.f32 %v6780, %v6840
    %v6845 = vadd.f32 %v6819, %v6841
    %v6846 = vadd.f32 %v6821, %v6842
    %v6847 = vxor.u32 %v6832, 2147483648
    %v6848 = vmul.f32 %v6847, 1.442695
    %v6849 = vpow.pop %v6848
    %v6850 = vadd.f32 %v6849, 1.0
    %v6851 = vrcp.pop %v6850
    %v6852 = vmul.f32 1.0, %v6851
    %v6853 = vxor.u32 %v6833, 2147483648
    %v6854 = vmul.f32 %v6853, 1.442695
    %v6855 = vpow.pop %v6854
    %v6856 = vadd.f32 %v6855, 1.0
    %v6857 = vrcp.pop %v6856
    %v6858 = vmul.f32 1.0, %v6857
    %v6859 = vtanh.pop %v6834
    %v6860 = vxor.u32 %v6835, 2147483648
    %v6861 = vmul.f32 %v6860, 1.442695
    %v6862 = vpow.pop %v6861
    %v6863 = vadd.f32 %v6862, 1.0
    %v6864 = vrcp.pop %v6863
    %v6865 = vmul.f32 1.0, %v6864
    %v6866 = vmul.f32 %v6858, %v5860
    %v6867 = vmul.f32 %v6852, %v6859
    %v6868 = vadd.f32 %v6866, %v6867
    %v6869 = vtanh.pop %v6868
    %v6870 = vmul.f32 %v6865, %v6869
    %v6871 = vxor.u32 %v6843, 2147483648
    %v6872 = vmul.f32 %v6871, 1.442695
    %v6873 = vpow.pop %v6872
    %v6874 = vadd.f32 %v6873, 1.0
    %v6875 = vrcp.pop %v6874
    %v6876 = vmul.f32 1.0, %v6875
    %v6877 = vxor.u32 %v6844, 2147483648
    %v6878 = vmul.f32 %v6877, 1.442695
    %v6879 = vpow.pop %v6878
    %v6880 = vadd.f32 %v6879, 1.0
    %v6881 = vrcp.pop %v6880
    %v6882 = vmul.f32 1.0, %v6881
    %v6883 = vtanh.pop %v6845
    %v6884 = vxor.u32 %v6846, 2147483648
    %v6885 = vmul.f32 %v6884, 1.442695
    %v6886 = vpow.pop %v6885
    %v6887 = vadd.f32 %v6886, 1.0
    %v6888 = vrcp.pop %v6887
    %v6889 = vmul.f32 1.0, %v6888
    %v6890 = vmul.f32 %v6882, %v5884
    %v6891 = vmul.f32 %v6876, %v6883
    %v6892 = vadd.f32 %v6890, %v6891
    %v6893 = vtanh.pop %v6892
    %v6894 = vmul.f32 %v6889, %v6893
    %v6895 = vpack.c.bf16 %v6870, %v6870
    %s6896 = scalar_lea.vmem [#allocation4], 20
    %6897 = vst [vmem:[%s6896] sm:$0xf] %v6895
    %v6898 = vpack.c.bf16 %v6894, %v6894
    %s6899 = scalar_lea.vmem [#allocation5], 8
    %6900 = vst [vmem:[%s6899] sm:$0xf] %v6898
    %v6901 = vld [vmem:[#allocation11] sm:$0xff]
    %v6902 = vld [vmem:[#allocation11 + $0x8] sm:$0xff]
    %v6903 = vld [vmem:[#allocation11 + $0x10] sm:$0xff]
    %v6904 = vld [vmem:[#allocation11 + $0x18] sm:$0xff]
    %v6905 = vld [vmem:[#allocation11 + $0x20] sm:$0xff]
    %v6906 = vld [vmem:[#allocation11 + $0x28] sm:$0xff]
    %v6907 = vld [vmem:[#allocation11 + $0x30] sm:$0xff]
    %v6908 = vld [vmem:[#allocation11 + $0x38] sm:$0xff]
    %v6909 = vld [vmem:[#allocation11 + $0x40] sm:$0xff]
    %v6910 = vld [vmem:[#allocation11 + $0x48] sm:$0xff]
    %v6911 = vld [vmem:[#allocation11 + $0x50] sm:$0xff]
    %v6912 = vld [vmem:[#allocation11 + $0x58] sm:$0xff]
    %v6913 = vld [vmem:[#allocation11 + $0x60] sm:$0xff]
    %v6914 = vld [vmem:[#allocation11 + $0x68] sm:$0xff]
    %v6915 = vld [vmem:[#allocation11 + $0x70] sm:$0xff]
    %v6916 = vld [vmem:[#allocation11 + $0x78] sm:$0xff]
    %v6917 = vld [vmem:[#allocation11 + $0x80] sm:$0xff]
    %v6918 = vld [vmem:[#allocation11 + $0x88] sm:$0xff]
    %v6919 = vld [vmem:[#allocation11 + $0x90] sm:$0xff]
    %v6920 = vld [vmem:[#allocation11 + $0x98] sm:$0xff]
    %v6921 = vld [vmem:[#allocation11 + $0xa0] sm:$0xff]
    %v6922 = vld [vmem:[#allocation11 + $0xa8] sm:$0xff]
    %v6923 = vld [vmem:[#allocation11 + $0xb0] sm:$0xff]
    %v6924 = vld [vmem:[#allocation11 + $0xb8] sm:$0xff]
    %v6925 = vld [vmem:[#allocation11 + $0xc0] sm:$0xff]
    %v6926 = vld [vmem:[#allocation11 + $0xc8] sm:$0xff]
    %v6927 = vld [vmem:[#allocation11 + $0xd0] sm:$0xff]
    %v6928 = vld [vmem:[#allocation11 + $0xd8] sm:$0xff]
    %v6929 = vld [vmem:[#allocation11 + $0xe0] sm:$0xff]
    %v6930 = vld [vmem:[#allocation11 + $0xe8] sm:$0xff]
    %v6931 = vld [vmem:[#allocation11 + $0xf0] sm:$0xff]
    %v6932 = vld [vmem:[#allocation11 + $0xf8] sm:$0xff]
    %v6933 = vld [vmem:[#allocation11 + $0x100] sm:$0xff]
    %v6934 = vld [vmem:[#allocation11 + $0x108] sm:$0xff]
    %v6935 = vld [vmem:[#allocation11 + $0x110] sm:$0xff]
    %v6936 = vld [vmem:[#allocation11 + $0x118] sm:$0xff]
    %v6937 = vld [vmem:[#allocation11 + $0x120] sm:$0xff]
    %v6938 = vld [vmem:[#allocation11 + $0x128] sm:$0xff]
    %v6939 = vld [vmem:[#allocation11 + $0x130] sm:$0xff]
    %v6940 = vld [vmem:[#allocation11 + $0x138] sm:$0xff]
    %v6941 = vld [vmem:[#allocation11 + $0x140] sm:$0xff]
    %v6942 = vld [vmem:[#allocation11 + $0x148] sm:$0xff]
    %v6943 = vld [vmem:[#allocation11 + $0x150] sm:$0xff]
    %v6944 = vld [vmem:[#allocation11 + $0x158] sm:$0xff]
    %v6945 = vld [vmem:[#allocation11 + $0x160] sm:$0xff]
    %v6946 = vld [vmem:[#allocation11 + $0x168] sm:$0xff]
    %v6947 = vld [vmem:[#allocation11 + $0x170] sm:$0xff]
    %v6948 = vld [vmem:[#allocation11 + $0x178] sm:$0xff]
    %v6949 = vld [vmem:[#allocation11 + $0x180] sm:$0xff]
    %v6950 = vld [vmem:[#allocation11 + $0x188] sm:$0xff]
    %v6951 = vld [vmem:[#allocation11 + $0x190] sm:$0xff]
    %v6952 = vld [vmem:[#allocation11 + $0x198] sm:$0xff]
    %v6953 = vld [vmem:[#allocation11 + $0x1a0] sm:$0xff]
    %v6954 = vld [vmem:[#allocation11 + $0x1a8] sm:$0xff]
    %v6955 = vld [vmem:[#allocation11 + $0x1b0] sm:$0xff]
    %v6956 = vld [vmem:[#allocation11 + $0x1b8] sm:$0xff]
    %v6957 = vld [vmem:[#allocation11 + $0x1c0] sm:$0xff]
    %v6958 = vld [vmem:[#allocation11 + $0x1c8] sm:$0xff]
    %v6959 = vld [vmem:[#allocation11 + $0x1d0] sm:$0xff]
    %v6960 = vld [vmem:[#allocation11 + $0x1d8] sm:$0xff]
    %v6961 = vld [vmem:[#allocation11 + $0x1e0] sm:$0xff]
    %v6962 = vld [vmem:[#allocation11 + $0x1e8] sm:$0xff]
    %v6963 = vld [vmem:[#allocation11 + $0x1f0] sm:$0xff]
    %v6964 = vld [vmem:[#allocation11 + $0x1f8] sm:$0xff]
    %v6965 = vld [vmem:[#allocation11 + $0x200] sm:$0xff]
    %v6966 = vld [vmem:[#allocation11 + $0x208] sm:$0xff]
    %v6967 = vld [vmem:[#allocation11 + $0x210] sm:$0xff]
    %v6968 = vld [vmem:[#allocation11 + $0x218] sm:$0xff]
    %v6969 = vld [vmem:[#allocation11 + $0x220] sm:$0xff]
    %v6970 = vld [vmem:[#allocation11 + $0x228] sm:$0xff]
    %v6971 = vld [vmem:[#allocation11 + $0x230] sm:$0xff]
    %v6972 = vld [vmem:[#allocation11 + $0x238] sm:$0xff]
    %v6973 = vld [vmem:[#allocation11 + $0x240] sm:$0xff]
    %v6974 = vld [vmem:[#allocation11 + $0x248] sm:$0xff]
    %v6975 = vld [vmem:[#allocation11 + $0x250] sm:$0xff]
    %v6976 = vld [vmem:[#allocation11 + $0x258] sm:$0xff]
    %v6977 = vld [vmem:[#allocation11 + $0x260] sm:$0xff]
    %v6978 = vld [vmem:[#allocation11 + $0x268] sm:$0xff]
    %v6979 = vld [vmem:[#allocation11 + $0x270] sm:$0xff]
    %v6980 = vld [vmem:[#allocation11 + $0x278] sm:$0xff]
    %v6981 = vld [vmem:[#allocation11 + $0x280] sm:$0xff]
    %v6982 = vld [vmem:[#allocation11 + $0x288] sm:$0xff]
    %v6983 = vld [vmem:[#allocation11 + $0x290] sm:$0xff]
    %v6984 = vld [vmem:[#allocation11 + $0x298] sm:$0xff]
    %v6985 = vld [vmem:[#allocation11 + $0x2a0] sm:$0xff]
    %v6986 = vld [vmem:[#allocation11 + $0x2a8] sm:$0xff]
    %v6987 = vld [vmem:[#allocation11 + $0x2b0] sm:$0xff]
    %v6988 = vld [vmem:[#allocation11 + $0x2b8] sm:$0xff]
    %v6989 = vld [vmem:[#allocation11 + $0x2c0] sm:$0xff]
    %v6990 = vld [vmem:[#allocation11 + $0x2c8] sm:$0xff]
    %v6991 = vld [vmem:[#allocation11 + $0x2d0] sm:$0xff]
    %v6992 = vld [vmem:[#allocation11 + $0x2d8] sm:$0xff]
    %v6993 = vld [vmem:[#allocation11 + $0x2e0] sm:$0xff]
    %v6994 = vld [vmem:[#allocation11 + $0x2e8] sm:$0xff]
    %v6995 = vld [vmem:[#allocation11 + $0x2f0] sm:$0xff]
    %v6996 = vld [vmem:[#allocation11 + $0x2f8] sm:$0xff]
    %v6997 = vld [vmem:[#allocation11 + $0x300] sm:$0xff]
    %v6998 = vld [vmem:[#allocation11 + $0x308] sm:$0xff]
    %v6999 = vld [vmem:[#allocation11 + $0x310] sm:$0xff]
    %v7000 = vld [vmem:[#allocation11 + $0x318] sm:$0xff]
    %v7001 = vld [vmem:[#allocation11 + $0x320] sm:$0xff]
    %v7002 = vld [vmem:[#allocation11 + $0x328] sm:$0xff]
    %v7003 = vld [vmem:[#allocation11 + $0x330] sm:$0xff]
    %v7004 = vld [vmem:[#allocation11 + $0x338] sm:$0xff]
    %v7005 = vld [vmem:[#allocation11 + $0x340] sm:$0xff]
    %v7006 = vld [vmem:[#allocation11 + $0x348] sm:$0xff]
    %v7007 = vld [vmem:[#allocation11 + $0x350] sm:$0xff]
    %v7008 = vld [vmem:[#allocation11 + $0x358] sm:$0xff]
    %v7009 = vld [vmem:[#allocation11 + $0x360] sm:$0xff]
    %v7010 = vld [vmem:[#allocation11 + $0x368] sm:$0xff]
    %v7011 = vld [vmem:[#allocation11 + $0x370] sm:$0xff]
    %v7012 = vld [vmem:[#allocation11 + $0x378] sm:$0xff]
    %v7013 = vld [vmem:[#allocation11 + $0x380] sm:$0xff]
    %v7014 = vld [vmem:[#allocation11 + $0x388] sm:$0xff]
    %v7015 = vld [vmem:[#allocation11 + $0x390] sm:$0xff]
    %v7016 = vld [vmem:[#allocation11 + $0x398] sm:$0xff]
    %v7017 = vld [vmem:[#allocation11 + $0x3a0] sm:$0xff]
    %v7018 = vld [vmem:[#allocation11 + $0x3a8] sm:$0xff]
    %v7019 = vld [vmem:[#allocation11 + $0x3b0] sm:$0xff]
    %v7020 = vld [vmem:[#allocation11 + $0x3b8] sm:$0xff]
    %v7021 = vld [vmem:[#allocation11 + $0x3c0] sm:$0xff]
    %v7022 = vld [vmem:[#allocation11 + $0x3c8] sm:$0xff]
    %v7023 = vld [vmem:[#allocation11 + $0x3d0] sm:$0xff]
    %v7024 = vld [vmem:[#allocation11 + $0x3d8] sm:$0xff]
    %v7025 = vld [vmem:[#allocation11 + $0x3e0] sm:$0xff]
    %v7026 = vld [vmem:[#allocation11 + $0x3e8] sm:$0xff]
    %v7027 = vld [vmem:[#allocation11 + $0x3f0] sm:$0xff]
    %v7028 = vld [vmem:[#allocation11 + $0x3f8] sm:$0xff]
    %v7157 = vunpack.c.l.b16 %v6901
    %v7158 = vunpack.c.h.b16 %v6901
    %v7159 = vunpack.c.l.b16 %v6902
    %v7160 = vunpack.c.h.b16 %v6902
    %v7161 = vunpack.c.l.b16 %v6903
    %v7162 = vunpack.c.h.b16 %v6903
    %v7163 = vunpack.c.l.b16 %v6904
    %v7164 = vunpack.c.h.b16 %v6904
    %v7165 = vunpack.c.l.b16 %v6905
    %v7166 = vunpack.c.h.b16 %v6905
    %v7167 = vunpack.c.l.b16 %v6906
    %v7168 = vunpack.c.h.b16 %v6906
    %v7169 = vunpack.c.l.b16 %v6907
    %v7170 = vunpack.c.h.b16 %v6907
    %v7171 = vunpack.c.l.b16 %v6908
    %v7172 = vunpack.c.h.b16 %v6908
    %v7173 = vunpack.c.l.b16 %v6909
    %v7174 = vunpack.c.h.b16 %v6909
    %v7175 = vunpack.c.l.b16 %v6910
    %v7176 = vunpack.c.h.b16 %v6910
    %v7177 = vunpack.c.l.b16 %v6911
    %v7178 = vunpack.c.h.b16 %v6911
    %v7179 = vunpack.c.l.b16 %v6912
    %v7180 = vunpack.c.h.b16 %v6912
    %v7181 = vunpack.c.l.b16 %v6913
    %v7182 = vunpack.c.h.b16 %v6913
    %v7183 = vunpack.c.l.b16 %v6914
    %v7184 = vunpack.c.h.b16 %v6914
    %v7185 = vunpack.c.l.b16 %v6915
    %v7186 = vunpack.c.h.b16 %v6915
    %v7187 = vunpack.c.l.b16 %v6916
    %v7188 = vunpack.c.h.b16 %v6916
    %v7189 = vunpack.c.l.b16 %v6917
    %v7190 = vunpack.c.h.b16 %v6917
    %v7191 = vunpack.c.l.b16 %v6918
    %v7192 = vunpack.c.h.b16 %v6918
    %v7193 = vunpack.c.l.b16 %v6919
    %v7194 = vunpack.c.h.b16 %v6919
    %v7195 = vunpack.c.l.b16 %v6920
    %v7196 = vunpack.c.h.b16 %v6920
    %v7197 = vunpack.c.l.b16 %v6921
    %v7198 = vunpack.c.h.b16 %v6921
    %v7199 = vunpack.c.l.b16 %v6922
    %v7200 = vunpack.c.h.b16 %v6922
    %v7201 = vunpack.c.l.b16 %v6923
    %v7202 = vunpack.c.h.b16 %v6923
    %v7203 = vunpack.c.l.b16 %v6924
    %v7204 = vunpack.c.h.b16 %v6924
    %v7205 = vunpack.c.l.b16 %v6925
    %v7206 = vunpack.c.h.b16 %v6925
    %v7207 = vunpack.c.l.b16 %v6926
    %v7208 = vunpack.c.h.b16 %v6926
    %v7209 = vunpack.c.l.b16 %v6927
    %v7210 = vunpack.c.h.b16 %v6927
    %v7211 = vunpack.c.l.b16 %v6928
    %v7212 = vunpack.c.h.b16 %v6928
    %v7213 = vunpack.c.l.b16 %v6929
    %v7214 = vunpack.c.h.b16 %v6929
    %v7215 = vunpack.c.l.b16 %v6930
    %v7216 = vunpack.c.h.b16 %v6930
    %v7217 = vunpack.c.l.b16 %v6931
    %v7218 = vunpack.c.h.b16 %v6931
    %v7219 = vunpack.c.l.b16 %v6932
    %v7220 = vunpack.c.h.b16 %v6932
    %v7221 = vunpack.c.l.b16 %v6933
    %v7222 = vunpack.c.h.b16 %v6933
    %v7223 = vunpack.c.l.b16 %v6934
    %v7224 = vunpack.c.h.b16 %v6934
    %v7225 = vunpack.c.l.b16 %v6935
    %v7226 = vunpack.c.h.b16 %v6935
    %v7227 = vunpack.c.l.b16 %v6936
    %v7228 = vunpack.c.h.b16 %v6936
    %v7229 = vunpack.c.l.b16 %v6937
    %v7230 = vunpack.c.h.b16 %v6937
    %v7231 = vunpack.c.l.b16 %v6938
    %v7232 = vunpack.c.h.b16 %v6938
    %v7233 = vunpack.c.l.b16 %v6939
    %v7234 = vunpack.c.h.b16 %v6939
    %v7235 = vunpack.c.l.b16 %v6940
    %v7236 = vunpack.c.h.b16 %v6940
    %v7237 = vunpack.c.l.b16 %v6941
    %v7238 = vunpack.c.h.b16 %v6941
    %v7239 = vunpack.c.l.b16 %v6942
    %v7240 = vunpack.c.h.b16 %v6942
    %v7241 = vunpack.c.l.b16 %v6943
    %v7242 = vunpack.c.h.b16 %v6943
    %v7243 = vunpack.c.l.b16 %v6944
    %v7244 = vunpack.c.h.b16 %v6944
    %v7245 = vunpack.c.l.b16 %v6945
    %v7246 = vunpack.c.h.b16 %v6945
    %v7247 = vunpack.c.l.b16 %v6946
    %v7248 = vunpack.c.h.b16 %v6946
    %v7249 = vunpack.c.l.b16 %v6947
    %v7250 = vunpack.c.h.b16 %v6947
    %v7251 = vunpack.c.l.b16 %v6948
    %v7252 = vunpack.c.h.b16 %v6948
    %v7253 = vunpack.c.l.b16 %v6949
    %v7254 = vunpack.c.h.b16 %v6949
    %v7255 = vunpack.c.l.b16 %v6950
    %v7256 = vunpack.c.h.b16 %v6950
    %v7257 = vunpack.c.l.b16 %v6951
    %v7258 = vunpack.c.h.b16 %v6951
    %v7259 = vunpack.c.l.b16 %v6952
    %v7260 = vunpack.c.h.b16 %v6952
    %v7261 = vunpack.c.l.b16 %v6953
    %v7262 = vunpack.c.h.b16 %v6953
    %v7263 = vunpack.c.l.b16 %v6954
    %v7264 = vunpack.c.h.b16 %v6954
    %v7265 = vunpack.c.l.b16 %v6955
    %v7266 = vunpack.c.h.b16 %v6955
    %v7267 = vunpack.c.l.b16 %v6956
    %v7268 = vunpack.c.h.b16 %v6956
    %v7269 = vunpack.c.l.b16 %v6957
    %v7270 = vunpack.c.h.b16 %v6957
    %v7271 = vunpack.c.l.b16 %v6958
    %v7272 = vunpack.c.h.b16 %v6958
    %v7273 = vunpack.c.l.b16 %v6959
    %v7274 = vunpack.c.h.b16 %v6959
    %v7275 = vunpack.c.l.b16 %v6960
    %v7276 = vunpack.c.h.b16 %v6960
    %v7277 = vunpack.c.l.b16 %v6961
    %v7278 = vunpack.c.h.b16 %v6961
    %v7279 = vunpack.c.l.b16 %v6962
    %v7280 = vunpack.c.h.b16 %v6962
    %v7281 = vunpack.c.l.b16 %v6963
    %v7282 = vunpack.c.h.b16 %v6963
    %v7283 = vunpack.c.l.b16 %v6964
    %v7284 = vunpack.c.h.b16 %v6964
    %v7285 = vunpack.c.l.b16 %v6965
    %v7286 = vunpack.c.h.b16 %v6965
    %v7287 = vunpack.c.l.b16 %v6966
    %v7288 = vunpack.c.h.b16 %v6966
    %v7289 = vunpack.c.l.b16 %v6967
    %v7290 = vunpack.c.h.b16 %v6967
    %v7291 = vunpack.c.l.b16 %v6968
    %v7292 = vunpack.c.h.b16 %v6968
    %v7293 = vunpack.c.l.b16 %v6969
    %v7294 = vunpack.c.h.b16 %v6969
    %v7295 = vunpack.c.l.b16 %v6970
    %v7296 = vunpack.c.h.b16 %v6970
    %v7297 = vunpack.c.l.b16 %v6971
    %v7298 = vunpack.c.h.b16 %v6971
    %v7299 = vunpack.c.l.b16 %v6972
    %v7300 = vunpack.c.h.b16 %v6972
    %v7301 = vunpack.c.l.b16 %v6973
    %v7302 = vunpack.c.h.b16 %v6973
    %v7303 = vunpack.c.l.b16 %v6974
    %v7304 = vunpack.c.h.b16 %v6974
    %v7305 = vunpack.c.l.b16 %v6975
    %v7306 = vunpack.c.h.b16 %v6975
    %v7307 = vunpack.c.l.b16 %v6976
    %v7308 = vunpack.c.h.b16 %v6976
    %v7309 = vunpack.c.l.b16 %v6977
    %v7310 = vunpack.c.h.b16 %v6977
    %v7311 = vunpack.c.l.b16 %v6978
    %v7312 = vunpack.c.h.b16 %v6978
    %v7313 = vunpack.c.l.b16 %v6979
    %v7314 = vunpack.c.h.b16 %v6979
    %v7315 = vunpack.c.l.b16 %v6980
    %v7316 = vunpack.c.h.b16 %v6980
    %v7317 = vunpack.c.l.b16 %v6981
    %v7318 = vunpack.c.h.b16 %v6981
    %v7319 = vunpack.c.l.b16 %v6982
    %v7320 = vunpack.c.h.b16 %v6982
    %v7321 = vunpack.c.l.b16 %v6983
    %v7322 = vunpack.c.h.b16 %v6983
    %v7323 = vunpack.c.l.b16 %v6984
    %v7324 = vunpack.c.h.b16 %v6984
    %v7325 = vunpack.c.l.b16 %v6985
    %v7326 = vunpack.c.h.b16 %v6985
    %v7327 = vunpack.c.l.b16 %v6986
    %v7328 = vunpack.c.h.b16 %v6986
    %v7329 = vunpack.c.l.b16 %v6987
    %v7330 = vunpack.c.h.b16 %v6987
    %v7331 = vunpack.c.l.b16 %v6988
    %v7332 = vunpack.c.h.b16 %v6988
    %v7333 = vunpack.c.l.b16 %v6989
    %v7334 = vunpack.c.h.b16 %v6989
    %v7335 = vunpack.c.l.b16 %v6990
    %v7336 = vunpack.c.h.b16 %v6990
    %v7337 = vunpack.c.l.b16 %v6991
    %v7338 = vunpack.c.h.b16 %v6991
    %v7339 = vunpack.c.l.b16 %v6992
    %v7340 = vunpack.c.h.b16 %v6992
    %v7341 = vunpack.c.l.b16 %v6993
    %v7342 = vunpack.c.h.b16 %v6993
    %v7343 = vunpack.c.l.b16 %v6994
    %v7344 = vunpack.c.h.b16 %v6994
    %v7345 = vunpack.c.l.b16 %v6995
    %v7346 = vunpack.c.h.b16 %v6995
    %v7347 = vunpack.c.l.b16 %v6996
    %v7348 = vunpack.c.h.b16 %v6996
    %v7349 = vunpack.c.l.b16 %v6997
    %v7350 = vunpack.c.h.b16 %v6997
    %v7351 = vunpack.c.l.b16 %v6998
    %v7352 = vunpack.c.h.b16 %v6998
    %v7353 = vunpack.c.l.b16 %v6999
    %v7354 = vunpack.c.h.b16 %v6999
    %v7355 = vunpack.c.l.b16 %v7000
    %v7356 = vunpack.c.h.b16 %v7000
    %v7357 = vunpack.c.l.b16 %v7001
    %v7358 = vunpack.c.h.b16 %v7001
    %v7359 = vunpack.c.l.b16 %v7002
    %v7360 = vunpack.c.h.b16 %v7002
    %v7361 = vunpack.c.l.b16 %v7003
    %v7362 = vunpack.c.h.b16 %v7003
    %v7363 = vunpack.c.l.b16 %v7004
    %v7364 = vunpack.c.h.b16 %v7004
    %v7365 = vunpack.c.l.b16 %v7005
    %v7366 = vunpack.c.h.b16 %v7005
    %v7367 = vunpack.c.l.b16 %v7006
    %v7368 = vunpack.c.h.b16 %v7006
    %v7369 = vunpack.c.l.b16 %v7007
    %v7370 = vunpack.c.h.b16 %v7007
    %v7371 = vunpack.c.l.b16 %v7008
    %v7372 = vunpack.c.h.b16 %v7008
    %v7373 = vunpack.c.l.b16 %v7009
    %v7374 = vunpack.c.h.b16 %v7009
    %v7375 = vunpack.c.l.b16 %v7010
    %v7376 = vunpack.c.h.b16 %v7010
    %v7377 = vunpack.c.l.b16 %v7011
    %v7378 = vunpack.c.h.b16 %v7011
    %v7379 = vunpack.c.l.b16 %v7012
    %v7380 = vunpack.c.h.b16 %v7012
    %v7381 = vunpack.c.l.b16 %v7013
    %v7382 = vunpack.c.h.b16 %v7013
    %v7383 = vunpack.c.l.b16 %v7014
    %v7384 = vunpack.c.h.b16 %v7014
    %v7385 = vunpack.c.l.b16 %v7015
    %v7386 = vunpack.c.h.b16 %v7015
    %v7387 = vunpack.c.l.b16 %v7016
    %v7388 = vunpack.c.h.b16 %v7016
    %v7389 = vunpack.c.l.b16 %v7017
    %v7390 = vunpack.c.h.b16 %v7017
    %v7391 = vunpack.c.l.b16 %v7018
    %v7392 = vunpack.c.h.b16 %v7018
    %v7393 = vunpack.c.l.b16 %v7019
    %v7394 = vunpack.c.h.b16 %v7019
    %v7395 = vunpack.c.l.b16 %v7020
    %v7396 = vunpack.c.h.b16 %v7020
    %v7397 = vunpack.c.l.b16 %v7021
    %v7398 = vunpack.c.h.b16 %v7021
    %v7399 = vunpack.c.l.b16 %v7022
    %v7400 = vunpack.c.h.b16 %v7022
    %v7401 = vunpack.c.l.b16 %v7023
    %v7402 = vunpack.c.h.b16 %v7023
    %v7403 = vunpack.c.l.b16 %v7024
    %v7404 = vunpack.c.h.b16 %v7024
    %v7405 = vunpack.c.l.b16 %v7025
    %v7406 = vunpack.c.h.b16 %v7025
    %v7407 = vunpack.c.l.b16 %v7026
    %v7408 = vunpack.c.h.b16 %v7026
    %v7409 = vunpack.c.l.b16 %v7027
    %v7410 = vunpack.c.h.b16 %v7027
    %v7411 = vunpack.c.l.b16 %v7028
    %v7412 = vunpack.c.h.b16 %v7028
    %v7413 = vpack.c.b16 %v7165, %v7157
    %v7414 = vpack.c.b16 %v7166, %v7158
    %v7415 = vpack.c.b16 %v7167, %v7159
    %v7416 = vpack.c.b16 %v7168, %v7160
    %v7417 = vpack.c.b16 %v7169, %v7161
    %v7418 = vpack.c.b16 %v7170, %v7162
    %v7419 = vpack.c.b16 %v7171, %v7163
    %v7420 = vpack.c.b16 %v7172, %v7164
    %v7421 = vpack.c.b16 %v7181, %v7173
    %v7422 = vpack.c.b16 %v7182, %v7174
    %v7423 = vpack.c.b16 %v7183, %v7175
    %v7424 = vpack.c.b16 %v7184, %v7176
    %v7425 = vpack.c.b16 %v7185, %v7177
    %v7426 = vpack.c.b16 %v7186, %v7178
    %v7427 = vpack.c.b16 %v7187, %v7179
    %v7428 = vpack.c.b16 %v7188, %v7180
    %v7429 = vpack.c.b16 %v7197, %v7189
    %v7430 = vpack.c.b16 %v7198, %v7190
    %v7431 = vpack.c.b16 %v7199, %v7191
    %v7432 = vpack.c.b16 %v7200, %v7192
    %v7433 = vpack.c.b16 %v7201, %v7193
    %v7434 = vpack.c.b16 %v7202, %v7194
    %v7435 = vpack.c.b16 %v7203, %v7195
    %v7436 = vpack.c.b16 %v7204, %v7196
    %v7437 = vpack.c.b16 %v7213, %v7205
    %v7438 = vpack.c.b16 %v7214, %v7206
    %v7439 = vpack.c.b16 %v7215, %v7207
    %v7440 = vpack.c.b16 %v7216, %v7208
    %v7441 = vpack.c.b16 %v7217, %v7209
    %v7442 = vpack.c.b16 %v7218, %v7210
    %v7443 = vpack.c.b16 %v7219, %v7211
    %v7444 = vpack.c.b16 %v7220, %v7212
    %v7445 = vpack.c.b16 %v7229, %v7221
    %v7446 = vpack.c.b16 %v7230, %v7222
    %v7447 = vpack.c.b16 %v7231, %v7223
    %v7448 = vpack.c.b16 %v7232, %v7224
    %v7449 = vpack.c.b16 %v7233, %v7225
    %v7450 = vpack.c.b16 %v7234, %v7226
    %v7451 = vpack.c.b16 %v7235, %v7227
    %v7452 = vpack.c.b16 %v7236, %v7228
    %v7453 = vpack.c.b16 %v7245, %v7237
    %v7454 = vpack.c.b16 %v7246, %v7238
    %v7455 = vpack.c.b16 %v7247, %v7239
    %v7456 = vpack.c.b16 %v7248, %v7240
    %v7457 = vpack.c.b16 %v7249, %v7241
    %v7458 = vpack.c.b16 %v7250, %v7242
    %v7459 = vpack.c.b16 %v7251, %v7243
    %v7460 = vpack.c.b16 %v7252, %v7244
    %v7461 = vpack.c.b16 %v7261, %v7253
    %v7462 = vpack.c.b16 %v7262, %v7254
    %v7463 = vpack.c.b16 %v7263, %v7255
    %v7464 = vpack.c.b16 %v7264, %v7256
    %v7465 = vpack.c.b16 %v7265, %v7257
    %v7466 = vpack.c.b16 %v7266, %v7258
    %v7467 = vpack.c.b16 %v7267, %v7259
    %v7468 = vpack.c.b16 %v7268, %v7260
    %v7469 = vpack.c.b16 %v7277, %v7269
    %v7470 = vpack.c.b16 %v7278, %v7270
    %v7471 = vpack.c.b16 %v7279, %v7271
    %v7472 = vpack.c.b16 %v7280, %v7272
    %v7473 = vpack.c.b16 %v7281, %v7273
    %v7474 = vpack.c.b16 %v7282, %v7274
    %v7475 = vpack.c.b16 %v7283, %v7275
    %v7476 = vpack.c.b16 %v7284, %v7276
    %v7477 = vpack.c.b16 %v7293, %v7285
    %v7478 = vpack.c.b16 %v7294, %v7286
    %v7479 = vpack.c.b16 %v7295, %v7287
    %v7480 = vpack.c.b16 %v7296, %v7288
    %v7481 = vpack.c.b16 %v7297, %v7289
    %v7482 = vpack.c.b16 %v7298, %v7290
    %v7483 = vpack.c.b16 %v7299, %v7291
    %v7484 = vpack.c.b16 %v7300, %v7292
    %v7485 = vpack.c.b16 %v7309, %v7301
    %v7486 = vpack.c.b16 %v7310, %v7302
    %v7487 = vpack.c.b16 %v7311, %v7303
    %v7488 = vpack.c.b16 %v7312, %v7304
    %v7489 = vpack.c.b16 %v7313, %v7305
    %v7490 = vpack.c.b16 %v7314, %v7306
    %v7491 = vpack.c.b16 %v7315, %v7307
    %v7492 = vpack.c.b16 %v7316, %v7308
    %v7493 = vpack.c.b16 %v7325, %v7317
    %v7494 = vpack.c.b16 %v7326, %v7318
    %v7495 = vpack.c.b16 %v7327, %v7319
    %v7496 = vpack.c.b16 %v7328, %v7320
    %v7497 = vpack.c.b16 %v7329, %v7321
    %v7498 = vpack.c.b16 %v7330, %v7322
    %v7499 = vpack.c.b16 %v7331, %v7323
    %v7500 = vpack.c.b16 %v7332, %v7324
    %v7501 = vpack.c.b16 %v7341, %v7333
    %v7502 = vpack.c.b16 %v7342, %v7334
    %v7503 = vpack.c.b16 %v7343, %v7335
    %v7504 = vpack.c.b16 %v7344, %v7336
    %v7505 = vpack.c.b16 %v7345, %v7337
    %v7506 = vpack.c.b16 %v7346, %v7338
    %v7507 = vpack.c.b16 %v7347, %v7339
    %v7508 = vpack.c.b16 %v7348, %v7340
    %v7509 = vpack.c.b16 %v7357, %v7349
    %v7510 = vpack.c.b16 %v7358, %v7350
    %v7511 = vpack.c.b16 %v7359, %v7351
    %v7512 = vpack.c.b16 %v7360, %v7352
    %v7513 = vpack.c.b16 %v7361, %v7353
    %v7514 = vpack.c.b16 %v7362, %v7354
    %v7515 = vpack.c.b16 %v7363, %v7355
    %v7516 = vpack.c.b16 %v7364, %v7356
    %v7517 = vpack.c.b16 %v7373, %v7365
    %v7518 = vpack.c.b16 %v7374, %v7366
    %v7519 = vpack.c.b16 %v7375, %v7367
    %v7520 = vpack.c.b16 %v7376, %v7368
    %v7521 = vpack.c.b16 %v7377, %v7369
    %v7522 = vpack.c.b16 %v7378, %v7370
    %v7523 = vpack.c.b16 %v7379, %v7371
    %v7524 = vpack.c.b16 %v7380, %v7372
    %v7525 = vpack.c.b16 %v7389, %v7381
    %v7526 = vpack.c.b16 %v7390, %v7382
    %v7527 = vpack.c.b16 %v7391, %v7383
    %v7528 = vpack.c.b16 %v7392, %v7384
    %v7529 = vpack.c.b16 %v7393, %v7385
    %v7530 = vpack.c.b16 %v7394, %v7386
    %v7531 = vpack.c.b16 %v7395, %v7387
    %v7532 = vpack.c.b16 %v7396, %v7388
    %v7533 = vpack.c.b16 %v7405, %v7397
    %v7534 = vpack.c.b16 %v7406, %v7398
    %v7535 = vpack.c.b16 %v7407, %v7399
    %v7536 = vpack.c.b16 %v7408, %v7400
    %v7537 = vpack.c.b16 %v7409, %v7401
    %v7538 = vpack.c.b16 %v7410, %v7402
    %v7539 = vpack.c.b16 %v7411, %v7403
    %v7540 = vpack.c.b16 %v7412, %v7404
    %7669 = vmatprep.subr.bf16.mxu0 %v7414
    %7670 = vmatpush1.bf16.msra.mxu0 %v7413
    %7671 = vmatprep.subr.bf16.mxu0 %v7422
    %7672 = vmatpush1.bf16.msra.mxu0 %v7421
    %7673 = vmatprep.subr.bf16.mxu0 %v7430
    %7674 = vmatpush1.bf16.msra.mxu0 %v7429
    %7675 = vmatprep.subr.bf16.mxu0 %v7438
    %7676 = vmatpush1.bf16.msra.mxu0 %v7437
    %7677 = vmatprep.subr.bf16.mxu0 %v7446
    %7678 = vmatpush1.bf16.msra.mxu0 %v7445
    %7679 = vmatprep.subr.bf16.mxu0 %v7454
    %7680 = vmatpush1.bf16.msra.mxu0 %v7453
    %7681 = vmatprep.subr.bf16.mxu0 %v7462
    %7682 = vmatpush1.bf16.msra.mxu0 %v7461
    %7683 = vmatprep.subr.bf16.mxu0 %v7470
    %7684 = vmatpush1.bf16.msra.mxu0 %v7469
    %7685 = vmatprep.subr.bf16.mxu0 %v7478
    %7686 = vmatpush1.bf16.msra.mxu0 %v7477
    %7687 = vmatprep.subr.bf16.mxu0 %v7486
    %7688 = vmatpush1.bf16.msra.mxu0 %v7485
    %7689 = vmatprep.subr.bf16.mxu0 %v7494
    %7690 = vmatpush1.bf16.msra.mxu0 %v7493
    %7691 = vmatprep.subr.bf16.mxu0 %v7502
    %7692 = vmatpush1.bf16.msra.mxu0 %v7501
    %7693 = vmatprep.subr.bf16.mxu0 %v7510
    %7694 = vmatpush1.bf16.msra.mxu0 %v7509
    %7695 = vmatprep.subr.bf16.mxu0 %v7518
    %7696 = vmatpush1.bf16.msra.mxu0 %v7517
    %7697 = vmatprep.subr.bf16.mxu0 %v7526
    %7698 = vmatpush1.bf16.msra.mxu0 %v7525
    %7699 = vmatprep.subr.bf16.mxu0 %v7534
    %7700 = vmatpush1.bf16.msra.mxu0 %v7533
    %7701 = vmatprep.mubr.bf16.mxu0 %v6898
    %7702 = vmatmul.mubr.bf16.gmra.mrb[0].mxu0 %v6895
    %v7703 = vpop.f32.mrb[0].mxu0
    %v7704 = vadd.f32 0.0, %v7703
    %v7705 = vpop.f32.mrb[0].mxu0
    %v7706 = vadd.f32 0.0, %v7705
    %v7707 = vpop.f32.mrb[0].mxu0
    %v7708 = vpop.f32.mrb[0].mxu0
    %7709 = vdwg.mxu0
    %7710 = vmatprep.subr.bf16.mxu0 %v7416
    %7711 = vmatpush1.bf16.msra.mxu0 %v7415
    %7712 = vmatprep.subr.bf16.mxu0 %v7424
    %7713 = vmatpush1.bf16.msra.mxu0 %v7423
    %7714 = vmatprep.subr.bf16.mxu0 %v7432
    %7715 = vmatpush1.bf16.msra.mxu0 %v7431
    %7716 = vmatprep.subr.bf16.mxu0 %v7440
    %7717 = vmatpush1.bf16.msra.mxu0 %v7439
    %7718 = vmatprep.subr.bf16.mxu0 %v7448
    %7719 = vmatpush1.bf16.msra.mxu0 %v7447
    %7720 = vmatprep.subr.bf16.mxu0 %v7456
    %7721 = vmatpush1.bf16.msra.mxu0 %v7455
    %7722 = vmatprep.subr.bf16.mxu0 %v7464
    %7723 = vmatpush1.bf16.msra.mxu0 %v7463
    %7724 = vmatprep.subr.bf16.mxu0 %v7472
    %7725 = vmatpush1.bf16.msra.mxu0 %v7471
    %7726 = vmatprep.subr.bf16.mxu0 %v7480
    %7727 = vmatpush1.bf16.msra.mxu0 %v7479
    %7728 = vmatprep.subr.bf16.mxu0 %v7488
    %7729 = vmatpush1.bf16.msra.mxu0 %v7487
    %7730 = vmatprep.subr.bf16.mxu0 %v7496
    %7731 = vmatpush1.bf16.msra.mxu0 %v7495
    %7732 = vmatprep.subr.bf16.mxu0 %v7504
    %7733 = vmatpush1.bf16.msra.mxu0 %v7503
    %7734 = vmatprep.subr.bf16.mxu0 %v7512
    %7735 = vmatpush1.bf16.msra.mxu0 %v7511
    %7736 = vmatprep.subr.bf16.mxu0 %v7520
    %7737 = vmatpush1.bf16.msra.mxu0 %v7519
    %7738 = vmatprep.subr.bf16.mxu0 %v7528
    %7739 = vmatpush1.bf16.msra.mxu0 %v7527
    %7740 = vmatprep.subr.bf16.mxu0 %v7536
    %7741 = vmatpush1.bf16.msra.mxu0 %v7535
    %7742 = vmatprep.mubr.bf16.mxu0 %v6898
    %7743 = vmatmul.mubr.bf16.gmra.mrb[0].mxu0 %v6895
    %v7744 = vpop.f32.mrb[0].mxu0
    %v7745 = vadd.f32 0.0, %v7744
    %v7746 = vpop.f32.mrb[0].mxu0
    %v7747 = vadd.f32 0.0, %v7746
    %v7748 = vpop.f32.mrb[0].mxu0
    %v7749 = vpop.f32.mrb[0].mxu0
    %7750 = vdwg.mxu0
    %7751 = vmatprep.subr.bf16.mxu0 %v7418
    %7752 = vmatpush1.bf16.msra.mxu0 %v7417
    %7753 = vmatprep.subr.bf16.mxu0 %v7426
    %7754 = vmatpush1.bf16.msra.mxu0 %v7425
    %7755 = vmatprep.subr.bf16.mxu0 %v7434
    %7756 = vmatpush1.bf16.msra.mxu0 %v7433
    %7757 = vmatprep.subr.bf16.mxu0 %v7442
    %7758 = vmatpush1.bf16.msra.mxu0 %v7441
    %7759 = vmatprep.subr.bf16.mxu0 %v7450
    %7760 = vmatpush1.bf16.msra.mxu0 %v7449
    %7761 = vmatprep.subr.bf16.mxu0 %v7458
    %7762 = vmatpush1.bf16.msra.mxu0 %v7457
    %7763 = vmatprep.subr.bf16.mxu0 %v7466
    %7764 = vmatpush1.bf16.msra.mxu0 %v7465
    %7765 = vmatprep.subr.bf16.mxu0 %v7474
    %7766 = vmatpush1.bf16.msra.mxu0 %v7473
    %7767 = vmatprep.subr.bf16.mxu0 %v7482
    %7768 = vmatpush1.bf16.msra.mxu0 %v7481
    %7769 = vmatprep.subr.bf16.mxu0 %v7490
    %7770 = vmatpush1.bf16.msra.mxu0 %v7489
    %7771 = vmatprep.subr.bf16.mxu0 %v7498
    %7772 = vmatpush1.bf16.msra.mxu0 %v7497
    %7773 = vmatprep.subr.bf16.mxu0 %v7506
    %7774 = vmatpush1.bf16.msra.mxu0 %v7505
    %7775 = vmatprep.subr.bf16.mxu0 %v7514
    %7776 = vmatpush1.bf16.msra.mxu0 %v7513
    %7777 = vmatprep.subr.bf16.mxu0 %v7522
    %7778 = vmatpush1.bf16.msra.mxu0 %v7521
    %7779 = vmatprep.subr.bf16.mxu0 %v7530
    %7780 = vmatpush1.bf16.msra.mxu0 %v7529
    %7781 = vmatprep.subr.bf16.mxu0 %v7538
    %7782 = vmatpush1.bf16.msra.mxu0 %v7537
    %7783 = vmatprep.mubr.bf16.mxu0 %v6898
    %7784 = vmatmul.mubr.bf16.gmra.mrb[0].mxu0 %v6895
    %v7785 = vpop.f32.mrb[0].mxu0
    %v7786 = vadd.f32 0.0, %v7785
    %v7787 = vpop.f32.mrb[0].mxu0
    %v7788 = vadd.f32 0.0, %v7787
    %v7789 = vpop.f32.mrb[0].mxu0
    %v7790 = vpop.f32.mrb[0].mxu0
    %7791 = vdwg.mxu0
    %7792 = vmatprep.subr.bf16.mxu0 %v7420
    %7793 = vmatpush1.bf16.msra.mxu0 %v7419
    %7794 = vmatprep.subr.bf16.mxu0 %v7428
    %7795 = vmatpush1.bf16.msra.mxu0 %v7427
    %7796 = vmatprep.subr.bf16.mxu0 %v7436
    %7797 = vmatpush1.bf16.msra.mxu0 %v7435
    %7798 = vmatprep.subr.bf16.mxu0 %v7444
    %7799 = vmatpush1.bf16.msra.mxu0 %v7443
    %7800 = vmatprep.subr.bf16.mxu0 %v7452
    %7801 = vmatpush1.bf16.msra.mxu0 %v7451
    %7802 = vmatprep.subr.bf16.mxu0 %v7460
    %7803 = vmatpush1.bf16.msra.mxu0 %v7459
    %7804 = vmatprep.subr.bf16.mxu0 %v7468
    %7805 = vmatpush1.bf16.msra.mxu0 %v7467
    %7806 = vmatprep.subr.bf16.mxu0 %v7476
    %7807 = vmatpush1.bf16.msra.mxu0 %v7475
    %7808 = vmatprep.subr.bf16.mxu0 %v7484
    %7809 = vmatpush1.bf16.msra.mxu0 %v7483
    %7810 = vmatprep.subr.bf16.mxu0 %v7492
    %7811 = vmatpush1.bf16.msra.mxu0 %v7491
    %7812 = vmatprep.subr.bf16.mxu0 %v7500
    %7813 = vmatpush1.bf16.msra.mxu0 %v7499
    %7814 = vmatprep.subr.bf16.mxu0 %v7508
    %7815 = vmatpush1.bf16.msra.mxu0 %v7507
    %7816 = vmatprep.subr.bf16.mxu0 %v7516
    %7817 = vmatpush1.bf16.msra.mxu0 %v7515
    %7818 = vmatprep.subr.bf16.mxu0 %v7524
    %7819 = vmatpush1.bf16.msra.mxu0 %v7523
    %7820 = vmatprep.subr.bf16.mxu0 %v7532
    %7821 = vmatpush1.bf16.msra.mxu0 %v7531
    %7822 = vmatprep.subr.bf16.mxu0 %v7540
    %7823 = vmatpush1.bf16.msra.mxu0 %v7539
    %7824 = vmatprep.mubr.bf16.mxu0 %v6898
    %7825 = vmatmul.mubr.bf16.gmra.mrb[0].mxu0 %v6895
    %v7826 = vpop.f32.mrb[0].mxu0
    %v7827 = vadd.f32 0.0, %v7826
    %v7828 = vpop.f32.mrb[0].mxu0
    %v7829 = vadd.f32 0.0, %v7828
    %v7830 = vpop.f32.mrb[0].mxu0
    %v7831 = vpop.f32.mrb[0].mxu0
    %7832 = vdwg.mxu0
    %s7833 = scalar_lea.vmem [#allocation2], 96
    %v7834 = vld [vmem:[%s7833] sm:$0xff]
    %v7835 = vld [vmem:[%s7833 + $0x8] sm:$0xff]
    %v7836 = vunpack.c.l.bf16 %v7834
    %v7837 = vunpack.c.h.bf16 %v7834
    %v7838 = vunpack.c.l.bf16 %v7835
    %v7839 = vunpack.c.h.bf16 %v7835
    %v7840 = vadd.f32 %v7704, %v7836
    %v7841 = vadd.f32 %v7706, %v7837
    %v7842 = vadd.f32 %v7745, %v7838
    %v7843 = vadd.f32 %v7747, %v7839
    %s7844 = scalar_lea.vmem [#allocation3], 16
    %v7845 = vld [vmem:[%s7844] sm:$0xff]
    %v7846 = vld [vmem:[%s7844 + $0x8] sm:$0xff]
    %v7847 = vunpack.c.l.bf16 %v7845
    %v7848 = vunpack.c.h.bf16 %v7845
    %v7849 = vunpack.c.l.bf16 %v7846
    %v7850 = vunpack.c.h.bf16 %v7846
    %v7851 = vadd.f32 %v7786, %v7847
    %v7852 = vadd.f32 %v7788, %v7848
    %v7853 = vadd.f32 %v7827, %v7849
    %v7854 = vadd.f32 %v7829, %v7850
    %v7855 = vxor.u32 %v7840, 2147483648
    %v7856 = vmul.f32 %v7855, 1.442695
    %v7857 = vpow.pop %v7856
    %v7858 = vadd.f32 %v7857, 1.0
    %v7859 = vrcp.pop %v7858
    %v7860 = vmul.f32 1.0, %v7859
    %v7861 = vxor.u32 %v7841, 2147483648
    %v7862 = vmul.f32 %v7861, 1.442695
    %v7863 = vpow.pop %v7862
    %v7864 = vadd.f32 %v7863, 1.0
    %v7865 = vrcp.pop %v7864
    %v7866 = vmul.f32 1.0, %v7865
    %v7867 = vtanh.pop %v7842
    %v7868 = vxor.u32 %v7843, 2147483648
    %v7869 = vmul.f32 %v7868, 1.442695
    %v7870 = vpow.pop %v7869
    %v7871 = vadd.f32 %v7870, 1.0
    %v7872 = vrcp.pop %v7871
    %v7873 = vmul.f32 1.0, %v7872
    %v7874 = vmul.f32 %v7866, %v6868
    %v7875 = vmul.f32 %v7860, %v7867
    %v7876 = vadd.f32 %v7874, %v7875
    %v7877 = vtanh.pop %v7876
    %v7878 = vmul.f32 %v7873, %v7877
    %v7879 = vxor.u32 %v7851, 2147483648
    %v7880 = vmul.f32 %v7879, 1.442695
    %v7881 = vpow.pop %v7880
    %v7882 = vadd.f32 %v7881, 1.0
    %v7883 = vrcp.pop %v7882
    %v7884 = vmul.f32 1.0, %v7883
    %v7885 = vxor.u32 %v7852, 2147483648
    %v7886 = vmul.f32 %v7885, 1.442695
    %v7887 = vpow.pop %v7886
    %v7888 = vadd.f32 %v7887, 1.0
    %v7889 = vrcp.pop %v7888
    %v7890 = vmul.f32 1.0, %v7889
    %v7891 = vtanh.pop %v7853
    %v7892 = vxor.u32 %v7854, 2147483648
    %v7893 = vmul.f32 %v7892, 1.442695
    %v7894 = vpow.pop %v7893
    %v7895 = vadd.f32 %v7894, 1.0
    %v7896 = vrcp.pop %v7895
    %v7897 = vmul.f32 1.0, %v7896
    %v7898 = vmul.f32 %v7890, %v6892
    %v7899 = vmul.f32 %v7884, %v7891
    %v7900 = vadd.f32 %v7898, %v7899
    %v7901 = vtanh.pop %v7900
    %v7902 = vmul.f32 %v7897, %v7901
    %v7903 = vpack.c.bf16 %v7878, %v7878
    %s7904 = scalar_lea.vmem [#allocation4], 24
    %7905 = vst [vmem:[%s7904] sm:$0xf] %v7903
    %v7906 = vpack.c.bf16 %v7902, %v7902
    %s7907 = scalar_lea.vmem [#allocation5], 4
    %7908 = vst [vmem:[%s7907] sm:$0xf] %v7906
    %v7909 = vld [vmem:[#allocation11] sm:$0xff]
    %v7910 = vld [vmem:[#allocation11 + $0x8] sm:$0xff]
    %v7911 = vld [vmem:[#allocation11 + $0x10] sm:$0xff]
    %v7912 = vld [vmem:[#allocation11 + $0x18] sm:$0xff]
    %v7913 = vld [vmem:[#allocation11 + $0x20] sm:$0xff]
    %v7914 = vld [vmem:[#allocation11 + $0x28] sm:$0xff]
    %v7915 = vld [vmem:[#allocation11 + $0x30] sm:$0xff]
    %v7916 = vld [vmem:[#allocation11 + $0x38] sm:$0xff]
    %v7917 = vld [vmem:[#allocation11 + $0x40] sm:$0xff]
    %v7918 = vld [vmem:[#allocation11 + $0x48] sm:$0xff]
    %v7919 = vld [vmem:[#allocation11 + $0x50] sm:$0xff]
    %v7920 = vld [vmem:[#allocation11 + $0x58] sm:$0xff]
    %v7921 = vld [vmem:[#allocation11 + $0x60] sm:$0xff]
    %v7922 = vld [vmem:[#allocation11 + $0x68] sm:$0xff]
    %v7923 = vld [vmem:[#allocation11 + $0x70] sm:$0xff]
    %v7924 = vld [vmem:[#allocation11 + $0x78] sm:$0xff]
    %v7925 = vld [vmem:[#allocation11 + $0x80] sm:$0xff]
    %v7926 = vld [vmem:[#allocation11 + $0x88] sm:$0xff]
    %v7927 = vld [vmem:[#allocation11 + $0x90] sm:$0xff]
    %v7928 = vld [vmem:[#allocation11 + $0x98] sm:$0xff]
    %v7929 = vld [vmem:[#allocation11 + $0xa0] sm:$0xff]
    %v7930 = vld [vmem:[#allocation11 + $0xa8] sm:$0xff]
    %v7931 = vld [vmem:[#allocation11 + $0xb0] sm:$0xff]
    %v7932 = vld [vmem:[#allocation11 + $0xb8] sm:$0xff]
    %v7933 = vld [vmem:[#allocation11 + $0xc0] sm:$0xff]
    %v7934 = vld [vmem:[#allocation11 + $0xc8] sm:$0xff]
    %v7935 = vld [vmem:[#allocation11 + $0xd0] sm:$0xff]
    %v7936 = vld [vmem:[#allocation11 + $0xd8] sm:$0xff]
    %v7937 = vld [vmem:[#allocation11 + $0xe0] sm:$0xff]
    %v7938 = vld [vmem:[#allocation11 + $0xe8] sm:$0xff]
    %v7939 = vld [vmem:[#allocation11 + $0xf0] sm:$0xff]
    %v7940 = vld [vmem:[#allocation11 + $0xf8] sm:$0xff]
    %v7941 = vld [vmem:[#allocation11 + $0x100] sm:$0xff]
    %v7942 = vld [vmem:[#allocation11 + $0x108] sm:$0xff]
    %v7943 = vld [vmem:[#allocation11 + $0x110] sm:$0xff]
    %v7944 = vld [vmem:[#allocation11 + $0x118] sm:$0xff]
    %v7945 = vld [vmem:[#allocation11 + $0x120] sm:$0xff]
    %v7946 = vld [vmem:[#allocation11 + $0x128] sm:$0xff]
    %v7947 = vld [vmem:[#allocation11 + $0x130] sm:$0xff]
    %v7948 = vld [vmem:[#allocation11 + $0x138] sm:$0xff]
    %v7949 = vld [vmem:[#allocation11 + $0x140] sm:$0xff]
    %v7950 = vld [vmem:[#allocation11 + $0x148] sm:$0xff]
    %v7951 = vld [vmem:[#allocation11 + $0x150] sm:$0xff]
    %v7952 = vld [vmem:[#allocation11 + $0x158] sm:$0xff]
    %v7953 = vld [vmem:[#allocation11 + $0x160] sm:$0xff]
    %v7954 = vld [vmem:[#allocation11 + $0x168] sm:$0xff]
    %v7955 = vld [vmem:[#allocation11 + $0x170] sm:$0xff]
    %v7956 = vld [vmem:[#allocation11 + $0x178] sm:$0xff]
    %v7957 = vld [vmem:[#allocation11 + $0x180] sm:$0xff]
    %v7958 = vld [vmem:[#allocation11 + $0x188] sm:$0xff]
    %v7959 = vld [vmem:[#allocation11 + $0x190] sm:$0xff]
    %v7960 = vld [vmem:[#allocation11 + $0x198] sm:$0xff]
    %v7961 = vld [vmem:[#allocation11 + $0x1a0] sm:$0xff]
    %v7962 = vld [vmem:[#allocation11 + $0x1a8] sm:$0xff]
    %v7963 = vld [vmem:[#allocation11 + $0x1b0] sm:$0xff]
    %v7964 = vld [vmem:[#allocation11 + $0x1b8] sm:$0xff]
    %v7965 = vld [vmem:[#allocation11 + $0x1c0] sm:$0xff]
    %v7966 = vld [vmem:[#allocation11 + $0x1c8] sm:$0xff]
    %v7967 = vld [vmem:[#allocation11 + $0x1d0] sm:$0xff]
    %v7968 = vld [vmem:[#allocation11 + $0x1d8] sm:$0xff]
    %v7969 = vld [vmem:[#allocation11 + $0x1e0] sm:$0xff]
    %v7970 = vld [vmem:[#allocation11 + $0x1e8] sm:$0xff]
    %v7971 = vld [vmem:[#allocation11 + $0x1f0] sm:$0xff]
    %v7972 = vld [vmem:[#allocation11 + $0x1f8] sm:$0xff]
    %v7973 = vld [vmem:[#allocation11 + $0x200] sm:$0xff]
    %v7974 = vld [vmem:[#allocation11 + $0x208] sm:$0xff]
    %v7975 = vld [vmem:[#allocation11 + $0x210] sm:$0xff]
    %v7976 = vld [vmem:[#allocation11 + $0x218] sm:$0xff]
    %v7977 = vld [vmem:[#allocation11 + $0x220] sm:$0xff]
    %v7978 = vld [vmem:[#allocation11 + $0x228] sm:$0xff]
    %v7979 = vld [vmem:[#allocation11 + $0x230] sm:$0xff]
    %v7980 = vld [vmem:[#allocation11 + $0x238] sm:$0xff]
    %v7981 = vld [vmem:[#allocation11 + $0x240] sm:$0xff]
    %v7982 = vld [vmem:[#allocation11 + $0x248] sm:$0xff]
    %v7983 = vld [vmem:[#allocation11 + $0x250] sm:$0xff]
    %v7984 = vld [vmem:[#allocation11 + $0x258] sm:$0xff]
    %v7985 = vld [vmem:[#allocation11 + $0x260] sm:$0xff]
    %v7986 = vld [vmem:[#allocation11 + $0x268] sm:$0xff]
    %v7987 = vld [vmem:[#allocation11 + $0x270] sm:$0xff]
    %v7988 = vld [vmem:[#allocation11 + $0x278] sm:$0xff]
    %v7989 = vld [vmem:[#allocation11 + $0x280] sm:$0xff]
    %v7990 = vld [vmem:[#allocation11 + $0x288] sm:$0xff]
    %v7991 = vld [vmem:[#allocation11 + $0x290] sm:$0xff]
    %v7992 = vld [vmem:[#allocation11 + $0x298] sm:$0xff]
    %v7993 = vld [vmem:[#allocation11 + $0x2a0] sm:$0xff]
    %v7994 = vld [vmem:[#allocation11 + $0x2a8] sm:$0xff]
    %v7995 = vld [vmem:[#allocation11 + $0x2b0] sm:$0xff]
    %v7996 = vld [vmem:[#allocation11 + $0x2b8] sm:$0xff]
    %v7997 = vld [vmem:[#allocation11 + $0x2c0] sm:$0xff]
    %v7998 = vld [vmem:[#allocation11 + $0x2c8] sm:$0xff]
    %v7999 = vld [vmem:[#allocation11 + $0x2d0] sm:$0xff]
    %v8000 = vld [vmem:[#allocation11 + $0x2d8] sm:$0xff]
    %v8001 = vld [vmem:[#allocation11 + $0x2e0] sm:$0xff]
    %v8002 = vld [vmem:[#allocation11 + $0x2e8] sm:$0xff]
    %v8003 = vld [vmem:[#allocation11 + $0x2f0] sm:$0xff]
    %v8004 = vld [vmem:[#allocation11 + $0x2f8] sm:$0xff]
    %v8005 = vld [vmem:[#allocation11 + $0x300] sm:$0xff]
    %v8006 = vld [vmem:[#allocation11 + $0x308] sm:$0xff]
    %v8007 = vld [vmem:[#allocation11 + $0x310] sm:$0xff]
    %v8008 = vld [vmem:[#allocation11 + $0x318] sm:$0xff]
    %v8009 = vld [vmem:[#allocation11 + $0x320] sm:$0xff]
    %v8010 = vld [vmem:[#allocation11 + $0x328] sm:$0xff]
    %v8011 = vld [vmem:[#allocation11 + $0x330] sm:$0xff]
    %v8012 = vld [vmem:[#allocation11 + $0x338] sm:$0xff]
    %v8013 = vld [vmem:[#allocation11 + $0x340] sm:$0xff]
    %v8014 = vld [vmem:[#allocation11 + $0x348] sm:$0xff]
    %v8015 = vld [vmem:[#allocation11 + $0x350] sm:$0xff]
    %v8016 = vld [vmem:[#allocation11 + $0x358] sm:$0xff]
    %v8017 = vld [vmem:[#allocation11 + $0x360] sm:$0xff]
    %v8018 = vld [vmem:[#allocation11 + $0x368] sm:$0xff]
    %v8019 = vld [vmem:[#allocation11 + $0x370] sm:$0xff]
    %v8020 = vld [vmem:[#allocation11 + $0x378] sm:$0xff]
    %v8021 = vld [vmem:[#allocation11 + $0x380] sm:$0xff]
    %v8022 = vld [vmem:[#allocation11 + $0x388] sm:$0xff]
    %v8023 = vld [vmem:[#allocation11 + $0x390] sm:$0xff]
    %v8024 = vld [vmem:[#allocation11 + $0x398] sm:$0xff]
    %v8025 = vld [vmem:[#allocation11 + $0x3a0] sm:$0xff]
    %v8026 = vld [vmem:[#allocation11 + $0x3a8] sm:$0xff]
    %v8027 = vld [vmem:[#allocation11 + $0x3b0] sm:$0xff]
    %v8028 = vld [vmem:[#allocation11 + $0x3b8] sm:$0xff]
    %v8029 = vld [vmem:[#allocation11 + $0x3c0] sm:$0xff]
    %v8030 = vld [vmem:[#allocation11 + $0x3c8] sm:$0xff]
    %v8031 = vld [vmem:[#allocation11 + $0x3d0] sm:$0xff]
    %v8032 = vld [vmem:[#allocation11 + $0x3d8] sm:$0xff]
    %v8033 = vld [vmem:[#allocation11 + $0x3e0] sm:$0xff]
    %v8034 = vld [vmem:[#allocation11 + $0x3e8] sm:$0xff]
    %v8035 = vld [vmem:[#allocation11 + $0x3f0] sm:$0xff]
    %v8036 = vld [vmem:[#allocation11 + $0x3f8] sm:$0xff]
    %v8165 = vunpack.c.l.b16 %v7909
    %v8166 = vunpack.c.h.b16 %v7909
    %v8167 = vunpack.c.l.b16 %v7910
    %v8168 = vunpack.c.h.b16 %v7910
    %v8169 = vunpack.c.l.b16 %v7911
    %v8170 = vunpack.c.h.b16 %v7911
    %v8171 = vunpack.c.l.b16 %v7912
    %v8172 = vunpack.c.h.b16 %v7912
    %v8173 = vunpack.c.l.b16 %v7913
    %v8174 = vunpack.c.h.b16 %v7913
    %v8175 = vunpack.c.l.b16 %v7914
    %v8176 = vunpack.c.h.b16 %v7914
    %v8177 = vunpack.c.l.b16 %v7915
    %v8178 = vunpack.c.h.b16 %v7915
    %v8179 = vunpack.c.l.b16 %v7916
    %v8180 = vunpack.c.h.b16 %v7916
    %v8181 = vunpack.c.l.b16 %v7917
    %v8182 = vunpack.c.h.b16 %v7917
    %v8183 = vunpack.c.l.b16 %v7918
    %v8184 = vunpack.c.h.b16 %v7918
    %v8185 = vunpack.c.l.b16 %v7919
    %v8186 = vunpack.c.h.b16 %v7919
    %v8187 = vunpack.c.l.b16 %v7920
    %v8188 = vunpack.c.h.b16 %v7920
    %v8189 = vunpack.c.l.b16 %v7921
    %v8190 = vunpack.c.h.b16 %v7921
    %v8191 = vunpack.c.l.b16 %v7922
    %v8192 = vunpack.c.h.b16 %v7922
    %v8193 = vunpack.c.l.b16 %v7923
    %v8194 = vunpack.c.h.b16 %v7923
    %v8195 = vunpack.c.l.b16 %v7924
    %v8196 = vunpack.c.h.b16 %v7924
    %v8197 = vunpack.c.l.b16 %v7925
    %v8198 = vunpack.c.h.b16 %v7925
    %v8199 = vunpack.c.l.b16 %v7926
    %v8200 = vunpack.c.h.b16 %v7926
    %v8201 = vunpack.c.l.b16 %v7927
    %v8202 = vunpack.c.h.b16 %v7927
    %v8203 = vunpack.c.l.b16 %v7928
    %v8204 = vunpack.c.h.b16 %v7928
    %v8205 = vunpack.c.l.b16 %v7929
    %v8206 = vunpack.c.h.b16 %v7929
    %v8207 = vunpack.c.l.b16 %v7930
    %v8208 = vunpack.c.h.b16 %v7930
    %v8209 = vunpack.c.l.b16 %v7931
    %v8210 = vunpack.c.h.b16 %v7931
    %v8211 = vunpack.c.l.b16 %v7932
    %v8212 = vunpack.c.h.b16 %v7932
    %v8213 = vunpack.c.l.b16 %v7933
    %v8214 = vunpack.c.h.b16 %v7933
    %v8215 = vunpack.c.l.b16 %v7934
    %v8216 = vunpack.c.h.b16 %v7934
    %v8217 = vunpack.c.l.b16 %v7935
    %v8218 = vunpack.c.h.b16 %v7935
    %v8219 = vunpack.c.l.b16 %v7936
    %v8220 = vunpack.c.h.b16 %v7936
    %v8221 = vunpack.c.l.b16 %v7937
    %v8222 = vunpack.c.h.b16 %v7937
    %v8223 = vunpack.c.l.b16 %v7938
    %v8224 = vunpack.c.h.b16 %v7938
    %v8225 = vunpack.c.l.b16 %v7939
    %v8226 = vunpack.c.h.b16 %v7939
    %v8227 = vunpack.c.l.b16 %v7940
    %v8228 = vunpack.c.h.b16 %v7940
    %v8229 = vunpack.c.l.b16 %v7941
    %v8230 = vunpack.c.h.b16 %v7941
    %v8231 = vunpack.c.l.b16 %v7942
    %v8232 = vunpack.c.h.b16 %v7942
    %v8233 = vunpack.c.l.b16 %v7943
    %v8234 = vunpack.c.h.b16 %v7943
    %v8235 = vunpack.c.l.b16 %v7944
    %v8236 = vunpack.c.h.b16 %v7944
    %v8237 = vunpack.c.l.b16 %v7945
    %v8238 = vunpack.c.h.b16 %v7945
    %v8239 = vunpack.c.l.b16 %v7946
    %v8240 = vunpack.c.h.b16 %v7946
    %v8241 = vunpack.c.l.b16 %v7947
    %v8242 = vunpack.c.h.b16 %v7947
    %v8243 = vunpack.c.l.b16 %v7948
    %v8244 = vunpack.c.h.b16 %v7948
    %v8245 = vunpack.c.l.b16 %v7949
    %v8246 = vunpack.c.h.b16 %v7949
    %v8247 = vunpack.c.l.b16 %v7950
    %v8248 = vunpack.c.h.b16 %v7950
    %v8249 = vunpack.c.l.b16 %v7951
    %v8250 = vunpack.c.h.b16 %v7951
    %v8251 = vunpack.c.l.b16 %v7952
    %v8252 = vunpack.c.h.b16 %v7952
    %v8253 = vunpack.c.l.b16 %v7953
    %v8254 = vunpack.c.h.b16 %v7953
    %v8255 = vunpack.c.l.b16 %v7954
    %v8256 = vunpack.c.h.b16 %v7954
    %v8257 = vunpack.c.l.b16 %v7955
    %v8258 = vunpack.c.h.b16 %v7955
    %v8259 = vunpack.c.l.b16 %v7956
    %v8260 = vunpack.c.h.b16 %v7956
    %v8261 = vunpack.c.l.b16 %v7957
    %v8262 = vunpack.c.h.b16 %v7957
    %v8263 = vunpack.c.l.b16 %v7958
    %v8264 = vunpack.c.h.b16 %v7958
    %v8265 = vunpack.c.l.b16 %v7959
    %v8266 = vunpack.c.h.b16 %v7959
    %v8267 = vunpack.c.l.b16 %v7960
    %v8268 = vunpack.c.h.b16 %v7960
    %v8269 = vunpack.c.l.b16 %v7961
    %v8270 = vunpack.c.h.b16 %v7961
    %v8271 = vunpack.c.l.b16 %v7962
    %v8272 = vunpack.c.h.b16 %v7962
    %v8273 = vunpack.c.l.b16 %v7963
    %v8274 = vunpack.c.h.b16 %v7963
    %v8275 = vunpack.c.l.b16 %v7964
    %v8276 = vunpack.c.h.b16 %v7964
    %v8277 = vunpack.c.l.b16 %v7965
    %v8278 = vunpack.c.h.b16 %v7965
    %v8279 = vunpack.c.l.b16 %v7966
    %v8280 = vunpack.c.h.b16 %v7966
    %v8281 = vunpack.c.l.b16 %v7967
    %v8282 = vunpack.c.h.b16 %v7967
    %v8283 = vunpack.c.l.b16 %v7968
    %v8284 = vunpack.c.h.b16 %v7968
    %v8285 = vunpack.c.l.b16 %v7969
    %v8286 = vunpack.c.h.b16 %v7969
    %v8287 = vunpack.c.l.b16 %v7970
    %v8288 = vunpack.c.h.b16 %v7970
    %v8289 = vunpack.c.l.b16 %v7971
    %v8290 = vunpack.c.h.b16 %v7971
    %v8291 = vunpack.c.l.b16 %v7972
    %v8292 = vunpack.c.h.b16 %v7972
    %v8293 = vunpack.c.l.b16 %v7973
    %v8294 = vunpack.c.h.b16 %v7973
    %v8295 = vunpack.c.l.b16 %v7974
    %v8296 = vunpack.c.h.b16 %v7974
    %v8297 = vunpack.c.l.b16 %v7975
    %v8298 = vunpack.c.h.b16 %v7975
    %v8299 = vunpack.c.l.b16 %v7976
    %v8300 = vunpack.c.h.b16 %v7976
    %v8301 = vunpack.c.l.b16 %v7977
    %v8302 = vunpack.c.h.b16 %v7977
    %v8303 = vunpack.c.l.b16 %v7978
    %v8304 = vunpack.c.h.b16 %v7978
    %v8305 = vunpack.c.l.b16 %v7979
    %v8306 = vunpack.c.h.b16 %v7979
    %v8307 = vunpack.c.l.b16 %v7980
    %v8308 = vunpack.c.h.b16 %v7980
    %v8309 = vunpack.c.l.b16 %v7981
    %v8310 = vunpack.c.h.b16 %v7981
    %v8311 = vunpack.c.l.b16 %v7982
    %v8312 = vunpack.c.h.b16 %v7982
    %v8313 = vunpack.c.l.b16 %v7983
    %v8314 = vunpack.c.h.b16 %v7983
    %v8315 = vunpack.c.l.b16 %v7984
    %v8316 = vunpack.c.h.b16 %v7984
    %v8317 = vunpack.c.l.b16 %v7985
    %v8318 = vunpack.c.h.b16 %v7985
    %v8319 = vunpack.c.l.b16 %v7986
    %v8320 = vunpack.c.h.b16 %v7986
    %v8321 = vunpack.c.l.b16 %v7987
    %v8322 = vunpack.c.h.b16 %v7987
    %v8323 = vunpack.c.l.b16 %v7988
    %v8324 = vunpack.c.h.b16 %v7988
    %v8325 = vunpack.c.l.b16 %v7989
    %v8326 = vunpack.c.h.b16 %v7989
    %v8327 = vunpack.c.l.b16 %v7990
    %v8328 = vunpack.c.h.b16 %v7990
    %v8329 = vunpack.c.l.b16 %v7991
    %v8330 = vunpack.c.h.b16 %v7991
    %v8331 = vunpack.c.l.b16 %v7992
    %v8332 = vunpack.c.h.b16 %v7992
    %v8333 = vunpack.c.l.b16 %v7993
    %v8334 = vunpack.c.h.b16 %v7993
    %v8335 = vunpack.c.l.b16 %v7994
    %v8336 = vunpack.c.h.b16 %v7994
    %v8337 = vunpack.c.l.b16 %v7995
    %v8338 = vunpack.c.h.b16 %v7995
    %v8339 = vunpack.c.l.b16 %v7996
    %v8340 = vunpack.c.h.b16 %v7996
    %v8341 = vunpack.c.l.b16 %v7997
    %v8342 = vunpack.c.h.b16 %v7997
    %v8343 = vunpack.c.l.b16 %v7998
    %v8344 = vunpack.c.h.b16 %v7998
    %v8345 = vunpack.c.l.b16 %v7999
    %v8346 = vunpack.c.h.b16 %v7999
    %v8347 = vunpack.c.l.b16 %v8000
    %v8348 = vunpack.c.h.b16 %v8000
    %v8349 = vunpack.c.l.b16 %v8001
    %v8350 = vunpack.c.h.b16 %v8001
    %v8351 = vunpack.c.l.b16 %v8002
    %v8352 = vunpack.c.h.b16 %v8002
    %v8353 = vunpack.c.l.b16 %v8003
    %v8354 = vunpack.c.h.b16 %v8003
    %v8355 = vunpack.c.l.b16 %v8004
    %v8356 = vunpack.c.h.b16 %v8004
    %v8357 = vunpack.c.l.b16 %v8005
    %v8358 = vunpack.c.h.b16 %v8005
    %v8359 = vunpack.c.l.b16 %v8006
    %v8360 = vunpack.c.h.b16 %v8006
    %v8361 = vunpack.c.l.b16 %v8007
    %v8362 = vunpack.c.h.b16 %v8007
    %v8363 = vunpack.c.l.b16 %v8008
    %v8364 = vunpack.c.h.b16 %v8008
    %v8365 = vunpack.c.l.b16 %v8009
    %v8366 = vunpack.c.h.b16 %v8009
    %v8367 = vunpack.c.l.b16 %v8010
    %v8368 = vunpack.c.h.b16 %v8010
    %v8369 = vunpack.c.l.b16 %v8011
    %v8370 = vunpack.c.h.b16 %v8011
    %v8371 = vunpack.c.l.b16 %v8012
    %v8372 = vunpack.c.h.b16 %v8012
    %v8373 = vunpack.c.l.b16 %v8013
    %v8374 = vunpack.c.h.b16 %v8013
    %v8375 = vunpack.c.l.b16 %v8014
    %v8376 = vunpack.c.h.b16 %v8014
    %v8377 = vunpack.c.l.b16 %v8015
    %v8378 = vunpack.c.h.b16 %v8015
    %v8379 = vunpack.c.l.b16 %v8016
    %v8380 = vunpack.c.h.b16 %v8016
    %v8381 = vunpack.c.l.b16 %v8017
    %v8382 = vunpack.c.h.b16 %v8017
    %v8383 = vunpack.c.l.b16 %v8018
    %v8384 = vunpack.c.h.b16 %v8018
    %v8385 = vunpack.c.l.b16 %v8019
    %v8386 = vunpack.c.h.b16 %v8019
    %v8387 = vunpack.c.l.b16 %v8020
    %v8388 = vunpack.c.h.b16 %v8020
    %v8389 = vunpack.c.l.b16 %v8021
    %v8390 = vunpack.c.h.b16 %v8021
    %v8391 = vunpack.c.l.b16 %v8022
    %v8392 = vunpack.c.h.b16 %v8022
    %v8393 = vunpack.c.l.b16 %v8023
    %v8394 = vunpack.c.h.b16 %v8023
    %v8395 = vunpack.c.l.b16 %v8024
    %v8396 = vunpack.c.h.b16 %v8024
    %v8397 = vunpack.c.l.b16 %v8025
    %v8398 = vunpack.c.h.b16 %v8025
    %v8399 = vunpack.c.l.b16 %v8026
    %v8400 = vunpack.c.h.b16 %v8026
    %v8401 = vunpack.c.l.b16 %v8027
    %v8402 = vunpack.c.h.b16 %v8027
    %v8403 = vunpack.c.l.b16 %v8028
    %v8404 = vunpack.c.h.b16 %v8028
    %v8405 = vunpack.c.l.b16 %v8029
    %v8406 = vunpack.c.h.b16 %v8029
    %v8407 = vunpack.c.l.b16 %v8030
    %v8408 = vunpack.c.h.b16 %v8030
    %v8409 = vunpack.c.l.b16 %v8031
    %v8410 = vunpack.c.h.b16 %v8031
    %v8411 = vunpack.c.l.b16 %v8032
    %v8412 = vunpack.c.h.b16 %v8032
    %v8413 = vunpack.c.l.b16 %v8033
    %v8414 = vunpack.c.h.b16 %v8033
    %v8415 = vunpack.c.l.b16 %v8034
    %v8416 = vunpack.c.h.b16 %v8034
    %v8417 = vunpack.c.l.b16 %v8035
    %v8418 = vunpack.c.h.b16 %v8035
    %v8419 = vunpack.c.l.b16 %v8036
    %v8420 = vunpack.c.h.b16 %v8036
    %v8421 = vpack.c.b16 %v8173, %v8165
    %v8422 = vpack.c.b16 %v8174, %v8166
    %v8423 = vpack.c.b16 %v8175, %v8167
    %v8424 = vpack.c.b16 %v8176, %v8168
    %v8425 = vpack.c.b16 %v8177, %v8169
    %v8426 = vpack.c.b16 %v8178, %v8170
    %v8427 = vpack.c.b16 %v8179, %v8171
    %v8428 = vpack.c.b16 %v8180, %v8172
    %v8429 = vpack.c.b16 %v8189, %v8181
    %v8430 = vpack.c.b16 %v8190, %v8182
    %v8431 = vpack.c.b16 %v8191, %v8183
    %v8432 = vpack.c.b16 %v8192, %v8184
    %v8433 = vpack.c.b16 %v8193, %v8185
    %v8434 = vpack.c.b16 %v8194, %v8186
    %v8435 = vpack.c.b16 %v8195, %v8187
    %v8436 = vpack.c.b16 %v8196, %v8188
    %v8437 = vpack.c.b16 %v8205, %v8197
    %v8438 = vpack.c.b16 %v8206, %v8198
    %v8439 = vpack.c.b16 %v8207, %v8199
    %v8440 = vpack.c.b16 %v8208, %v8200
    %v8441 = vpack.c.b16 %v8209, %v8201
    %v8442 = vpack.c.b16 %v8210, %v8202
    %v8443 = vpack.c.b16 %v8211, %v8203
    %v8444 = vpack.c.b16 %v8212, %v8204
    %v8445 = vpack.c.b16 %v8221, %v8213
    %v8446 = vpack.c.b16 %v8222, %v8214
    %v8447 = vpack.c.b16 %v8223, %v8215
    %v8448 = vpack.c.b16 %v8224, %v8216
    %v8449 = vpack.c.b16 %v8225, %v8217
    %v8450 = vpack.c.b16 %v8226, %v8218
    %v8451 = vpack.c.b16 %v8227, %v8219
    %v8452 = vpack.c.b16 %v8228, %v8220
    %v8453 = vpack.c.b16 %v8237, %v8229
    %v8454 = vpack.c.b16 %v8238, %v8230
    %v8455 = vpack.c.b16 %v8239, %v8231
    %v8456 = vpack.c.b16 %v8240, %v8232
    %v8457 = vpack.c.b16 %v8241, %v8233
    %v8458 = vpack.c.b16 %v8242, %v8234
    %v8459 = vpack.c.b16 %v8243, %v8235
    %v8460 = vpack.c.b16 %v8244, %v8236
    %v8461 = vpack.c.b16 %v8253, %v8245
    %v8462 = vpack.c.b16 %v8254, %v8246
    %v8463 = vpack.c.b16 %v8255, %v8247
    %v8464 = vpack.c.b16 %v8256, %v8248
    %v8465 = vpack.c.b16 %v8257, %v8249
    %v8466 = vpack.c.b16 %v8258, %v8250
    %v8467 = vpack.c.b16 %v8259, %v8251
    %v8468 = vpack.c.b16 %v8260, %v8252
    %v8469 = vpack.c.b16 %v8269, %v8261
    %v8470 = vpack.c.b16 %v8270, %v8262
    %v8471 = vpack.c.b16 %v8271, %v8263
    %v8472 = vpack.c.b16 %v8272, %v8264
    %v8473 = vpack.c.b16 %v8273, %v8265
    %v8474 = vpack.c.b16 %v8274, %v8266
    %v8475 = vpack.c.b16 %v8275, %v8267
    %v8476 = vpack.c.b16 %v8276, %v8268
    %v8477 = vpack.c.b16 %v8285, %v8277
    %v8478 = vpack.c.b16 %v8286, %v8278
    %v8479 = vpack.c.b16 %v8287, %v8279
    %v8480 = vpack.c.b16 %v8288, %v8280
    %v8481 = vpack.c.b16 %v8289, %v8281
    %v8482 = vpack.c.b16 %v8290, %v8282
    %v8483 = vpack.c.b16 %v8291, %v8283
    %v8484 = vpack.c.b16 %v8292, %v8284
    %v8485 = vpack.c.b16 %v8301, %v8293
    %v8486 = vpack.c.b16 %v8302, %v8294
    %v8487 = vpack.c.b16 %v8303, %v8295
    %v8488 = vpack.c.b16 %v8304, %v8296
    %v8489 = vpack.c.b16 %v8305, %v8297
    %v8490 = vpack.c.b16 %v8306, %v8298
    %v8491 = vpack.c.b16 %v8307, %v8299
    %v8492 = vpack.c.b16 %v8308, %v8300
    %v8493 = vpack.c.b16 %v8317, %v8309
    %v8494 = vpack.c.b16 %v8318, %v8310
    %v8495 = vpack.c.b16 %v8319, %v8311
    %v8496 = vpack.c.b16 %v8320, %v8312
    %v8497 = vpack.c.b16 %v8321, %v8313
    %v8498 = vpack.c.b16 %v8322, %v8314
    %v8499 = vpack.c.b16 %v8323, %v8315
    %v8500 = vpack.c.b16 %v8324, %v8316
    %v8501 = vpack.c.b16 %v8333, %v8325
    %v8502 = vpack.c.b16 %v8334, %v8326
    %v8503 = vpack.c.b16 %v8335, %v8327
    %v8504 = vpack.c.b16 %v8336, %v8328
    %v8505 = vpack.c.b16 %v8337, %v8329
    %v8506 = vpack.c.b16 %v8338, %v8330
    %v8507 = vpack.c.b16 %v8339, %v8331
    %v8508 = vpack.c.b16 %v8340, %v8332
    %v8509 = vpack.c.b16 %v8349, %v8341
    %v8510 = vpack.c.b16 %v8350, %v8342
    %v8511 = vpack.c.b16 %v8351, %v8343
    %v8512 = vpack.c.b16 %v8352, %v8344
    %v8513 = vpack.c.b16 %v8353, %v8345
    %v8514 = vpack.c.b16 %v8354, %v8346
    %v8515 = vpack.c.b16 %v8355, %v8347
    %v8516 = vpack.c.b16 %v8356, %v8348
    %v8517 = vpack.c.b16 %v8365, %v8357
    %v8518 = vpack.c.b16 %v8366, %v8358
    %v8519 = vpack.c.b16 %v8367, %v8359
    %v8520 = vpack.c.b16 %v8368, %v8360
    %v8521 = vpack.c.b16 %v8369, %v8361
    %v8522 = vpack.c.b16 %v8370, %v8362
    %v8523 = vpack.c.b16 %v8371, %v8363
    %v8524 = vpack.c.b16 %v8372, %v8364
    %v8525 = vpack.c.b16 %v8381, %v8373
    %v8526 = vpack.c.b16 %v8382, %v8374
    %v8527 = vpack.c.b16 %v8383, %v8375
    %v8528 = vpack.c.b16 %v8384, %v8376
    %v8529 = vpack.c.b16 %v8385, %v8377
    %v8530 = vpack.c.b16 %v8386, %v8378
    %v8531 = vpack.c.b16 %v8387, %v8379
    %v8532 = vpack.c.b16 %v8388, %v8380
    %v8533 = vpack.c.b16 %v8397, %v8389
    %v8534 = vpack.c.b16 %v8398, %v8390
    %v8535 = vpack.c.b16 %v8399, %v8391
    %v8536 = vpack.c.b16 %v8400, %v8392
    %v8537 = vpack.c.b16 %v8401, %v8393
    %v8538 = vpack.c.b16 %v8402, %v8394
    %v8539 = vpack.c.b16 %v8403, %v8395
    %v8540 = vpack.c.b16 %v8404, %v8396
    %v8541 = vpack.c.b16 %v8413, %v8405
    %v8542 = vpack.c.b16 %v8414, %v8406
    %v8543 = vpack.c.b16 %v8415, %v8407
    %v8544 = vpack.c.b16 %v8416, %v8408
    %v8545 = vpack.c.b16 %v8417, %v8409
    %v8546 = vpack.c.b16 %v8418, %v8410
    %v8547 = vpack.c.b16 %v8419, %v8411
    %v8548 = vpack.c.b16 %v8420, %v8412
    %8677 = vmatprep.subr.bf16.mxu0 %v8422
    %8678 = vmatpush1.bf16.msra.mxu0 %v8421
    %8679 = vmatprep.subr.bf16.mxu0 %v8430
    %8680 = vmatpush1.bf16.msra.mxu0 %v8429
    %8681 = vmatprep.subr.bf16.mxu0 %v8438
    %8682 = vmatpush1.bf16.msra.mxu0 %v8437
    %8683 = vmatprep.subr.bf16.mxu0 %v8446
    %8684 = vmatpush1.bf16.msra.mxu0 %v8445
    %8685 = vmatprep.subr.bf16.mxu0 %v8454
    %8686 = vmatpush1.bf16.msra.mxu0 %v8453
    %8687 = vmatprep.subr.bf16.mxu0 %v8462
    %8688 = vmatpush1.bf16.msra.mxu0 %v8461
    %8689 = vmatprep.subr.bf16.mxu0 %v8470
    %8690 = vmatpush1.bf16.msra.mxu0 %v8469
    %8691 = vmatprep.subr.bf16.mxu0 %v8478
    %8692 = vmatpush1.bf16.msra.mxu0 %v8477
    %8693 = vmatprep.subr.bf16.mxu0 %v8486
    %8694 = vmatpush1.bf16.msra.mxu0 %v8485
    %8695 = vmatprep.subr.bf16.mxu0 %v8494
    %8696 = vmatpush1.bf16.msra.mxu0 %v8493
    %8697 = vmatprep.subr.bf16.mxu0 %v8502
    %8698 = vmatpush1.bf16.msra.mxu0 %v8501
    %8699 = vmatprep.subr.bf16.mxu0 %v8510
    %8700 = vmatpush1.bf16.msra.mxu0 %v8509
    %8701 = vmatprep.subr.bf16.mxu0 %v8518
    %8702 = vmatpush1.bf16.msra.mxu0 %v8517
    %8703 = vmatprep.subr.bf16.mxu0 %v8526
    %8704 = vmatpush1.bf16.msra.mxu0 %v8525
    %8705 = vmatprep.subr.bf16.mxu0 %v8534
    %8706 = vmatpush1.bf16.msra.mxu0 %v8533
    %8707 = vmatprep.subr.bf16.mxu0 %v8542
    %8708 = vmatpush1.bf16.msra.mxu0 %v8541
    %8709 = vmatprep.mubr.bf16.mxu0 %v7906
    %8710 = vmatmul.mubr.bf16.gmra.mrb[0].mxu0 %v7903
    %v8711 = vpop.f32.mrb[0].mxu0
    %v8712 = vadd.f32 0.0, %v8711
    %v8713 = vpop.f32.mrb[0].mxu0
    %v8714 = vadd.f32 0.0, %v8713
    %v8715 = vpop.f32.mrb[0].mxu0
    %v8716 = vpop.f32.mrb[0].mxu0
    %8717 = vdwg.mxu0
    %8718 = vmatprep.subr.bf16.mxu0 %v8424
    %8719 = vmatpush1.bf16.msra.mxu0 %v8423
    %8720 = vmatprep.subr.bf16.mxu0 %v8432
    %8721 = vmatpush1.bf16.msra.mxu0 %v8431
    %8722 = vmatprep.subr.bf16.mxu0 %v8440
    %8723 = vmatpush1.bf16.msra.mxu0 %v8439
    %8724 = vmatprep.subr.bf16.mxu0 %v8448
    %8725 = vmatpush1.bf16.msra.mxu0 %v8447
    %8726 = vmatprep.subr.bf16.mxu0 %v8456
    %8727 = vmatpush1.bf16.msra.mxu0 %v8455
    %8728 = vmatprep.subr.bf16.mxu0 %v8464
    %8729 = vmatpush1.bf16.msra.mxu0 %v8463
    %8730 = vmatprep.subr.bf16.mxu0 %v8472
    %8731 = vmatpush1.bf16.msra.mxu0 %v8471
    %8732 = vmatprep.subr.bf16.mxu0 %v8480
    %8733 = vmatpush1.bf16.msra.mxu0 %v8479
    %8734 = vmatprep.subr.bf16.mxu0 %v8488
    %8735 = vmatpush1.bf16.msra.mxu0 %v8487
    %8736 = vmatprep.subr.bf16.mxu0 %v8496
    %8737 = vmatpush1.bf16.msra.mxu0 %v8495
    %8738 = vmatprep.subr.bf16.mxu0 %v8504
    %8739 = vmatpush1.bf16.msra.mxu0 %v8503
    %8740 = vmatprep.subr.bf16.mxu0 %v8512
    %8741 = vmatpush1.bf16.msra.mxu0 %v8511
    %8742 = vmatprep.subr.bf16.mxu0 %v8520
    %8743 = vmatpush1.bf16.msra.mxu0 %v8519
    %8744 = vmatprep.subr.bf16.mxu0 %v8528
    %8745 = vmatpush1.bf16.msra.mxu0 %v8527
    %8746 = vmatprep.subr.bf16.mxu0 %v8536
    %8747 = vmatpush1.bf16.msra.mxu0 %v8535
    %8748 = vmatprep.subr.bf16.mxu0 %v8544
    %8749 = vmatpush1.bf16.msra.mxu0 %v8543
    %8750 = vmatprep.mubr.bf16.mxu0 %v7906
    %8751 = vmatmul.mubr.bf16.gmra.mrb[0].mxu0 %v7903
    %v8752 = vpop.f32.mrb[0].mxu0
    %v8753 = vadd.f32 0.0, %v8752
    %v8754 = vpop.f32.mrb[0].mxu0
    %v8755 = vadd.f32 0.0, %v8754
    %v8756 = vpop.f32.mrb[0].mxu0
    %v8757 = vpop.f32.mrb[0].mxu0
    %8758 = vdwg.mxu0
    %8759 = vmatprep.subr.bf16.mxu0 %v8426
    %8760 = vmatpush1.bf16.msra.mxu0 %v8425
    %8761 = vmatprep.subr.bf16.mxu0 %v8434
    %8762 = vmatpush1.bf16.msra.mxu0 %v8433
    %8763 = vmatprep.subr.bf16.mxu0 %v8442
    %8764 = vmatpush1.bf16.msra.mxu0 %v8441
    %8765 = vmatprep.subr.bf16.mxu0 %v8450
    %8766 = vmatpush1.bf16.msra.mxu0 %v8449
    %8767 = vmatprep.subr.bf16.mxu0 %v8458
    %8768 = vmatpush1.bf16.msra.mxu0 %v8457
    %8769 = vmatprep.subr.bf16.mxu0 %v8466
    %8770 = vmatpush1.bf16.msra.mxu0 %v8465
    %8771 = vmatprep.subr.bf16.mxu0 %v8474
    %8772 = vmatpush1.bf16.msra.mxu0 %v8473
    %8773 = vmatprep.subr.bf16.mxu0 %v8482
    %8774 = vmatpush1.bf16.msra.mxu0 %v8481
    %8775 = vmatprep.subr.bf16.mxu0 %v8490
    %8776 = vmatpush1.bf16.msra.mxu0 %v8489
    %8777 = vmatprep.subr.bf16.mxu0 %v8498
    %8778 = vmatpush1.bf16.msra.mxu0 %v8497
    %8779 = vmatprep.subr.bf16.mxu0 %v8506
    %8780 = vmatpush1.bf16.msra.mxu0 %v8505
    %8781 = vmatprep.subr.bf16.mxu0 %v8514
    %8782 = vmatpush1.bf16.msra.mxu0 %v8513
    %8783 = vmatprep.subr.bf16.mxu0 %v8522
    %8784 = vmatpush1.bf16.msra.mxu0 %v8521
    %8785 = vmatprep.subr.bf16.mxu0 %v8530
    %8786 = vmatpush1.bf16.msra.mxu0 %v8529
    %8787 = vmatprep.subr.bf16.mxu0 %v8538
    %8788 = vmatpush1.bf16.msra.mxu0 %v8537
    %8789 = vmatprep.subr.bf16.mxu0 %v8546
    %8790 = vmatpush1.bf16.msra.mxu0 %v8545
    %8791 = vmatprep.mubr.bf16.mxu0 %v7906
    %8792 = vmatmul.mubr.bf16.gmra.mrb[0].mxu0 %v7903
    %v8793 = vpop.f32.mrb[0].mxu0
    %v8794 = vadd.f32 0.0, %v8793
    %v8795 = vpop.f32.mrb[0].mxu0
    %v8796 = vadd.f32 0.0, %v8795
    %v8797 = vpop.f32.mrb[0].mxu0
    %v8798 = vpop.f32.mrb[0].mxu0
    %8799 = vdwg.mxu0
    %8800 = vmatprep.subr.bf16.mxu0 %v8428
    %8801 = vmatpush1.bf16.msra.mxu0 %v8427
    %8802 = vmatprep.subr.bf16.mxu0 %v8436
    %8803 = vmatpush1.bf16.msra.mxu0 %v8435
    %8804 = vmatprep.subr.bf16.mxu0 %v8444
    %8805 = vmatpush1.bf16.msra.mxu0 %v8443
    %8806 = vmatprep.subr.bf16.mxu0 %v8452
    %8807 = vmatpush1.bf16.msra.mxu0 %v8451
    %8808 = vmatprep.subr.bf16.mxu0 %v8460
    %8809 = vmatpush1.bf16.msra.mxu0 %v8459
    %8810 = vmatprep.subr.bf16.mxu0 %v8468
    %8811 = vmatpush1.bf16.msra.mxu0 %v8467
    %8812 = vmatprep.subr.bf16.mxu0 %v8476
    %8813 = vmatpush1.bf16.msra.mxu0 %v8475
    %8814 = vmatprep.subr.bf16.mxu0 %v8484
    %8815 = vmatpush1.bf16.msra.mxu0 %v8483
    %8816 = vmatprep.subr.bf16.mxu0 %v8492
    %8817 = vmatpush1.bf16.msra.mxu0 %v8491
    %8818 = vmatprep.subr.bf16.mxu0 %v8500
    %8819 = vmatpush1.bf16.msra.mxu0 %v8499
    %8820 = vmatprep.subr.bf16.mxu0 %v8508
    %8821 = vmatpush1.bf16.msra.mxu0 %v8507
    %8822 = vmatprep.subr.bf16.mxu0 %v8516
    %8823 = vmatpush1.bf16.msra.mxu0 %v8515
    %8824 = vmatprep.subr.bf16.mxu0 %v8524
    %8825 = vmatpush1.bf16.msra.mxu0 %v8523
    %8826 = vmatprep.subr.bf16.mxu0 %v8532
    %8827 = vmatpush1.bf16.msra.mxu0 %v8531
    %8828 = vmatprep.subr.bf16.mxu0 %v8540
    %8829 = vmatpush1.bf16.msra.mxu0 %v8539
    %8830 = vmatprep.subr.bf16.mxu0 %v8548
    %8831 = vmatpush1.bf16.msra.mxu0 %v8547
    %8832 = vmatprep.mubr.bf16.mxu0 %v7906
    %8833 = vmatmul.mubr.bf16.gmra.mrb[0].mxu0 %v7903
    %v8834 = vpop.f32.mrb[0].mxu0
    %v8835 = vadd.f32 0.0, %v8834
    %v8836 = vpop.f32.mrb[0].mxu0
    %v8837 = vadd.f32 0.0, %v8836
    %v8838 = vpop.f32.mrb[0].mxu0
    %v8839 = vpop.f32.mrb[0].mxu0
    %8840 = vdwg.mxu0
    %s8841 = scalar_lea.vmem [#allocation2], 112
    %v8842 = vld [vmem:[%s8841] sm:$0xff]
    %v8843 = vld [vmem:[%s8841 + $0x8] sm:$0xff]
    %v8844 = vunpack.c.l.bf16 %v8842
    %v8845 = vunpack.c.h.bf16 %v8842
    %v8846 = vunpack.c.l.bf16 %v8843
    %v8847 = vunpack.c.h.bf16 %v8843
    %v8848 = vadd.f32 %v8712, %v8844
    %v8849 = vadd.f32 %v8714, %v8845
    %v8850 = vadd.f32 %v8753, %v8846
    %v8851 = vadd.f32 %v8755, %v8847
    %v8852 = vld [vmem:[#allocation3] sm:$0xff]
    %v8853 = vld [vmem:[#allocation3 + $0x8] sm:$0xff]
    %v8854 = vunpack.c.l.bf16 %v8852
    %v8855 = vunpack.c.h.bf16 %v8852
    %v8856 = vunpack.c.l.bf16 %v8853
    %v8857 = vunpack.c.h.bf16 %v8853
    %v8858 = vadd.f32 %v8794, %v8854
    %v8859 = vadd.f32 %v8796, %v8855
    %v8860 = vadd.f32 %v8835, %v8856
    %v8861 = vadd.f32 %v8837, %v8857
    %v8862 = vxor.u32 %v8848, 2147483648
    %v8863 = vmul.f32 %v8862, 1.442695
    %v8864 = vpow.pop %v8863
    %v8865 = vadd.f32 %v8864, 1.0
    %v8866 = vrcp.pop %v8865
    %v8867 = vmul.f32 1.0, %v8866
    %v8868 = vxor.u32 %v8849, 2147483648
    %v8869 = vmul.f32 %v8868, 1.442695
    %v8870 = vpow.pop %v8869
    %v8871 = vadd.f32 %v8870, 1.0
    %v8872 = vrcp.pop %v8871
    %v8873 = vmul.f32 1.0, %v8872
    %v8874 = vtanh.pop %v8850
    %v8875 = vxor.u32 %v8851, 2147483648
    %v8876 = vmul.f32 %v8875, 1.442695
    %v8877 = vpow.pop %v8876
    %v8878 = vadd.f32 %v8877, 1.0
    %v8879 = vrcp.pop %v8878
    %v8880 = vmul.f32 1.0, %v8879
    %v8881 = vmul.f32 %v8873, %v7876
    %v8882 = vmul.f32 %v8867, %v8874
    %v8883 = vadd.f32 %v8881, %v8882
    %v8884 = vtanh.pop %v8883
    %v8885 = vmul.f32 %v8880, %v8884
    %v8886 = vxor.u32 %v8858, 2147483648
    %v8887 = vmul.f32 %v8886, 1.442695
    %v8888 = vpow.pop %v8887
    %v8889 = vadd.f32 %v8888, 1.0
    %v8890 = vrcp.pop %v8889
    %v8891 = vmul.f32 1.0, %v8890
    %v8892 = vxor.u32 %v8859, 2147483648
    %v8893 = vmul.f32 %v8892, 1.442695
    %v8894 = vpow.pop %v8893
    %v8895 = vadd.f32 %v8894, 1.0
    %v8896 = vrcp.pop %v8895
    %v8897 = vmul.f32 1.0, %v8896
    %v8898 = vtanh.pop %v8860
    %v8899 = vxor.u32 %v8861, 2147483648
    %v8900 = vmul.f32 %v8899, 1.442695
    %v8901 = vpow.pop %v8900
    %v8902 = vadd.f32 %v8901, 1.0
    %v8903 = vrcp.pop %v8902
    %v8904 = vmul.f32 1.0, %v8903
    %v8905 = vmul.f32 %v8897, %v7900
    %v8906 = vmul.f32 %v8891, %v8898
    %v8907 = vadd.f32 %v8905, %v8906
    %v8908 = vtanh.pop %v8907
    %v8909 = vmul.f32 %v8904, %v8908
    %v8910 = vpack.c.bf16 %v8885, %v8885
    %s8911 = scalar_lea.vmem [#allocation4], 28
    %8912 = vst [vmem:[%s8911] sm:$0xf] %v8910
    %v8913 = vpack.c.bf16 %v8909, %v8909
    %8914 = vst [vmem:[#allocation5] sm:$0xf] %v8913
    %v8915 = vld [vmem:[#allocation4] sm:$0xf]
    %v8916 = vld [vmem:[#allocation4 + $0x4] sm:$0xf]
    %v8917 = vld [vmem:[#allocation4 + $0x8] sm:$0xf]
    %v8918 = vld [vmem:[#allocation4 + $0xc] sm:$0xf]
    %v8919 = vld [vmem:[#allocation4 + $0x10] sm:$0xf]
    %v8920 = vld [vmem:[#allocation4 + $0x14] sm:$0xf]
    %v8921 = vld [vmem:[#allocation4 + $0x18] sm:$0xf]
    %v8922 = vld [vmem:[#allocation4 + $0x1c] sm:$0xf]
    %v8923 = vld [vmem:[#allocation5] sm:$0xf]
    %v8924 = vld [vmem:[#allocation5 + $0x4] sm:$0xf]
    %v8925 = vld [vmem:[#allocation5 + $0x8] sm:$0xf]
    %v8926 = vld [vmem:[#allocation5 + $0xc] sm:$0xf]
    %v8927 = vld [vmem:[#allocation5 + $0x10] sm:$0xf]
    %v8928 = vld [vmem:[#allocation5 + $0x14] sm:$0xf]
    %v8929 = vld [vmem:[#allocation5 + $0x18] sm:$0xf]
    %v8930 = vld [vmem:[#allocation5 + $0x1c] sm:$0xf]
    %v8931 = vld [vmem:[#allocation12] sm:$0xf]
    %v8932 = vld [vmem:[#allocation12 + $0x4] sm:$0xf]
    %v8933 = vld [vmem:[#allocation12 + $0x8] sm:$0xf]
    %v8934 = vld [vmem:[#allocation12 + $0xc] sm:$0xf]
    %v8935 = vld [vmem:[#allocation12 + $0x10] sm:$0xf]
    %v8936 = vld [vmem:[#allocation12 + $0x14] sm:$0xf]
    %v8937 = vld [vmem:[#allocation12 + $0x18] sm:$0xf]
    %v8938 = vld [vmem:[#allocation12 + $0x1c] sm:$0xf]
    %v8939 = vld [vmem:[#allocation12 + $0x20] sm:$0xf]
    %v8940 = vld [vmem:[#allocation12 + $0x24] sm:$0xf]
    %v8941 = vld [vmem:[#allocation12 + $0x28] sm:$0xf]
    %v8942 = vld [vmem:[#allocation12 + $0x2c] sm:$0xf]
    %v8943 = vld [vmem:[#allocation12 + $0x30] sm:$0xf]
    %v8944 = vld [vmem:[#allocation12 + $0x34] sm:$0xf]
    %v8945 = vld [vmem:[#allocation12 + $0x38] sm:$0xf]
    %v8946 = vld [vmem:[#allocation12 + $0x3c] sm:$0xf]
    %v8947 = vld [vmem:[#allocation14] sm:$0xf]
    %v8948 = vld [vmem:[#allocation14 + $0x4] sm:$0xf]
    %v8949 = vld [vmem:[#allocation14 + $0x8] sm:$0xf]
    %v8950 = vld [vmem:[#allocation14 + $0xc] sm:$0xf]
    %v8951 = vld [vmem:[#allocation14 + $0x10] sm:$0xf]
    %v8952 = vld [vmem:[#allocation14 + $0x14] sm:$0xf]
    %v8953 = vld [vmem:[#allocation14 + $0x18] sm:$0xf]
    %v8954 = vld [vmem:[#allocation14 + $0x1c] sm:$0xf]
    %v8955 = vld [vmem:[#allocation14 + $0x20] sm:$0xf]
    %v8956 = vld [vmem:[#allocation14 + $0x24] sm:$0xf]
    %v8957 = vld [vmem:[#allocation14 + $0x28] sm:$0xf]
    %v8958 = vld [vmem:[#allocation14 + $0x2c] sm:$0xf]
    %v8959 = vld [vmem:[#allocation14 + $0x30] sm:$0xf]
    %v8960 = vld [vmem:[#allocation14 + $0x34] sm:$0xf]
    %v8961 = vld [vmem:[#allocation14 + $0x38] sm:$0xf]
    %v8962 = vld [vmem:[#allocation14 + $0x3c] sm:$0xf]
    %v8971 = vunpack.c.l.b16 %v8923
    %v8972 = vunpack.c.l.b16 %v8924
    %v8973 = vunpack.c.l.b16 %v8925
    %v8974 = vunpack.c.l.b16 %v8926
    %v8975 = vunpack.c.l.b16 %v8927
    %v8976 = vunpack.c.l.b16 %v8928
    %v8977 = vunpack.c.l.b16 %v8929
    %v8978 = vunpack.c.l.b16 %v8930
    %v8979 = vpack.c.b16 %v8972, %v8971
    %v8980 = vpack.c.b16 %v8974, %v8973
    %v8981 = vpack.c.b16 %v8976, %v8975
    %v8982 = vpack.c.b16 %v8978, %v8977
    %v9003 = vunpack.c.l.b16 %v8947
    %v9004 = vunpack.c.l.b16 %v8948
    %v9005 = vunpack.c.l.b16 %v8949
    %v9006 = vunpack.c.l.b16 %v8950
    %v9007 = vunpack.c.l.b16 %v8951
    %v9008 = vunpack.c.l.b16 %v8952
    %v9009 = vunpack.c.l.b16 %v8953
    %v9010 = vunpack.c.l.b16 %v8954
    %v9011 = vunpack.c.l.b16 %v8955
    %v9012 = vunpack.c.l.b16 %v8956
    %v9013 = vunpack.c.l.b16 %v8957
    %v9014 = vunpack.c.l.b16 %v8958
    %v9015 = vunpack.c.l.b16 %v8959
    %v9016 = vunpack.c.l.b16 %v8960
    %v9017 = vunpack.c.l.b16 %v8961
    %v9018 = vunpack.c.l.b16 %v8962
    %v9019 = vpack.c.b16 %v9004, %v9003
    %v9020 = vpack.c.b16 %v9006, %v9005
    %v9021 = vpack.c.b16 %v9008, %v9007
    %v9022 = vpack.c.b16 %v9010, %v9009
    %v9023 = vpack.c.b16 %v9012, %v9011
    %v9024 = vpack.c.b16 %v9014, %v9013
    %v9025 = vpack.c.b16 %v9016, %v9015
    %v9026 = vpack.c.b16 %v9018, %v9017
    %9035 = vmatprep.subr.bf16.mxu0 0
    %9036 = vmatpush1.bf16.msra.mxu0 %v9019
    %9037 = vmatprep.subr.bf16.mxu0 0
    %9038 = vmatpush1.bf16.msra.mxu0 %v9020
    %9039 = vmatprep.subr.bf16.mxu0 0
    %9040 = vmatpush1.bf16.msra.mxu0 %v9021
    %9041 = vmatprep.subr.bf16.mxu0 0
    %9042 = vmatpush1.bf16.msra.mxu0 %v9022
    %9043 = vmatprep.subr.bf16.mxu0 0
    %9044 = vmatpush1.bf16.msra.mxu0 %v9023
    %9045 = vmatprep.subr.bf16.mxu0 0
    %9046 = vmatpush1.bf16.msra.mxu0 %v9024
    %9047 = vmatprep.subr.bf16.mxu0 0
    %9048 = vmatpush1.bf16.msra.mxu0 %v9025
    %9049 = vmatprep.subr.bf16.mxu0 0
    %9050 = vmatpush1.bf16.msra.mxu0 %v9026
    %9051 = vmatprep.subr.bf16.mxu0 0
    %9052 = vmatpush1.bf16.msra.mxu0 0
    %9053 = vmatprep.subr.bf16.mxu0 0
    %9054 = vmatpush1.bf16.msra.mxu0 0
    %9055 = vmatprep.subr.bf16.mxu0 0
    %9056 = vmatpush1.bf16.msra.mxu0 0
    %9057 = vmatprep.subr.bf16.mxu0 0
    %9058 = vmatpush1.bf16.msra.mxu0 0
    %9059 = vmatprep.subr.bf16.mxu0 0
    %9060 = vmatpush1.bf16.msra.mxu0 0
    %9061 = vmatprep.subr.bf16.mxu0 0
    %9062 = vmatpush1.bf16.msra.mxu0 0
    %9063 = vmatprep.subr.bf16.mxu0 0
    %9064 = vmatpush1.bf16.msra.mxu0 0
    %9065 = vmatprep.subr.bf16.mxu0 0
    %9066 = vmatpush1.bf16.msra.mxu0 0
    %9067 = vmatprep.mubr.bf16.mxu0 0
    %9068 = vmatmul.mubr.bf16.gmra.mrb[0].mxu0 %v8979
    %v9069 = vpop.f32.mrb[0].mxu0
    %v9070 = vadd.f32 0.0, %v9069
    %v9071 = vpop.f32.mrb[0].mxu0
    %v9072 = vpop.f32.mrb[0].mxu0
    %v9073 = vadd.f32 0.0, %v9072
    %v9074 = vpop.f32.mrb[0].mxu0
    %9075 = vmatprep.mubr.bf16.mxu0 0
    %9076 = vmatmul.mubr.bf16.gmra.mrb[0].mxu0 %v8980
    %v9077 = vpop.f32.mrb[0].mxu0
    %v9078 = vadd.f32 0.0, %v9077
    %v9079 = vpop.f32.mrb[0].mxu0
    %v9080 = vpop.f32.mrb[0].mxu0
    %v9081 = vadd.f32 0.0, %v9080
    %v9082 = vpop.f32.mrb[0].mxu0
    %9083 = vmatprep.mubr.bf16.mxu0 0
    %9084 = vmatmul.mubr.bf16.gmra.mrb[0].mxu0 %v8981
    %v9085 = vpop.f32.mrb[0].mxu0
    %v9086 = vadd.f32 0.0, %v9085
    %v9087 = vpop.f32.mrb[0].mxu0
    %v9088 = vpop.f32.mrb[0].mxu0
    %v9089 = vadd.f32 0.0, %v9088
    %v9090 = vpop.f32.mrb[0].mxu0
    %9091 = vmatprep.mubr.bf16.mxu0 0
    %9092 = vmatmul.mubr.bf16.gmra.mrb[0].mxu0 %v8982
    %v9093 = vpop.f32.mrb[0].mxu0
    %v9094 = vadd.f32 0.0, %v9093
    %v9095 = vpop.f32.mrb[0].mxu0
    %v9096 = vpop.f32.mrb[0].mxu0
    %v9097 = vadd.f32 0.0, %v9096
    %v9098 = vpop.f32.mrb[0].mxu0
    %9099 = vdwg.mxu0
    %v9108 = vunpack.c.l.b16 %v8915
    %v9109 = vunpack.c.l.b16 %v8916
    %v9110 = vunpack.c.l.b16 %v8917
    %v9111 = vunpack.c.l.b16 %v8918
    %v9112 = vunpack.c.l.b16 %v8919
    %v9113 = vunpack.c.l.b16 %v8920
    %v9114 = vunpack.c.l.b16 %v8921
    %v9115 = vunpack.c.l.b16 %v8922
    %v9116 = vpack.c.b16 %v9109, %v9108
    %v9117 = vpack.c.b16 %v9111, %v9110
    %v9118 = vpack.c.b16 %v9113, %v9112
    %v9119 = vpack.c.b16 %v9115, %v9114
    %v9140 = vunpack.c.l.b16 %v8931
    %v9141 = vunpack.c.l.b16 %v8932
    %v9142 = vunpack.c.l.b16 %v8933
    %v9143 = vunpack.c.l.b16 %v8934
    %v9144 = vunpack.c.l.b16 %v8935
    %v9145 = vunpack.c.l.b16 %v8936
    %v9146 = vunpack.c.l.b16 %v8937
    %v9147 = vunpack.c.l.b16 %v8938
    %v9148 = vunpack.c.l.b16 %v8939
    %v9149 = vunpack.c.l.b16 %v8940
    %v9150 = vunpack.c.l.b16 %v8941
    %v9151 = vunpack.c.l.b16 %v8942
    %v9152 = vunpack.c.l.b16 %v8943
    %v9153 = vunpack.c.l.b16 %v8944
    %v9154 = vunpack.c.l.b16 %v8945
    %v9155 = vunpack.c.l.b16 %v8946
    %v9156 = vpack.c.b16 %v9141, %v9140
    %v9157 = vpack.c.b16 %v9143, %v9142
    %v9158 = vpack.c.b16 %v9145, %v9144
    %v9159 = vpack.c.b16 %v9147, %v9146
    %v9160 = vpack.c.b16 %v9149, %v9148
    %v9161 = vpack.c.b16 %v9151, %v9150
    %v9162 = vpack.c.b16 %v9153, %v9152
    %v9163 = vpack.c.b16 %v9155, %v9154
    %9172 = vmatprep.subr.bf16.mxu0 0
    %9173 = vmatpush1.bf16.msra.mxu0 %v9156
    %9174 = vmatprep.subr.bf16.mxu0 0
    %9175 = vmatpush1.bf16.msra.mxu0 %v9157
    %9176 = vmatprep.subr.bf16.mxu0 0
    %9177 = vmatpush1.bf16.msra.mxu0 %v9158
    %9178 = vmatprep.subr.bf16.mxu0 0
    %9179 = vmatpush1.bf16.msra.mxu0 %v9159
    %9180 = vmatprep.subr.bf16.mxu0 0
    %9181 = vmatpush1.bf16.msra.mxu0 %v9160
    %9182 = vmatprep.subr.bf16.mxu0 0
    %9183 = vmatpush1.bf16.msra.mxu0 %v9161
    %9184 = vmatprep.subr.bf16.mxu0 0
    %9185 = vmatpush1.bf16.msra.mxu0 %v9162
    %9186 = vmatprep.subr.bf16.mxu0 0
    %9187 = vmatpush1.bf16.msra.mxu0 %v9163
    %9188 = vmatprep.subr.bf16.mxu0 0
    %9189 = vmatpush1.bf16.msra.mxu0 0
    %9190 = vmatprep.subr.bf16.mxu0 0
    %9191 = vmatpush1.bf16.msra.mxu0 0
    %9192 = vmatprep.subr.bf16.mxu0 0
    %9193 = vmatpush1.bf16.msra.mxu0 0
    %9194 = vmatprep.subr.bf16.mxu0 0
    %9195 = vmatpush1.bf16.msra.mxu0 0
    %9196 = vmatprep.subr.bf16.mxu0 0
    %9197 = vmatpush1.bf16.msra.mxu0 0
    %9198 = vmatprep.subr.bf16.mxu0 0
    %9199 = vmatpush1.bf16.msra.mxu0 0
    %9200 = vmatprep.subr.bf16.mxu0 0
    %9201 = vmatpush1.bf16.msra.mxu0 0
    %9202 = vmatprep.subr.bf16.mxu0 0
    %9203 = vmatpush1.bf16.msra.mxu0 0
    %9204 = vmatprep.mubr.bf16.mxu0 0
    %9205 = vmatmul.mubr.bf16.gmra.mrb[0].mxu0 %v9116
    %v9206 = vpop.f32.mrb[0].mxu0
    %v9207 = vadd.f32 %v9070, %v9206
    %v9208 = vpop.f32.mrb[0].mxu0
    %v9209 = vpop.f32.mrb[0].mxu0
    %v9210 = vadd.f32 %v9073, %v9209
    %v9211 = vpop.f32.mrb[0].mxu0
    %9212 = vmatprep.mubr.bf16.mxu0 0
    %9213 = vmatmul.mubr.bf16.gmra.mrb[0].mxu0 %v9117
    %v9214 = vpop.f32.mrb[0].mxu0
    %v9215 = vadd.f32 %v9078, %v9214
    %v9216 = vpop.f32.mrb[0].mxu0
    %v9217 = vpop.f32.mrb[0].mxu0
    %v9218 = vadd.f32 %v9081, %v9217
    %v9219 = vpop.f32.mrb[0].mxu0
    %9220 = vmatprep.mubr.bf16.mxu0 0
    %9221 = vmatmul.mubr.bf16.gmra.mrb[0].mxu0 %v9118
    %v9222 = vpop.f32.mrb[0].mxu0
    %v9223 = vadd.f32 %v9086, %v9222
    %v9224 = vpop.f32.mrb[0].mxu0
    %v9225 = vpop.f32.mrb[0].mxu0
    %v9226 = vadd.f32 %v9089, %v9225
    %v9227 = vpop.f32.mrb[0].mxu0
    %9228 = vmatprep.mubr.bf16.mxu0 0
    %9229 = vmatmul.mubr.bf16.gmra.mrb[0].mxu0 %v9119
    %v9230 = vpop.f32.mrb[0].mxu0
    %v9231 = vadd.f32 %v9094, %v9230
    %v9232 = vpop.f32.mrb[0].mxu0
    %v9233 = vpop.f32.mrb[0].mxu0
    %v9234 = vadd.f32 %v9097, %v9233
    %v9235 = vpop.f32.mrb[0].mxu0
    %9236 = vdwg.mxu0
    %v9237 = vld [vmem:[%s6] sm:$0x1]
    %v9239 = vlaneseq
    %v9240 = vshrl.u32 %v9239, 7
    %v9241 = vsub.s32 0, %v9240
    %v9242 = vrot.slane %v9237, %v9241
    %v9244 = vadd.f32 %v9207, %v9242
    %v9245 = vadd.f32 %v9210, %v9242
    %v9246 = vadd.f32 %v9215, %v9242
    %v9247 = vadd.f32 %v9218, %v9242
    %v9248 = vadd.f32 %v9223, %v9242
    %v9249 = vadd.f32 %v9226, %v9242
    %v9250 = vadd.f32 %v9231, %v9242
    %v9251 = vadd.f32 %v9234, %v9242
    %9252 = vmax.xlane.f32.xlu0 %v9244
    %v9253 = vpop.xlane.xlu0 %9252
    %9254 = vmax.xlane.f32.xlu0 %v9245
    %v9255 = vpop.xlane.xlu0 %9254
    %9256 = vmax.xlane.f32.xlu0 %v9246
    %v9257 = vpop.xlane.xlu0 %9256
    %9258 = vmax.xlane.f32.xlu0 %v9247
    %v9259 = vpop.xlane.xlu0 %9258
    %9260 = vmax.xlane.f32.xlu0 %v9248
    %v9261 = vpop.xlane.xlu0 %9260
    %9262 = vmax.xlane.f32.xlu0 %v9249
    %v9263 = vpop.xlane.xlu0 %9262
    %9264 = vmax.xlane.f32.xlu0 %v9250
    %v9265 = vpop.xlane.xlu0 %9264
    %9266 = vmax.xlane.f32.xlu0 %v9251
    %v9267 = vpop.xlane.xlu0 %9266
    %v9268 = vsub.f32 %v9244, %v9253
    %v9269 = vsub.f32 %v9245, %v9255
    %v9270 = vsub.f32 %v9246, %v9257
    %v9271 = vsub.f32 %v9247, %v9259
    %v9272 = vsub.f32 %v9248, %v9261
    %v9273 = vsub.f32 %v9249, %v9263
    %v9274 = vsub.f32 %v9250, %v9265
    %v9275 = vsub.f32 %v9251, %v9267
    %v9276 = vmul.f32 %v9268, 1.442695
    %v9277 = vpow.pop %v9276
    %v9278 = vmul.f32 %v9269, 1.442695
    %v9279 = vpow.pop %v9278
    %v9280 = vmul.f32 %v9270, 1.442695
    %v9281 = vpow.pop %v9280
    %v9282 = vmul.f32 %v9271, 1.442695
    %v9283 = vpow.pop %v9282
    %v9284 = vmul.f32 %v9272, 1.442695
    %v9285 = vpow.pop %v9284
    %v9286 = vmul.f32 %v9273, 1.442695
    %v9287 = vpow.pop %v9286
    %v9288 = vmul.f32 %v9274, 1.442695
    %v9289 = vpow.pop %v9288
    %v9290 = vmul.f32 %v9275, 1.442695
    %v9291 = vpow.pop %v9290
    %9292 = vadd.xlane.f32.xlu0 %v9277
    %v9293 = vpop.xlane.xlu0 %9292
    %9294 = vadd.xlane.f32.xlu0 %v9279
    %v9295 = vpop.xlane.xlu0 %9294
    %9296 = vadd.xlane.f32.xlu0 %v9281
    %v9297 = vpop.xlane.xlu0 %9296
    %9298 = vadd.xlane.f32.xlu0 %v9283
    %v9299 = vpop.xlane.xlu0 %9298
    %9300 = vadd.xlane.f32.xlu0 %v9285
    %v9301 = vpop.xlane.xlu0 %9300
    %9302 = vadd.xlane.f32.xlu0 %v9287
    %v9303 = vpop.xlane.xlu0 %9302
    %9304 = vadd.xlane.f32.xlu0 %v9289
    %v9305 = vpop.xlane.xlu0 %9304
    %9306 = vadd.xlane.f32.xlu0 %v9291
    %v9307 = vpop.xlane.xlu0 %9306
    %v9308 = vrcp.pop %v9293
    %v9309 = vmul.f32 %v9277, %v9308
    %v9310 = vrcp.pop %v9295
    %v9311 = vmul.f32 %v9279, %v9310
    %v9312 = vrcp.pop %v9297
    %v9313 = vmul.f32 %v9281, %v9312
    %v9314 = vrcp.pop %v9299
    %v9315 = vmul.f32 %v9283, %v9314
    %v9316 = vrcp.pop %v9301
    %v9317 = vmul.f32 %v9285, %v9316
    %v9318 = vrcp.pop %v9303
    %v9319 = vmul.f32 %v9287, %v9318
    %v9320 = vrcp.pop %v9305
    %v9321 = vmul.f32 %v9289, %v9320
    %v9322 = vrcp.pop %v9307
    %v9323 = vmul.f32 %v9291, %v9322
    %9324 = vst [vmem:[#allocation15] sm:$0xff] %v9309
    %9325 = vst [vmem:[#allocation15 + $0x8] sm:$0xff] %v9311
    %9326 = vst [vmem:[#allocation15 + $0x10] sm:$0xff] %v9313
    %9327 = vst [vmem:[#allocation15 + $0x18] sm:$0xff] %v9315
    %9328 = vst [vmem:[#allocation15 + $0x20] sm:$0xff] %v9317
    %9329 = vst [vmem:[#allocation15 + $0x28] sm:$0xff] %v9319
    %9330 = vst [vmem:[#allocation15 + $0x30] sm:$0xff] %v9321
    %9331 = vst [vmem:[#allocation15 + $0x38] sm:$0xff] %v9323
    // Predicated region
    $region50: #{tpu_custom_call.1} parent=1 // pred_check
      _
    $region51: #{tpu_custom_call.1} parent=1 // pred_check_branch
      %9333 = sbr.rel (0) target = $region53
    $region52: #{tpu_custom_call.1} parent=1 // pred_region
      %s9335 = ssub.s32 1024, 1024
      %9336 = vsyncadd [#allocation8], %s9335
      %s9337 = sshll.u32 [#allocation15], 4
      %s9338 = int_to_ptr.vmem [resolvable:$true] %s9337
      %9343 = dma.vmem_to_hbm [thread:$0]  %s9338, 1024, %s7, [#allocation8], 128, 128, 8
    $region53: #{tpu_custom_call.1} parent=1 // pred_fallthru
      _
    // Predicated region
    $region54: #{tpu_custom_call.1} parent=1 // pred_check
      _
    $region55: #{tpu_custom_call.1} parent=1 // pred_check_branch
      %9345 = sbr.rel (0) target = $region57
    $region56: #{tpu_custom_call.1} parent=1 // pred_region
      %9346 = dma.done [#allocation8], 1024
    $region57: #{tpu_custom_call.1} parent=1 // pred_fallthru
      _
    %9347 = vsyncpa [#allocation7], 1
    %9348 = vsyncpa [#allocation10], 1
    %9349 = vsyncpa [#allocation13], 1
    %9350 = vsyncpa [#allocation8], 1

</llo_original>
